<compile_context>
chip_gen: v7x
topology: tpu7x:2x2x1
jax: 0.10.0
libtpu: 0.0.40
codegen_flags: <defaults>
</compile_context>

<pallas_src>
import functools

import jax
import jax.numpy as jnp
from jax.experimental import pallas as pl
from jax.experimental.pallas import tpu as pltpu

# ----------------------------- config (small, synthetic) ---------------------
HIDDEN = 128          # base_model.config.hidden_size (scaled down)
VOCAB = 512           # base_model.config.vocab_size (scaled down)
NUM_HEADS = 4
HEAD_DIM = HIDDEN // NUM_HEADS
MLP = 4 * HIDDEN
NUM_LAYERS = 2
IMG = 16              # image spatial size
IMG_C = 3
PATCH = 8             # -> 4 image tokens
SEQ = 8               # text sequence length
STATE_DIM = 7         # config.state_dim
STATE_PAD = 8         # state padded once in glue to a sublane multiple
ACTION_DIM = 4        # config.action_dim
CHUNK_SIZE = 20       # config.chunk_size
B = 2

NEG_INF = -1e9
LN_EPS = 1e-5

BLOCK_PARAM_ORDER = ("ln1_g", "ln1_b", "w_qkv", "b_qkv", "w_o", "b_o",
                     "ln2_g", "ln2_b", "w_fc1", "b_fc1", "w_fc2", "b_fc2")


# ----------------------------- in-kernel helpers ------------------------------
def _ln(x, g, b, eps):
    """Row-wise layernorm on a (rows, H) f32 value; g/b are (1, H) f32."""
    mu = jnp.mean(x, axis=-1, keepdims=True)
    var = jnp.mean((x - mu) ** 2, axis=-1, keepdims=True)
    return (x - mu) * jax.lax.rsqrt(var + eps) * g + b


def _block_compute(x, bias, p, *, num_heads, head_dim, eps):
    """GPT-NeoX (Pythia) style parallel-residual block, pure value function.

    x: (B, T, H) f32; bias: (B, T, T) f32 additive (causal+padding) or None.
    p: dict of weight VALUES; matmul weights bf16, biases / LN params f32.
    """
    Bb, T, H = x.shape
    xf = x.reshape(Bb * T, H)
    scale = 1.0 / float(head_dim) ** 0.5

    # ---- attention branch: one fused QKV matmul (M=B*T, K=H, N=3H) ----
    ln1 = _ln(xf, p["ln1_g"], p["ln1_b"], eps)
    qkv = jnp.dot(ln1.astype(jnp.bfloat16), p["w_qkv"],
                  preferred_element_type=jnp.float32) + p["b_qkv"]   # (B*T, 3H)
    qkv = qkv.reshape(Bb, T, 3 * H)

    # TODO(synk): Pythia rotary position embeddings omitted; learned absolute
    # positional embeddings are added at the model level instead.
    head_outs = []
    for h in range(num_heads):                       # static unroll, NH=4
        q = qkv[..., h * head_dim:(h + 1) * head_dim]
        k = qkv[..., H + h * head_dim:H + (h + 1) * head_dim]
        v = qkv[..., 2 * H + h * head_dim:2 * H + (h + 1) * head_dim]
        s = jnp.einsum("bqd,bkd->bqk", q.astype(jnp.bfloat16),
                       k.astype(jnp.bfloat16),
                       preferred_element_type=jnp.float32) * scale
        if bias is not None:
            s = s + bias
        m = jnp.max(s, axis=-1, keepdims=True)
        e = jnp.exp(s - m)
        pr = e * pl.reciprocal(jnp.sum(e, axis=-1, keepdims=True), approx=True)
        head_outs.append(jnp.einsum("bqk,bkd->bqd", pr.astype(jnp.bfloat16),
                                    v.astype(jnp.bfloat16),
                                    preferred_element_type=jnp.float32))
    o = jnp.concatenate(head_outs, axis=-1).reshape(Bb * T, H)
    attn = jnp.dot(o.astype(jnp.bfloat16), p["w_o"],
                   preferred_element_type=jnp.float32) + p["b_o"]    # one (H,H)

    # ---- MLP branch (parallel residual) ----
    # TODO(synk): PyTorch nn.GELU defaults to exact erf; tanh approximation used.
    ln2 = _ln(xf, p["ln2_g"], p["ln2_b"], eps)
    hmid = jax.nn.gelu(jnp.dot(ln2.astype(jnp.bfloat16), p["w_fc1"],
                               preferred_element_type=jnp.float32) + p["b_fc1"],
                       approximate=True)
    mlp = jnp.dot(hmid.astype(jnp.bfloat16), p["w_fc2"],
                  preferred_element_type=jnp.float32) + p["b_fc2"]

    return x + (attn + mlp).reshape(Bb, T, H)


# ----------------------------- kernel 1: fused vision encoder ------------------
def _vision_kernel(patches_ref, pw_ref, pb_ref, pos_ref,
                   ln1g_ref, ln1b_ref, wqkv_ref, bqkv_ref, wo_ref, bo_ref,
                   ln2g_ref, ln2b_ref, wfc1_ref, bfc1_ref, wfc2_ref, bfc2_ref,
                   vlng_ref, vlnb_ref, projw_ref, projb_ref,
                   o_ref, *, nb, n_patches, num_heads, head_dim, eps):
    # patch embed: (B*P, Cpp) @ (Cpp, H)
    x = jnp.dot(patches_ref[...].astype(jnp.bfloat16), pw_ref[...],
                preferred_element_type=jnp.float32) + pb_ref[...]
    x = x.reshape(nb, n_patches, -1) + pos_ref[...][None]          # + pos emb
    blk = dict(ln1_g=ln1g_ref[...], ln1_b=ln1b_ref[...], w_qkv=wqkv_ref[...],
               b_qkv=bqkv_ref[...], w_o=wo_ref[...], b_o=bo_ref[...],
               ln2_g=ln2g_ref[...], ln2_b=ln2b_ref[...], w_fc1=wfc1_ref[...],
               b_fc1=bfc1_ref[...], w_fc2=wfc2_ref[...], b_fc2=bfc2_ref[...])
    x = _block_compute(x, None, blk, num_heads=num_heads, head_dim=head_dim,
                       eps=eps)                                    # non-causal
    xf = x.reshape(nb * n_patches, -1)
    xn = _ln(xf, vlng_ref[...], vlnb_ref[...], eps)                # vision LN
    y = jnp.dot(xn.astype(jnp.bfloat16), projw_ref[...],          # mm_projector
                preferred_element_type=jnp.float32) + projb_ref[...]
    o_ref[...] = y.reshape(nb, n_patches, -1).astype(o_ref.dtype)


def vision_encode(patches_flat, params):
    P = params["vis_pos"].shape[0]
    Bi = patches_flat.shape[0] // P
    ins = ([patches_flat, params["vis_patch_w"], params["vis_patch_b"],
            params["vis_pos"]]
           + [params["vis_block"][n] for n in BLOCK_PARAM_ORDER]
           + [params["vis_ln_g"], params["vis_ln_b"],
              params["proj_w"], params["proj_b"]])
    kernel = functools.partial(_vision_kernel, nb=Bi, n_patches=P,
                               num_heads=NUM_HEADS, head_dim=HEAD_DIM, eps=LN_EPS)
    return pl.pallas_call(
        kernel,
        out_shape=jax.ShapeDtypeStruct((Bi, P, HIDDEN), jnp.float32),
    )(*ins)


# ----------------------------- kernel 2: fused LM layer stack ------------------
def _lm_stack_kernel(h_ref, pos_ref, bias_ref,
                     ln1g_ref, ln1b_ref, wqkv_ref, bqkv_ref, wo_ref, bo_ref,
                     ln2g_ref, ln2b_ref, wfc1_ref, bfc1_ref, wfc2_ref, bfc2_ref,
                     o_ref, *, num_layers, num_heads, head_dim, eps):
    x = h_ref[...].astype(jnp.float32) + pos_ref[...][None]        # + pos emb
    bias = bias_ref[...]                                           # (B, T, T)
    for l in range(num_layers):                                    # static unroll
        blk = dict(ln1_g=ln1g_ref[l], ln1_b=ln1b_ref[l], w_qkv=wqkv_ref[l],
                   b_qkv=bqkv_ref[l], w_o=wo_ref[l], b_o=bo_ref[l],
                   ln2_g=ln2g_ref[l], ln2_b=ln2b_ref[l], w_fc1=wfc1_ref[l],
                   b_fc1=bfc1_ref[l], w_fc2=wfc2_ref[l], b_fc2=bfc2_ref[l])
        x = _block_compute(x, bias, blk, num_heads=num_heads,
                           head_dim=head_dim, eps=eps)             # causal
    o_ref[...] = x.astype(o_ref.dtype)


def lm_stack(h0, pos_t, attn_bias, stacked):
    ins = [h0, pos_t, attn_bias] + [stacked[n] for n in BLOCK_PARAM_ORDER]
    kernel = functools.partial(_lm_stack_kernel, num_layers=NUM_LAYERS,
                               num_heads=NUM_HEADS, head_dim=HEAD_DIM, eps=LN_EPS)
    return pl.pallas_call(
        kernel,
        out_shape=jax.ShapeDtypeStruct(h0.shape, jnp.float32),
    )(*ins)


# ----------------------------- kernel 3: final LN + logits + pooling + head ----
def _head_kernel(h_ref, mask_ref, lnfg_ref, lnfb_ref, wout_ref, bout_ref,
                 states_ref, w1h_ref, w1s_ref, b1_ref, w2_ref, b2_ref,
                 w3_ref, b3_ref, logits_ref, act_ref, *, eps):
    Bb, T, H = h_ref.shape
    hf = h_ref[...].reshape(Bb * T, H).astype(jnp.float32)
    hn = _ln(hf, lnfg_ref[...], lnfb_ref[...], eps)                # final LN
    logits = jnp.dot(hn.astype(jnp.bfloat16), wout_ref[...],      # embed_out
                     preferred_element_type=jnp.float32) + bout_ref[...]
    logits_ref[...] = logits.reshape(Bb, T, -1).astype(logits_ref.dtype)

    # masked mean pooling over post-final-LN hidden states
    m = mask_ref[...]                                              # (B, T, 1)
    hn3 = hn.reshape(Bb, T, H)
    pooled = (hn3 * m).sum(axis=1) / jnp.maximum(m.sum(axis=1), 1.0)  # (B, H)

    # TODO(synk): the real droid_diffusion head runs a ConditionalUnet1D DDIM
    # denoising loop; replaced here by a fused MLP regressor conditioned on the
    # pooled multimodal hidden state + robot state.
    a = (jnp.dot(pooled.astype(jnp.bfloat16), w1h_ref[...],
                 preferred_element_type=jnp.float32)
         + jnp.dot(states_ref[...].astype(jnp.bfloat16), w1s_ref[...],
                   preferred_element_type=jnp.float32)
         + b1_ref[...])
    a = jnp.maximum(a, 0.0)
    a = jnp.maximum(jnp.dot(a.astype(jnp.bfloat16), w2_ref[...],
                            preferred_element_type=jnp.float32) + b2_ref[...], 0.0)
    act_ref[...] = (jnp.dot(a.astype(jnp.bfloat16), w3_ref[...],
                            preferred_element_type=jnp.float32)
                    + b3_ref[...]).astype(act_ref.dtype)


def lm_head(h, mask3, states_p, params):
    Bi, T, _ = h.shape
    V = params["embed_out_w"].shape[1]
    ins = [h, mask3, params["ln_f_g"], params["ln_f_b"],
           params["embed_out_w"], params["embed_out_b"], states_p,
           params["act_w1h"], params["act_w1s"], params["act_b1"],
           params["act_w2"], params["act_b2"], params["act_w3"], params["act_b3"]]
    return pl.pallas_call(
        functools.partial(_head_kernel, eps=LN_EPS),
        out_shape=(jax.ShapeDtypeStruct((Bi, T, V), jnp.float32),
                   jax.ShapeDtypeStruct((Bi, CHUNK_SIZE * ACTION_DIM),
                                        jnp.float32)),
    )(*ins)


# ----------------------------- model glue (plain JAX) -------------------------
def patchify(images, patch):
    # images: NCHW -> (B, num_patches, C*patch*patch)
    Bi, C, Hh, Ww = images.shape
    ph, pw = Hh // patch, Ww // patch
    x = images.reshape(Bi, C, ph, patch, pw, patch)
    x = x.transpose(0, 2, 4, 1, 3, 5).reshape(Bi, ph * pw, C * patch * patch)
    return x


def unified_tinyvla_forward(params, input_ids, attention_mask, images,
                            states=None, actions=None, is_pad=None):
    Bi = images.shape[0]

    # ---- vision tower (synthetic CLIP-style patch encoder) + mm_projector ----
    patches = patchify(images.astype(jnp.float32), PATCH)            # (B, P, Cpp)
    P = patches.shape[1]
    img_tok = vision_encode(patches.reshape(Bi * P, -1), params)     # (B, P, H)

    # ---- language model (Pythia-like) over [image tokens ; text tokens] ----
    txt = params["tok_emb"][input_ids]                                # (B, S, H)
    h0 = jnp.concatenate([img_tok, txt], axis=1)                      # (B, T, H)
    T = h0.shape[1]

    full_mask = jnp.concatenate(
        [jnp.ones((Bi, P), jnp.float32), attention_mask.astype(jnp.float32)],
        axis=1)                                                       # (B, T)
    key_bias = (1.0 - full_mask) * NEG_INF                            # (B, T)
    causal_bias = jnp.triu(jnp.full((T, T), NEG_INF, jnp.float32), k=1)
    attn_bias = key_bias[:, None, :] + causal_bias[None]              # (B, T, T)

    h = lm_stack(h0, params["pos_emb"][:T], attn_bias, params["lm_blocks"])

    # ---- final LN + logits + pooled action head, one fused call ----
    if states is None:
        states = jnp.zeros((Bi, STATE_DIM), jnp.float32)
    states_p = jnp.pad(states.astype(jnp.float32),
                       ((0, 0), (0, STATE_PAD - STATE_DIM)))
    logits, act_flat = lm_head(h, full_mask[..., None], states_p, params)
    pred_actions = act_flat.reshape(Bi, CHUNK_SIZE, ACTION_DIM)

    loss = None
    if actions is not None:
        if is_pad is None:
            is_pad = jnp.zeros(actions.shape[:-1], dtype=bool)
        valid = (~is_pad).astype(jnp.float32)[..., None]
        se = (pred_actions - actions.astype(jnp.float32)) ** 2 * valid
        loss = se.sum() / jnp.maximum(valid.sum() * ACTION_DIM, 1.0)

    # NOTE: self.text_decoder in the PyTorch module is defined but never used
    # in forward(); it is intentionally not evaluated here.
    return {"text_logits": logits, "actions": pred_actions, "loss": loss}


# ----------------------------- deterministic param init ----------------------
def _dense(key, fan_in, fan_out, scale=0.02):
    return scale * jax.random.normal(key, (fan_in, fan_out), jnp.float32)


def make_block_params(key):
    ks = jax.random.split(key, 4)
    # Matmul weights stored in bf16 (MXU operands); biases / LN params f32.
    return {
        "ln1_g": jnp.ones((1, HIDDEN), jnp.float32),
        "ln1_b": jnp.zeros((1, HIDDEN), jnp.float32),
        "ln2_g": jnp.ones((1, HIDDEN), jnp.float32),
        "ln2_b": jnp.zeros((1, HIDDEN), jnp.float32),
        "w_qkv": _dense(ks[0], HIDDEN, 3 * HIDDEN).astype(jnp.bfloat16),
        "b_qkv": jnp.zeros((1, 3 * HIDDEN), jnp.float32),
        "w_o": _dense(ks[1], HIDDEN, HIDDEN).astype(jnp.bfloat16),
        "b_o": jnp.zeros((1, HIDDEN), jnp.float32),
        "w_fc1": _dense(ks[2], HIDDEN, MLP).astype(jnp.bfloat16),
        "b_fc1": jnp.zeros((1, MLP), jnp.float32),
        "w_fc2": _dense(ks[3], MLP, HIDDEN).astype(jnp.bfloat16),
        "b_fc2": jnp.zeros((1, HIDDEN), jnp.float32),
    }


def init_params(key):
    keys = jax.random.split(key, 12)
    num_patches = (IMG // PATCH) ** 2
    patch_dim = IMG_C * PATCH * PATCH
    t_max = num_patches + SEQ
    # Pre-split / pre-pad the first action-head weight once at init.
    act_w1 = _dense(keys[8], HIDDEN + STATE_DIM, 256)
    act_w1h = act_w1[:HIDDEN]
    act_w1s = jnp.zeros((STATE_PAD, 256), jnp.float32).at[:STATE_DIM].set(
        act_w1[HIDDEN:])
    # Stack LM layer params once so the whole stack is a single pallas_call.
    blocks = [make_block_params(k) for k in jax.random.split(keys[6], NUM_LAYERS)]
    lm_blocks = {n: jnp.stack([b[n] for b in blocks]) for n in BLOCK_PARAM_ORDER}
    return {
        "vis_patch_w": _dense(keys[0], patch_dim, HIDDEN).astype(jnp.bfloat16),
        "vis_patch_b": jnp.zeros((1, HIDDEN), jnp.float32),
        "vis_pos": 0.02 * jax.random.normal(keys[1], (num_patches, HIDDEN),
                                            jnp.float32),
        "vis_block": make_block_params(keys[2]),
        "vis_ln_g": jnp.ones((1, HIDDEN), jnp.float32),
        "vis_ln_b": jnp.zeros((1, HIDDEN), jnp.float32),
        "proj_w": _dense(keys[3], HIDDEN, HIDDEN).astype(jnp.bfloat16),
        "proj_b": jnp.zeros((1, HIDDEN), jnp.float32),
        "tok_emb": 0.02 * jax.random.normal(keys[4], (VOCAB, HIDDEN), jnp.float32),
        "pos_emb": 0.02 * jax.random.normal(keys[5], (t_max, HIDDEN), jnp.float32),
        "lm_blocks": lm_blocks,
        "ln_f_g": jnp.ones((1, HIDDEN), jnp.float32),
        "ln_f_b": jnp.zeros((1, HIDDEN), jnp.float32),
        "embed_out_w": _dense(keys[7], HIDDEN, VOCAB).astype(jnp.bfloat16),
        "embed_out_b": jnp.zeros((1, VOCAB), jnp.float32),
        "act_w1h": act_w1h.astype(jnp.bfloat16),                  # (H, 256)
        "act_w1s": act_w1s.astype(jnp.bfloat16),                  # (STATE_PAD, 256)
        "act_b1": jnp.zeros((1, 256), jnp.float32),
        "act_w2": _dense(keys[9], 256, 256).astype(jnp.bfloat16),
        "act_b2": jnp.zeros((1, 256), jnp.float32),
        "act_w3": _dense(keys[10], 256, CHUNK_SIZE * ACTION_DIM).astype(jnp.bfloat16),
        "act_b3": jnp.zeros((1, CHUNK_SIZE * ACTION_DIM), jnp.float32),
    }


# ----------------------------- main -------------------------------------------
if __name__ == "__main__":
    params = init_params(jax.random.PRNGKey(42))

    key = jax.random.PRNGKey(0)
    k1, k2, k3, k4 = jax.random.split(key, 4)
    input_ids = jax.random.randint(k1, (B, SEQ), 0, VOCAB)
    attention_mask = jnp.ones((B, SEQ), jnp.int32)
    images = jax.random.normal(k2, (B, IMG_C, IMG, IMG), jnp.float32)   # NCHW
    states = jax.random.normal(k3, (B, STATE_DIM), jnp.float32)
    actions = jax.random.normal(k4, (B, CHUNK_SIZE, ACTION_DIM), jnp.float32)

    fwd = jax.jit(unified_tinyvla_forward)
    out = fwd(params, input_ids, attention_mask, images,
              states=states, actions=actions)
    out = jax.block_until_ready(out)

    num_patches = (IMG // PATCH) ** 2
    assert out["text_logits"].shape == (B, num_patches + SEQ, VOCAB)
    assert out["actions"].shape == (B, CHUNK_SIZE, ACTION_DIM)
    assert out["loss"].shape == ()
    assert bool(jnp.isfinite(out["loss"]))
    assert bool(jnp.all(jnp.isfinite(out["text_logits"])))
    assert bool(jnp.all(jnp.isfinite(out["actions"])))
    print("KERNEL_OK")
</pallas_src>

<mosaic_0001>
module attributes {stable_mosaic.version = 11 : i64} {
  func.func @_vision_kernel(%arg0: memref<8x192xf32, #tpu.memory_space<vmem>>, %arg1: memref<192x128xbf16, #tpu.memory_space<vmem>>, %arg2: memref<1x128xf32, #tpu.memory_space<vmem>>, %arg3: memref<4x128xf32, #tpu.memory_space<vmem>>, %arg4: memref<1x128xf32, #tpu.memory_space<vmem>>, %arg5: memref<1x128xf32, #tpu.memory_space<vmem>>, %arg6: memref<128x384xbf16, #tpu.memory_space<vmem>>, %arg7: memref<1x384xf32, #tpu.memory_space<vmem>>, %arg8: memref<128x128xbf16, #tpu.memory_space<vmem>>, %arg9: memref<1x128xf32, #tpu.memory_space<vmem>>, %arg10: memref<1x128xf32, #tpu.memory_space<vmem>>, %arg11: memref<1x128xf32, #tpu.memory_space<vmem>>, %arg12: memref<128x512xbf16, #tpu.memory_space<vmem>>, %arg13: memref<1x512xf32, #tpu.memory_space<vmem>>, %arg14: memref<512x128xbf16, #tpu.memory_space<vmem>>, %arg15: memref<1x128xf32, #tpu.memory_space<vmem>>, %arg16: memref<1x128xf32, #tpu.memory_space<vmem>>, %arg17: memref<1x128xf32, #tpu.memory_space<vmem>>, %arg18: memref<128x128xbf16, #tpu.memory_space<vmem>>, %arg19: memref<1x128xf32, #tpu.memory_space<vmem>>, %arg20: memref<2x4x128xf32, #tpu.memory_space<vmem>>) attributes {dimension_semantics = [], scalar_prefetch = 0 : i64, scratch_operands = 0 : i64, tpu.core_type = #tpu.core_type<tc>} {
    %c0 = arith.constant 0 : index
    %c0_0 = arith.constant 0 : index
    %0 = vector.load %arg0[%c0, %c0_0] : memref<8x192xf32, #tpu.memory_space<vmem>>, vector<8x192xf32>
    %1 = arith.truncf %0 : vector<8x192xf32> to vector<8x192xbf16>
    %c0_1 = arith.constant 0 : index
    %c0_2 = arith.constant 0 : index
    %2 = vector.load %arg1[%c0_1, %c0_2] : memref<192x128xbf16, #tpu.memory_space<vmem>>, vector<192x128xbf16>
    %cst = arith.constant dense<0.000000e+00> : vector<8x128xf32>
    %3 = tpu.matmul %1, %2, %cst {dimension_numbers = #tpu.dot_dimension_numbers<[1], [0], [0], [1], [0, 0, 1, 1], [], []>} : vector<8x192xbf16>, vector<192x128xbf16>, vector<8x128xf32> -> vector<8x128xf32>
    %c0_3 = arith.constant 0 : index
    %c0_4 = arith.constant 0 : index
    %4 = vector.load %arg2[%c0_3, %c0_4] : memref<1x128xf32, #tpu.memory_space<vmem>>, vector<1x128xf32>
    %5 = vector.broadcast %4 : vector<1x128xf32> to vector<8x128xf32>
    %6 = arith.addf %3, %5 : vector<8x128xf32>
    %7 = vector.shape_cast %6 : vector<8x128xf32> to vector<2x4x128xf32>
    %c0_5 = arith.constant 0 : index
    %c0_6 = arith.constant 0 : index
    %8 = vector.load %arg3[%c0_5, %c0_6] : memref<4x128xf32, #tpu.memory_space<vmem>>, vector<4x128xf32>
    %9 = vector.shape_cast %8 : vector<4x128xf32> to vector<1x4x128xf32>
    %10 = vector.broadcast %9 : vector<1x4x128xf32> to vector<2x4x128xf32>
    %11 = arith.addf %7, %10 : vector<2x4x128xf32>
    %c0_7 = arith.constant 0 : index
    %c0_8 = arith.constant 0 : index
    %12 = vector.load %arg4[%c0_7, %c0_8] : memref<1x128xf32, #tpu.memory_space<vmem>>, vector<1x128xf32>
    %c0_9 = arith.constant 0 : index
    %c0_10 = arith.constant 0 : index
    %13 = vector.load %arg5[%c0_9, %c0_10] : memref<1x128xf32, #tpu.memory_space<vmem>>, vector<1x128xf32>
    %c0_11 = arith.constant 0 : index
    %c0_12 = arith.constant 0 : index
    %14 = vector.load %arg6[%c0_11, %c0_12] : memref<128x384xbf16, #tpu.memory_space<vmem>>, vector<128x384xbf16>
    %c0_13 = arith.constant 0 : index
    %c0_14 = arith.constant 0 : index
    %15 = vector.load %arg7[%c0_13, %c0_14] : memref<1x384xf32, #tpu.memory_space<vmem>>, vector<1x384xf32>
    %c0_15 = arith.constant 0 : index
    %c0_16 = arith.constant 0 : index
    %16 = vector.load %arg8[%c0_15, %c0_16] : memref<128x128xbf16, #tpu.memory_space<vmem>>, vector<128x128xbf16>
    %c0_17 = arith.constant 0 : index
    %c0_18 = arith.constant 0 : index
    %17 = vector.load %arg9[%c0_17, %c0_18] : memref<1x128xf32, #tpu.memory_space<vmem>>, vector<1x128xf32>
    %c0_19 = arith.constant 0 : index
    %c0_20 = arith.constant 0 : index
    %18 = vector.load %arg10[%c0_19, %c0_20] : memref<1x128xf32, #tpu.memory_space<vmem>>, vector<1x128xf32>
    %c0_21 = arith.constant 0 : index
    %c0_22 = arith.constant 0 : index
    %19 = vector.load %arg11[%c0_21, %c0_22] : memref<1x128xf32, #tpu.memory_space<vmem>>, vector<1x128xf32>
    %c0_23 = arith.constant 0 : index
    %c0_24 = arith.constant 0 : index
    %20 = vector.load %arg12[%c0_23, %c0_24] : memref<128x512xbf16, #tpu.memory_space<vmem>>, vector<128x512xbf16>
    %c0_25 = arith.constant 0 : index
    %c0_26 = arith.constant 0 : index
    %21 = vector.load %arg13[%c0_25, %c0_26] : memref<1x512xf32, #tpu.memory_space<vmem>>, vector<1x512xf32>
    %c0_27 = arith.constant 0 : index
    %c0_28 = arith.constant 0 : index
    %22 = vector.load %arg14[%c0_27, %c0_28] : memref<512x128xbf16, #tpu.memory_space<vmem>>, vector<512x128xbf16>
    %c0_29 = arith.constant 0 : index
    %c0_30 = arith.constant 0 : index
    %23 = vector.load %arg15[%c0_29, %c0_30] : memref<1x128xf32, #tpu.memory_space<vmem>>, vector<1x128xf32>
    %24 = vector.shape_cast %11 : vector<2x4x128xf32> to vector<8x128xf32>
    %cst_31 = arith.constant dense<0.000000e+00> : vector<8xf32>
    %25 = vector.multi_reduction <add>, %24, %cst_31 [1] : vector<8x128xf32> to vector<8xf32>
    %26 = vector.shape_cast %25 : vector<8xf32> to vector<8x1xf32>
    %cst_32 = arith.constant 1.280000e+02 : f32
    %27 = vector.broadcast %cst_32 : f32 to vector<8x1xf32>
    %28 = arith.divf %26, %27 : vector<8x1xf32>
    %29 = vector.broadcast %28 : vector<8x1xf32> to vector<8x128xf32>
    %30 = arith.subf %24, %29 : vector<8x128xf32>
    %31 = arith.mulf %30, %30 : vector<8x128xf32>
    %cst_33 = arith.constant dense<0.000000e+00> : vector<8xf32>
    %32 = vector.multi_reduction <add>, %31, %cst_33 [1] : vector<8x128xf32> to vector<8xf32>
    %33 = vector.shape_cast %32 : vector<8xf32> to vector<8x1xf32>
    %cst_34 = arith.constant 1.280000e+02 : f32
    %34 = vector.broadcast %cst_34 : f32 to vector<8x1xf32>
    %35 = arith.divf %33, %34 : vector<8x1xf32>
    %36 = vector.broadcast %28 : vector<8x1xf32> to vector<8x128xf32>
    %37 = arith.subf %24, %36 : vector<8x128xf32>
    %cst_35 = arith.constant 9.99999974E-6 : f32
    %38 = vector.broadcast %cst_35 : f32 to vector<8x1xf32>
    %39 = arith.addf %35, %38 : vector<8x1xf32>
    %40 = math.rsqrt %39 : vector<8x1xf32>
    %41 = vector.broadcast %40 : vector<8x1xf32> to vector<8x128xf32>
    %42 = arith.mulf %37, %41 : vector<8x128xf32>
    %43 = vector.broadcast %12 : vector<1x128xf32> to vector<8x128xf32>
    %44 = arith.mulf %42, %43 : vector<8x128xf32>
    %45 = vector.broadcast %13 : vector<1x128xf32> to vector<8x128xf32>
    %46 = arith.addf %44, %45 : vector<8x128xf32>
    %47 = arith.truncf %46 : vector<8x128xf32> to vector<8x128xbf16>
    %cst_36 = arith.constant dense<0.000000e+00> : vector<8x384xf32>
    %48 = tpu.matmul %47, %14, %cst_36 {dimension_numbers = #tpu.dot_dimension_numbers<[1], [0], [0], [1], [0, 0, 1, 1], [], []>} : vector<8x128xbf16>, vector<128x384xbf16>, vector<8x384xf32> -> vector<8x384xf32>
    %49 = vector.broadcast %15 : vector<1x384xf32> to vector<8x384xf32>
    %50 = arith.addf %48, %49 : vector<8x384xf32>
    %51 = vector.shape_cast %50 : vector<8x384xf32> to vector<2x4x384xf32>
    %52 = vector.extract_strided_slice %51 {offsets = [0, 0, 0], sizes = [2, 4, 32], strides = [1, 1, 1]} : vector<2x4x384xf32> to vector<2x4x32xf32>
    %53 = vector.extract_strided_slice %51 {offsets = [0, 0, 128], sizes = [2, 4, 32], strides = [1, 1, 1]} : vector<2x4x384xf32> to vector<2x4x32xf32>
    %54 = vector.extract_strided_slice %51 {offsets = [0, 0, 256], sizes = [2, 4, 32], strides = [1, 1, 1]} : vector<2x4x384xf32> to vector<2x4x32xf32>
    %55 = arith.truncf %52 : vector<2x4x32xf32> to vector<2x4x32xbf16>
    %56 = arith.truncf %53 : vector<2x4x32xf32> to vector<2x4x32xbf16>
    "tpu.trace_start"() <{level = 10 : i32, message = "bqd,bkd->bqk"}> : () -> ()
    %cst_37 = arith.constant dense<0.000000e+00> : vector<2x4x4xf32>
    %57 = tpu.matmul %55, %56, %cst_37 {dimension_numbers = #tpu.dot_dimension_numbers<[2], [2], [1], [1], [0, 0, 0, 1, 1, 1], [0], [0]>} : vector<2x4x32xbf16>, vector<2x4x32xbf16>, vector<2x4x4xf32> -> vector<2x4x4xf32>
    "tpu.trace_stop"() : () -> ()
    %cst_38 = arith.constant 0.176776692 : f32
    %58 = vector.broadcast %cst_38 : f32 to vector<2x4x4xf32>
    %59 = arith.mulf %57, %58 : vector<2x4x4xf32>
    %cst_39 = arith.constant dense<0xFF800000> : vector<2x4xf32>
    %60 = vector.multi_reduction <maximumf>, %59, %cst_39 [2] : vector<2x4x4xf32> to vector<2x4xf32>
    %61 = vector.shape_cast %60 : vector<2x4xf32> to vector<2x4x1xf32>
    %62 = vector.broadcast %61 : vector<2x4x1xf32> to vector<2x4x4xf32>
    %63 = arith.subf %59, %62 : vector<2x4x4xf32>
    %64 = math.exp %63 : vector<2x4x4xf32>
    %cst_40 = arith.constant dense<0.000000e+00> : vector<2x4xf32>
    %65 = vector.multi_reduction <add>, %64, %cst_40 [2] : vector<2x4x4xf32> to vector<2x4xf32>
    %66 = vector.shape_cast %65 : vector<2x4xf32> to vector<2x4x1xf32>
    %67 = tpu.reciprocal %66 {approx = true} : vector<2x4x1xf32> -> vector<2x4x1xf32>
    %68 = vector.broadcast %67 : vector<2x4x1xf32> to vector<2x4x4xf32>
    %69 = arith.mulf %64, %68 : vector<2x4x4xf32>
    %70 = arith.truncf %69 : vector<2x4x4xf32> to vector<2x4x4xbf16>
    %71 = arith.truncf %54 : vector<2x4x32xf32> to vector<2x4x32xbf16>
    "tpu.trace_start"() <{level = 10 : i32, message = "bqk,bkd->bqd"}> : () -> ()
    %cst_41 = arith.constant dense<0.000000e+00> : vector<2x4x32xf32>
    %72 = tpu.matmul %70, %71, %cst_41 {dimension_numbers = #tpu.dot_dimension_numbers<[2], [1], [1], [2], [0, 0, 0, 1, 1, 2], [0], [0]>} : vector<2x4x4xbf16>, vector<2x4x32xbf16>, vector<2x4x32xf32> -> vector<2x4x32xf32>
    "tpu.trace_stop"() : () -> ()
    %73 = vector.extract_strided_slice %51 {offsets = [0, 0, 32], sizes = [2, 4, 32], strides = [1, 1, 1]} : vector<2x4x384xf32> to vector<2x4x32xf32>
    %74 = vector.extract_strided_slice %51 {offsets = [0, 0, 160], sizes = [2, 4, 32], strides = [1, 1, 1]} : vector<2x4x384xf32> to vector<2x4x32xf32>
    %75 = vector.extract_strided_slice %51 {offsets = [0, 0, 288], sizes = [2, 4, 32], strides = [1, 1, 1]} : vector<2x4x384xf32> to vector<2x4x32xf32>
    %76 = arith.truncf %73 : vector<2x4x32xf32> to vector<2x4x32xbf16>
    %77 = arith.truncf %74 : vector<2x4x32xf32> to vector<2x4x32xbf16>
    "tpu.trace_start"() <{level = 10 : i32, message = "bqd,bkd->bqk"}> : () -> ()
    %cst_42 = arith.constant dense<0.000000e+00> : vector<2x4x4xf32>
    %78 = tpu.matmul %76, %77, %cst_42 {dimension_numbers = #tpu.dot_dimension_numbers<[2], [2], [1], [1], [0, 0, 0, 1, 1, 1], [0], [0]>} : vector<2x4x32xbf16>, vector<2x4x32xbf16>, vector<2x4x4xf32> -> vector<2x4x4xf32>
    "tpu.trace_stop"() : () -> ()
    %cst_43 = arith.constant 0.176776692 : f32
    %79 = vector.broadcast %cst_43 : f32 to vector<2x4x4xf32>
    %80 = arith.mulf %78, %79 : vector<2x4x4xf32>
    %cst_44 = arith.constant dense<0xFF800000> : vector<2x4xf32>
    %81 = vector.multi_reduction <maximumf>, %80, %cst_44 [2] : vector<2x4x4xf32> to vector<2x4xf32>
    %82 = vector.shape_cast %81 : vector<2x4xf32> to vector<2x4x1xf32>
    %83 = vector.broadcast %82 : vector<2x4x1xf32> to vector<2x4x4xf32>
    %84 = arith.subf %80, %83 : vector<2x4x4xf32>
    %85 = math.exp %84 : vector<2x4x4xf32>
    %cst_45 = arith.constant dense<0.000000e+00> : vector<2x4xf32>
    %86 = vector.multi_reduction <add>, %85, %cst_45 [2] : vector<2x4x4xf32> to vector<2x4xf32>
    %87 = vector.shape_cast %86 : vector<2x4xf32> to vector<2x4x1xf32>
    %88 = tpu.reciprocal %87 {approx = true} : vector<2x4x1xf32> -> vector<2x4x1xf32>
    %89 = vector.broadcast %88 : vector<2x4x1xf32> to vector<2x4x4xf32>
    %90 = arith.mulf %85, %89 : vector<2x4x4xf32>
    %91 = arith.truncf %90 : vector<2x4x4xf32> to vector<2x4x4xbf16>
    %92 = arith.truncf %75 : vector<2x4x32xf32> to vector<2x4x32xbf16>
    "tpu.trace_start"() <{level = 10 : i32, message = "bqk,bkd->bqd"}> : () -> ()
    %cst_46 = arith.constant dense<0.000000e+00> : vector<2x4x32xf32>
    %93 = tpu.matmul %91, %92, %cst_46 {dimension_numbers = #tpu.dot_dimension_numbers<[2], [1], [1], [2], [0, 0, 0, 1, 1, 2], [0], [0]>} : vector<2x4x4xbf16>, vector<2x4x32xbf16>, vector<2x4x32xf32> -> vector<2x4x32xf32>
    "tpu.trace_stop"() : () -> ()
    %94 = vector.extract_strided_slice %51 {offsets = [0, 0, 64], sizes = [2, 4, 32], strides = [1, 1, 1]} : vector<2x4x384xf32> to vector<2x4x32xf32>
    %95 = vector.extract_strided_slice %51 {offsets = [0, 0, 192], sizes = [2, 4, 32], strides = [1, 1, 1]} : vector<2x4x384xf32> to vector<2x4x32xf32>
    %96 = vector.extract_strided_slice %51 {offsets = [0, 0, 320], sizes = [2, 4, 32], strides = [1, 1, 1]} : vector<2x4x384xf32> to vector<2x4x32xf32>
    %97 = arith.truncf %94 : vector<2x4x32xf32> to vector<2x4x32xbf16>
    %98 = arith.truncf %95 : vector<2x4x32xf32> to vector<2x4x32xbf16>
    "tpu.trace_start"() <{level = 10 : i32, message = "bqd,bkd->bqk"}> : () -> ()
    %cst_47 = arith.constant dense<0.000000e+00> : vector<2x4x4xf32>
    %99 = tpu.matmul %97, %98, %cst_47 {dimension_numbers = #tpu.dot_dimension_numbers<[2], [2], [1], [1], [0, 0, 0, 1, 1, 1], [0], [0]>} : vector<2x4x32xbf16>, vector<2x4x32xbf16>, vector<2x4x4xf32> -> vector<2x4x4xf32>
    "tpu.trace_stop"() : () -> ()
    %cst_48 = arith.constant 0.176776692 : f32
    %100 = vector.broadcast %cst_48 : f32 to vector<2x4x4xf32>
    %101 = arith.mulf %99, %100 : vector<2x4x4xf32>
    %cst_49 = arith.constant dense<0xFF800000> : vector<2x4xf32>
    %102 = vector.multi_reduction <maximumf>, %101, %cst_49 [2] : vector<2x4x4xf32> to vector<2x4xf32>
    %103 = vector.shape_cast %102 : vector<2x4xf32> to vector<2x4x1xf32>
    %104 = vector.broadcast %103 : vector<2x4x1xf32> to vector<2x4x4xf32>
    %105 = arith.subf %101, %104 : vector<2x4x4xf32>
    %106 = math.exp %105 : vector<2x4x4xf32>
    %cst_50 = arith.constant dense<0.000000e+00> : vector<2x4xf32>
    %107 = vector.multi_reduction <add>, %106, %cst_50 [2] : vector<2x4x4xf32> to vector<2x4xf32>
    %108 = vector.shape_cast %107 : vector<2x4xf32> to vector<2x4x1xf32>
    %109 = tpu.reciprocal %108 {approx = true} : vector<2x4x1xf32> -> vector<2x4x1xf32>
    %110 = vector.broadcast %109 : vector<2x4x1xf32> to vector<2x4x4xf32>
    %111 = arith.mulf %106, %110 : vector<2x4x4xf32>
    %112 = arith.truncf %111 : vector<2x4x4xf32> to vector<2x4x4xbf16>
    %113 = arith.truncf %96 : vector<2x4x32xf32> to vector<2x4x32xbf16>
    "tpu.trace_start"() <{level = 10 : i32, message = "bqk,bkd->bqd"}> : () -> ()
    %cst_51 = arith.constant dense<0.000000e+00> : vector<2x4x32xf32>
    %114 = tpu.matmul %112, %113, %cst_51 {dimension_numbers = #tpu.dot_dimension_numbers<[2], [1], [1], [2], [0, 0, 0, 1, 1, 2], [0], [0]>} : vector<2x4x4xbf16>, vector<2x4x32xbf16>, vector<2x4x32xf32> -> vector<2x4x32xf32>
    "tpu.trace_stop"() : () -> ()
    %115 = vector.extract_strided_slice %51 {offsets = [0, 0, 96], sizes = [2, 4, 32], strides = [1, 1, 1]} : vector<2x4x384xf32> to vector<2x4x32xf32>
    %116 = vector.extract_strided_slice %51 {offsets = [0, 0, 224], sizes = [2, 4, 32], strides = [1, 1, 1]} : vector<2x4x384xf32> to vector<2x4x32xf32>
    %117 = vector.extract_strided_slice %51 {offsets = [0, 0, 352], sizes = [2, 4, 32], strides = [1, 1, 1]} : vector<2x4x384xf32> to vector<2x4x32xf32>
    %118 = arith.truncf %115 : vector<2x4x32xf32> to vector<2x4x32xbf16>
    %119 = arith.truncf %116 : vector<2x4x32xf32> to vector<2x4x32xbf16>
    "tpu.trace_start"() <{level = 10 : i32, message = "bqd,bkd->bqk"}> : () -> ()
    %cst_52 = arith.constant dense<0.000000e+00> : vector<2x4x4xf32>
    %120 = tpu.matmul %118, %119, %cst_52 {dimension_numbers = #tpu.dot_dimension_numbers<[2], [2], [1], [1], [0, 0, 0, 1, 1, 1], [0], [0]>} : vector<2x4x32xbf16>, vector<2x4x32xbf16>, vector<2x4x4xf32> -> vector<2x4x4xf32>
    "tpu.trace_stop"() : () -> ()
    %cst_53 = arith.constant 0.176776692 : f32
    %121 = vector.broadcast %cst_53 : f32 to vector<2x4x4xf32>
    %122 = arith.mulf %120, %121 : vector<2x4x4xf32>
    %cst_54 = arith.constant dense<0xFF800000> : vector<2x4xf32>
    %123 = vector.multi_reduction <maximumf>, %122, %cst_54 [2] : vector<2x4x4xf32> to vector<2x4xf32>
    %124 = vector.shape_cast %123 : vector<2x4xf32> to vector<2x4x1xf32>
    %125 = vector.broadcast %124 : vector<2x4x1xf32> to vector<2x4x4xf32>
    %126 = arith.subf %122, %125 : vector<2x4x4xf32>
    %127 = math.exp %126 : vector<2x4x4xf32>
    %cst_55 = arith.constant dense<0.000000e+00> : vector<2x4xf32>
    %128 = vector.multi_reduction <add>, %127, %cst_55 [2] : vector<2x4x4xf32> to vector<2x4xf32>
    %129 = vector.shape_cast %128 : vector<2x4xf32> to vector<2x4x1xf32>
    %130 = tpu.reciprocal %129 {approx = true} : vector<2x4x1xf32> -> vector<2x4x1xf32>
    %131 = vector.broadcast %130 : vector<2x4x1xf32> to vector<2x4x4xf32>
    %132 = arith.mulf %127, %131 : vector<2x4x4xf32>
    %133 = arith.truncf %132 : vector<2x4x4xf32> to vector<2x4x4xbf16>
    %134 = arith.truncf %117 : vector<2x4x32xf32> to vector<2x4x32xbf16>
    "tpu.trace_start"() <{level = 10 : i32, message = "bqk,bkd->bqd"}> : () -> ()
    %cst_56 = arith.constant dense<0.000000e+00> : vector<2x4x32xf32>
    %135 = tpu.matmul %133, %134, %cst_56 {dimension_numbers = #tpu.dot_dimension_numbers<[2], [1], [1], [2], [0, 0, 0, 1, 1, 2], [0], [0]>} : vector<2x4x4xbf16>, vector<2x4x32xbf16>, vector<2x4x32xf32> -> vector<2x4x32xf32>
    "tpu.trace_stop"() : () -> ()
    %136 = tpu.concatenate %72, %93, %114, %135 in 2 : vector<2x4x32xf32>, vector<2x4x32xf32>, vector<2x4x32xf32>, vector<2x4x32xf32> -> vector<2x4x128xf32>
    %137 = vector.shape_cast %136 : vector<2x4x128xf32> to vector<8x128xf32>
    %138 = arith.truncf %137 : vector<8x128xf32> to vector<8x128xbf16>
    %cst_57 = arith.constant dense<0.000000e+00> : vector<8x128xf32>
    %139 = tpu.matmul %138, %16, %cst_57 {dimension_numbers = #tpu.dot_dimension_numbers<[1], [0], [0], [1], [0, 0, 1, 1], [], []>} : vector<8x128xbf16>, vector<128x128xbf16>, vector<8x128xf32> -> vector<8x128xf32>
    %140 = vector.broadcast %17 : vector<1x128xf32> to vector<8x128xf32>
    %141 = arith.addf %139, %140 : vector<8x128xf32>
    %cst_58 = arith.constant dense<0.000000e+00> : vector<8xf32>
    %142 = vector.multi_reduction <add>, %24, %cst_58 [1] : vector<8x128xf32> to vector<8xf32>
    %143 = vector.shape_cast %142 : vector<8xf32> to vector<8x1xf32>
    %cst_59 = arith.constant 1.280000e+02 : f32
    %144 = vector.broadcast %cst_59 : f32 to vector<8x1xf32>
    %145 = arith.divf %143, %144 : vector<8x1xf32>
    %146 = vector.broadcast %145 : vector<8x1xf32> to vector<8x128xf32>
    %147 = arith.subf %24, %146 : vector<8x128xf32>
    %148 = arith.mulf %147, %147 : vector<8x128xf32>
    %cst_60 = arith.constant dense<0.000000e+00> : vector<8xf32>
    %149 = vector.multi_reduction <add>, %148, %cst_60 [1] : vector<8x128xf32> to vector<8xf32>
    %150 = vector.shape_cast %149 : vector<8xf32> to vector<8x1xf32>
    %cst_61 = arith.constant 1.280000e+02 : f32
    %151 = vector.broadcast %cst_61 : f32 to vector<8x1xf32>
    %152 = arith.divf %150, %151 : vector<8x1xf32>
    %153 = vector.broadcast %145 : vector<8x1xf32> to vector<8x128xf32>
    %154 = arith.subf %24, %153 : vector<8x128xf32>
    %cst_62 = arith.constant 9.99999974E-6 : f32
    %155 = vector.broadcast %cst_62 : f32 to vector<8x1xf32>
    %156 = arith.addf %152, %155 : vector<8x1xf32>
    %157 = math.rsqrt %156 : vector<8x1xf32>
    %158 = vector.broadcast %157 : vector<8x1xf32> to vector<8x128xf32>
    %159 = arith.mulf %154, %158 : vector<8x128xf32>
    %160 = vector.broadcast %18 : vector<1x128xf32> to vector<8x128xf32>
    %161 = arith.mulf %159, %160 : vector<8x128xf32>
    %162 = vector.broadcast %19 : vector<1x128xf32> to vector<8x128xf32>
    %163 = arith.addf %161, %162 : vector<8x128xf32>
    %164 = arith.truncf %163 : vector<8x128xf32> to vector<8x128xbf16>
    %cst_63 = arith.constant dense<0.000000e+00> : vector<8x512xf32>
    %165 = tpu.matmul %164, %20, %cst_63 {dimension_numbers = #tpu.dot_dimension_numbers<[1], [0], [0], [1], [0, 0, 1, 1], [], []>} : vector<8x128xbf16>, vector<128x512xbf16>, vector<8x512xf32> -> vector<8x512xf32>
    %166 = vector.broadcast %21 : vector<1x512xf32> to vector<8x512xf32>
    %167 = arith.addf %165, %166 : vector<8x512xf32>
    %168 = arith.mulf %167, %167 : vector<8x512xf32>
    %169 = arith.mulf %167, %168 : vector<8x512xf32>
    %cst_64 = arith.constant 4.471500e-02 : f32
    %170 = vector.broadcast %cst_64 : f32 to vector<8x512xf32>
    %171 = arith.mulf %170, %169 : vector<8x512xf32>
    %172 = arith.addf %167, %171 : vector<8x512xf32>
    %cst_65 = arith.constant 0.797884583 : f32
    %173 = vector.broadcast %cst_65 : f32 to vector<8x512xf32>
    %174 = arith.mulf %173, %172 : vector<8x512xf32>
    %175 = math.tanh %174 : vector<8x512xf32>
    %cst_66 = arith.constant 1.000000e+00 : f32
    %176 = vector.broadcast %cst_66 : f32 to vector<8x512xf32>
    %177 = arith.addf %176, %175 : vector<8x512xf32>
    %cst_67 = arith.constant 5.000000e-01 : f32
    %178 = vector.broadcast %cst_67 : f32 to vector<8x512xf32>
    %179 = arith.mulf %178, %177 : vector<8x512xf32>
    %180 = arith.mulf %167, %179 : vector<8x512xf32>
    %181 = arith.truncf %180 : vector<8x512xf32> to vector<8x512xbf16>
    %cst_68 = arith.constant dense<0.000000e+00> : vector<8x128xf32>
    %182 = tpu.matmul %181, %22, %cst_68 {dimension_numbers = #tpu.dot_dimension_numbers<[1], [0], [0], [1], [0, 0, 1, 1], [], []>} : vector<8x512xbf16>, vector<512x128xbf16>, vector<8x128xf32> -> vector<8x128xf32>
    %183 = vector.broadcast %23 : vector<1x128xf32> to vector<8x128xf32>
    %184 = arith.addf %182, %183 : vector<8x128xf32>
    %185 = arith.addf %141, %184 : vector<8x128xf32>
    %186 = vector.shape_cast %185 : vector<8x128xf32> to vector<2x4x128xf32>
    %187 = arith.addf %11, %186 : vector<2x4x128xf32>
    %188 = vector.shape_cast %187 : vector<2x4x128xf32> to vector<8x128xf32>
    %c0_69 = arith.constant 0 : index
    %c0_70 = arith.constant 0 : index
    %189 = vector.load %arg16[%c0_69, %c0_70] : memref<1x128xf32, #tpu.memory_space<vmem>>, vector<1x128xf32>
    %c0_71 = arith.constant 0 : index
    %c0_72 = arith.constant 0 : index
    %190 = vector.load %arg17[%c0_71, %c0_72] : memref<1x128xf32, #tpu.memory_space<vmem>>, vector<1x128xf32>
    %cst_73 = arith.constant dense<0.000000e+00> : vector<8xf32>
    %191 = vector.multi_reduction <add>, %188, %cst_73 [1] : vector<8x128xf32> to vector<8xf32>
    %192 = vector.shape_cast %191 : vector<8xf32> to vector<8x1xf32>
    %cst_74 = arith.constant 1.280000e+02 : f32
    %193 = vector.broadcast %cst_74 : f32 to vector<8x1xf32>
    %194 = arith.divf %192, %193 : vector<8x1xf32>
    %195 = vector.broadcast %194 : vector<8x1xf32> to vector<8x128xf32>
    %196 = arith.subf %188, %195 : vector<8x128xf32>
    %197 = arith.mulf %196, %196 : vector<8x128xf32>
    %cst_75 = arith.constant dense<0.000000e+00> : vector<8xf32>
    %198 = vector.multi_reduction <add>, %197, %cst_75 [1] : vector<8x128xf32> to vector<8xf32>
    %199 = vector.shape_cast %198 : vector<8xf32> to vector<8x1xf32>
    %cst_76 = arith.constant 1.280000e+02 : f32
    %200 = vector.broadcast %cst_76 : f32 to vector<8x1xf32>
    %201 = arith.divf %199, %200 : vector<8x1xf32>
    %202 = vector.broadcast %194 : vector<8x1xf32> to vector<8x128xf32>
    %203 = arith.subf %188, %202 : vector<8x128xf32>
    %cst_77 = arith.constant 9.99999974E-6 : f32
    %204 = vector.broadcast %cst_77 : f32 to vector<8x1xf32>
    %205 = arith.addf %201, %204 : vector<8x1xf32>
    %206 = math.rsqrt %205 : vector<8x1xf32>
    %207 = vector.broadcast %206 : vector<8x1xf32> to vector<8x128xf32>
    %208 = arith.mulf %203, %207 : vector<8x128xf32>
    %209 = vector.broadcast %189 : vector<1x128xf32> to vector<8x128xf32>
    %210 = arith.mulf %208, %209 : vector<8x128xf32>
    %211 = vector.broadcast %190 : vector<1x128xf32> to vector<8x128xf32>
    %212 = arith.addf %210, %211 : vector<8x128xf32>
    %213 = arith.truncf %212 : vector<8x128xf32> to vector<8x128xbf16>
    %c0_78 = arith.constant 0 : index
    %c0_79 = arith.constant 0 : index
    %214 = vector.load %arg18[%c0_78, %c0_79] : memref<128x128xbf16, #tpu.memory_space<vmem>>, vector<128x128xbf16>
    %cst_80 = arith.constant dense<0.000000e+00> : vector<8x128xf32>
    %215 = tpu.matmul %213, %214, %cst_80 {dimension_numbers = #tpu.dot_dimension_numbers<[1], [0], [0], [1], [0, 0, 1, 1], [], []>} : vector<8x128xbf16>, vector<128x128xbf16>, vector<8x128xf32> -> vector<8x128xf32>
    %c0_81 = arith.constant 0 : index
    %c0_82 = arith.constant 0 : index
    %216 = vector.load %arg19[%c0_81, %c0_82] : memref<1x128xf32, #tpu.memory_space<vmem>>, vector<1x128xf32>
    %217 = vector.broadcast %216 : vector<1x128xf32> to vector<8x128xf32>
    %218 = arith.addf %215, %217 : vector<8x128xf32>
    %219 = vector.shape_cast %218 : vector<8x128xf32> to vector<2x4x128xf32>
    %c0_83 = arith.constant 0 : index
    %c0_84 = arith.constant 0 : index
    %c0_85 = arith.constant 0 : index
    %220 = vector.load %arg20[%c0_83, %c0_84, %c0_85] : memref<2x4x128xf32, #tpu.memory_space<vmem>>, vector<2x4x128xf32>
    tpu.vector_store %arg20[%c0_83, %c0_84, %c0_85], %219 {strides = array<i32>} : memref<2x4x128xf32, #tpu.memory_space<vmem>>, vector<2x4x128xf32>,
    return
  }
}

module attributes {stable_mosaic.version = 11 : i64} {
  func.func @_lm_stack_kernel(%arg0: memref<2x12x128xf32, #tpu.memory_space<vmem>>, %arg1: memref<12x128xf32, #tpu.memory_space<vmem>>, %arg2: memref<2x12x12xf32, #tpu.memory_space<vmem>>, %arg3: memref<2x1x128xf32, #tpu.memory_space<vmem>>, %arg4: memref<2x1x128xf32, #tpu.memory_space<vmem>>, %arg5: memref<2x128x384xbf16, #tpu.memory_space<vmem>>, %arg6: memref<2x1x384xf32, #tpu.memory_space<vmem>>, %arg7: memref<2x128x128xbf16, #tpu.memory_space<vmem>>, %arg8: memref<2x1x128xf32, #tpu.memory_space<vmem>>, %arg9: memref<2x1x128xf32, #tpu.memory_space<vmem>>, %arg10: memref<2x1x128xf32, #tpu.memory_space<vmem>>, %arg11: memref<2x128x512xbf16, #tpu.memory_space<vmem>>, %arg12: memref<2x1x512xf32, #tpu.memory_space<vmem>>, %arg13: memref<2x512x128xbf16, #tpu.memory_space<vmem>>, %arg14: memref<2x1x128xf32, #tpu.memory_space<vmem>>, %arg15: memref<2x12x128xf32, #tpu.memory_space<vmem>>) attributes {dimension_semantics = [], scalar_prefetch = 0 : i64, scratch_operands = 0 : i64, tpu.core_type = #tpu.core_type<tc>} {
    %c0 = arith.constant 0 : index
    %c0_0 = arith.constant 0 : index
    %c0_1 = arith.constant 0 : index
    %0 = vector.load %arg0[%c0, %c0_0, %c0_1] : memref<2x12x128xf32, #tpu.memory_space<vmem>>, vector<2x12x128xf32>
    %c0_2 = arith.constant 0 : index
    %c0_3 = arith.constant 0 : index
    %1 = vector.load %arg1[%c0_2, %c0_3] : memref<12x128xf32, #tpu.memory_space<vmem>>, vector<12x128xf32>
    %2 = vector.shape_cast %1 : vector<12x128xf32> to vector<1x12x128xf32>
    %3 = vector.broadcast %2 : vector<1x12x128xf32> to vector<2x12x128xf32>
    %4 = arith.addf %0, %3 : vector<2x12x128xf32>
    %c0_4 = arith.constant 0 : index
    %c0_5 = arith.constant 0 : index
    %c0_6 = arith.constant 0 : index
    %5 = vector.load %arg2[%c0_4, %c0_5, %c0_6] : memref<2x12x12xf32, #tpu.memory_space<vmem>>, vector<2x12x12xf32>
    %c0_7 = arith.constant 0 : index
    %c0_8 = arith.constant 0 : index
    %c0_9 = arith.constant 0 : index
    %6 = vector.load %arg3[%c0_7, %c0_8, %c0_9] : memref<2x1x128xf32, #tpu.memory_space<vmem>>, vector<1x1x128xf32>
    %7 = vector.shape_cast %6 : vector<1x1x128xf32> to vector<1x128xf32>
    %c0_10 = arith.constant 0 : index
    %c0_11 = arith.constant 0 : index
    %c0_12 = arith.constant 0 : index
    %8 = vector.load %arg4[%c0_10, %c0_11, %c0_12] : memref<2x1x128xf32, #tpu.memory_space<vmem>>, vector<1x1x128xf32>
    %9 = vector.shape_cast %8 : vector<1x1x128xf32> to vector<1x128xf32>
    %c0_13 = arith.constant 0 : index
    %c0_14 = arith.constant 0 : index
    %c0_15 = arith.constant 0 : index
    %10 = vector.load %arg5[%c0_13, %c0_14, %c0_15] : memref<2x128x384xbf16, #tpu.memory_space<vmem>>, vector<1x128x384xbf16>
    %11 = vector.shape_cast %10 : vector<1x128x384xbf16> to vector<128x384xbf16>
    %c0_16 = arith.constant 0 : index
    %c0_17 = arith.constant 0 : index
    %c0_18 = arith.constant 0 : index
    %12 = vector.load %arg6[%c0_16, %c0_17, %c0_18] : memref<2x1x384xf32, #tpu.memory_space<vmem>>, vector<1x1x384xf32>
    %13 = vector.shape_cast %12 : vector<1x1x384xf32> to vector<1x384xf32>
    %c0_19 = arith.constant 0 : index
    %c0_20 = arith.constant 0 : index
    %c0_21 = arith.constant 0 : index
    %14 = vector.load %arg7[%c0_19, %c0_20, %c0_21] : memref<2x128x128xbf16, #tpu.memory_space<vmem>>, vector<1x128x128xbf16>
    %15 = vector.shape_cast %14 : vector<1x128x128xbf16> to vector<128x128xbf16>
    %c0_22 = arith.constant 0 : index
    %c0_23 = arith.constant 0 : index
    %c0_24 = arith.constant 0 : index
    %16 = vector.load %arg8[%c0_22, %c0_23, %c0_24] : memref<2x1x128xf32, #tpu.memory_space<vmem>>, vector<1x1x128xf32>
    %17 = vector.shape_cast %16 : vector<1x1x128xf32> to vector<1x128xf32>
    %c0_25 = arith.constant 0 : index
    %c0_26 = arith.constant 0 : index
    %c0_27 = arith.constant 0 : index
    %18 = vector.load %arg9[%c0_25, %c0_26, %c0_27] : memref<2x1x128xf32, #tpu.memory_space<vmem>>, vector<1x1x128xf32>
    %19 = vector.shape_cast %18 : vector<1x1x128xf32> to vector<1x128xf32>
    %c0_28 = arith.constant 0 : index
    %c0_29 = arith.constant 0 : index
    %c0_30 = arith.constant 0 : index
    %20 = vector.load %arg10[%c0_28, %c0_29, %c0_30] : memref<2x1x128xf32, #tpu.memory_space<vmem>>, vector<1x1x128xf32>
    %21 = vector.shape_cast %20 : vector<1x1x128xf32> to vector<1x128xf32>
    %c0_31 = arith.constant 0 : index
    %c0_32 = arith.constant 0 : index
    %c0_33 = arith.constant 0 : index
    %22 = vector.load %arg11[%c0_31, %c0_32, %c0_33] : memref<2x128x512xbf16, #tpu.memory_space<vmem>>, vector<1x128x512xbf16>
    %23 = vector.shape_cast %22 : vector<1x128x512xbf16> to vector<128x512xbf16>
    %c0_34 = arith.constant 0 : index
    %c0_35 = arith.constant 0 : index
    %c0_36 = arith.constant 0 : index
    %24 = vector.load %arg12[%c0_34, %c0_35, %c0_36] : memref<2x1x512xf32, #tpu.memory_space<vmem>>, vector<1x1x512xf32>
    %25 = vector.shape_cast %24 : vector<1x1x512xf32> to vector<1x512xf32>
    %c0_37 = arith.constant 0 : index
    %c0_38 = arith.constant 0 : index
    %c0_39 = arith.constant 0 : index
    %26 = vector.load %arg13[%c0_37, %c0_38, %c0_39] : memref<2x512x128xbf16, #tpu.memory_space<vmem>>, vector<1x512x128xbf16>
    %27 = vector.shape_cast %26 : vector<1x512x128xbf16> to vector<512x128xbf16>
    %c0_40 = arith.constant 0 : index
    %c0_41 = arith.constant 0 : index
    %c0_42 = arith.constant 0 : index
    %28 = vector.load %arg14[%c0_40, %c0_41, %c0_42] : memref<2x1x128xf32, #tpu.memory_space<vmem>>, vector<1x1x128xf32>
    %29 = vector.shape_cast %28 : vector<1x1x128xf32> to vector<1x128xf32>
    %30 = vector.shape_cast %4 : vector<2x12x128xf32> to vector<24x128xf32>
    %cst = arith.constant dense<0.000000e+00> : vector<24xf32>
    %31 = vector.multi_reduction <add>, %30, %cst [1] : vector<24x128xf32> to vector<24xf32>
    %32 = vector.shape_cast %31 : vector<24xf32> to vector<24x1xf32>
    %cst_43 = arith.constant 1.280000e+02 : f32
    %33 = vector.broadcast %cst_43 : f32 to vector<24x1xf32>
    %34 = arith.divf %32, %33 : vector<24x1xf32>
    %35 = vector.broadcast %34 : vector<24x1xf32> to vector<24x128xf32>
    %36 = arith.subf %30, %35 : vector<24x128xf32>
    %37 = arith.mulf %36, %36 : vector<24x128xf32>
    %cst_44 = arith.constant dense<0.000000e+00> : vector<24xf32>
    %38 = vector.multi_reduction <add>, %37, %cst_44 [1] : vector<24x128xf32> to vector<24xf32>
    %39 = vector.shape_cast %38 : vector<24xf32> to vector<24x1xf32>
    %cst_45 = arith.constant 1.280000e+02 : f32
    %40 = vector.broadcast %cst_45 : f32 to vector<24x1xf32>
    %41 = arith.divf %39, %40 : vector<24x1xf32>
    %42 = vector.broadcast %34 : vector<24x1xf32> to vector<24x128xf32>
    %43 = arith.subf %30, %42 : vector<24x128xf32>
    %cst_46 = arith.constant 9.99999974E-6 : f32
    %44 = vector.broadcast %cst_46 : f32 to vector<24x1xf32>
    %45 = arith.addf %41, %44 : vector<24x1xf32>
    %46 = math.rsqrt %45 : vector<24x1xf32>
    %47 = vector.broadcast %46 : vector<24x1xf32> to vector<24x128xf32>
    %48 = arith.mulf %43, %47 : vector<24x128xf32>
    %49 = vector.broadcast %7 : vector<1x128xf32> to vector<24x128xf32>
    %50 = arith.mulf %48, %49 : vector<24x128xf32>
    %51 = vector.broadcast %9 : vector<1x128xf32> to vector<24x128xf32>
    %52 = arith.addf %50, %51 : vector<24x128xf32>
    %53 = arith.truncf %52 : vector<24x128xf32> to vector<24x128xbf16>
    %cst_47 = arith.constant dense<0.000000e+00> : vector<24x384xf32>
    %54 = tpu.matmul %53, %11, %cst_47 {dimension_numbers = #tpu.dot_dimension_numbers<[1], [0], [0], [1], [0, 0, 1, 1], [], []>} : vector<24x128xbf16>, vector<128x384xbf16>, vector<24x384xf32> -> vector<24x384xf32>
    %55 = vector.broadcast %13 : vector<1x384xf32> to vector<24x384xf32>
    %56 = arith.addf %54, %55 : vector<24x384xf32>
    %57 = vector.shape_cast %56 : vector<24x384xf32> to vector<2x12x384xf32>
    %58 = vector.extract_strided_slice %57 {offsets = [0, 0, 0], sizes = [2, 12, 32], strides = [1, 1, 1]} : vector<2x12x384xf32> to vector<2x12x32xf32>
    %59 = vector.extract_strided_slice %57 {offsets = [0, 0, 128], sizes = [2, 12, 32], strides = [1, 1, 1]} : vector<2x12x384xf32> to vector<2x12x32xf32>
    %60 = vector.extract_strided_slice %57 {offsets = [0, 0, 256], sizes = [2, 12, 32], strides = [1, 1, 1]} : vector<2x12x384xf32> to vector<2x12x32xf32>
    %61 = arith.truncf %58 : vector<2x12x32xf32> to vector<2x12x32xbf16>
    %62 = arith.truncf %59 : vector<2x12x32xf32> to vector<2x12x32xbf16>
    "tpu.trace_start"() <{level = 10 : i32, message = "bqd,bkd->bqk"}> : () -> ()
    %cst_48 = arith.constant dense<0.000000e+00> : vector<2x12x12xf32>
    %63 = tpu.matmul %61, %62, %cst_48 {dimension_numbers = #tpu.dot_dimension_numbers<[2], [2], [1], [1], [0, 0, 0, 1, 1, 1], [0], [0]>} : vector<2x12x32xbf16>, vector<2x12x32xbf16>, vector<2x12x12xf32> -> vector<2x12x12xf32>
    "tpu.trace_stop"() : () -> ()
    %cst_49 = arith.constant 0.176776692 : f32
    %64 = vector.broadcast %cst_49 : f32 to vector<2x12x12xf32>
    %65 = arith.mulf %63, %64 : vector<2x12x12xf32>
    %66 = arith.addf %65, %5 : vector<2x12x12xf32>
    %cst_50 = arith.constant dense<0xFF800000> : vector<2x12xf32>
    %67 = vector.multi_reduction <maximumf>, %66, %cst_50 [2] : vector<2x12x12xf32> to vector<2x12xf32>
    %68 = vector.shape_cast %67 : vector<2x12xf32> to vector<2x12x1xf32>
    %69 = vector.broadcast %68 : vector<2x12x1xf32> to vector<2x12x12xf32>
    %70 = arith.subf %66, %69 : vector<2x12x12xf32>
    %71 = math.exp %70 : vector<2x12x12xf32>
    %cst_51 = arith.constant dense<0.000000e+00> : vector<2x12xf32>
    %72 = vector.multi_reduction <add>, %71, %cst_51 [2] : vector<2x12x12xf32> to vector<2x12xf32>
    %73 = vector.shape_cast %72 : vector<2x12xf32> to vector<2x12x1xf32>
    %74 = tpu.reciprocal %73 {approx = true} : vector<2x12x1xf32> -> vector<2x12x1xf32>
    %75 = vector.broadcast %74 : vector<2x12x1xf32> to vector<2x12x12xf32>
    %76 = arith.mulf %71, %75 : vector<2x12x12xf32>
    %77 = arith.truncf %76 : vector<2x12x12xf32> to vector<2x12x12xbf16>
    %78 = arith.truncf %60 : vector<2x12x32xf32> to vector<2x12x32xbf16>
    "tpu.trace_start"() <{level = 10 : i32, message = "bqk,bkd->bqd"}> : () -> ()
    %cst_52 = arith.constant dense<0.000000e+00> : vector<2x12x32xf32>
    %79 = tpu.matmul %77, %78, %cst_52 {dimension_numbers = #tpu.dot_dimension_numbers<[2], [1], [1], [2], [0, 0, 0, 1, 1, 2], [0], [0]>} : vector<2x12x12xbf16>, vector<2x12x32xbf16>, vector<2x12x32xf32> -> vector<2x12x32xf32>
    "tpu.trace_stop"() : () -> ()
    %80 = vector.extract_strided_slice %57 {offsets = [0, 0, 32], sizes = [2, 12, 32], strides = [1, 1, 1]} : vector<2x12x384xf32> to vector<2x12x32xf32>
    %81 = vector.extract_strided_slice %57 {offsets = [0, 0, 160], sizes = [2, 12, 32], strides = [1, 1, 1]} : vector<2x12x384xf32> to vector<2x12x32xf32>
    %82 = vector.extract_strided_slice %57 {offsets = [0, 0, 288], sizes = [2, 12, 32], strides = [1, 1, 1]} : vector<2x12x384xf32> to vector<2x12x32xf32>
    %83 = arith.truncf %80 : vector<2x12x32xf32> to vector<2x12x32xbf16>
    %84 = arith.truncf %81 : vector<2x12x32xf32> to vector<2x12x32xbf16>
    "tpu.trace_start"() <{level = 10 : i32, message = "bqd,bkd->bqk"}> : () -> ()
    %cst_53 = arith.constant dense<0.000000e+00> : vector<2x12x12xf32>
    %85 = tpu.matmul %83, %84, %cst_53 {dimension_numbers = #tpu.dot_dimension_numbers<[2], [2], [1], [1], [0, 0, 0, 1, 1, 1], [0], [0]>} : vector<2x12x32xbf16>, vector<2x12x32xbf16>, vector<2x12x12xf32> -> vector<2x12x12xf32>
    "tpu.trace_stop"() : () -> ()
    %cst_54 = arith.constant 0.176776692 : f32
    %86 = vector.broadcast %cst_54 : f32 to vector<2x12x12xf32>
    %87 = arith.mulf %85, %86 : vector<2x12x12xf32>
    %88 = arith.addf %87, %5 : vector<2x12x12xf32>
    %cst_55 = arith.constant dense<0xFF800000> : vector<2x12xf32>
    %89 = vector.multi_reduction <maximumf>, %88, %cst_55 [2] : vector<2x12x12xf32> to vector<2x12xf32>
    %90 = vector.shape_cast %89 : vector<2x12xf32> to vector<2x12x1xf32>
    %91 = vector.broadcast %90 : vector<2x12x1xf32> to vector<2x12x12xf32>
    %92 = arith.subf %88, %91 : vector<2x12x12xf32>
    %93 = math.exp %92 : vector<2x12x12xf32>
    %cst_56 = arith.constant dense<0.000000e+00> : vector<2x12xf32>
    %94 = vector.multi_reduction <add>, %93, %cst_56 [2] : vector<2x12x12xf32> to vector<2x12xf32>
    %95 = vector.shape_cast %94 : vector<2x12xf32> to vector<2x12x1xf32>
    %96 = tpu.reciprocal %95 {approx = true} : vector<2x12x1xf32> -> vector<2x12x1xf32>
    %97 = vector.broadcast %96 : vector<2x12x1xf32> to vector<2x12x12xf32>
    %98 = arith.mulf %93, %97 : vector<2x12x12xf32>
    %99 = arith.truncf %98 : vector<2x12x12xf32> to vector<2x12x12xbf16>
    %100 = arith.truncf %82 : vector<2x12x32xf32> to vector<2x12x32xbf16>
    "tpu.trace_start"() <{level = 10 : i32, message = "bqk,bkd->bqd"}> : () -> ()
    %cst_57 = arith.constant dense<0.000000e+00> : vector<2x12x32xf32>
    %101 = tpu.matmul %99, %100, %cst_57 {dimension_numbers = #tpu.dot_dimension_numbers<[2], [1], [1], [2], [0, 0, 0, 1, 1, 2], [0], [0]>} : vector<2x12x12xbf16>, vector<2x12x32xbf16>, vector<2x12x32xf32> -> vector<2x12x32xf32>
    "tpu.trace_stop"() : () -> ()
    %102 = vector.extract_strided_slice %57 {offsets = [0, 0, 64], sizes = [2, 12, 32], strides = [1, 1, 1]} : vector<2x12x384xf32> to vector<2x12x32xf32>
    %103 = vector.extract_strided_slice %57 {offsets = [0, 0, 192], sizes = [2, 12, 32], strides = [1, 1, 1]} : vector<2x12x384xf32> to vector<2x12x32xf32>
    %104 = vector.extract_strided_slice %57 {offsets = [0, 0, 320], sizes = [2, 12, 32], strides = [1, 1, 1]} : vector<2x12x384xf32> to vector<2x12x32xf32>
    %105 = arith.truncf %102 : vector<2x12x32xf32> to vector<2x12x32xbf16>
    %106 = arith.truncf %103 : vector<2x12x32xf32> to vector<2x12x32xbf16>
    "tpu.trace_start"() <{level = 10 : i32, message = "bqd,bkd->bqk"}> : () -> ()
    %cst_58 = arith.constant dense<0.000000e+00> : vector<2x12x12xf32>
    %107 = tpu.matmul %105, %106, %cst_58 {dimension_numbers = #tpu.dot_dimension_numbers<[2], [2], [1], [1], [0, 0, 0, 1, 1, 1], [0], [0]>} : vector<2x12x32xbf16>, vector<2x12x32xbf16>, vector<2x12x12xf32> -> vector<2x12x12xf32>
    "tpu.trace_stop"() : () -> ()
    %cst_59 = arith.constant 0.176776692 : f32
    %108 = vector.broadcast %cst_59 : f32 to vector<2x12x12xf32>
    %109 = arith.mulf %107, %108 : vector<2x12x12xf32>
    %110 = arith.addf %109, %5 : vector<2x12x12xf32>
    %cst_60 = arith.constant dense<0xFF800000> : vector<2x12xf32>
    %111 = vector.multi_reduction <maximumf>, %110, %cst_60 [2] : vector<2x12x12xf32> to vector<2x12xf32>
    %112 = vector.shape_cast %111 : vector<2x12xf32> to vector<2x12x1xf32>
    %113 = vector.broadcast %112 : vector<2x12x1xf32> to vector<2x12x12xf32>
    %114 = arith.subf %110, %113 : vector<2x12x12xf32>
    %115 = math.exp %114 : vector<2x12x12xf32>
    %cst_61 = arith.constant dense<0.000000e+00> : vector<2x12xf32>
    %116 = vector.multi_reduction <add>, %115, %cst_61 [2] : vector<2x12x12xf32> to vector<2x12xf32>
    %117 = vector.shape_cast %116 : vector<2x12xf32> to vector<2x12x1xf32>
    %118 = tpu.reciprocal %117 {approx = true} : vector<2x12x1xf32> -> vector<2x12x1xf32>
    %119 = vector.broadcast %118 : vector<2x12x1xf32> to vector<2x12x12xf32>
    %120 = arith.mulf %115, %119 : vector<2x12x12xf32>
    %121 = arith.truncf %120 : vector<2x12x12xf32> to vector<2x12x12xbf16>
    %122 = arith.truncf %104 : vector<2x12x32xf32> to vector<2x12x32xbf16>
    "tpu.trace_start"() <{level = 10 : i32, message = "bqk,bkd->bqd"}> : () -> ()
    %cst_62 = arith.constant dense<0.000000e+00> : vector<2x12x32xf32>
    %123 = tpu.matmul %121, %122, %cst_62 {dimension_numbers = #tpu.dot_dimension_numbers<[2], [1], [1], [2], [0, 0, 0, 1, 1, 2], [0], [0]>} : vector<2x12x12xbf16>, vector<2x12x32xbf16>, vector<2x12x32xf32> -> vector<2x12x32xf32>
    "tpu.trace_stop"() : () -> ()
    %124 = vector.extract_strided_slice %57 {offsets = [0, 0, 96], sizes = [2, 12, 32], strides = [1, 1, 1]} : vector<2x12x384xf32> to vector<2x12x32xf32>
    %125 = vector.extract_strided_slice %57 {offsets = [0, 0, 224], sizes = [2, 12, 32], strides = [1, 1, 1]} : vector<2x12x384xf32> to vector<2x12x32xf32>
    %126 = vector.extract_strided_slice %57 {offsets = [0, 0, 352], sizes = [2, 12, 32], strides = [1, 1, 1]} : vector<2x12x384xf32> to vector<2x12x32xf32>
    %127 = arith.truncf %124 : vector<2x12x32xf32> to vector<2x12x32xbf16>
    %128 = arith.truncf %125 : vector<2x12x32xf32> to vector<2x12x32xbf16>
    "tpu.trace_start"() <{level = 10 : i32, message = "bqd,bkd->bqk"}> : () -> ()
    %cst_63 = arith.constant dense<0.000000e+00> : vector<2x12x12xf32>
    %129 = tpu.matmul %127, %128, %cst_63 {dimension_numbers = #tpu.dot_dimension_numbers<[2], [2], [1], [1], [0, 0, 0, 1, 1, 1], [0], [0]>} : vector<2x12x32xbf16>, vector<2x12x32xbf16>, vector<2x12x12xf32> -> vector<2x12x12xf32>
    "tpu.trace_stop"() : () -> ()
    %cst_64 = arith.constant 0.176776692 : f32
    %130 = vector.broadcast %cst_64 : f32 to vector<2x12x12xf32>
    %131 = arith.mulf %129, %130 : vector<2x12x12xf32>
    %132 = arith.addf %131, %5 : vector<2x12x12xf32>
    %cst_65 = arith.constant dense<0xFF800000> : vector<2x12xf32>
    %133 = vector.multi_reduction <maximumf>, %132, %cst_65 [2] : vector<2x12x12xf32> to vector<2x12xf32>
    %134 = vector.shape_cast %133 : vector<2x12xf32> to vector<2x12x1xf32>
    %135 = vector.broadcast %134 : vector<2x12x1xf32> to vector<2x12x12xf32>
    %136 = arith.subf %132, %135 : vector<2x12x12xf32>
    %137 = math.exp %136 : vector<2x12x12xf32>
    %cst_66 = arith.constant dense<0.000000e+00> : vector<2x12xf32>
    %138 = vector.multi_reduction <add>, %137, %cst_66 [2] : vector<2x12x12xf32> to vector<2x12xf32>
    %139 = vector.shape_cast %138 : vector<2x12xf32> to vector<2x12x1xf32>
    %140 = tpu.reciprocal %139 {approx = true} : vector<2x12x1xf32> -> vector<2x12x1xf32>
    %141 = vector.broadcast %140 : vector<2x12x1xf32> to vector<2x12x12xf32>
    %142 = arith.mulf %137, %141 : vector<2x12x12xf32>
    %143 = arith.truncf %142 : vector<2x12x12xf32> to vector<2x12x12xbf16>
    %144 = arith.truncf %126 : vector<2x12x32xf32> to vector<2x12x32xbf16>
    "tpu.trace_start"() <{level = 10 : i32, message = "bqk,bkd->bqd"}> : () -> ()
    %cst_67 = arith.constant dense<0.000000e+00> : vector<2x12x32xf32>
    %145 = tpu.matmul %143, %144, %cst_67 {dimension_numbers = #tpu.dot_dimension_numbers<[2], [1], [1], [2], [0, 0, 0, 1, 1, 2], [0], [0]>} : vector<2x12x12xbf16>, vector<2x12x32xbf16>, vector<2x12x32xf32> -> vector<2x12x32xf32>
    "tpu.trace_stop"() : () -> ()
    %146 = tpu.concatenate %79, %101, %123, %145 in 2 : vector<2x12x32xf32>, vector<2x12x32xf32>, vector<2x12x32xf32>, vector<2x12x32xf32> -> vector<2x12x128xf32>
    %147 = vector.shape_cast %146 : vector<2x12x128xf32> to vector<24x128xf32>
    %148 = arith.truncf %147 : vector<24x128xf32> to vector<24x128xbf16>
    %cst_68 = arith.constant dense<0.000000e+00> : vector<24x128xf32>
    %149 = tpu.matmul %148, %15, %cst_68 {dimension_numbers = #tpu.dot_dimension_numbers<[1], [0], [0], [1], [0, 0, 1, 1], [], []>} : vector<24x128xbf16>, vector<128x128xbf16>, vector<24x128xf32> -> vector<24x128xf32>
    %150 = vector.broadcast %17 : vector<1x128xf32> to vector<24x128xf32>
    %151 = arith.addf %149, %150 : vector<24x128xf32>
    %cst_69 = arith.constant dense<0.000000e+00> : vector<24xf32>
    %152 = vector.multi_reduction <add>, %30, %cst_69 [1] : vector<24x128xf32> to vector<24xf32>
    %153 = vector.shape_cast %152 : vector<24xf32> to vector<24x1xf32>
    %cst_70 = arith.constant 1.280000e+02 : f32
    %154 = vector.broadcast %cst_70 : f32 to vector<24x1xf32>
    %155 = arith.divf %153, %154 : vector<24x1xf32>
    %156 = vector.broadcast %155 : vector<24x1xf32> to vector<24x128xf32>
    %157 = arith.subf %30, %156 : vector<24x128xf32>
    %158 = arith.mulf %157, %157 : vector<24x128xf32>
    %cst_71 = arith.constant dense<0.000000e+00> : vector<24xf32>
    %159 = vector.multi_reduction <add>, %158, %cst_71 [1] : vector<24x128xf32> to vector<24xf32>
    %160 = vector.shape_cast %159 : vector<24xf32> to vector<24x1xf32>
    %cst_72 = arith.constant 1.280000e+02 : f32
    %161 = vector.broadcast %cst_72 : f32 to vector<24x1xf32>
    %162 = arith.divf %160, %161 : vector<24x1xf32>
    %163 = vector.broadcast %155 : vector<24x1xf32> to vector<24x128xf32>
    %164 = arith.subf %30, %163 : vector<24x128xf32>
    %cst_73 = arith.constant 9.99999974E-6 : f32
    %165 = vector.broadcast %cst_73 : f32 to vector<24x1xf32>
    %166 = arith.addf %162, %165 : vector<24x1xf32>
    %167 = math.rsqrt %166 : vector<24x1xf32>
    %168 = vector.broadcast %167 : vector<24x1xf32> to vector<24x128xf32>
    %169 = arith.mulf %164, %168 : vector<24x128xf32>
    %170 = vector.broadcast %19 : vector<1x128xf32> to vector<24x128xf32>
    %171 = arith.mulf %169, %170 : vector<24x128xf32>
    %172 = vector.broadcast %21 : vector<1x128xf32> to vector<24x128xf32>
    %173 = arith.addf %171, %172 : vector<24x128xf32>
    %174 = arith.truncf %173 : vector<24x128xf32> to vector<24x128xbf16>
    %cst_74 = arith.constant dense<0.000000e+00> : vector<24x512xf32>
    %175 = tpu.matmul %174, %23, %cst_74 {dimension_numbers = #tpu.dot_dimension_numbers<[1], [0], [0], [1], [0, 0, 1, 1], [], []>} : vector<24x128xbf16>, vector<128x512xbf16>, vector<24x512xf32> -> vector<24x512xf32>
    %176 = vector.broadcast %25 : vector<1x512xf32> to vector<24x512xf32>
    %177 = arith.addf %175, %176 : vector<24x512xf32>
    %178 = arith.mulf %177, %177 : vector<24x512xf32>
    %179 = arith.mulf %177, %178 : vector<24x512xf32>
    %cst_75 = arith.constant 4.471500e-02 : f32
    %180 = vector.broadcast %cst_75 : f32 to vector<24x512xf32>
    %181 = arith.mulf %180, %179 : vector<24x512xf32>
    %182 = arith.addf %177, %181 : vector<24x512xf32>
    %cst_76 = arith.constant 0.797884583 : f32
    %183 = vector.broadcast %cst_76 : f32 to vector<24x512xf32>
    %184 = arith.mulf %183, %182 : vector<24x512xf32>
    %185 = math.tanh %184 : vector<24x512xf32>
    %cst_77 = arith.constant 1.000000e+00 : f32
    %186 = vector.broadcast %cst_77 : f32 to vector<24x512xf32>
    %187 = arith.addf %186, %185 : vector<24x512xf32>
    %cst_78 = arith.constant 5.000000e-01 : f32
    %188 = vector.broadcast %cst_78 : f32 to vector<24x512xf32>
    %189 = arith.mulf %188, %187 : vector<24x512xf32>
    %190 = arith.mulf %177, %189 : vector<24x512xf32>
    %191 = arith.truncf %190 : vector<24x512xf32> to vector<24x512xbf16>
    %cst_79 = arith.constant dense<0.000000e+00> : vector<24x128xf32>
    %192 = tpu.matmul %191, %27, %cst_79 {dimension_numbers = #tpu.dot_dimension_numbers<[1], [0], [0], [1], [0, 0, 1, 1], [], []>} : vector<24x512xbf16>, vector<512x128xbf16>, vector<24x128xf32> -> vector<24x128xf32>
    %193 = vector.broadcast %29 : vector<1x128xf32> to vector<24x128xf32>
    %194 = arith.addf %192, %193 : vector<24x128xf32>
    %195 = arith.addf %151, %194 : vector<24x128xf32>
    %196 = vector.shape_cast %195 : vector<24x128xf32> to vector<2x12x128xf32>
    %197 = arith.addf %4, %196 : vector<2x12x128xf32>
    %c1 = arith.constant 1 : index
    %c0_80 = arith.constant 0 : index
    %c0_81 = arith.constant 0 : index
    %198 = vector.load %arg3[%c1, %c0_80, %c0_81] : memref<2x1x128xf32, #tpu.memory_space<vmem>>, vector<1x1x128xf32>
    %199 = vector.shape_cast %198 : vector<1x1x128xf32> to vector<1x128xf32>
    %c1_82 = arith.constant 1 : index
    %c0_83 = arith.constant 0 : index
    %c0_84 = arith.constant 0 : index
    %200 = vector.load %arg4[%c1_82, %c0_83, %c0_84] : memref<2x1x128xf32, #tpu.memory_space<vmem>>, vector<1x1x128xf32>
    %201 = vector.shape_cast %200 : vector<1x1x128xf32> to vector<1x128xf32>
    %c1_85 = arith.constant 1 : index
    %c0_86 = arith.constant 0 : index
    %c0_87 = arith.constant 0 : index
    %202 = vector.load %arg5[%c1_85, %c0_86, %c0_87] : memref<2x128x384xbf16, #tpu.memory_space<vmem>>, vector<1x128x384xbf16>
    %203 = vector.shape_cast %202 : vector<1x128x384xbf16> to vector<128x384xbf16>
    %c1_88 = arith.constant 1 : index
    %c0_89 = arith.constant 0 : index
    %c0_90 = arith.constant 0 : index
    %204 = vector.load %arg6[%c1_88, %c0_89, %c0_90] : memref<2x1x384xf32, #tpu.memory_space<vmem>>, vector<1x1x384xf32>
    %205 = vector.shape_cast %204 : vector<1x1x384xf32> to vector<1x384xf32>
    %c1_91 = arith.constant 1 : index
    %c0_92 = arith.constant 0 : index
    %c0_93 = arith.constant 0 : index
    %206 = vector.load %arg7[%c1_91, %c0_92, %c0_93] : memref<2x128x128xbf16, #tpu.memory_space<vmem>>, vector<1x128x128xbf16>
    %207 = vector.shape_cast %206 : vector<1x128x128xbf16> to vector<128x128xbf16>
    %c1_94 = arith.constant 1 : index
    %c0_95 = arith.constant 0 : index
    %c0_96 = arith.constant 0 : index
    %208 = vector.load %arg8[%c1_94, %c0_95, %c0_96] : memref<2x1x128xf32, #tpu.memory_space<vmem>>, vector<1x1x128xf32>
    %209 = vector.shape_cast %208 : vector<1x1x128xf32> to vector<1x128xf32>
    %c1_97 = arith.constant 1 : index
    %c0_98 = arith.constant 0 : index
    %c0_99 = arith.constant 0 : index
    %210 = vector.load %arg9[%c1_97, %c0_98, %c0_99] : memref<2x1x128xf32, #tpu.memory_space<vmem>>, vector<1x1x128xf32>
    %211 = vector.shape_cast %210 : vector<1x1x128xf32> to vector<1x128xf32>
    %c1_100 = arith.constant 1 : index
    %c0_101 = arith.constant 0 : index
    %c0_102 = arith.constant 0 : index
    %212 = vector.load %arg10[%c1_100, %c0_101, %c0_102] : memref<2x1x128xf32, #tpu.memory_space<vmem>>, vector<1x1x128xf32>
    %213 = vector.shape_cast %212 : vector<1x1x128xf32> to vector<1x128xf32>
    %c1_103 = arith.constant 1 : index
    %c0_104 = arith.constant 0 : index
    %c0_105 = arith.constant 0 : index
    %214 = vector.load %arg11[%c1_103, %c0_104, %c0_105] : memref<2x128x512xbf16, #tpu.memory_space<vmem>>, vector<1x128x512xbf16>
    %215 = vector.shape_cast %214 : vector<1x128x512xbf16> to vector<128x512xbf16>
    %c1_106 = arith.constant 1 : index
    %c0_107 = arith.constant 0 : index
    %c0_108 = arith.constant 0 : index
    %216 = vector.load %arg12[%c1_106, %c0_107, %c0_108] : memref<2x1x512xf32, #tpu.memory_space<vmem>>, vector<1x1x512xf32>
    %217 = vector.shape_cast %216 : vector<1x1x512xf32> to vector<1x512xf32>
    %c1_109 = arith.constant 1 : index
    %c0_110 = arith.constant 0 : index
    %c0_111 = arith.constant 0 : index
    %218 = vector.load %arg13[%c1_109, %c0_110, %c0_111] : memref<2x512x128xbf16, #tpu.memory_space<vmem>>, vector<1x512x128xbf16>
    %219 = vector.shape_cast %218 : vector<1x512x128xbf16> to vector<512x128xbf16>
    %c1_112 = arith.constant 1 : index
    %c0_113 = arith.constant 0 : index
    %c0_114 = arith.constant 0 : index
    %220 = vector.load %arg14[%c1_112, %c0_113, %c0_114] : memref<2x1x128xf32, #tpu.memory_space<vmem>>, vector<1x1x128xf32>
    %221 = vector.shape_cast %220 : vector<1x1x128xf32> to vector<1x128xf32>
    %222 = vector.shape_cast %197 : vector<2x12x128xf32> to vector<24x128xf32>
    %cst_115 = arith.constant dense<0.000000e+00> : vector<24xf32>
    %223 = vector.multi_reduction <add>, %222, %cst_115 [1] : vector<24x128xf32> to vector<24xf32>
    %224 = vector.shape_cast %223 : vector<24xf32> to vector<24x1xf32>
    %cst_116 = arith.constant 1.280000e+02 : f32
    %225 = vector.broadcast %cst_116 : f32 to vector<24x1xf32>
    %226 = arith.divf %224, %225 : vector<24x1xf32>
    %227 = vector.broadcast %226 : vector<24x1xf32> to vector<24x128xf32>
    %228 = arith.subf %222, %227 : vector<24x128xf32>
    %229 = arith.mulf %228, %228 : vector<24x128xf32>
    %cst_117 = arith.constant dense<0.000000e+00> : vector<24xf32>
    %230 = vector.multi_reduction <add>, %229, %cst_117 [1] : vector<24x128xf32> to vector<24xf32>
    %231 = vector.shape_cast %230 : vector<24xf32> to vector<24x1xf32>
    %cst_118 = arith.constant 1.280000e+02 : f32
    %232 = vector.broadcast %cst_118 : f32 to vector<24x1xf32>
    %233 = arith.divf %231, %232 : vector<24x1xf32>
    %234 = vector.broadcast %226 : vector<24x1xf32> to vector<24x128xf32>
    %235 = arith.subf %222, %234 : vector<24x128xf32>
    %cst_119 = arith.constant 9.99999974E-6 : f32
    %236 = vector.broadcast %cst_119 : f32 to vector<24x1xf32>
    %237 = arith.addf %233, %236 : vector<24x1xf32>
    %238 = math.rsqrt %237 : vector<24x1xf32>
    %239 = vector.broadcast %238 : vector<24x1xf32> to vector<24x128xf32>
    %240 = arith.mulf %235, %239 : vector<24x128xf32>
    %241 = vector.broadcast %199 : vector<1x128xf32> to vector<24x128xf32>
    %242 = arith.mulf %240, %241 : vector<24x128xf32>
    %243 = vector.broadcast %201 : vector<1x128xf32> to vector<24x128xf32>
    %244 = arith.addf %242, %243 : vector<24x128xf32>
    %245 = arith.truncf %244 : vector<24x128xf32> to vector<24x128xbf16>
    %cst_120 = arith.constant dense<0.000000e+00> : vector<24x384xf32>
    %246 = tpu.matmul %245, %203, %cst_120 {dimension_numbers = #tpu.dot_dimension_numbers<[1], [0], [0], [1], [0, 0, 1, 1], [], []>} : vector<24x128xbf16>, vector<128x384xbf16>, vector<24x384xf32> -> vector<24x384xf32>
    %247 = vector.broadcast %205 : vector<1x384xf32> to vector<24x384xf32>
    %248 = arith.addf %246, %247 : vector<24x384xf32>
    %249 = vector.shape_cast %248 : vector<24x384xf32> to vector<2x12x384xf32>
    %250 = vector.extract_strided_slice %249 {offsets = [0, 0, 0], sizes = [2, 12, 32], strides = [1, 1, 1]} : vector<2x12x384xf32> to vector<2x12x32xf32>
    %251 = vector.extract_strided_slice %249 {offsets = [0, 0, 128], sizes = [2, 12, 32], strides = [1, 1, 1]} : vector<2x12x384xf32> to vector<2x12x32xf32>
    %252 = vector.extract_strided_slice %249 {offsets = [0, 0, 256], sizes = [2, 12, 32], strides = [1, 1, 1]} : vector<2x12x384xf32> to vector<2x12x32xf32>
    %253 = arith.truncf %250 : vector<2x12x32xf32> to vector<2x12x32xbf16>
    %254 = arith.truncf %251 : vector<2x12x32xf32> to vector<2x12x32xbf16>
    "tpu.trace_start"() <{level = 10 : i32, message = "bqd,bkd->bqk"}> : () -> ()
    %cst_121 = arith.constant dense<0.000000e+00> : vector<2x12x12xf32>
    %255 = tpu.matmul %253, %254, %cst_121 {dimension_numbers = #tpu.dot_dimension_numbers<[2], [2], [1], [1], [0, 0, 0, 1, 1, 1], [0], [0]>} : vector<2x12x32xbf16>, vector<2x12x32xbf16>, vector<2x12x12xf32> -> vector<2x12x12xf32>
    "tpu.trace_stop"() : () -> ()
    %cst_122 = arith.constant 0.176776692 : f32
    %256 = vector.broadcast %cst_122 : f32 to vector<2x12x12xf32>
    %257 = arith.mulf %255, %256 : vector<2x12x12xf32>
    %258 = arith.addf %257, %5 : vector<2x12x12xf32>
    %cst_123 = arith.constant dense<0xFF800000> : vector<2x12xf32>
    %259 = vector.multi_reduction <maximumf>, %258, %cst_123 [2] : vector<2x12x12xf32> to vector<2x12xf32>
    %260 = vector.shape_cast %259 : vector<2x12xf32> to vector<2x12x1xf32>
    %261 = vector.broadcast %260 : vector<2x12x1xf32> to vector<2x12x12xf32>
    %262 = arith.subf %258, %261 : vector<2x12x12xf32>
    %263 = math.exp %262 : vector<2x12x12xf32>
    %cst_124 = arith.constant dense<0.000000e+00> : vector<2x12xf32>
    %264 = vector.multi_reduction <add>, %263, %cst_124 [2] : vector<2x12x12xf32> to vector<2x12xf32>
    %265 = vector.shape_cast %264 : vector<2x12xf32> to vector<2x12x1xf32>
    %266 = tpu.reciprocal %265 {approx = true} : vector<2x12x1xf32> -> vector<2x12x1xf32>
    %267 = vector.broadcast %266 : vector<2x12x1xf32> to vector<2x12x12xf32>
    %268 = arith.mulf %263, %267 : vector<2x12x12xf32>
    %269 = arith.truncf %268 : vector<2x12x12xf32> to vector<2x12x12xbf16>
    %270 = arith.truncf %252 : vector<2x12x32xf32> to vector<2x12x32xbf16>
    "tpu.trace_start"() <{level = 10 : i32, message = "bqk,bkd->bqd"}> : () -> ()
    %cst_125 = arith.constant dense<0.000000e+00> : vector<2x12x32xf32>
    %271 = tpu.matmul %269, %270, %cst_125 {dimension_numbers = #tpu.dot_dimension_numbers<[2], [1], [1], [2], [0, 0, 0, 1, 1, 2], [0], [0]>} : vector<2x12x12xbf16>, vector<2x12x32xbf16>, vector<2x12x32xf32> -> vector<2x12x32xf32>
    "tpu.trace_stop"() : () -> ()
    %272 = vector.extract_strided_slice %249 {offsets = [0, 0, 32], sizes = [2, 12, 32], strides = [1, 1, 1]} : vector<2x12x384xf32> to vector<2x12x32xf32>
    %273 = vector.extract_strided_slice %249 {offsets = [0, 0, 160], sizes = [2, 12, 32], strides = [1, 1, 1]} : vector<2x12x384xf32> to vector<2x12x32xf32>
    %274 = vector.extract_strided_slice %249 {offsets = [0, 0, 288], sizes = [2, 12, 32], strides = [1, 1, 1]} : vector<2x12x384xf32> to vector<2x12x32xf32>
    %275 = arith.truncf %272 : vector<2x12x32xf32> to vector<2x12x32xbf16>
    %276 = arith.truncf %273 : vector<2x12x32xf32> to vector<2x12x32xbf16>
    "tpu.trace_start"() <{level = 10 : i32, message = "bqd,bkd->bqk"}> : () -> ()
    %cst_126 = arith.constant dense<0.000000e+00> : vector<2x12x12xf32>
    %277 = tpu.matmul %275, %276, %cst_126 {dimension_numbers = #tpu.dot_dimension_numbers<[2], [2], [1], [1], [0, 0, 0, 1, 1, 1], [0], [0]>} : vector<2x12x32xbf16>, vector<2x12x32xbf16>, vector<2x12x12xf32> -> vector<2x12x12xf32>
    "tpu.trace_stop"() : () -> ()
    %cst_127 = arith.constant 0.176776692 : f32
    %278 = vector.broadcast %cst_127 : f32 to vector<2x12x12xf32>
    %279 = arith.mulf %277, %278 : vector<2x12x12xf32>
    %280 = arith.addf %279, %5 : vector<2x12x12xf32>
    %cst_128 = arith.constant dense<0xFF800000> : vector<2x12xf32>
    %281 = vector.multi_reduction <maximumf>, %280, %cst_128 [2] : vector<2x12x12xf32> to vector<2x12xf32>
    %282 = vector.shape_cast %281 : vector<2x12xf32> to vector<2x12x1xf32>
    %283 = vector.broadcast %282 : vector<2x12x1xf32> to vector<2x12x12xf32>
    %284 = arith.subf %280, %283 : vector<2x12x12xf32>
    %285 = math.exp %284 : vector<2x12x12xf32>
    %cst_129 = arith.constant dense<0.000000e+00> : vector<2x12xf32>
    %286 = vector.multi_reduction <add>, %285, %cst_129 [2] : vector<2x12x12xf32> to vector<2x12xf32>
    %287 = vector.shape_cast %286 : vector<2x12xf32> to vector<2x12x1xf32>
    %288 = tpu.reciprocal %287 {approx = true} : vector<2x12x1xf32> -> vector<2x12x1xf32>
    %289 = vector.broadcast %288 : vector<2x12x1xf32> to vector<2x12x12xf32>
    %290 = arith.mulf %285, %289 : vector<2x12x12xf32>
    %291 = arith.truncf %290 : vector<2x12x12xf32> to vector<2x12x12xbf16>
    %292 = arith.truncf %274 : vector<2x12x32xf32> to vector<2x12x32xbf16>
    "tpu.trace_start"() <{level = 10 : i32, message = "bqk,bkd->bqd"}> : () -> ()
    %cst_130 = arith.constant dense<0.000000e+00> : vector<2x12x32xf32>
    %293 = tpu.matmul %291, %292, %cst_130 {dimension_numbers = #tpu.dot_dimension_numbers<[2], [1], [1], [2], [0, 0, 0, 1, 1, 2], [0], [0]>} : vector<2x12x12xbf16>, vector<2x12x32xbf16>, vector<2x12x32xf32> -> vector<2x12x32xf32>
    "tpu.trace_stop"() : () -> ()
    %294 = vector.extract_strided_slice %249 {offsets = [0, 0, 64], sizes = [2, 12, 32], strides = [1, 1, 1]} : vector<2x12x384xf32> to vector<2x12x32xf32>
    %295 = vector.extract_strided_slice %249 {offsets = [0, 0, 192], sizes = [2, 12, 32], strides = [1, 1, 1]} : vector<2x12x384xf32> to vector<2x12x32xf32>
    %296 = vector.extract_strided_slice %249 {offsets = [0, 0, 320], sizes = [2, 12, 32], strides = [1, 1, 1]} : vector<2x12x384xf32> to vector<2x12x32xf32>
    %297 = arith.truncf %294 : vector<2x12x32xf32> to vector<2x12x32xbf16>
    %298 = arith.truncf %295 : vector<2x12x32xf32> to vector<2x12x32xbf16>
    "tpu.trace_start"() <{level = 10 : i32, message = "bqd,bkd->bqk"}> : () -> ()
    %cst_131 = arith.constant dense<0.000000e+00> : vector<2x12x12xf32>
    %299 = tpu.matmul %297, %298, %cst_131 {dimension_numbers = #tpu.dot_dimension_numbers<[2], [2], [1], [1], [0, 0, 0, 1, 1, 1], [0], [0]>} : vector<2x12x32xbf16>, vector<2x12x32xbf16>, vector<2x12x12xf32> -> vector<2x12x12xf32>
    "tpu.trace_stop"() : () -> ()
    %cst_132 = arith.constant 0.176776692 : f32
    %300 = vector.broadcast %cst_132 : f32 to vector<2x12x12xf32>
    %301 = arith.mulf %299, %300 : vector<2x12x12xf32>
    %302 = arith.addf %301, %5 : vector<2x12x12xf32>
    %cst_133 = arith.constant dense<0xFF800000> : vector<2x12xf32>
    %303 = vector.multi_reduction <maximumf>, %302, %cst_133 [2] : vector<2x12x12xf32> to vector<2x12xf32>
    %304 = vector.shape_cast %303 : vector<2x12xf32> to vector<2x12x1xf32>
    %305 = vector.broadcast %304 : vector<2x12x1xf32> to vector<2x12x12xf32>
    %306 = arith.subf %302, %305 : vector<2x12x12xf32>
    %307 = math.exp %306 : vector<2x12x12xf32>
    %cst_134 = arith.constant dense<0.000000e+00> : vector<2x12xf32>
    %308 = vector.multi_reduction <add>, %307, %cst_134 [2] : vector<2x12x12xf32> to vector<2x12xf32>
    %309 = vector.shape_cast %308 : vector<2x12xf32> to vector<2x12x1xf32>
    %310 = tpu.reciprocal %309 {approx = true} : vector<2x12x1xf32> -> vector<2x12x1xf32>
    %311 = vector.broadcast %310 : vector<2x12x1xf32> to vector<2x12x12xf32>
    %312 = arith.mulf %307, %311 : vector<2x12x12xf32>
    %313 = arith.truncf %312 : vector<2x12x12xf32> to vector<2x12x12xbf16>
    %314 = arith.truncf %296 : vector<2x12x32xf32> to vector<2x12x32xbf16>
    "tpu.trace_start"() <{level = 10 : i32, message = "bqk,bkd->bqd"}> : () -> ()
    %cst_135 = arith.constant dense<0.000000e+00> : vector<2x12x32xf32>
    %315 = tpu.matmul %313, %314, %cst_135 {dimension_numbers = #tpu.dot_dimension_numbers<[2], [1], [1], [2], [0, 0, 0, 1, 1, 2], [0], [0]>} : vector<2x12x12xbf16>, vector<2x12x32xbf16>, vector<2x12x32xf32> -> vector<2x12x32xf32>
    "tpu.trace_stop"() : () -> ()
    %316 = vector.extract_strided_slice %249 {offsets = [0, 0, 96], sizes = [2, 12, 32], strides = [1, 1, 1]} : vector<2x12x384xf32> to vector<2x12x32xf32>
    %317 = vector.extract_strided_slice %249 {offsets = [0, 0, 224], sizes = [2, 12, 32], strides = [1, 1, 1]} : vector<2x12x384xf32> to vector<2x12x32xf32>
    %318 = vector.extract_strided_slice %249 {offsets = [0, 0, 352], sizes = [2, 12, 32], strides = [1, 1, 1]} : vector<2x12x384xf32> to vector<2x12x32xf32>
    %319 = arith.truncf %316 : vector<2x12x32xf32> to vector<2x12x32xbf16>
    %320 = arith.truncf %317 : vector<2x12x32xf32> to vector<2x12x32xbf16>
    "tpu.trace_start"() <{level = 10 : i32, message = "bqd,bkd->bqk"}> : () -> ()
    %cst_136 = arith.constant dense<0.000000e+00> : vector<2x12x12xf32>
    %321 = tpu.matmul %319, %320, %cst_136 {dimension_numbers = #tpu.dot_dimension_numbers<[2], [2], [1], [1], [0, 0, 0, 1, 1, 1], [0], [0]>} : vector<2x12x32xbf16>, vector<2x12x32xbf16>, vector<2x12x12xf32> -> vector<2x12x12xf32>
    "tpu.trace_stop"() : () -> ()
    %cst_137 = arith.constant 0.176776692 : f32
    %322 = vector.broadcast %cst_137 : f32 to vector<2x12x12xf32>
    %323 = arith.mulf %321, %322 : vector<2x12x12xf32>
    %324 = arith.addf %323, %5 : vector<2x12x12xf32>
    %cst_138 = arith.constant dense<0xFF800000> : vector<2x12xf32>
    %325 = vector.multi_reduction <maximumf>, %324, %cst_138 [2] : vector<2x12x12xf32> to vector<2x12xf32>
    %326 = vector.shape_cast %325 : vector<2x12xf32> to vector<2x12x1xf32>
    %327 = vector.broadcast %326 : vector<2x12x1xf32> to vector<2x12x12xf32>
    %328 = arith.subf %324, %327 : vector<2x12x12xf32>
    %329 = math.exp %328 : vector<2x12x12xf32>
    %cst_139 = arith.constant dense<0.000000e+00> : vector<2x12xf32>
    %330 = vector.multi_reduction <add>, %329, %cst_139 [2] : vector<2x12x12xf32> to vector<2x12xf32>
    %331 = vector.shape_cast %330 : vector<2x12xf32> to vector<2x12x1xf32>
    %332 = tpu.reciprocal %331 {approx = true} : vector<2x12x1xf32> -> vector<2x12x1xf32>
    %333 = vector.broadcast %332 : vector<2x12x1xf32> to vector<2x12x12xf32>
    %334 = arith.mulf %329, %333 : vector<2x12x12xf32>
    %335 = arith.truncf %334 : vector<2x12x12xf32> to vector<2x12x12xbf16>
    %336 = arith.truncf %318 : vector<2x12x32xf32> to vector<2x12x32xbf16>
    "tpu.trace_start"() <{level = 10 : i32, message = "bqk,bkd->bqd"}> : () -> ()
    %cst_140 = arith.constant dense<0.000000e+00> : vector<2x12x32xf32>
    %337 = tpu.matmul %335, %336, %cst_140 {dimension_numbers = #tpu.dot_dimension_numbers<[2], [1], [1], [2], [0, 0, 0, 1, 1, 2], [0], [0]>} : vector<2x12x12xbf16>, vector<2x12x32xbf16>, vector<2x12x32xf32> -> vector<2x12x32xf32>
    "tpu.trace_stop"() : () -> ()
    %338 = tpu.concatenate %271, %293, %315, %337 in 2 : vector<2x12x32xf32>, vector<2x12x32xf32>, vector<2x12x32xf32>, vector<2x12x32xf32> -> vector<2x12x128xf32>
    %339 = vector.shape_cast %338 : vector<2x12x128xf32> to vector<24x128xf32>
    %340 = arith.truncf %339 : vector<24x128xf32> to vector<24x128xbf16>
    %cst_141 = arith.constant dense<0.000000e+00> : vector<24x128xf32>
    %341 = tpu.matmul %340, %207, %cst_141 {dimension_numbers = #tpu.dot_dimension_numbers<[1], [0], [0], [1], [0, 0, 1, 1], [], []>} : vector<24x128xbf16>, vector<128x128xbf16>, vector<24x128xf32> -> vector<24x128xf32>
    %342 = vector.broadcast %209 : vector<1x128xf32> to vector<24x128xf32>
    %343 = arith.addf %341, %342 : vector<24x128xf32>
    %cst_142 = arith.constant dense<0.000000e+00> : vector<24xf32>
    %344 = vector.multi_reduction <add>, %222, %cst_142 [1] : vector<24x128xf32> to vector<24xf32>
    %345 = vector.shape_cast %344 : vector<24xf32> to vector<24x1xf32>
    %cst_143 = arith.constant 1.280000e+02 : f32
    %346 = vector.broadcast %cst_143 : f32 to vector<24x1xf32>
    %347 = arith.divf %345, %346 : vector<24x1xf32>
    %348 = vector.broadcast %347 : vector<24x1xf32> to vector<24x128xf32>
    %349 = arith.subf %222, %348 : vector<24x128xf32>
    %350 = arith.mulf %349, %349 : vector<24x128xf32>
    %cst_144 = arith.constant dense<0.000000e+00> : vector<24xf32>
    %351 = vector.multi_reduction <add>, %350, %cst_144 [1] : vector<24x128xf32> to vector<24xf32>
    %352 = vector.shape_cast %351 : vector<24xf32> to vector<24x1xf32>
    %cst_145 = arith.constant 1.280000e+02 : f32
    %353 = vector.broadcast %cst_145 : f32 to vector<24x1xf32>
    %354 = arith.divf %352, %353 : vector<24x1xf32>
    %355 = vector.broadcast %347 : vector<24x1xf32> to vector<24x128xf32>
    %356 = arith.subf %222, %355 : vector<24x128xf32>
    %cst_146 = arith.constant 9.99999974E-6 : f32
    %357 = vector.broadcast %cst_146 : f32 to vector<24x1xf32>
    %358 = arith.addf %354, %357 : vector<24x1xf32>
    %359 = math.rsqrt %358 : vector<24x1xf32>
    %360 = vector.broadcast %359 : vector<24x1xf32> to vector<24x128xf32>
    %361 = arith.mulf %356, %360 : vector<24x128xf32>
    %362 = vector.broadcast %211 : vector<1x128xf32> to vector<24x128xf32>
    %363 = arith.mulf %361, %362 : vector<24x128xf32>
    %364 = vector.broadcast %213 : vector<1x128xf32> to vector<24x128xf32>
    %365 = arith.addf %363, %364 : vector<24x128xf32>
    %366 = arith.truncf %365 : vector<24x128xf32> to vector<24x128xbf16>
    %cst_147 = arith.constant dense<0.000000e+00> : vector<24x512xf32>
    %367 = tpu.matmul %366, %215, %cst_147 {dimension_numbers = #tpu.dot_dimension_numbers<[1], [0], [0], [1], [0, 0, 1, 1], [], []>} : vector<24x128xbf16>, vector<128x512xbf16>, vector<24x512xf32> -> vector<24x512xf32>
    %368 = vector.broadcast %217 : vector<1x512xf32> to vector<24x512xf32>
    %369 = arith.addf %367, %368 : vector<24x512xf32>
    %370 = arith.mulf %369, %369 : vector<24x512xf32>
    %371 = arith.mulf %369, %370 : vector<24x512xf32>
    %cst_148 = arith.constant 4.471500e-02 : f32
    %372 = vector.broadcast %cst_148 : f32 to vector<24x512xf32>
    %373 = arith.mulf %372, %371 : vector<24x512xf32>
    %374 = arith.addf %369, %373 : vector<24x512xf32>
    %cst_149 = arith.constant 0.797884583 : f32
    %375 = vector.broadcast %cst_149 : f32 to vector<24x512xf32>
    %376 = arith.mulf %375, %374 : vector<24x512xf32>
    %377 = math.tanh %376 : vector<24x512xf32>
    %cst_150 = arith.constant 1.000000e+00 : f32
    %378 = vector.broadcast %cst_150 : f32 to vector<24x512xf32>
    %379 = arith.addf %378, %377 : vector<24x512xf32>
    %cst_151 = arith.constant 5.000000e-01 : f32
    %380 = vector.broadcast %cst_151 : f32 to vector<24x512xf32>
    %381 = arith.mulf %380, %379 : vector<24x512xf32>
    %382 = arith.mulf %369, %381 : vector<24x512xf32>
    %383 = arith.truncf %382 : vector<24x512xf32> to vector<24x512xbf16>
    %cst_152 = arith.constant dense<0.000000e+00> : vector<24x128xf32>
    %384 = tpu.matmul %383, %219, %cst_152 {dimension_numbers = #tpu.dot_dimension_numbers<[1], [0], [0], [1], [0, 0, 1, 1], [], []>} : vector<24x512xbf16>, vector<512x128xbf16>, vector<24x128xf32> -> vector<24x128xf32>
    %385 = vector.broadcast %221 : vector<1x128xf32> to vector<24x128xf32>
    %386 = arith.addf %384, %385 : vector<24x128xf32>
    %387 = arith.addf %343, %386 : vector<24x128xf32>
    %388 = vector.shape_cast %387 : vector<24x128xf32> to vector<2x12x128xf32>
    %389 = arith.addf %197, %388 : vector<2x12x128xf32>
    %c0_153 = arith.constant 0 : index
    %c0_154 = arith.constant 0 : index
    %c0_155 = arith.constant 0 : index
    %390 = vector.load %arg15[%c0_153, %c0_154, %c0_155] : memref<2x12x128xf32, #tpu.memory_space<vmem>>, vector<2x12x128xf32>
    tpu.vector_store %arg15[%c0_153, %c0_154, %c0_155], %389 {strides = array<i32>} : memref<2x12x128xf32, #tpu.memory_space<vmem>>, vector<2x12x128xf32>,
    return
  }
}

module attributes {stable_mosaic.version = 11 : i64} {
  func.func @_head_kernel(%arg0: memref<2x12x128xf32, #tpu.memory_space<vmem>>, %arg1: memref<2x12x1xf32, #tpu.memory_space<vmem>>, %arg2: memref<1x128xf32, #tpu.memory_space<vmem>>, %arg3: memref<1x128xf32, #tpu.memory_space<vmem>>, %arg4: memref<128x512xbf16, #tpu.memory_space<vmem>>, %arg5: memref<1x512xf32, #tpu.memory_space<vmem>>, %arg6: memref<2x8xf32, #tpu.memory_space<vmem>>, %arg7: memref<128x256xbf16, #tpu.memory_space<vmem>>, %arg8: memref<8x256xbf16, #tpu.memory_space<vmem>>, %arg9: memref<1x256xf32, #tpu.memory_space<vmem>>, %arg10: memref<256x256xbf16, #tpu.memory_space<vmem>>, %arg11: memref<1x256xf32, #tpu.memory_space<vmem>>, %arg12: memref<256x80xbf16, #tpu.memory_space<vmem>>, %arg13: memref<1x80xf32, #tpu.memory_space<vmem>>, %arg14: memref<2x12x512xf32, #tpu.memory_space<vmem>>, %arg15: memref<2x80xf32, #tpu.memory_space<vmem>>) attributes {dimension_semantics = [], scalar_prefetch = 0 : i64, scratch_operands = 0 : i64, tpu.core_type = #tpu.core_type<tc>} {
    %c0 = arith.constant 0 : index
    %c0_0 = arith.constant 0 : index
    %c0_1 = arith.constant 0 : index
    %0 = vector.load %arg0[%c0, %c0_0, %c0_1] : memref<2x12x128xf32, #tpu.memory_space<vmem>>, vector<2x12x128xf32>
    %1 = vector.shape_cast %0 : vector<2x12x128xf32> to vector<24x128xf32>
    %c0_2 = arith.constant 0 : index
    %c0_3 = arith.constant 0 : index
    %2 = vector.load %arg2[%c0_2, %c0_3] : memref<1x128xf32, #tpu.memory_space<vmem>>, vector<1x128xf32>
    %c0_4 = arith.constant 0 : index
    %c0_5 = arith.constant 0 : index
    %3 = vector.load %arg3[%c0_4, %c0_5] : memref<1x128xf32, #tpu.memory_space<vmem>>, vector<1x128xf32>
    %cst = arith.constant dense<0.000000e+00> : vector<24xf32>
    %4 = vector.multi_reduction <add>, %1, %cst [1] : vector<24x128xf32> to vector<24xf32>
    %5 = vector.shape_cast %4 : vector<24xf32> to vector<24x1xf32>
    %cst_6 = arith.constant 1.280000e+02 : f32
    %6 = vector.broadcast %cst_6 : f32 to vector<24x1xf32>
    %7 = arith.divf %5, %6 : vector<24x1xf32>
    %8 = vector.broadcast %7 : vector<24x1xf32> to vector<24x128xf32>
    %9 = arith.subf %1, %8 : vector<24x128xf32>
    %10 = arith.mulf %9, %9 : vector<24x128xf32>
    %cst_7 = arith.constant dense<0.000000e+00> : vector<24xf32>
    %11 = vector.multi_reduction <add>, %10, %cst_7 [1] : vector<24x128xf32> to vector<24xf32>
    %12 = vector.shape_cast %11 : vector<24xf32> to vector<24x1xf32>
    %cst_8 = arith.constant 1.280000e+02 : f32
    %13 = vector.broadcast %cst_8 : f32 to vector<24x1xf32>
    %14 = arith.divf %12, %13 : vector<24x1xf32>
    %15 = vector.broadcast %7 : vector<24x1xf32> to vector<24x128xf32>
    %16 = arith.subf %1, %15 : vector<24x128xf32>
    %cst_9 = arith.constant 9.99999974E-6 : f32
    %17 = vector.broadcast %cst_9 : f32 to vector<24x1xf32>
    %18 = arith.addf %14, %17 : vector<24x1xf32>
    %19 = math.rsqrt %18 : vector<24x1xf32>
    %20 = vector.broadcast %19 : vector<24x1xf32> to vector<24x128xf32>
    %21 = arith.mulf %16, %20 : vector<24x128xf32>
    %22 = vector.broadcast %2 : vector<1x128xf32> to vector<24x128xf32>
    %23 = arith.mulf %21, %22 : vector<24x128xf32>
    %24 = vector.broadcast %3 : vector<1x128xf32> to vector<24x128xf32>
    %25 = arith.addf %23, %24 : vector<24x128xf32>
    %26 = arith.truncf %25 : vector<24x128xf32> to vector<24x128xbf16>
    %c0_10 = arith.constant 0 : index
    %c0_11 = arith.constant 0 : index
    %27 = vector.load %arg4[%c0_10, %c0_11] : memref<128x512xbf16, #tpu.memory_space<vmem>>, vector<128x512xbf16>
    %cst_12 = arith.constant dense<0.000000e+00> : vector<24x512xf32>
    %28 = tpu.matmul %26, %27, %cst_12 {dimension_numbers = #tpu.dot_dimension_numbers<[1], [0], [0], [1], [0, 0, 1, 1], [], []>} : vector<24x128xbf16>, vector<128x512xbf16>, vector<24x512xf32> -> vector<24x512xf32>
    %c0_13 = arith.constant 0 : index
    %c0_14 = arith.constant 0 : index
    %29 = vector.load %arg5[%c0_13, %c0_14] : memref<1x512xf32, #tpu.memory_space<vmem>>, vector<1x512xf32>
    %30 = vector.broadcast %29 : vector<1x512xf32> to vector<24x512xf32>
    %31 = arith.addf %28, %30 : vector<24x512xf32>
    %32 = vector.shape_cast %31 : vector<24x512xf32> to vector<2x12x512xf32>
    %c0_15 = arith.constant 0 : index
    %c0_16 = arith.constant 0 : index
    %c0_17 = arith.constant 0 : index
    %33 = vector.load %arg14[%c0_15, %c0_16, %c0_17] : memref<2x12x512xf32, #tpu.memory_space<vmem>>, vector<2x12x512xf32>
    tpu.vector_store %arg14[%c0_15, %c0_16, %c0_17], %32 {strides = array<i32>} : memref<2x12x512xf32, #tpu.memory_space<vmem>>, vector<2x12x512xf32>,
    %c0_18 = arith.constant 0 : index
    %c0_19 = arith.constant 0 : index
    %c0_20 = arith.constant 0 : index
    %34 = vector.load %arg1[%c0_18, %c0_19, %c0_20] : memref<2x12x1xf32, #tpu.memory_space<vmem>>, vector<2x12x1xf32>
    %35 = vector.shape_cast %25 : vector<24x128xf32> to vector<2x12x128xf32>
    %36 = vector.broadcast %34 : vector<2x12x1xf32> to vector<2x12x128xf32>
    %37 = arith.mulf %35, %36 : vector<2x12x128xf32>
    %cst_21 = arith.constant dense<0.000000e+00> : vector<2x128xf32>
    %38 = vector.multi_reduction <add>, %37, %cst_21 [1] : vector<2x12x128xf32> to vector<2x128xf32>
    %cst_22 = arith.constant dense<0.000000e+00> : vector<2x1xf32>
    %39 = vector.multi_reduction <add>, %34, %cst_22 [1] : vector<2x12x1xf32> to vector<2x1xf32>
    %cst_23 = arith.constant 1.000000e+00 : f32
    %40 = vector.broadcast %cst_23 : f32 to vector<2x1xf32>
    %41 = arith.maximumf %39, %40 : vector<2x1xf32>
    %42 = vector.broadcast %41 : vector<2x1xf32> to vector<2x128xf32>
    %43 = arith.divf %38, %42 : vector<2x128xf32>
    %44 = arith.truncf %43 : vector<2x128xf32> to vector<2x128xbf16>
    %c0_24 = arith.constant 0 : index
    %c0_25 = arith.constant 0 : index
    %45 = vector.load %arg7[%c0_24, %c0_25] : memref<128x256xbf16, #tpu.memory_space<vmem>>, vector<128x256xbf16>
    %cst_26 = arith.constant dense<0.000000e+00> : vector<2x256xf32>
    %46 = tpu.matmul %44, %45, %cst_26 {dimension_numbers = #tpu.dot_dimension_numbers<[1], [0], [0], [1], [0, 0, 1, 1], [], []>} : vector<2x128xbf16>, vector<128x256xbf16>, vector<2x256xf32> -> vector<2x256xf32>
    %c0_27 = arith.constant 0 : index
    %c0_28 = arith.constant 0 : index
    %47 = vector.load %arg6[%c0_27, %c0_28] : memref<2x8xf32, #tpu.memory_space<vmem>>, vector<2x8xf32>
    %48 = arith.truncf %47 : vector<2x8xf32> to vector<2x8xbf16>
    %c0_29 = arith.constant 0 : index
    %c0_30 = arith.constant 0 : index
    %49 = vector.load %arg8[%c0_29, %c0_30] : memref<8x256xbf16, #tpu.memory_space<vmem>>, vector<8x256xbf16>
    %cst_31 = arith.constant dense<0.000000e+00> : vector<2x256xf32>
    %50 = tpu.matmul %48, %49, %cst_31 {dimension_numbers = #tpu.dot_dimension_numbers<[1], [0], [0], [1], [0, 0, 1, 1], [], []>} : vector<2x8xbf16>, vector<8x256xbf16>, vector<2x256xf32> -> vector<2x256xf32>
    %51 = arith.addf %46, %50 : vector<2x256xf32>
    %c0_32 = arith.constant 0 : index
    %c0_33 = arith.constant 0 : index
    %52 = vector.load %arg9[%c0_32, %c0_33] : memref<1x256xf32, #tpu.memory_space<vmem>>, vector<1x256xf32>
    %53 = vector.broadcast %52 : vector<1x256xf32> to vector<2x256xf32>
    %54 = arith.addf %51, %53 : vector<2x256xf32>
    %cst_34 = arith.constant 0.000000e+00 : f32
    %55 = vector.broadcast %cst_34 : f32 to vector<2x256xf32>
    %56 = arith.maximumf %54, %55 : vector<2x256xf32>
    %57 = arith.truncf %56 : vector<2x256xf32> to vector<2x256xbf16>
    %c0_35 = arith.constant 0 : index
    %c0_36 = arith.constant 0 : index
    %58 = vector.load %arg10[%c0_35, %c0_36] : memref<256x256xbf16, #tpu.memory_space<vmem>>, vector<256x256xbf16>
    %cst_37 = arith.constant dense<0.000000e+00> : vector<2x256xf32>
    %59 = tpu.matmul %57, %58, %cst_37 {dimension_numbers = #tpu.dot_dimension_numbers<[1], [0], [0], [1], [0, 0, 1, 1], [], []>} : vector<2x256xbf16>, vector<256x256xbf16>, vector<2x256xf32> -> vector<2x256xf32>
    %c0_38 = arith.constant 0 : index
    %c0_39 = arith.constant 0 : index
    %60 = vector.load %arg11[%c0_38, %c0_39] : memref<1x256xf32, #tpu.memory_space<vmem>>, vector<1x256xf32>
    %61 = vector.broadcast %60 : vector<1x256xf32> to vector<2x256xf32>
    %62 = arith.addf %59, %61 : vector<2x256xf32>
    %cst_40 = arith.constant 0.000000e+00 : f32
    %63 = vector.broadcast %cst_40 : f32 to vector<2x256xf32>
    %64 = arith.maximumf %62, %63 : vector<2x256xf32>
    %65 = arith.truncf %64 : vector<2x256xf32> to vector<2x256xbf16>
    %c0_41 = arith.constant 0 : index
    %c0_42 = arith.constant 0 : index
    %66 = vector.load %arg12[%c0_41, %c0_42] : memref<256x80xbf16, #tpu.memory_space<vmem>>, vector<256x80xbf16>
    %cst_43 = arith.constant dense<0.000000e+00> : vector<2x80xf32>
    %67 = tpu.matmul %65, %66, %cst_43 {dimension_numbers = #tpu.dot_dimension_numbers<[1], [0], [0], [1], [0, 0, 1, 1], [], []>} : vector<2x256xbf16>, vector<256x80xbf16>, vector<2x80xf32> -> vector<2x80xf32>
    %c0_44 = arith.constant 0 : index
    %c0_45 = arith.constant 0 : index
    %68 = vector.load %arg13[%c0_44, %c0_45] : memref<1x80xf32, #tpu.memory_space<vmem>>, vector<1x80xf32>
    %69 = vector.broadcast %68 : vector<1x80xf32> to vector<2x80xf32>
    %70 = arith.addf %67, %69 : vector<2x80xf32>
    %c0_46 = arith.constant 0 : index
    %c0_47 = arith.constant 0 : index
    %71 = vector.load %arg15[%c0_46, %c0_47] : memref<2x80xf32, #tpu.memory_space<vmem>>, vector<2x80xf32>
    tpu.vector_store %arg15[%c0_46, %c0_47], %70 {strides = array<i32>} : memref<2x80xf32, #tpu.memory_space<vmem>>, vector<2x80xf32>,
    return
  }
}

</mosaic_0001>

<llo_original>
// kernel: unified_tinyvla_forward.5
$region0: #{unified_tinyvla_forward.5}
  #allocation0 [shape = 'u32[]', space=smem, size = 0x4, offset = 0x4, fixed_abs, tag = 'smem constant byte address 0x4 - core index']
  #allocation1 [shape = 'u32[144,128]{1,0:T(1,128)}', space=vmem, size = 0x12000, scoped, tag = 'internal scratch']
  %s0 = inlined_call_operand.vmem [shape: f32[2,12,128], index: 0, kind: input, shape index: {}]
  %s1 = inlined_call_operand.vmem [shape: f32[2,12,1], index: 1, kind: input, shape index: {}]
  %s2 = inlined_call_operand.vmem [shape: f32[1,128], index: 2, kind: input, shape index: {}]
  %s3 = inlined_call_operand.vmem [shape: f32[1,128], index: 3, kind: input, shape index: {}]
  %s4 = inlined_call_operand.vmem [shape: bf16[128,512], index: 4, kind: input, shape index: {}]
  %s5 = inlined_call_operand.vmem [shape: f32[1,512], index: 5, kind: input, shape index: {}]
  %s6 = inlined_call_operand.vmem [shape: f32[2,8], index: 6, kind: input, shape index: {}]
  %s7 = inlined_call_operand.vmem [shape: bf16[128,256], index: 7, kind: input, shape index: {}]
  %s8 = inlined_call_operand.vmem [shape: bf16[8,256], index: 8, kind: input, shape index: {}]
  %s9 = inlined_call_operand.vmem [shape: f32[1,256], index: 9, kind: input, shape index: {}]
  %s10 = inlined_call_operand.vmem [shape: bf16[256,256], index: 10, kind: input, shape index: {}]
  %s11 = inlined_call_operand.vmem [shape: f32[1,256], index: 11, kind: input, shape index: {}]
  %s12 = inlined_call_operand.vmem [shape: bf16[256,80], index: 12, kind: input, shape index: {}]
  %s13 = inlined_call_operand.vmem [shape: f32[1,80], index: 13, kind: input, shape index: {}]
  %s14 = inlined_call_operand.vmem [shape: f32[2,12,512], index: 14, kind: output, shape index: {0}]
  %s15 = inlined_call_operand.vmem [shape: f32[2,80], index: 15, kind: output, shape index: {1}]
  %16 = xla_tuple %s14, %s15
  %s17 = sld [smem:[#allocation0]]
  $region74: #{unified_tinyvla_forward.5} parent=0
    _
  %s19 = ssub.s32 1, %s17
  %s20 = scalar_select 0, %s19, %s17
  // Predicated region
  $region2: #{unified_tinyvla_forward.5} parent=0 // pred_check
    _
  $region3: #{unified_tinyvla_forward.5} parent=0 // pred_check_branch
    %22 = sbr.rel (0) target = $region5
  $region4: #{unified_tinyvla_forward.5} parent=0 // pred_region
    _
  $region5: #{unified_tinyvla_forward.5} parent=0 // pred_fallthru
    _
  // Predicated region
  $region6: #{unified_tinyvla_forward.5} parent=0 // pred_check
    _
  $region7: #{unified_tinyvla_forward.5} parent=0 // pred_check_branch
    %24 = sbr.rel (0) target = $region9
  $region8: #{unified_tinyvla_forward.5} parent=0 // pred_region
    _
  $region9: #{unified_tinyvla_forward.5} parent=0 // pred_fallthru
    _
  // Predicated region
  $region10: #{unified_tinyvla_forward.5} parent=0 // pred_check
    _
  $region11: #{unified_tinyvla_forward.5} parent=0 // pred_check_branch
    %26 = sbr.rel (0) target = $region13
  $region12: #{unified_tinyvla_forward.5} parent=0 // pred_region
    _
  $region13: #{unified_tinyvla_forward.5} parent=0 // pred_fallthru
    _
  // Predicated region
  $region14: #{unified_tinyvla_forward.5} parent=0 // pred_check
    _
  $region15: #{unified_tinyvla_forward.5} parent=0 // pred_check_branch
    %28 = sbr.rel (0) target = $region17
  $region16: #{unified_tinyvla_forward.5} parent=0 // pred_region
    _
  $region17: #{unified_tinyvla_forward.5} parent=0 // pred_fallthru
    _
  // Predicated region
  $region18: #{unified_tinyvla_forward.5} parent=0 // pred_check
    _
  $region19: #{unified_tinyvla_forward.5} parent=0 // pred_check_branch
    %30 = sbr.rel (0) target = $region21
  $region20: #{unified_tinyvla_forward.5} parent=0 // pred_region
    _
  $region21: #{unified_tinyvla_forward.5} parent=0 // pred_fallthru
    _
  // Predicated region
  $region22: #{unified_tinyvla_forward.5} parent=0 // pred_check
    _
  $region23: #{unified_tinyvla_forward.5} parent=0 // pred_check_branch
    %32 = sbr.rel (0) target = $region25
  $region24: #{unified_tinyvla_forward.5} parent=0 // pred_region
    _
  $region25: #{unified_tinyvla_forward.5} parent=0 // pred_fallthru
    _
  // Predicated region
  $region26: #{unified_tinyvla_forward.5} parent=0 // pred_check
    _
  $region27: #{unified_tinyvla_forward.5} parent=0 // pred_check_branch
    %34 = sbr.rel (0) target = $region29
  $region28: #{unified_tinyvla_forward.5} parent=0 // pred_region
    _
  $region29: #{unified_tinyvla_forward.5} parent=0 // pred_fallthru
    _
  // Predicated region
  $region30: #{unified_tinyvla_forward.5} parent=0 // pred_check
    _
  $region31: #{unified_tinyvla_forward.5} parent=0 // pred_check_branch
    %36 = sbr.rel (0) target = $region33
  $region32: #{unified_tinyvla_forward.5} parent=0 // pred_region
    _
  $region33: #{unified_tinyvla_forward.5} parent=0 // pred_fallthru
    _
  // Predicated region
  $region34: #{unified_tinyvla_forward.5} parent=0 // pred_check
    _
  $region35: #{unified_tinyvla_forward.5} parent=0 // pred_check_branch
    %38 = sbr.rel (0) target = $region37
  $region36: #{unified_tinyvla_forward.5} parent=0 // pred_region
    _
  $region37: #{unified_tinyvla_forward.5} parent=0 // pred_fallthru
    _
  // Predicated region
  $region38: #{unified_tinyvla_forward.5} parent=0 // pred_check
    _
  $region39: #{unified_tinyvla_forward.5} parent=0 // pred_check_branch
    %40 = sbr.rel (0) target = $region41
  $region40: #{unified_tinyvla_forward.5} parent=0 // pred_region
    _
  $region41: #{unified_tinyvla_forward.5} parent=0 // pred_fallthru
    _
  // Predicated region
  $region42: #{unified_tinyvla_forward.5} parent=0 // pred_check
    _
  $region43: #{unified_tinyvla_forward.5} parent=0 // pred_check_branch
    %42 = sbr.rel (0) target = $region45
  $region44: #{unified_tinyvla_forward.5} parent=0 // pred_region
    _
  $region45: #{unified_tinyvla_forward.5} parent=0 // pred_fallthru
    _
  // Predicated region
  $region46: #{unified_tinyvla_forward.5} parent=0 // pred_check
    _
  $region47: #{unified_tinyvla_forward.5} parent=0 // pred_check_branch
    %44 = sbr.rel (0) target = $region49
  $region48: #{unified_tinyvla_forward.5} parent=0 // pred_region
    _
  $region49: #{unified_tinyvla_forward.5} parent=0 // pred_fallthru
    _
  // Predicated region
  $region50: #{unified_tinyvla_forward.5} parent=0 // pred_check
    _
  $region51: #{unified_tinyvla_forward.5} parent=0 // pred_check_branch
    %46 = sbr.rel (0) target = $region53
  $region52: #{unified_tinyvla_forward.5} parent=0 // pred_region
    _
  $region53: #{unified_tinyvla_forward.5} parent=0 // pred_fallthru
    _
  // Predicated region
  $region54: #{unified_tinyvla_forward.5} parent=0 // pred_check
    _
  $region55: #{unified_tinyvla_forward.5} parent=0 // pred_check_branch
    %48 = sbr.rel (0) target = $region57
  $region56: #{unified_tinyvla_forward.5} parent=0 // pred_region
    _
  $region57: #{unified_tinyvla_forward.5} parent=0 // pred_fallthru
    _
  %v50 = vld [vmem:[%s0] sm:$0xff]
  %v51 = vld [vmem:[%s0 + $0x8] sm:$0xf]
  %v52 = vld [vmem:[%s0 + $0x10] sm:$0xff]
  %v53 = vld [vmem:[%s0 + $0x18] sm:$0xf]
  %v58 = vcombine.high %v50, %v50
  %v59 = vcombine.high %v52, %v52
  %v62 = vld [vmem:[%s2] sm:$0x1]
  %v63 = vld [vmem:[%s3] sm:$0x1]
  %v64 = vcombine.low %v50, %v58
  %v65 = vcombine.low %v51, %v52
  %v66 = vcombine.low %v59, %v53
  %70 = vadd.xlane.f32.xlu0 %v64
  %v71 = vpop.xlane.xlu0 %70
  %72 = vadd.xlane.f32.xlu0 %v65
  %v73 = vpop.xlane.xlu0 %72
  %74 = vadd.xlane.f32.xlu0 %v66
  %v75 = vpop.xlane.xlu0 %74
  %v76 = vrcp.pop 128.0
  %v77 = vmul.f32 %v71, %v76
  %v78 = vmul.f32 %v73, %v76
  %v79 = vmul.f32 %v75, %v76
  %v84 = vunpack.c.l.s4 839922192
  %v85 = vunpack.c.0.s8 %v84
  %v86 = vlaneseq
  %v87 = vshrl.u32 %v86, 7
  %v88 = vsub.s32 %v85, %v87
  %v89 = vrot.slane %v77, %v88
  %v91 = vunpack.c.l.s4 1985246804
  %v92 = vunpack.c.0.s8 %v91
  %v93 = vlaneseq
  %v94 = vshrl.u32 %v93, 7
  %v95 = vsub.s32 %v92, %v94
  %v96 = vrot.slane %v77, %v95
  %v98 = vunpack.c.l.s4 839922192
  %v99 = vunpack.c.0.s8 %v98
  %v100 = vlaneseq
  %v101 = vshrl.u32 %v100, 7
  %v102 = vsub.s32 %v99, %v101
  %v103 = vrot.slane %v78, %v102
  %v105 = vunpack.c.l.s4 1985246804
  %v106 = vunpack.c.0.s8 %v105
  %v107 = vlaneseq
  %v108 = vshrl.u32 %v107, 7
  %v109 = vsub.s32 %v106, %v108
  %v110 = vrot.slane %v78, %v109
  %v112 = vunpack.c.l.s4 839922192
  %v113 = vunpack.c.0.s8 %v112
  %v114 = vlaneseq
  %v115 = vshrl.u32 %v114, 7
  %v116 = vsub.s32 %v113, %v115
  %v117 = vrot.slane %v79, %v116
  %v119 = vunpack.c.l.s4 1985246804
  %v120 = vunpack.c.0.s8 %v119
  %v121 = vlaneseq
  %v122 = vshrl.u32 %v121, 7
  %v123 = vsub.s32 %v120, %v122
  %v124 = vrot.slane %v79, %v123
  %v131 = vsub.f32 %v50, %v89
  %v132 = vsub.f32 %v58, %v96
  %v133 = vsub.f32 %v51, %v103
  %v134 = vsub.f32 %v52, %v110
  %v135 = vsub.f32 %v59, %v117
  %v136 = vsub.f32 %v53, %v124
  %v137 = vmul.f32 %v131, %v131
  %v138 = vmul.f32 %v132, %v132
  %v139 = vmul.f32 %v133, %v133
  %v140 = vmul.f32 %v134, %v134
  %v141 = vmul.f32 %v135, %v135
  %v142 = vmul.f32 %v136, %v136
  %v149 = vcombine.low %v137, %v138
  %v150 = vcombine.low %v139, %v140
  %v151 = vcombine.low %v141, %v142
  %155 = vadd.xlane.f32.xlu0 %v149
  %v156 = vpop.xlane.xlu0 %155
  %157 = vadd.xlane.f32.xlu0 %v150
  %v158 = vpop.xlane.xlu0 %157
  %159 = vadd.xlane.f32.xlu0 %v151
  %v160 = vpop.xlane.xlu0 %159
  %v161 = vmul.f32 %v156, %v76
  %v162 = vmul.f32 %v158, %v76
  %v163 = vmul.f32 %v160, %v76
  %v164 = vadd.f32 %v161, 1e-05
  %v165 = vadd.f32 %v162, 1e-05
  %v166 = vadd.f32 %v163, 1e-05
  %v167 = vrsqrt.pop %v164
  %v168 = vrsqrt.pop %v165
  %v169 = vrsqrt.pop %v166
  %v174 = vunpack.c.l.s4 839922192
  %v175 = vunpack.c.0.s8 %v174
  %v176 = vlaneseq
  %v177 = vshrl.u32 %v176, 7
  %v178 = vsub.s32 %v175, %v177
  %v179 = vrot.slane %v167, %v178
  %v181 = vunpack.c.l.s4 1985246804
  %v182 = vunpack.c.0.s8 %v181
  %v183 = vlaneseq
  %v184 = vshrl.u32 %v183, 7
  %v185 = vsub.s32 %v182, %v184
  %v186 = vrot.slane %v167, %v185
  %v188 = vunpack.c.l.s4 839922192
  %v189 = vunpack.c.0.s8 %v188
  %v190 = vlaneseq
  %v191 = vshrl.u32 %v190, 7
  %v192 = vsub.s32 %v189, %v191
  %v193 = vrot.slane %v168, %v192
  %v195 = vunpack.c.l.s4 1985246804
  %v196 = vunpack.c.0.s8 %v195
  %v197 = vlaneseq
  %v198 = vshrl.u32 %v197, 7
  %v199 = vsub.s32 %v196, %v198
  %v200 = vrot.slane %v168, %v199
  %v202 = vunpack.c.l.s4 839922192
  %v203 = vunpack.c.0.s8 %v202
  %v204 = vlaneseq
  %v205 = vshrl.u32 %v204, 7
  %v206 = vsub.s32 %v203, %v205
  %v207 = vrot.slane %v169, %v206
  %v209 = vunpack.c.l.s4 1985246804
  %v210 = vunpack.c.0.s8 %v209
  %v211 = vlaneseq
  %v212 = vshrl.u32 %v211, 7
  %v213 = vsub.s32 %v210, %v212
  %v214 = vrot.slane %v169, %v213
  %v221 = vmul.f32 %v131, %v179
  %v222 = vmul.f32 %v132, %v186
  %v223 = vmul.f32 %v133, %v193
  %v224 = vmul.f32 %v134, %v200
  %v225 = vmul.f32 %v135, %v207
  %v226 = vmul.f32 %v136, %v214
  %v228 = vlaneseq
  %v229 = vshrl.u32 %v228, 7
  %v230 = vsub.s32 0, %v229
  %v231 = vrot.slane %v62, %v230
  %v233 = vcombine.high %v231, %v231
  %v235 = vmul.f32 %v221, %v231
  %v236 = vmul.f32 %v222, %v233
  %v237 = vmul.f32 %v223, %v231
  %v238 = vmul.f32 %v224, %v233
  %v239 = vmul.f32 %v225, %v231
  %v240 = vmul.f32 %v226, %v233
  %v242 = vlaneseq
  %v243 = vshrl.u32 %v242, 7
  %v244 = vsub.s32 0, %v243
  %v245 = vrot.slane %v63, %v244
  %v247 = vcombine.high %v245, %v245
  %v249 = vadd.f32 %v235, %v245
  %v250 = vadd.f32 %v236, %v247
  %v251 = vadd.f32 %v237, %v245
  %v252 = vadd.f32 %v238, %v247
  %v253 = vadd.f32 %v239, %v245
  %v254 = vadd.f32 %v240, %v247
  %v261 = vcombine.low %v249, %v250
  %v262 = vcombine.low %v251, %v252
  %v263 = vcombine.low %v253, %v254
  %v267 = vpack.c.bf16 %v262, %v261
  %v268 = vpack.c.bf16 %v263, %v263
  %v269 = vld [vmem:[%s4] sm:$0xff]
  %v270 = vld [vmem:[%s4 + $0x8] sm:$0xff]
  %v271 = vld [vmem:[%s4 + $0x10] sm:$0xff]
  %v272 = vld [vmem:[%s4 + $0x18] sm:$0xff]
  %v273 = vld [vmem:[%s4 + $0x20] sm:$0xff]
  %v274 = vld [vmem:[%s4 + $0x28] sm:$0xff]
  %v275 = vld [vmem:[%s4 + $0x30] sm:$0xff]
  %v276 = vld [vmem:[%s4 + $0x38] sm:$0xff]
  %v277 = vld [vmem:[%s4 + $0x40] sm:$0xff]
  %v278 = vld [vmem:[%s4 + $0x48] sm:$0xff]
  %v279 = vld [vmem:[%s4 + $0x50] sm:$0xff]
  %v280 = vld [vmem:[%s4 + $0x58] sm:$0xff]
  %v281 = vld [vmem:[%s4 + $0x60] sm:$0xff]
  %v282 = vld [vmem:[%s4 + $0x68] sm:$0xff]
  %v283 = vld [vmem:[%s4 + $0x70] sm:$0xff]
  %v284 = vld [vmem:[%s4 + $0x78] sm:$0xff]
  %v285 = vld [vmem:[%s4 + $0x80] sm:$0xff]
  %v286 = vld [vmem:[%s4 + $0x88] sm:$0xff]
  %v287 = vld [vmem:[%s4 + $0x90] sm:$0xff]
  %v288 = vld [vmem:[%s4 + $0x98] sm:$0xff]
  %v289 = vld [vmem:[%s4 + $0xa0] sm:$0xff]
  %v290 = vld [vmem:[%s4 + $0xa8] sm:$0xff]
  %v291 = vld [vmem:[%s4 + $0xb0] sm:$0xff]
  %v292 = vld [vmem:[%s4 + $0xb8] sm:$0xff]
  %v293 = vld [vmem:[%s4 + $0xc0] sm:$0xff]
  %v294 = vld [vmem:[%s4 + $0xc8] sm:$0xff]
  %v295 = vld [vmem:[%s4 + $0xd0] sm:$0xff]
  %v296 = vld [vmem:[%s4 + $0xd8] sm:$0xff]
  %v297 = vld [vmem:[%s4 + $0xe0] sm:$0xff]
  %v298 = vld [vmem:[%s4 + $0xe8] sm:$0xff]
  %v299 = vld [vmem:[%s4 + $0xf0] sm:$0xff]
  %v300 = vld [vmem:[%s4 + $0xf8] sm:$0xff]
  %v301 = vld [vmem:[%s5] sm:$0xf]
  %v303 = vlaneseq
  %v304 = vshrl.u32 %v303, 7
  %v305 = vsub.s32 0, %v304
  %v306 = vrot.slane %v301, %v305
  %v307 = vlaneseq
  %v308 = vshrl.u32 %v307, 7
  %v309 = vsub.s32 1, %v308
  %v310 = vrot.slane %v301, %v309
  %v311 = vlaneseq
  %v312 = vshrl.u32 %v311, 7
  %v313 = vsub.s32 2, %v312
  %v314 = vrot.slane %v301, %v313
  %v315 = vlaneseq
  %v316 = vshrl.u32 %v315, 7
  %v317 = vsub.s32 3, %v316
  %v318 = vrot.slane %v301, %v317
  %v355 = vunpack.c.l.b16 %v269
  %v356 = vunpack.c.h.b16 %v269
  %v357 = vunpack.c.l.b16 %v270
  %v358 = vunpack.c.h.b16 %v270
  %v359 = vunpack.c.l.b16 %v271
  %v360 = vunpack.c.h.b16 %v271
  %v361 = vunpack.c.l.b16 %v272
  %v362 = vunpack.c.h.b16 %v272
  %v363 = vunpack.c.l.b16 %v273
  %v364 = vunpack.c.h.b16 %v273
  %v365 = vunpack.c.l.b16 %v274
  %v366 = vunpack.c.h.b16 %v274
  %v367 = vunpack.c.l.b16 %v275
  %v368 = vunpack.c.h.b16 %v275
  %v369 = vunpack.c.l.b16 %v276
  %v370 = vunpack.c.h.b16 %v276
  %v371 = vunpack.c.l.b16 %v277
  %v372 = vunpack.c.h.b16 %v277
  %v373 = vunpack.c.l.b16 %v278
  %v374 = vunpack.c.h.b16 %v278
  %v375 = vunpack.c.l.b16 %v279
  %v376 = vunpack.c.h.b16 %v279
  %v377 = vunpack.c.l.b16 %v280
  %v378 = vunpack.c.h.b16 %v280
  %v379 = vunpack.c.l.b16 %v281
  %v380 = vunpack.c.h.b16 %v281
  %v381 = vunpack.c.l.b16 %v282
  %v382 = vunpack.c.h.b16 %v282
  %v383 = vunpack.c.l.b16 %v283
  %v384 = vunpack.c.h.b16 %v283
  %v385 = vunpack.c.l.b16 %v284
  %v386 = vunpack.c.h.b16 %v284
  %v387 = vunpack.c.l.b16 %v285
  %v388 = vunpack.c.h.b16 %v285
  %v389 = vunpack.c.l.b16 %v286
  %v390 = vunpack.c.h.b16 %v286
  %v391 = vunpack.c.l.b16 %v287
  %v392 = vunpack.c.h.b16 %v287
  %v393 = vunpack.c.l.b16 %v288
  %v394 = vunpack.c.h.b16 %v288
  %v395 = vunpack.c.l.b16 %v289
  %v396 = vunpack.c.h.b16 %v289
  %v397 = vunpack.c.l.b16 %v290
  %v398 = vunpack.c.h.b16 %v290
  %v399 = vunpack.c.l.b16 %v291
  %v400 = vunpack.c.h.b16 %v291
  %v401 = vunpack.c.l.b16 %v292
  %v402 = vunpack.c.h.b16 %v292
  %v403 = vunpack.c.l.b16 %v293
  %v404 = vunpack.c.h.b16 %v293
  %v405 = vunpack.c.l.b16 %v294
  %v406 = vunpack.c.h.b16 %v294
  %v407 = vunpack.c.l.b16 %v295
  %v408 = vunpack.c.h.b16 %v295
  %v409 = vunpack.c.l.b16 %v296
  %v410 = vunpack.c.h.b16 %v296
  %v411 = vunpack.c.l.b16 %v297
  %v412 = vunpack.c.h.b16 %v297
  %v413 = vunpack.c.l.b16 %v298
  %v414 = vunpack.c.h.b16 %v298
  %v415 = vunpack.c.l.b16 %v299
  %v416 = vunpack.c.h.b16 %v299
  %v417 = vunpack.c.l.b16 %v300
  %v418 = vunpack.c.h.b16 %v300
  %v419 = vpack.c.b16 %v359, %v355
  %v420 = vpack.c.b16 %v360, %v356
  %v421 = vpack.c.b16 %v361, %v357
  %v422 = vpack.c.b16 %v362, %v358
  %v423 = vpack.c.b16 %v367, %v363
  %v424 = vpack.c.b16 %v368, %v364
  %v425 = vpack.c.b16 %v369, %v365
  %v426 = vpack.c.b16 %v370, %v366
  %v427 = vpack.c.b16 %v375, %v371
  %v428 = vpack.c.b16 %v376, %v372
  %v429 = vpack.c.b16 %v377, %v373
  %v430 = vpack.c.b16 %v378, %v374
  %v431 = vpack.c.b16 %v383, %v379
  %v432 = vpack.c.b16 %v384, %v380
  %v433 = vpack.c.b16 %v385, %v381
  %v434 = vpack.c.b16 %v386, %v382
  %v435 = vpack.c.b16 %v391, %v387
  %v436 = vpack.c.b16 %v392, %v388
  %v437 = vpack.c.b16 %v393, %v389
  %v438 = vpack.c.b16 %v394, %v390
  %v439 = vpack.c.b16 %v399, %v395
  %v440 = vpack.c.b16 %v400, %v396
  %v441 = vpack.c.b16 %v401, %v397
  %v442 = vpack.c.b16 %v402, %v398
  %v443 = vpack.c.b16 %v407, %v403
  %v444 = vpack.c.b16 %v408, %v404
  %v445 = vpack.c.b16 %v409, %v405
  %v446 = vpack.c.b16 %v410, %v406
  %v447 = vpack.c.b16 %v415, %v411
  %v448 = vpack.c.b16 %v416, %v412
  %v449 = vpack.c.b16 %v417, %v413
  %v450 = vpack.c.b16 %v418, %v414
  %483 = vmatprep.subr.bf16.mxu0 %v420
  %484 = vmatpush1.bf16.msra.mxu0 %v419
  %485 = vmatprep.subr.bf16.mxu0 %v424
  %486 = vmatpush1.bf16.msra.mxu0 %v423
  %487 = vmatprep.subr.bf16.mxu0 %v428
  %488 = vmatpush1.bf16.msra.mxu0 %v427
  %489 = vmatprep.subr.bf16.mxu0 %v432
  %490 = vmatpush1.bf16.msra.mxu0 %v431
  %491 = vmatprep.subr.bf16.mxu0 %v436
  %492 = vmatpush1.bf16.msra.mxu0 %v435
  %493 = vmatprep.subr.bf16.mxu0 %v440
  %494 = vmatpush1.bf16.msra.mxu0 %v439
  %495 = vmatprep.subr.bf16.mxu0 %v444
  %496 = vmatpush1.bf16.msra.mxu0 %v443
  %497 = vmatprep.subr.bf16.mxu0 %v448
  %498 = vmatpush1.bf16.msra.mxu0 %v447
  %499 = vmatprep.subr.bf16.mxu0 0
  %500 = vmatpush1.bf16.msra.mxu0 0
  %501 = vmatprep.subr.bf16.mxu0 0
  %502 = vmatpush1.bf16.msra.mxu0 0
  %503 = vmatprep.subr.bf16.mxu0 0
  %504 = vmatpush1.bf16.msra.mxu0 0
  %505 = vmatprep.subr.bf16.mxu0 0
  %506 = vmatpush1.bf16.msra.mxu0 0
  %507 = vmatprep.subr.bf16.mxu0 0
  %508 = vmatpush1.bf16.msra.mxu0 0
  %509 = vmatprep.subr.bf16.mxu0 0
  %510 = vmatpush1.bf16.msra.mxu0 0
  %511 = vmatprep.subr.bf16.mxu0 0
  %512 = vmatpush1.bf16.msra.mxu0 0
  %513 = vmatprep.subr.bf16.mxu0 0
  %514 = vmatpush1.bf16.msra.mxu0 0
  %515 = vmatprep.mubr.bf16.mxu0 0
  %516 = vmatmul.mubr.bf16.gmra.mrb[0].mxu0 %v267
  %v517 = vpop.f32.mrb[0].mxu0
  %v518 = vadd.f32 %v306, %v517
  %v519 = vpop.f32.mrb[0].mxu0
  %v520 = vadd.f32 %v310, %v519
  %v521 = vpop.f32.mrb[0].mxu0
  %v522 = vadd.f32 %v306, %v521
  %v523 = vpop.f32.mrb[0].mxu0
  %v524 = vadd.f32 %v310, %v523
  %525 = vmatprep.mubr.bf16.mxu0 0
  %526 = vmatmul.mubr.bf16.gmra.mrb[0].mxu0 %v268
  %v527 = vpop.f32.mrb[0].mxu0
  %v528 = vadd.f32 %v306, %v527
  %v529 = vpop.f32.mrb[0].mxu0
  %v530 = vadd.f32 %v310, %v529
  %v531 = vpop.f32.mrb[0].mxu0
  %v532 = vpop.f32.mrb[0].mxu0
  %533 = vdwg.mxu0
  %534 = vmatprep.subr.bf16.mxu0 %v422
  %535 = vmatpush1.bf16.msra.mxu0 %v421
  %536 = vmatprep.subr.bf16.mxu0 %v426
  %537 = vmatpush1.bf16.msra.mxu0 %v425
  %538 = vmatprep.subr.bf16.mxu0 %v430
  %539 = vmatpush1.bf16.msra.mxu0 %v429
  %540 = vmatprep.subr.bf16.mxu0 %v434
  %541 = vmatpush1.bf16.msra.mxu0 %v433
  %542 = vmatprep.subr.bf16.mxu0 %v438
  %543 = vmatpush1.bf16.msra.mxu0 %v437
  %544 = vmatprep.subr.bf16.mxu0 %v442
  %545 = vmatpush1.bf16.msra.mxu0 %v441
  %546 = vmatprep.subr.bf16.mxu0 %v446
  %547 = vmatpush1.bf16.msra.mxu0 %v445
  %548 = vmatprep.subr.bf16.mxu0 %v450
  %549 = vmatpush1.bf16.msra.mxu0 %v449
  %550 = vmatprep.subr.bf16.mxu0 0
  %551 = vmatpush1.bf16.msra.mxu0 0
  %552 = vmatprep.subr.bf16.mxu0 0
  %553 = vmatpush1.bf16.msra.mxu0 0
  %554 = vmatprep.subr.bf16.mxu0 0
  %555 = vmatpush1.bf16.msra.mxu0 0
  %556 = vmatprep.subr.bf16.mxu0 0
  %557 = vmatpush1.bf16.msra.mxu0 0
  %558 = vmatprep.subr.bf16.mxu0 0
  %559 = vmatpush1.bf16.msra.mxu0 0
  %560 = vmatprep.subr.bf16.mxu0 0
  %561 = vmatpush1.bf16.msra.mxu0 0
  %562 = vmatprep.subr.bf16.mxu0 0
  %563 = vmatpush1.bf16.msra.mxu0 0
  %564 = vmatprep.subr.bf16.mxu0 0
  %565 = vmatpush1.bf16.msra.mxu0 0
  %566 = vmatprep.mubr.bf16.mxu0 0
  %567 = vmatmul.mubr.bf16.gmra.mrb[0].mxu0 %v267
  %v568 = vpop.f32.mrb[0].mxu0
  %v569 = vadd.f32 %v314, %v568
  %v570 = vpop.f32.mrb[0].mxu0
  %v571 = vadd.f32 %v318, %v570
  %v572 = vpop.f32.mrb[0].mxu0
  %v573 = vadd.f32 %v314, %v572
  %v574 = vpop.f32.mrb[0].mxu0
  %v575 = vadd.f32 %v318, %v574
  %576 = vmatprep.mubr.bf16.mxu0 0
  %577 = vmatmul.mubr.bf16.gmra.mrb[0].mxu0 %v268
  %v578 = vpop.f32.mrb[0].mxu0
  %v579 = vadd.f32 %v314, %v578
  %v580 = vpop.f32.mrb[0].mxu0
  %v581 = vadd.f32 %v318, %v580
  %v582 = vpop.f32.mrb[0].mxu0
  %v583 = vpop.f32.mrb[0].mxu0
  %584 = vdwg.mxu0
  %v597 = vcombine.low %v518, %v520
  %v598 = vcombine.high %v518, %v520
  %v599 = vcombine.low %v569, %v571
  %v600 = vcombine.high %v569, %v571
  %v601 = vcombine.low %v522, %v524
  %v602 = vcombine.high %v522, %v524
  %v603 = vcombine.low %v573, %v575
  %v604 = vcombine.high %v573, %v575
  %v605 = vcombine.low %v528, %v530
  %v606 = vcombine.high %v528, %v530
  %v607 = vcombine.low %v579, %v581
  %v608 = vcombine.high %v579, %v581
  %v613 = vcombine.low %v597, %v598
  %v614 = vcombine.high %v597, %v598
  %v615 = vcombine.low %v599, %v600
  %v616 = vcombine.high %v599, %v600
  %v617 = vcombine.high %v601, %v601
  %v618 = vcombine.high %v603, %v603
  %v619 = vcombine.low %v602, %v605
  %v620 = vcombine.high %v602, %v605
  %v621 = vcombine.low %v604, %v607
  %v622 = vcombine.high %v604, %v607
  %v623 = vcombine.high %v606, %v606
  %v624 = vcombine.high %v608, %v608
  %637 = vst [vmem:[%s14] sm:$0xff] %v613
  %638 = vst [vmem:[%s14 + $0x8] sm:$0xff] %v614
  %639 = vst [vmem:[%s14 + $0x10] sm:$0xff] %v615
  %640 = vst [vmem:[%s14 + $0x18] sm:$0xff] %v616
  %641 = vst [vmem:[%s14 + $0x20] sm:$0xf] %v601
  %642 = vst [vmem:[%s14 + $0x28] sm:$0xf] %v617
  %643 = vst [vmem:[%s14 + $0x30] sm:$0xf] %v603
  %644 = vst [vmem:[%s14 + $0x38] sm:$0xf] %v618
  %645 = vst [vmem:[%s14 + $0x40] sm:$0xff] %v619
  %646 = vst [vmem:[%s14 + $0x48] sm:$0xff] %v620
  %647 = vst [vmem:[%s14 + $0x50] sm:$0xff] %v621
  %648 = vst [vmem:[%s14 + $0x58] sm:$0xff] %v622
  %649 = vst [vmem:[%s14 + $0x60] sm:$0xf] %v606
  %650 = vst [vmem:[%s14 + $0x68] sm:$0xf] %v623
  %651 = vst [vmem:[%s14 + $0x70] sm:$0xf] %v608
  %652 = vst [vmem:[%s14 + $0x78] sm:$0xf] %v624
  %v653 = vld [vmem:[%s1] sm:$0xff]
  %v654 = vld [vmem:[%s1 + $0x8] sm:$0xf]
  %v655 = vld [vmem:[%s1 + $0x10] sm:$0xff]
  %v656 = vld [vmem:[%s1 + $0x18] sm:$0xf]
  %658 = vset.pattern.permute.xlu0 0
  %659 = vperm.xlu0 %658, %v653
  %v660 = vpop.permute.xlu0 %659
  %662 = vset.pattern.permute.xlu0 0
  %663 = vperm.xlu0 %662, %v654
  %v664 = vpop.permute.xlu0 %663
  %666 = vset.pattern.permute.xlu0 0
  %667 = vperm.xlu0 %666, %v655
  %v668 = vpop.permute.xlu0 %667
  %670 = vset.pattern.permute.xlu0 0
  %671 = vperm.xlu0 %670, %v656
  %v672 = vpop.permute.xlu0 %671
  %v674 = vunpack.c.l.s4 839922192
  %v675 = vunpack.c.0.s8 %v674
  %v676 = vlaneseq
  %v677 = vshrl.u32 %v676, 7
  %v678 = vsub.s32 %v675, %v677
  %v679 = vrot.slane %v660, %v678
  %v681 = vunpack.c.l.s4 1985246804
  %v682 = vunpack.c.0.s8 %v681
  %v683 = vlaneseq
  %v684 = vshrl.u32 %v683, 7
  %v685 = vsub.s32 %v682, %v684
  %v686 = vrot.slane %v660, %v685
  %v688 = vunpack.c.l.s4 839922192
  %v689 = vunpack.c.0.s8 %v688
  %v690 = vlaneseq
  %v691 = vshrl.u32 %v690, 7
  %v692 = vsub.s32 %v689, %v691
  %v693 = vrot.slane %v664, %v692
  %v695 = vunpack.c.l.s4 839922192
  %v696 = vunpack.c.0.s8 %v695
  %v697 = vlaneseq
  %v698 = vshrl.u32 %v697, 7
  %v699 = vsub.s32 %v696, %v698
  %v700 = vrot.slane %v668, %v699
  %v702 = vunpack.c.l.s4 1985246804
  %v703 = vunpack.c.0.s8 %v702
  %v704 = vlaneseq
  %v705 = vshrl.u32 %v704, 7
  %v706 = vsub.s32 %v703, %v705
  %v707 = vrot.slane %v668, %v706
  %v709 = vunpack.c.l.s4 839922192
  %v710 = vunpack.c.0.s8 %v709
  %v711 = vlaneseq
  %v712 = vshrl.u32 %v711, 7
  %v713 = vsub.s32 %v710, %v712
  %v714 = vrot.slane %v672, %v713
  %v721 = vmul.f32 %v249, %v679
  %v722 = vmul.f32 %v250, %v686
  %v723 = vmul.f32 %v251, %v693
  %v724 = vmul.f32 %v252, %v700
  %v725 = vmul.f32 %v253, %v707
  %v726 = vmul.f32 %v254, %v714
  %v731 = vcombine.low %v721, %v722
  %v732 = vcombine.low %v724, %v725
  %vm735 = vcmask 1043456
  %v736 = vsel %vm735, %v723, 0.0
  %v737 = vadd.f32 %v731, %v736
  %v738 = vrot.slane %v737, 4
  %v739 = vadd.f32 %v737, %v738
  %v740 = vrot.slane %v739, 2
  %v741 = vadd.f32 %v739, %v740
  %v742 = vrot.slane %v741, 1
  %v743 = vadd.f32 %v741, %v742
  %v744 = vsel %vm735, %v726, 0.0
  %v745 = vadd.f32 %v732, %v744
  %v746 = vrot.slane %v745, 4
  %v747 = vadd.f32 %v745, %v746
  %v748 = vrot.slane %v747, 2
  %v749 = vadd.f32 %v747, %v748
  %v750 = vrot.slane %v749, 1
  %v751 = vadd.f32 %v749, %v750
  %vm752 = vcmask 7168
  %v753 = vsel %vm752, %v653, 0.0
  %vm754 = vcmask 3072
  %v755 = vsel %vm754, %v654, 0.0
  %v756 = vadd.f32 %v753, %v755
  %v757 = vrot.slane %v756, 4
  %v758 = vadd.f32 %v756, %v757
  %v759 = vrot.slane %v758, 2
  %v760 = vadd.f32 %v758, %v759
  %v761 = vrot.slane %v760, 1
  %v762 = vadd.f32 %v760, %v761
  %v763 = vsel %vm752, %v655, 0.0
  %v764 = vsel %vm754, %v656, 0.0
  %v765 = vadd.f32 %v763, %v764
  %v766 = vrot.slane %v765, 4
  %v767 = vadd.f32 %v765, %v766
  %v768 = vrot.slane %v767, 2
  %v769 = vadd.f32 %v767, %v768
  %v770 = vrot.slane %v769, 1
  %v771 = vadd.f32 %v769, %v770
  %v772 = vmax.f32 %v762, 1.0
  %v773 = vmax.f32 %v771, 1.0
  %775 = vset.pattern.permute.xlu0 0
  %776 = vperm.xlu0 %775, %v772
  %v777 = vpop.permute.xlu0 %776
  %780 = vset.pattern.permute.xlu0 0
  %781 = vperm.xlu0 %780, %v773
  %v782 = vpop.permute.xlu0 %781
  %v784 = vrcp.pop %v777
  %v785 = vmul.f32 %v743, %v784
  %v786 = vrcp.pop %v782
  %v787 = vmul.f32 %v751, %v786
  %v788 = vpack.c.bf16 %v785, %v785
  %v789 = vpack.c.bf16 %v787, %v787
  %v790 = vld [vmem:[%s7] sm:$0xff]
  %v791 = vld [vmem:[%s7 + $0x8] sm:$0xff]
  %v792 = vld [vmem:[%s7 + $0x10] sm:$0xff]
  %v793 = vld [vmem:[%s7 + $0x18] sm:$0xff]
  %v794 = vld [vmem:[%s7 + $0x20] sm:$0xff]
  %v795 = vld [vmem:[%s7 + $0x28] sm:$0xff]
  %v796 = vld [vmem:[%s7 + $0x30] sm:$0xff]
  %v797 = vld [vmem:[%s7 + $0x38] sm:$0xff]
  %v798 = vld [vmem:[%s7 + $0x40] sm:$0xff]
  %v799 = vld [vmem:[%s7 + $0x48] sm:$0xff]
  %v800 = vld [vmem:[%s7 + $0x50] sm:$0xff]
  %v801 = vld [vmem:[%s7 + $0x58] sm:$0xff]
  %v802 = vld [vmem:[%s7 + $0x60] sm:$0xff]
  %v803 = vld [vmem:[%s7 + $0x68] sm:$0xff]
  %v804 = vld [vmem:[%s7 + $0x70] sm:$0xff]
  %v805 = vld [vmem:[%s7 + $0x78] sm:$0xff]
  %v806 = vld [vmem:[%s6] sm:$0x3]
  %v807 = vpack.c.bf16 %v806, %v806
  %v808 = vld [vmem:[%s8] sm:$0xff]
  %v810 = vunpack.c.l.b16 %v808
  %v811 = vunpack.c.h.b16 %v808
  %v812 = vpack.c.b16 %v810, %v810
  %v813 = vpack.c.b16 %v811, %v811
  %vm814 = vcmask 64512
  %v816 = vsel %vm814, %v807, 0
  %v819 = vsel %vm735, %v812, 0
  %v822 = vsel %vm735, %v813, 0
  %824 = vmatprep.subr.bf16.mxu0 %v822
  %825 = vmatpush1.bf16.msra.mxu0 %v819
  %826 = vmatprep.subr.bf16.mxu0 0
  %827 = vmatpush1.bf16.msra.mxu0 0
  %828 = vmatprep.subr.bf16.mxu0 0
  %829 = vmatpush1.bf16.msra.mxu0 0
  %830 = vmatprep.subr.bf16.mxu0 0
  %831 = vmatpush1.bf16.msra.mxu0 0
  %832 = vmatprep.subr.bf16.mxu0 0
  %833 = vmatpush1.bf16.msra.mxu0 0
  %834 = vmatprep.subr.bf16.mxu0 0
  %835 = vmatpush1.bf16.msra.mxu0 0
  %836 = vmatprep.subr.bf16.mxu0 0
  %837 = vmatpush1.bf16.msra.mxu0 0
  %838 = vmatprep.subr.bf16.mxu0 0
  %839 = vmatpush1.bf16.msra.mxu0 0
  %840 = vmatprep.subr.bf16.mxu0 0
  %841 = vmatpush1.bf16.msra.mxu0 0
  %842 = vmatprep.subr.bf16.mxu0 0
  %843 = vmatpush1.bf16.msra.mxu0 0
  %844 = vmatprep.subr.bf16.mxu0 0
  %845 = vmatpush1.bf16.msra.mxu0 0
  %846 = vmatprep.subr.bf16.mxu0 0
  %847 = vmatpush1.bf16.msra.mxu0 0
  %848 = vmatprep.subr.bf16.mxu0 0
  %849 = vmatpush1.bf16.msra.mxu0 0
  %850 = vmatprep.subr.bf16.mxu0 0
  %851 = vmatpush1.bf16.msra.mxu0 0
  %852 = vmatprep.subr.bf16.mxu0 0
  %853 = vmatpush1.bf16.msra.mxu0 0
  %854 = vmatprep.subr.bf16.mxu0 0
  %855 = vmatpush1.bf16.msra.mxu0 0
  %856 = vmatprep.mubr.bf16.mxu0 0
  %857 = vmatmul.mubr.bf16.gmra.mrb[0].mxu0 %v816
  %v858 = vpop.f32.mrb[0].mxu0
  %v859 = vadd.f32 0.0, %v858
  %v860 = vpop.f32.mrb[0].mxu0
  %v861 = vadd.f32 0.0, %v860
  %v862 = vpop.f32.mrb[0].mxu0
  %v863 = vpop.f32.mrb[0].mxu0
  %864 = vdwg.mxu0
  %v867 = vunpack.c.l.b16 %v788
  %v868 = vunpack.c.l.b16 %v789
  %vm869 = vcmask 1041409
  %v870 = vsel %vm869, %v868, %v867
  %v871 = vpack.c.b16 %v870, %v870
  %v889 = vunpack.c.l.b16 %v790
  %v890 = vunpack.c.h.b16 %v790
  %v891 = vunpack.c.l.b16 %v791
  %v892 = vunpack.c.h.b16 %v791
  %v893 = vunpack.c.l.b16 %v792
  %v894 = vunpack.c.h.b16 %v792
  %v895 = vunpack.c.l.b16 %v793
  %v896 = vunpack.c.h.b16 %v793
  %v897 = vunpack.c.l.b16 %v794
  %v898 = vunpack.c.h.b16 %v794
  %v899 = vunpack.c.l.b16 %v795
  %v900 = vunpack.c.h.b16 %v795
  %v901 = vunpack.c.l.b16 %v796
  %v902 = vunpack.c.h.b16 %v796
  %v903 = vunpack.c.l.b16 %v797
  %v904 = vunpack.c.h.b16 %v797
  %v905 = vunpack.c.l.b16 %v798
  %v906 = vunpack.c.h.b16 %v798
  %v907 = vunpack.c.l.b16 %v799
  %v908 = vunpack.c.h.b16 %v799
  %v909 = vunpack.c.l.b16 %v800
  %v910 = vunpack.c.h.b16 %v800
  %v911 = vunpack.c.l.b16 %v801
  %v912 = vunpack.c.h.b16 %v801
  %v913 = vunpack.c.l.b16 %v802
  %v914 = vunpack.c.h.b16 %v802
  %v915 = vunpack.c.l.b16 %v803
  %v916 = vunpack.c.h.b16 %v803
  %v917 = vunpack.c.l.b16 %v804
  %v918 = vunpack.c.h.b16 %v804
  %v919 = vunpack.c.l.b16 %v805
  %v920 = vunpack.c.h.b16 %v805
  %v921 = vpack.c.b16 %v891, %v889
  %v922 = vpack.c.b16 %v892, %v890
  %v923 = vpack.c.b16 %v895, %v893
  %v924 = vpack.c.b16 %v896, %v894
  %v925 = vpack.c.b16 %v899, %v897
  %v926 = vpack.c.b16 %v900, %v898
  %v927 = vpack.c.b16 %v903, %v901
  %v928 = vpack.c.b16 %v904, %v902
  %v929 = vpack.c.b16 %v907, %v905
  %v930 = vpack.c.b16 %v908, %v906
  %v931 = vpack.c.b16 %v911, %v909
  %v932 = vpack.c.b16 %v912, %v910
  %v933 = vpack.c.b16 %v915, %v913
  %v934 = vpack.c.b16 %v916, %v914
  %v935 = vpack.c.b16 %v919, %v917
  %v936 = vpack.c.b16 %v920, %v918
  %953 = vmatprep.subr.bf16.mxu0 %v922
  %954 = vmatpush1.bf16.msra.mxu0 %v921
  %955 = vmatprep.subr.bf16.mxu0 %v924
  %956 = vmatpush1.bf16.msra.mxu0 %v923
  %957 = vmatprep.subr.bf16.mxu0 %v926
  %958 = vmatpush1.bf16.msra.mxu0 %v925
  %959 = vmatprep.subr.bf16.mxu0 %v928
  %960 = vmatpush1.bf16.msra.mxu0 %v927
  %961 = vmatprep.subr.bf16.mxu0 %v930
  %962 = vmatpush1.bf16.msra.mxu0 %v929
  %963 = vmatprep.subr.bf16.mxu0 %v932
  %964 = vmatpush1.bf16.msra.mxu0 %v931
  %965 = vmatprep.subr.bf16.mxu0 %v934
  %966 = vmatpush1.bf16.msra.mxu0 %v933
  %967 = vmatprep.subr.bf16.mxu0 %v936
  %968 = vmatpush1.bf16.msra.mxu0 %v935
  %969 = vmatprep.subr.bf16.mxu0 0
  %970 = vmatpush1.bf16.msra.mxu0 0
  %971 = vmatprep.subr.bf16.mxu0 0
  %972 = vmatpush1.bf16.msra.mxu0 0
  %973 = vmatprep.subr.bf16.mxu0 0
  %974 = vmatpush1.bf16.msra.mxu0 0
  %975 = vmatprep.subr.bf16.mxu0 0
  %976 = vmatpush1.bf16.msra.mxu0 0
  %977 = vmatprep.subr.bf16.mxu0 0
  %978 = vmatpush1.bf16.msra.mxu0 0
  %979 = vmatprep.subr.bf16.mxu0 0
  %980 = vmatpush1.bf16.msra.mxu0 0
  %981 = vmatprep.subr.bf16.mxu0 0
  %982 = vmatpush1.bf16.msra.mxu0 0
  %983 = vmatprep.subr.bf16.mxu0 0
  %984 = vmatpush1.bf16.msra.mxu0 0
  %985 = vmatprep.mubr.bf16.mxu0 0
  %986 = vmatmul.mubr.bf16.gmra.mrb[0].mxu0 %v871
  %v987 = vpop.f32.mrb[0].mxu0
  %v988 = vadd.f32 %v859, %v987
  %v989 = vpop.f32.mrb[0].mxu0
  %v990 = vadd.f32 %v861, %v989
  %v991 = vpop.f32.mrb[0].mxu0
  %v992 = vpop.f32.mrb[0].mxu0
  %993 = vdwg.mxu0
  %v994 = vld [vmem:[%s9] sm:$0x3]
  %v996 = vlaneseq
  %v997 = vshrl.u32 %v996, 7
  %v998 = vsub.s32 0, %v997
  %v999 = vrot.slane %v994, %v998
  %v1000 = vlaneseq
  %v1001 = vshrl.u32 %v1000, 7
  %v1002 = vsub.s32 1, %v1001
  %v1003 = vrot.slane %v994, %v1002
  %v1006 = vadd.f32 %v988, %v999
  %v1007 = vadd.f32 %v990, %v1003
  %v1008 = vmax.f32 %v1006, 0.0
  %v1009 = vmax.f32 %v1007, 0.0
  %v1010 = vpack.c.bf16 %v1008, %v1008
  %v1011 = vpack.c.bf16 %v1009, %v1009
  %v1012 = vld [vmem:[%s10] sm:$0xff]
  %v1013 = vld [vmem:[%s10 + $0x8] sm:$0xff]
  %v1014 = vld [vmem:[%s10 + $0x10] sm:$0xff]
  %v1015 = vld [vmem:[%s10 + $0x18] sm:$0xff]
  %v1016 = vld [vmem:[%s10 + $0x20] sm:$0xff]
  %v1017 = vld [vmem:[%s10 + $0x28] sm:$0xff]
  %v1018 = vld [vmem:[%s10 + $0x30] sm:$0xff]
  %v1019 = vld [vmem:[%s10 + $0x38] sm:$0xff]
  %v1020 = vld [vmem:[%s10 + $0x40] sm:$0xff]
  %v1021 = vld [vmem:[%s10 + $0x48] sm:$0xff]
  %v1022 = vld [vmem:[%s10 + $0x50] sm:$0xff]
  %v1023 = vld [vmem:[%s10 + $0x58] sm:$0xff]
  %v1024 = vld [vmem:[%s10 + $0x60] sm:$0xff]
  %v1025 = vld [vmem:[%s10 + $0x68] sm:$0xff]
  %v1026 = vld [vmem:[%s10 + $0x70] sm:$0xff]
  %v1027 = vld [vmem:[%s10 + $0x78] sm:$0xff]
  %v1028 = vld [vmem:[%s10 + $0x80] sm:$0xff]
  %v1029 = vld [vmem:[%s10 + $0x88] sm:$0xff]
  %v1030 = vld [vmem:[%s10 + $0x90] sm:$0xff]
  %v1031 = vld [vmem:[%s10 + $0x98] sm:$0xff]
  %v1032 = vld [vmem:[%s10 + $0xa0] sm:$0xff]
  %v1033 = vld [vmem:[%s10 + $0xa8] sm:$0xff]
  %v1034 = vld [vmem:[%s10 + $0xb0] sm:$0xff]
  %v1035 = vld [vmem:[%s10 + $0xb8] sm:$0xff]
  %v1036 = vld [vmem:[%s10 + $0xc0] sm:$0xff]
  %v1037 = vld [vmem:[%s10 + $0xc8] sm:$0xff]
  %v1038 = vld [vmem:[%s10 + $0xd0] sm:$0xff]
  %v1039 = vld [vmem:[%s10 + $0xd8] sm:$0xff]
  %v1040 = vld [vmem:[%s10 + $0xe0] sm:$0xff]
  %v1041 = vld [vmem:[%s10 + $0xe8] sm:$0xff]
  %v1042 = vld [vmem:[%s10 + $0xf0] sm:$0xff]
  %v1043 = vld [vmem:[%s10 + $0xf8] sm:$0xff]
  %v1044 = vld [vmem:[%s11] sm:$0x3]
  %v1046 = vlaneseq
  %v1047 = vshrl.u32 %v1046, 7
  %v1048 = vsub.s32 0, %v1047
  %v1049 = vrot.slane %v1044, %v1048
  %v1050 = vlaneseq
  %v1051 = vshrl.u32 %v1050, 7
  %v1052 = vsub.s32 1, %v1051
  %v1053 = vrot.slane %v1044, %v1052
  %v1088 = vunpack.c.l.b16 %v1012
  %v1089 = vunpack.c.h.b16 %v1012
  %v1090 = vunpack.c.l.b16 %v1013
  %v1091 = vunpack.c.h.b16 %v1013
  %v1092 = vunpack.c.l.b16 %v1014
  %v1093 = vunpack.c.h.b16 %v1014
  %v1094 = vunpack.c.l.b16 %v1015
  %v1095 = vunpack.c.h.b16 %v1015
  %v1096 = vunpack.c.l.b16 %v1016
  %v1097 = vunpack.c.h.b16 %v1016
  %v1098 = vunpack.c.l.b16 %v1017
  %v1099 = vunpack.c.h.b16 %v1017
  %v1100 = vunpack.c.l.b16 %v1018
  %v1101 = vunpack.c.h.b16 %v1018
  %v1102 = vunpack.c.l.b16 %v1019
  %v1103 = vunpack.c.h.b16 %v1019
  %v1104 = vunpack.c.l.b16 %v1020
  %v1105 = vunpack.c.h.b16 %v1020
  %v1106 = vunpack.c.l.b16 %v1021
  %v1107 = vunpack.c.h.b16 %v1021
  %v1108 = vunpack.c.l.b16 %v1022
  %v1109 = vunpack.c.h.b16 %v1022
  %v1110 = vunpack.c.l.b16 %v1023
  %v1111 = vunpack.c.h.b16 %v1023
  %v1112 = vunpack.c.l.b16 %v1024
  %v1113 = vunpack.c.h.b16 %v1024
  %v1114 = vunpack.c.l.b16 %v1025
  %v1115 = vunpack.c.h.b16 %v1025
  %v1116 = vunpack.c.l.b16 %v1026
  %v1117 = vunpack.c.h.b16 %v1026
  %v1118 = vunpack.c.l.b16 %v1027
  %v1119 = vunpack.c.h.b16 %v1027
  %v1120 = vunpack.c.l.b16 %v1028
  %v1121 = vunpack.c.h.b16 %v1028
  %v1122 = vunpack.c.l.b16 %v1029
  %v1123 = vunpack.c.h.b16 %v1029
  %v1124 = vunpack.c.l.b16 %v1030
  %v1125 = vunpack.c.h.b16 %v1030
  %v1126 = vunpack.c.l.b16 %v1031
  %v1127 = vunpack.c.h.b16 %v1031
  %v1128 = vunpack.c.l.b16 %v1032
  %v1129 = vunpack.c.h.b16 %v1032
  %v1130 = vunpack.c.l.b16 %v1033
  %v1131 = vunpack.c.h.b16 %v1033
  %v1132 = vunpack.c.l.b16 %v1034
  %v1133 = vunpack.c.h.b16 %v1034
  %v1134 = vunpack.c.l.b16 %v1035
  %v1135 = vunpack.c.h.b16 %v1035
  %v1136 = vunpack.c.l.b16 %v1036
  %v1137 = vunpack.c.h.b16 %v1036
  %v1138 = vunpack.c.l.b16 %v1037
  %v1139 = vunpack.c.h.b16 %v1037
  %v1140 = vunpack.c.l.b16 %v1038
  %v1141 = vunpack.c.h.b16 %v1038
  %v1142 = vunpack.c.l.b16 %v1039
  %v1143 = vunpack.c.h.b16 %v1039
  %v1144 = vunpack.c.l.b16 %v1040
  %v1145 = vunpack.c.h.b16 %v1040
  %v1146 = vunpack.c.l.b16 %v1041
  %v1147 = vunpack.c.h.b16 %v1041
  %v1148 = vunpack.c.l.b16 %v1042
  %v1149 = vunpack.c.h.b16 %v1042
  %v1150 = vunpack.c.l.b16 %v1043
  %v1151 = vunpack.c.h.b16 %v1043
  %v1152 = vpack.c.b16 %v1090, %v1088
  %v1153 = vpack.c.b16 %v1091, %v1089
  %v1154 = vpack.c.b16 %v1094, %v1092
  %v1155 = vpack.c.b16 %v1095, %v1093
  %v1156 = vpack.c.b16 %v1098, %v1096
  %v1157 = vpack.c.b16 %v1099, %v1097
  %v1158 = vpack.c.b16 %v1102, %v1100
  %v1159 = vpack.c.b16 %v1103, %v1101
  %v1160 = vpack.c.b16 %v1106, %v1104
  %v1161 = vpack.c.b16 %v1107, %v1105
  %v1162 = vpack.c.b16 %v1110, %v1108
  %v1163 = vpack.c.b16 %v1111, %v1109
  %v1164 = vpack.c.b16 %v1114, %v1112
  %v1165 = vpack.c.b16 %v1115, %v1113
  %v1166 = vpack.c.b16 %v1118, %v1116
  %v1167 = vpack.c.b16 %v1119, %v1117
  %v1168 = vpack.c.b16 %v1122, %v1120
  %v1169 = vpack.c.b16 %v1123, %v1121
  %v1170 = vpack.c.b16 %v1126, %v1124
  %v1171 = vpack.c.b16 %v1127, %v1125
  %v1172 = vpack.c.b16 %v1130, %v1128
  %v1173 = vpack.c.b16 %v1131, %v1129
  %v1174 = vpack.c.b16 %v1134, %v1132
  %v1175 = vpack.c.b16 %v1135, %v1133
  %v1176 = vpack.c.b16 %v1138, %v1136
  %v1177 = vpack.c.b16 %v1139, %v1137
  %v1178 = vpack.c.b16 %v1142, %v1140
  %v1179 = vpack.c.b16 %v1143, %v1141
  %v1180 = vpack.c.b16 %v1146, %v1144
  %v1181 = vpack.c.b16 %v1147, %v1145
  %v1182 = vpack.c.b16 %v1150, %v1148
  %v1183 = vpack.c.b16 %v1151, %v1149
  %1216 = vmatprep.subr.bf16.mxu0 %v1153
  %1217 = vmatpush1.bf16.msra.mxu0 %v1152
  %1218 = vmatprep.subr.bf16.mxu0 %v1155
  %1219 = vmatpush1.bf16.msra.mxu0 %v1154
  %1220 = vmatprep.subr.bf16.mxu0 %v1157
  %1221 = vmatpush1.bf16.msra.mxu0 %v1156
  %1222 = vmatprep.subr.bf16.mxu0 %v1159
  %1223 = vmatpush1.bf16.msra.mxu0 %v1158
  %1224 = vmatprep.subr.bf16.mxu0 %v1161
  %1225 = vmatpush1.bf16.msra.mxu0 %v1160
  %1226 = vmatprep.subr.bf16.mxu0 %v1163
  %1227 = vmatpush1.bf16.msra.mxu0 %v1162
  %1228 = vmatprep.subr.bf16.mxu0 %v1165
  %1229 = vmatpush1.bf16.msra.mxu0 %v1164
  %1230 = vmatprep.subr.bf16.mxu0 %v1167
  %1231 = vmatpush1.bf16.msra.mxu0 %v1166
  %1232 = vmatprep.subr.bf16.mxu0 %v1169
  %1233 = vmatpush1.bf16.msra.mxu0 %v1168
  %1234 = vmatprep.subr.bf16.mxu0 %v1171
  %1235 = vmatpush1.bf16.msra.mxu0 %v1170
  %1236 = vmatprep.subr.bf16.mxu0 %v1173
  %1237 = vmatpush1.bf16.msra.mxu0 %v1172
  %1238 = vmatprep.subr.bf16.mxu0 %v1175
  %1239 = vmatpush1.bf16.msra.mxu0 %v1174
  %1240 = vmatprep.subr.bf16.mxu0 %v1177
  %1241 = vmatpush1.bf16.msra.mxu0 %v1176
  %1242 = vmatprep.subr.bf16.mxu0 %v1179
  %1243 = vmatpush1.bf16.msra.mxu0 %v1178
  %1244 = vmatprep.subr.bf16.mxu0 %v1181
  %1245 = vmatpush1.bf16.msra.mxu0 %v1180
  %1246 = vmatprep.subr.bf16.mxu0 %v1183
  %1247 = vmatpush1.bf16.msra.mxu0 %v1182
  %1248 = vmatprep.mubr.bf16.mxu0 %v1011
  %1249 = vmatmul.mubr.bf16.gmra.mrb[0].mxu0 %v1010
  %v1250 = vpop.f32.mrb[0].mxu0
  %v1251 = vadd.f32 %v1049, %v1250
  %v1252 = vpop.f32.mrb[0].mxu0
  %v1253 = vadd.f32 %v1053, %v1252
  %v1254 = vpop.f32.mrb[0].mxu0
  %v1255 = vpop.f32.mrb[0].mxu0
  %1256 = vdwg.mxu0
  %v1257 = vmax.f32 %v1251, 0.0
  %v1258 = vmax.f32 %v1253, 0.0
  %v1259 = vpack.c.bf16 %v1257, %v1257
  %v1260 = vpack.c.bf16 %v1258, %v1258
  %v1261 = vld [vmem:[%s12] sm:$0xf]
  %v1262 = vld [vmem:[%s12 + $0x4] sm:$0xf]
  %v1263 = vld [vmem:[%s12 + $0x8] sm:$0xf]
  %v1264 = vld [vmem:[%s12 + $0xc] sm:$0xf]
  %v1265 = vld [vmem:[%s12 + $0x10] sm:$0xf]
  %v1266 = vld [vmem:[%s12 + $0x14] sm:$0xf]
  %v1267 = vld [vmem:[%s12 + $0x18] sm:$0xf]
  %v1268 = vld [vmem:[%s12 + $0x1c] sm:$0xf]
  %v1269 = vld [vmem:[%s12 + $0x20] sm:$0xf]
  %v1270 = vld [vmem:[%s12 + $0x24] sm:$0xf]
  %v1271 = vld [vmem:[%s12 + $0x28] sm:$0xf]
  %v1272 = vld [vmem:[%s12 + $0x2c] sm:$0xf]
  %v1273 = vld [vmem:[%s12 + $0x30] sm:$0xf]
  %v1274 = vld [vmem:[%s12 + $0x34] sm:$0xf]
  %v1275 = vld [vmem:[%s12 + $0x38] sm:$0xf]
  %v1276 = vld [vmem:[%s12 + $0x3c] sm:$0xf]
  %v1277 = vld [vmem:[%s12 + $0x40] sm:$0xf]
  %v1278 = vld [vmem:[%s12 + $0x44] sm:$0xf]
  %v1279 = vld [vmem:[%s12 + $0x48] sm:$0xf]
  %v1280 = vld [vmem:[%s12 + $0x4c] sm:$0xf]
  %v1281 = vld [vmem:[%s12 + $0x50] sm:$0xf]
  %v1282 = vld [vmem:[%s12 + $0x54] sm:$0xf]
  %v1283 = vld [vmem:[%s12 + $0x58] sm:$0xf]
  %v1284 = vld [vmem:[%s12 + $0x5c] sm:$0xf]
  %v1285 = vld [vmem:[%s12 + $0x60] sm:$0xf]
  %v1286 = vld [vmem:[%s12 + $0x64] sm:$0xf]
  %v1287 = vld [vmem:[%s12 + $0x68] sm:$0xf]
  %v1288 = vld [vmem:[%s12 + $0x6c] sm:$0xf]
  %v1289 = vld [vmem:[%s12 + $0x70] sm:$0xf]
  %v1290 = vld [vmem:[%s12 + $0x74] sm:$0xf]
  %v1291 = vld [vmem:[%s12 + $0x78] sm:$0xf]
  %v1292 = vld [vmem:[%s12 + $0x7c] sm:$0xf]
  %v1293 = vld [vmem:[%s13] sm:$0x1]
  %v1295 = vlaneseq
  %v1296 = vshrl.u32 %v1295, 7
  %v1297 = vsub.s32 0, %v1296
  %v1298 = vrot.slane %v1293, %v1297
  %v1332 = vunpack.c.l.b16 %v1261
  %v1333 = vunpack.c.l.b16 %v1262
  %v1334 = vunpack.c.l.b16 %v1263
  %v1335 = vunpack.c.l.b16 %v1264
  %v1336 = vunpack.c.l.b16 %v1265
  %v1337 = vunpack.c.l.b16 %v1266
  %v1338 = vunpack.c.l.b16 %v1267
  %v1339 = vunpack.c.l.b16 %v1268
  %v1340 = vunpack.c.l.b16 %v1269
  %v1341 = vunpack.c.l.b16 %v1270
  %v1342 = vunpack.c.l.b16 %v1271
  %v1343 = vunpack.c.l.b16 %v1272
  %v1344 = vunpack.c.l.b16 %v1273
  %v1345 = vunpack.c.l.b16 %v1274
  %v1346 = vunpack.c.l.b16 %v1275
  %v1347 = vunpack.c.l.b16 %v1276
  %v1348 = vunpack.c.l.b16 %v1277
  %v1349 = vunpack.c.l.b16 %v1278
  %v1350 = vunpack.c.l.b16 %v1279
  %v1351 = vunpack.c.l.b16 %v1280
  %v1352 = vunpack.c.l.b16 %v1281
  %v1353 = vunpack.c.l.b16 %v1282
  %v1354 = vunpack.c.l.b16 %v1283
  %v1355 = vunpack.c.l.b16 %v1284
  %v1356 = vunpack.c.l.b16 %v1285
  %v1357 = vunpack.c.l.b16 %v1286
  %v1358 = vunpack.c.l.b16 %v1287
  %v1359 = vunpack.c.l.b16 %v1288
  %v1360 = vunpack.c.l.b16 %v1289
  %v1361 = vunpack.c.l.b16 %v1290
  %v1362 = vunpack.c.l.b16 %v1291
  %v1363 = vunpack.c.l.b16 %v1292
  %v1364 = vpack.c.b16 %v1333, %v1332
  %v1365 = vpack.c.b16 %v1335, %v1334
  %v1366 = vpack.c.b16 %v1337, %v1336
  %v1367 = vpack.c.b16 %v1339, %v1338
  %v1368 = vpack.c.b16 %v1341, %v1340
  %v1369 = vpack.c.b16 %v1343, %v1342
  %v1370 = vpack.c.b16 %v1345, %v1344
  %v1371 = vpack.c.b16 %v1347, %v1346
  %v1372 = vpack.c.b16 %v1349, %v1348
  %v1373 = vpack.c.b16 %v1351, %v1350
  %v1374 = vpack.c.b16 %v1353, %v1352
  %v1375 = vpack.c.b16 %v1355, %v1354
  %v1376 = vpack.c.b16 %v1357, %v1356
  %v1377 = vpack.c.b16 %v1359, %v1358
  %v1378 = vpack.c.b16 %v1361, %v1360
  %v1379 = vpack.c.b16 %v1363, %v1362
  %1396 = vmatprep.subr.bf16.mxu0 0
  %1397 = vmatpush1.bf16.msra.mxu0 %v1364
  %1398 = vmatprep.subr.bf16.mxu0 0
  %1399 = vmatpush1.bf16.msra.mxu0 %v1365
  %1400 = vmatprep.subr.bf16.mxu0 0
  %1401 = vmatpush1.bf16.msra.mxu0 %v1366
  %1402 = vmatprep.subr.bf16.mxu0 0
  %1403 = vmatpush1.bf16.msra.mxu0 %v1367
  %1404 = vmatprep.subr.bf16.mxu0 0
  %1405 = vmatpush1.bf16.msra.mxu0 %v1368
  %1406 = vmatprep.subr.bf16.mxu0 0
  %1407 = vmatpush1.bf16.msra.mxu0 %v1369
  %1408 = vmatprep.subr.bf16.mxu0 0
  %1409 = vmatpush1.bf16.msra.mxu0 %v1370
  %1410 = vmatprep.subr.bf16.mxu0 0
  %1411 = vmatpush1.bf16.msra.mxu0 %v1371
  %1412 = vmatprep.subr.bf16.mxu0 0
  %1413 = vmatpush1.bf16.msra.mxu0 %v1372
  %1414 = vmatprep.subr.bf16.mxu0 0
  %1415 = vmatpush1.bf16.msra.mxu0 %v1373
  %1416 = vmatprep.subr.bf16.mxu0 0
  %1417 = vmatpush1.bf16.msra.mxu0 %v1374
  %1418 = vmatprep.subr.bf16.mxu0 0
  %1419 = vmatpush1.bf16.msra.mxu0 %v1375
  %1420 = vmatprep.subr.bf16.mxu0 0
  %1421 = vmatpush1.bf16.msra.mxu0 %v1376
  %1422 = vmatprep.subr.bf16.mxu0 0
  %1423 = vmatpush1.bf16.msra.mxu0 %v1377
  %1424 = vmatprep.subr.bf16.mxu0 0
  %1425 = vmatpush1.bf16.msra.mxu0 %v1378
  %1426 = vmatprep.subr.bf16.mxu0 0
  %1427 = vmatpush1.bf16.msra.mxu0 %v1379
  %1428 = vmatprep.mubr.bf16.mxu0 %v1260
  %1429 = vmatmul.mubr.bf16.gmra.mrb[0].mxu0 %v1259
  %v1430 = vpop.f32.mrb[0].mxu0
  %v1431 = vadd.f32 %v1298, %v1430
  %v1432 = vpop.f32.mrb[0].mxu0
  %v1433 = vpop.f32.mrb[0].mxu0
  %v1434 = vpop.f32.mrb[0].mxu0
  %1435 = vdwg.mxu0
  %vm1436 = vcmask 648192
  %1437 = vst.msk [vmem:[%s15] sm:$0x3] %vm1436, %v1431
  // Predicated region
  $region58: #{unified_tinyvla_forward.5} parent=0 // pred_check
    _
  $region59: #{unified_tinyvla_forward.5} parent=0 // pred_check_branch
    %1439 = sbr.rel (0) target = $region61
  $region60: #{unified_tinyvla_forward.5} parent=0 // pred_region
    _
  $region61: #{unified_tinyvla_forward.5} parent=0 // pred_fallthru
    _
  // Predicated region
  $region62: #{unified_tinyvla_forward.5} parent=0 // pred_check
    _
  $region63: #{unified_tinyvla_forward.5} parent=0 // pred_check_branch
    %1441 = sbr.rel (0) target = $region65
  $region64: #{unified_tinyvla_forward.5} parent=0 // pred_region
    _
  $region65: #{unified_tinyvla_forward.5} parent=0 // pred_fallthru
    _
  // Predicated region
  $region66: #{unified_tinyvla_forward.5} parent=0 // pred_check
    _
  $region67: #{unified_tinyvla_forward.5} parent=0 // pred_check_branch
    %1443 = sbr.rel (0) target = $region69
  $region68: #{unified_tinyvla_forward.5} parent=0 // pred_region
    _
  $region69: #{unified_tinyvla_forward.5} parent=0 // pred_fallthru
    _
  // Predicated region
  $region70: #{unified_tinyvla_forward.5} parent=0 // pred_check
    _
  $region71: #{unified_tinyvla_forward.5} parent=0 // pred_check_branch
    %1445 = sbr.rel (0) target = $region73
  $region72: #{unified_tinyvla_forward.5} parent=0 // pred_region
    _
  $region73: #{unified_tinyvla_forward.5} parent=0 // pred_fallthru
    _

// kernel: unified_tinyvla_forward.3
$region0: #{unified_tinyvla_forward.3}
  #allocation0 [shape = 'u32[]', space=smem, size = 0x4, offset = 0x4, fixed_abs, tag = 'smem constant byte address 0x4 - core index']
  #allocation1 [shape = 'u32[144,128]{1,0:T(1,128)}', space=vmem, size = 0x12000, scoped, tag = 'internal scratch']
  %s0 = inlined_call_operand.vmem [shape: f32[8,192], index: 0, kind: input, shape index: {}]
  %s1 = inlined_call_operand.vmem [shape: bf16[192,128], index: 1, kind: input, shape index: {}]
  %s2 = inlined_call_operand.vmem [shape: f32[1,128], index: 2, kind: input, shape index: {}]
  %s3 = inlined_call_operand.vmem [shape: f32[4,128], index: 3, kind: input, shape index: {}]
  %s4 = inlined_call_operand.hbm [shape: f32[1,128], index: 4, kind: input, shape index: {}]
  %s5 = inlined_call_operand.hbm [shape: f32[1,128], index: 5, kind: input, shape index: {}]
  %s6 = inlined_call_operand.vmem [shape: bf16[128,384], index: 6, kind: input, shape index: {}]
  %s7 = inlined_call_operand.hbm [shape: f32[1,384], index: 7, kind: input, shape index: {}]
  %s8 = inlined_call_operand.hbm [shape: bf16[128,128], index: 8, kind: input, shape index: {}]
  %s9 = inlined_call_operand.hbm [shape: f32[1,128], index: 9, kind: input, shape index: {}]
  %s10 = inlined_call_operand.hbm [shape: f32[1,128], index: 10, kind: input, shape index: {}]
  %s11 = inlined_call_operand.hbm [shape: f32[1,128], index: 11, kind: input, shape index: {}]
  %s12 = inlined_call_operand.vmem [shape: bf16[128,512], index: 12, kind: input, shape index: {}]
  %s13 = inlined_call_operand.hbm [shape: f32[1,512], index: 13, kind: input, shape index: {}]
  %s14 = inlined_call_operand.vmem [shape: bf16[512,128], index: 14, kind: input, shape index: {}]
  %s15 = inlined_call_operand.hbm [shape: f32[1,128], index: 15, kind: input, shape index: {}]
  %s16 = inlined_call_operand.hbm [shape: f32[1,128], index: 16, kind: input, shape index: {}]
  %s17 = inlined_call_operand.hbm [shape: f32[1,128], index: 17, kind: input, shape index: {}]
  %s18 = inlined_call_operand.hbm [shape: bf16[128,128], index: 18, kind: input, shape index: {}]
  %s19 = inlined_call_operand.hbm [shape: f32[1,128], index: 19, kind: input, shape index: {}]
  %s20 = inlined_call_operand.vmem [shape: f32[2,4,128], index: 20, kind: output, shape index: {}]
  %s21 = sld [smem:[#allocation0]]
  $region142: #{unified_tinyvla_forward.3} parent=0
    _
  %s23 = ssub.s32 1, %s21
  %s24 = scalar_select 0, %s23, %s21
  $region1: #{unified_tinyvla_forward.3} parent=0
    #allocation2 [shape = 'u8[512]{0}', space=vmem, size = 0x400, scoped, tag = 'input window, operand 4, single buffered']
    #allocation3 [shape = 's32[1]{0}', space=sflag, size = 0x4, scoped, tag = 'scoped memory for unified_tinyvla_forward.3']
    #allocation4 [shape = 'u8[512]{0}', space=vmem, size = 0x400, scoped, tag = 'input window, operand 5, single buffered']
    #allocation5 [shape = 's32[1]{0}', space=sflag, size = 0x4, scoped, tag = 'scoped memory for unified_tinyvla_forward.3']
    #allocation6 [shape = 'u8[1536]{0}', space=vmem, size = 0x800, scoped, tag = 'input window, operand 7, single buffered']
    #allocation7 [shape = 'u8[32768]{0}', space=vmem, size = 0x8000, scoped, tag = 'input window, operand 8, single buffered']
    #allocation8 [shape = 's32[1]{0}', space=sflag, size = 0x4, scoped, tag = 'scoped memory for unified_tinyvla_forward.3']
    #allocation9 [shape = 'u8[512]{0}', space=vmem, size = 0x400, scoped, tag = 'input window, operand 9, single buffered']
    #allocation10 [shape = 'u8[512]{0}', space=vmem, size = 0x400, scoped, tag = 'input window, operand 10, single buffered']
    #allocation11 [shape = 's32[1]{0}', space=sflag, size = 0x4, scoped, tag = 'scoped memory for unified_tinyvla_forward.3']
    #allocation12 [shape = 'u8[512]{0}', space=vmem, size = 0x400, scoped, tag = 'input window, operand 11, single buffered']
    #allocation13 [shape = 'u8[2048]{0}', space=vmem, size = 0x800, scoped, tag = 'input window, operand 13, single buffered']
    #allocation14 [shape = 's32[1]{0}', space=sflag, size = 0x4, scoped, tag = 'scoped memory for unified_tinyvla_forward.3']
    #allocation15 [shape = 'u8[512]{0}', space=vmem, size = 0x400, scoped, tag = 'input window, operand 15, single buffered']
    #allocation16 [shape = 'u8[512]{0}', space=vmem, size = 0x400, scoped, tag = 'input window, operand 16, single buffered']
    #allocation17 [shape = 's32[1]{0}', space=sflag, size = 0x4, scoped, tag = 'scoped memory for unified_tinyvla_forward.3']
    #allocation18 [shape = 'u8[512]{0}', space=vmem, size = 0x400, scoped, tag = 'input window, operand 17, single buffered']
    #allocation19 [shape = 'u8[32768]{0}', space=vmem, size = 0x8000, scoped, tag = 'input window, operand 18, single buffered']
    #allocation20 [shape = 's32[1]{0}', space=sflag, size = 0x4, scoped, tag = 'scoped memory for unified_tinyvla_forward.3']
    #allocation21 [shape = 'u8[512]{0}', space=vmem, size = 0x400, scoped, tag = 'input window, operand 19, single buffered']
    %25 = vsyncpa [#allocation3], 0
    %26 = vsyncpa [#allocation5], 0
    %27 = vsyncpa [#allocation8], 0
    %28 = vsyncpa [#allocation11], 0
    %29 = vsyncpa [#allocation14], 0
    %30 = vsyncpa [#allocation17], 0
    %31 = vsyncpa [#allocation20], 0
    // Predicated region
    $region2: #{unified_tinyvla_forward.3} parent=1 // pred_check
      _
    $region3: #{unified_tinyvla_forward.3} parent=1 // pred_check_branch
      %33 = sbr.rel (0) target = $region5
    $region4: #{unified_tinyvla_forward.3} parent=1 // pred_region
      _
    $region5: #{unified_tinyvla_forward.3} parent=1 // pred_fallthru
      _
    // Predicated region
    $region6: #{unified_tinyvla_forward.3} parent=1 // pred_check
      _
    $region7: #{unified_tinyvla_forward.3} parent=1 // pred_check_branch
      %35 = sbr.rel (0) target = $region9
    $region8: #{unified_tinyvla_forward.3} parent=1 // pred_region
      _
    $region9: #{unified_tinyvla_forward.3} parent=1 // pred_fallthru
      _
    // Predicated region
    $region10: #{unified_tinyvla_forward.3} parent=1 // pred_check
      _
    $region11: #{unified_tinyvla_forward.3} parent=1 // pred_check_branch
      %37 = sbr.rel (0) target = $region13
    $region12: #{unified_tinyvla_forward.3} parent=1 // pred_region
      _
    $region13: #{unified_tinyvla_forward.3} parent=1 // pred_fallthru
      _
    // Predicated region
    $region14: #{unified_tinyvla_forward.3} parent=1 // pred_check
      _
    $region15: #{unified_tinyvla_forward.3} parent=1 // pred_check_branch
      %39 = sbr.rel (0) target = $region17
    $region16: #{unified_tinyvla_forward.3} parent=1 // pred_region
      _
    $region17: #{unified_tinyvla_forward.3} parent=1 // pred_fallthru
      _
    // Predicated region
    $region18: #{unified_tinyvla_forward.3} parent=1 // pred_check
      _
    $region19: #{unified_tinyvla_forward.3} parent=1 // pred_check_branch
      %41 = sbr.rel (0) target = $region21
    $region20: #{unified_tinyvla_forward.3} parent=1 // pred_region
      %s43 = ssub.s32 16, 16
      %44 = vsyncadd [#allocation3], %s43
      %s46 = sshll.u32 [#allocation2], 4
      %s47 = int_to_ptr.vmem [resolvable:$true] %s46
      %49 = dma.hbm_to_vmem [thread:$0]  %s4, 16, %s47, [#allocation3]
    $region21: #{unified_tinyvla_forward.3} parent=1 // pred_fallthru
      _
    // Predicated region
    $region22: #{unified_tinyvla_forward.3} parent=1 // pred_check
      _
    $region23: #{unified_tinyvla_forward.3} parent=1 // pred_check_branch
      %51 = sbr.rel (0) target = $region25
    $region24: #{unified_tinyvla_forward.3} parent=1 // pred_region
      %s53 = ssub.s32 16, 16
      %54 = vsyncadd [#allocation5], %s53
      %s56 = sshll.u32 [#allocation4], 4
      %s57 = int_to_ptr.vmem [resolvable:$true] %s56
      %59 = dma.hbm_to_vmem [thread:$0]  %s5, 16, %s57, [#allocation5]
    $region25: #{unified_tinyvla_forward.3} parent=1 // pred_fallthru
      _
    // Predicated region
    $region26: #{unified_tinyvla_forward.3} parent=1 // pred_check
      _
    $region27: #{unified_tinyvla_forward.3} parent=1 // pred_check_branch
      %61 = sbr.rel (0) target = $region29
    $region28: #{unified_tinyvla_forward.3} parent=1 // pred_region
      _
    $region29: #{unified_tinyvla_forward.3} parent=1 // pred_fallthru
      _
    // Predicated region
    $region30: #{unified_tinyvla_forward.3} parent=1 // pred_check
      _
    $region31: #{unified_tinyvla_forward.3} parent=1 // pred_check_branch
      %63 = sbr.rel (0) target = $region33
    $region32: #{unified_tinyvla_forward.3} parent=1 // pred_region
      %s65 = ssub.s32 48, 48
      %66 = vsyncadd [#allocation5], %s65
      %s68 = sshll.u32 [#allocation6], 4
      %s69 = int_to_ptr.vmem [resolvable:$true] %s68
      %71 = dma.hbm_to_vmem [thread:$0]  %s7, 48, %s69, [#allocation5]
    $region33: #{unified_tinyvla_forward.3} parent=1 // pred_fallthru
      _
    // Predicated region
    $region34: #{unified_tinyvla_forward.3} parent=1 // pred_check
      _
    $region35: #{unified_tinyvla_forward.3} parent=1 // pred_check_branch
      %73 = sbr.rel (0) target = $region37
    $region36: #{unified_tinyvla_forward.3} parent=1 // pred_region
      %s75 = ssub.s32 1024, 1024
      %76 = vsyncadd [#allocation8], %s75
      %s77 = sshll.u32 [#allocation7], 4
      %s78 = int_to_ptr.vmem [resolvable:$true] %s77
      %83 = dma.hbm_to_vmem [thread:$0]  %s8, 1024, %s78, [#allocation8], 64, 64, 4
    $region37: #{unified_tinyvla_forward.3} parent=1 // pred_fallthru
      _
    // Predicated region
    $region38: #{unified_tinyvla_forward.3} parent=1 // pred_check
      _
    $region39: #{unified_tinyvla_forward.3} parent=1 // pred_check_branch
      %85 = sbr.rel (0) target = $region41
    $region40: #{unified_tinyvla_forward.3} parent=1 // pred_region
      %s87 = ssub.s32 16, 16
      %88 = vsyncadd [#allocation8], %s87
      %s90 = sshll.u32 [#allocation9], 4
      %s91 = int_to_ptr.vmem [resolvable:$true] %s90
      %93 = dma.hbm_to_vmem [thread:$0]  %s9, 16, %s91, [#allocation8]
    $region41: #{unified_tinyvla_forward.3} parent=1 // pred_fallthru
      _
    // Predicated region
    $region42: #{unified_tinyvla_forward.3} parent=1 // pred_check
      _
    $region43: #{unified_tinyvla_forward.3} parent=1 // pred_check_branch
      %95 = sbr.rel (0) target = $region45
    $region44: #{unified_tinyvla_forward.3} parent=1 // pred_region
      %s97 = ssub.s32 16, 16
      %98 = vsyncadd [#allocation11], %s97
      %s100 = sshll.u32 [#allocation10], 4
      %s101 = int_to_ptr.vmem [resolvable:$true] %s100
      %103 = dma.hbm_to_vmem [thread:$0]  %s10, 16, %s101, [#allocation11]
    $region45: #{unified_tinyvla_forward.3} parent=1 // pred_fallthru
      _
    // Predicated region
    $region46: #{unified_tinyvla_forward.3} parent=1 // pred_check
      _
    $region47: #{unified_tinyvla_forward.3} parent=1 // pred_check_branch
      %105 = sbr.rel (0) target = $region49
    $region48: #{unified_tinyvla_forward.3} parent=1 // pred_region
      %s107 = ssub.s32 16, 16
      %108 = vsyncadd [#allocation11], %s107
      %s110 = sshll.u32 [#allocation12], 4
      %s111 = int_to_ptr.vmem [resolvable:$true] %s110
      %113 = dma.hbm_to_vmem [thread:$0]  %s11, 16, %s111, [#allocation11]
    $region49: #{unified_tinyvla_forward.3} parent=1 // pred_fallthru
      _
    // Predicated region
    $region50: #{unified_tinyvla_forward.3} parent=1 // pred_check
      _
    $region51: #{unified_tinyvla_forward.3} parent=1 // pred_check_branch
      %115 = sbr.rel (0) target = $region53
    $region52: #{unified_tinyvla_forward.3} parent=1 // pred_region
      _
    $region53: #{unified_tinyvla_forward.3} parent=1 // pred_fallthru
      _
    // Predicated region
    $region54: #{unified_tinyvla_forward.3} parent=1 // pred_check
      _
    $region55: #{unified_tinyvla_forward.3} parent=1 // pred_check_branch
      %117 = sbr.rel (0) target = $region57
    $region56: #{unified_tinyvla_forward.3} parent=1 // pred_region
      %s119 = ssub.s32 64, 64
      %120 = vsyncadd [#allocation14], %s119
      %s122 = sshll.u32 [#allocation13], 4
      %s123 = int_to_ptr.vmem [resolvable:$true] %s122
      %125 = dma.hbm_to_vmem [thread:$0]  %s13, 64, %s123, [#allocation14]
    $region57: #{unified_tinyvla_forward.3} parent=1 // pred_fallthru
      _
    // Predicated region
    $region58: #{unified_tinyvla_forward.3} parent=1 // pred_check
      _
    $region59: #{unified_tinyvla_forward.3} parent=1 // pred_check_branch
      %127 = sbr.rel (0) target = $region61
    $region60: #{unified_tinyvla_forward.3} parent=1 // pred_region
      _
    $region61: #{unified_tinyvla_forward.3} parent=1 // pred_fallthru
      _
    // Predicated region
    $region62: #{unified_tinyvla_forward.3} parent=1 // pred_check
      _
    $region63: #{unified_tinyvla_forward.3} parent=1 // pred_check_branch
      %129 = sbr.rel (0) target = $region65
    $region64: #{unified_tinyvla_forward.3} parent=1 // pred_region
      %s131 = ssub.s32 16, 16
      %132 = vsyncadd [#allocation14], %s131
      %s134 = sshll.u32 [#allocation15], 4
      %s135 = int_to_ptr.vmem [resolvable:$true] %s134
      %137 = dma.hbm_to_vmem [thread:$0]  %s15, 16, %s135, [#allocation14]
    $region65: #{unified_tinyvla_forward.3} parent=1 // pred_fallthru
      _
    // Predicated region
    $region66: #{unified_tinyvla_forward.3} parent=1 // pred_check
      _
    $region67: #{unified_tinyvla_forward.3} parent=1 // pred_check_branch
      %139 = sbr.rel (0) target = $region69
    $region68: #{unified_tinyvla_forward.3} parent=1 // pred_region
      %s141 = ssub.s32 16, 16
      %142 = vsyncadd [#allocation17], %s141
      %s144 = sshll.u32 [#allocation16], 4
      %s145 = int_to_ptr.vmem [resolvable:$true] %s144
      %147 = dma.hbm_to_vmem [thread:$0]  %s16, 16, %s145, [#allocation17]
    $region69: #{unified_tinyvla_forward.3} parent=1 // pred_fallthru
      _
    // Predicated region
    $region70: #{unified_tinyvla_forward.3} parent=1 // pred_check
      _
    $region71: #{unified_tinyvla_forward.3} parent=1 // pred_check_branch
      %149 = sbr.rel (0) target = $region73
    $region72: #{unified_tinyvla_forward.3} parent=1 // pred_region
      %s151 = ssub.s32 16, 16
      %152 = vsyncadd [#allocation17], %s151
      %s154 = sshll.u32 [#allocation18], 4
      %s155 = int_to_ptr.vmem [resolvable:$true] %s154
      %157 = dma.hbm_to_vmem [thread:$0]  %s17, 16, %s155, [#allocation17]
    $region73: #{unified_tinyvla_forward.3} parent=1 // pred_fallthru
      _
    // Predicated region
    $region74: #{unified_tinyvla_forward.3} parent=1 // pred_check
      _
    $region75: #{unified_tinyvla_forward.3} parent=1 // pred_check_branch
      %159 = sbr.rel (0) target = $region77
    $region76: #{unified_tinyvla_forward.3} parent=1 // pred_region
      %s161 = ssub.s32 1024, 1024
      %162 = vsyncadd [#allocation20], %s161
      %s163 = sshll.u32 [#allocation19], 4
      %s164 = int_to_ptr.vmem [resolvable:$true] %s163
      %169 = dma.hbm_to_vmem [thread:$0]  %s18, 1024, %s164, [#allocation20], 64, 64, 4
    $region77: #{unified_tinyvla_forward.3} parent=1 // pred_fallthru
      _
    // Predicated region
    $region78: #{unified_tinyvla_forward.3} parent=1 // pred_check
      _
    $region79: #{unified_tinyvla_forward.3} parent=1 // pred_check_branch
      %171 = sbr.rel (0) target = $region81
    $region80: #{unified_tinyvla_forward.3} parent=1 // pred_region
      %s173 = ssub.s32 16, 16
      %174 = vsyncadd [#allocation20], %s173
      %s176 = sshll.u32 [#allocation21], 4
      %s177 = int_to_ptr.vmem [resolvable:$true] %s176
      %179 = dma.hbm_to_vmem [thread:$0]  %s19, 16, %s177, [#allocation20]
    $region81: #{unified_tinyvla_forward.3} parent=1 // pred_fallthru
      _
    // Predicated region
    $region82: #{unified_tinyvla_forward.3} parent=1 // pred_check
      _
    $region83: #{unified_tinyvla_forward.3} parent=1 // pred_check_branch
      %181 = sbr.rel (0) target = $region85
    $region84: #{unified_tinyvla_forward.3} parent=1 // pred_region
      %182 = dma.done [#allocation3], 16
    $region85: #{unified_tinyvla_forward.3} parent=1 // pred_fallthru
      _
    // Predicated region
    $region86: #{unified_tinyvla_forward.3} parent=1 // pred_check
      _
    $region87: #{unified_tinyvla_forward.3} parent=1 // pred_check_branch
      %184 = sbr.rel (0) target = $region89
    $region88: #{unified_tinyvla_forward.3} parent=1 // pred_region
      %185 = dma.done [#allocation5], 16
    $region89: #{unified_tinyvla_forward.3} parent=1 // pred_fallthru
      _
    // Predicated region
    $region90: #{unified_tinyvla_forward.3} parent=1 // pred_check
      _
    $region91: #{unified_tinyvla_forward.3} parent=1 // pred_check_branch
      %187 = sbr.rel (0) target = $region93
    $region92: #{unified_tinyvla_forward.3} parent=1 // pred_region
      %188 = dma.done [#allocation5], 48
    $region93: #{unified_tinyvla_forward.3} parent=1 // pred_fallthru
      _
    // Predicated region
    $region94: #{unified_tinyvla_forward.3} parent=1 // pred_check
      _
    $region95: #{unified_tinyvla_forward.3} parent=1 // pred_check_branch
      %190 = sbr.rel (0) target = $region97
    $region96: #{unified_tinyvla_forward.3} parent=1 // pred_region
      %191 = dma.done [#allocation8], 1024
    $region97: #{unified_tinyvla_forward.3} parent=1 // pred_fallthru
      _
    // Predicated region
    $region98: #{unified_tinyvla_forward.3} parent=1 // pred_check
      _
    $region99: #{unified_tinyvla_forward.3} parent=1 // pred_check_branch
      %193 = sbr.rel (0) target = $region101
    $region100: #{unified_tinyvla_forward.3} parent=1 // pred_region
      %194 = dma.done [#allocation8], 16
    $region101: #{unified_tinyvla_forward.3} parent=1 // pred_fallthru
      _
    // Predicated region
    $region102: #{unified_tinyvla_forward.3} parent=1 // pred_check
      _
    $region103: #{unified_tinyvla_forward.3} parent=1 // pred_check_branch
      %196 = sbr.rel (0) target = $region105
    $region104: #{unified_tinyvla_forward.3} parent=1 // pred_region
      %197 = dma.done [#allocation11], 16
    $region105: #{unified_tinyvla_forward.3} parent=1 // pred_fallthru
      _
    // Predicated region
    $region106: #{unified_tinyvla_forward.3} parent=1 // pred_check
      _
    $region107: #{unified_tinyvla_forward.3} parent=1 // pred_check_branch
      %199 = sbr.rel (0) target = $region109
    $region108: #{unified_tinyvla_forward.3} parent=1 // pred_region
      %200 = dma.done [#allocation11], 16
    $region109: #{unified_tinyvla_forward.3} parent=1 // pred_fallthru
      _
    // Predicated region
    $region110: #{unified_tinyvla_forward.3} parent=1 // pred_check
      _
    $region111: #{unified_tinyvla_forward.3} parent=1 // pred_check_branch
      %202 = sbr.rel (0) target = $region113
    $region112: #{unified_tinyvla_forward.3} parent=1 // pred_region
      %203 = dma.done [#allocation14], 64
    $region113: #{unified_tinyvla_forward.3} parent=1 // pred_fallthru
      _
    // Predicated region
    $region114: #{unified_tinyvla_forward.3} parent=1 // pred_check
      _
    $region115: #{unified_tinyvla_forward.3} parent=1 // pred_check_branch
      %205 = sbr.rel (0) target = $region117
    $region116: #{unified_tinyvla_forward.3} parent=1 // pred_region
      %206 = dma.done [#allocation14], 16
    $region117: #{unified_tinyvla_forward.3} parent=1 // pred_fallthru
      _
    // Predicated region
    $region118: #{unified_tinyvla_forward.3} parent=1 // pred_check
      _
    $region119: #{unified_tinyvla_forward.3} parent=1 // pred_check_branch
      %208 = sbr.rel (0) target = $region121
    $region120: #{unified_tinyvla_forward.3} parent=1 // pred_region
      %209 = dma.done [#allocation17], 16
    $region121: #{unified_tinyvla_forward.3} parent=1 // pred_fallthru
      _
    // Predicated region
    $region122: #{unified_tinyvla_forward.3} parent=1 // pred_check
      _
    $region123: #{unified_tinyvla_forward.3} parent=1 // pred_check_branch
      %211 = sbr.rel (0) target = $region125
    $region124: #{unified_tinyvla_forward.3} parent=1 // pred_region
      %212 = dma.done [#allocation17], 16
    $region125: #{unified_tinyvla_forward.3} parent=1 // pred_fallthru
      _
    // Predicated region
    $region126: #{unified_tinyvla_forward.3} parent=1 // pred_check
      _
    $region127: #{unified_tinyvla_forward.3} parent=1 // pred_check_branch
      %214 = sbr.rel (0) target = $region129
    $region128: #{unified_tinyvla_forward.3} parent=1 // pred_region
      %215 = dma.done [#allocation20], 1024
    $region129: #{unified_tinyvla_forward.3} parent=1 // pred_fallthru
      _
    // Predicated region
    $region130: #{unified_tinyvla_forward.3} parent=1 // pred_check
      _
    $region131: #{unified_tinyvla_forward.3} parent=1 // pred_check_branch
      %217 = sbr.rel (0) target = $region133
    $region132: #{unified_tinyvla_forward.3} parent=1 // pred_region
      %218 = dma.done [#allocation20], 16
    $region133: #{unified_tinyvla_forward.3} parent=1 // pred_fallthru
      _
    %v220 = vld [vmem:[%s0] sm:$0xff]
    %v221 = vld [vmem:[%s0 + $0x8] sm:$0xff]
    %v222 = vpack.c.bf16 %v220, %v220
    %v223 = vpack.c.bf16 %v221, %v221
    %v224 = vld [vmem:[%s1] sm:$0xf]
    %v225 = vld [vmem:[%s1 + $0x4] sm:$0xf]
    %v226 = vld [vmem:[%s1 + $0x8] sm:$0xf]
    %v227 = vld [vmem:[%s1 + $0xc] sm:$0xf]
    %v228 = vld [vmem:[%s1 + $0x10] sm:$0xf]
    %v229 = vld [vmem:[%s1 + $0x14] sm:$0xf]
    %v230 = vld [vmem:[%s1 + $0x18] sm:$0xf]
    %v231 = vld [vmem:[%s1 + $0x1c] sm:$0xf]
    %v232 = vld [vmem:[%s1 + $0x20] sm:$0xf]
    %v233 = vld [vmem:[%s1 + $0x24] sm:$0xf]
    %v234 = vld [vmem:[%s1 + $0x28] sm:$0xf]
    %v235 = vld [vmem:[%s1 + $0x2c] sm:$0xf]
    %v236 = vld [vmem:[%s1 + $0x30] sm:$0xf]
    %v237 = vld [vmem:[%s1 + $0x34] sm:$0xf]
    %v238 = vld [vmem:[%s1 + $0x38] sm:$0xf]
    %v239 = vld [vmem:[%s1 + $0x3c] sm:$0xf]
    %v240 = vld [vmem:[%s1 + $0x40] sm:$0xf]
    %v241 = vld [vmem:[%s1 + $0x44] sm:$0xf]
    %v242 = vld [vmem:[%s1 + $0x48] sm:$0xf]
    %v243 = vld [vmem:[%s1 + $0x4c] sm:$0xf]
    %v244 = vld [vmem:[%s1 + $0x50] sm:$0xf]
    %v245 = vld [vmem:[%s1 + $0x54] sm:$0xf]
    %v246 = vld [vmem:[%s1 + $0x58] sm:$0xf]
    %v247 = vld [vmem:[%s1 + $0x5c] sm:$0xf]
    %v248 = vld [vmem:[%s2] sm:$0x1]
    %v250 = vlaneseq
    %v251 = vshrl.u32 %v250, 7
    %v252 = vsub.s32 0, %v251
    %v253 = vrot.slane %v248, %v252
    %v279 = vunpack.c.l.b16 %v224
    %v280 = vunpack.c.l.b16 %v225
    %v281 = vunpack.c.l.b16 %v226
    %v282 = vunpack.c.l.b16 %v227
    %v283 = vunpack.c.l.b16 %v228
    %v284 = vunpack.c.l.b16 %v229
    %v285 = vunpack.c.l.b16 %v230
    %v286 = vunpack.c.l.b16 %v231
    %v287 = vunpack.c.l.b16 %v232
    %v288 = vunpack.c.l.b16 %v233
    %v289 = vunpack.c.l.b16 %v234
    %v290 = vunpack.c.l.b16 %v235
    %v291 = vunpack.c.l.b16 %v236
    %v292 = vunpack.c.l.b16 %v237
    %v293 = vunpack.c.l.b16 %v238
    %v294 = vunpack.c.l.b16 %v239
    %v295 = vunpack.c.l.b16 %v240
    %v296 = vunpack.c.l.b16 %v241
    %v297 = vunpack.c.l.b16 %v242
    %v298 = vunpack.c.l.b16 %v243
    %v299 = vunpack.c.l.b16 %v244
    %v300 = vunpack.c.l.b16 %v245
    %v301 = vunpack.c.l.b16 %v246
    %v302 = vunpack.c.l.b16 %v247
    %v303 = vpack.c.b16 %v280, %v279
    %v304 = vpack.c.b16 %v282, %v281
    %v305 = vpack.c.b16 %v284, %v283
    %v306 = vpack.c.b16 %v286, %v285
    %v307 = vpack.c.b16 %v288, %v287
    %v308 = vpack.c.b16 %v290, %v289
    %v309 = vpack.c.b16 %v292, %v291
    %v310 = vpack.c.b16 %v294, %v293
    %v311 = vpack.c.b16 %v296, %v295
    %v312 = vpack.c.b16 %v298, %v297
    %v313 = vpack.c.b16 %v300, %v299
    %v314 = vpack.c.b16 %v302, %v301
    %vm327 = vcmask 523264
    %v329 = vsel %vm327, %v223, 0
    %331 = vmatprep.subr.bf16.mxu0 0
    %332 = vmatpush1.bf16.msra.mxu0 %v303
    %333 = vmatprep.subr.bf16.mxu0 0
    %334 = vmatpush1.bf16.msra.mxu0 %v304
    %335 = vmatprep.subr.bf16.mxu0 0
    %336 = vmatpush1.bf16.msra.mxu0 %v305
    %337 = vmatprep.subr.bf16.mxu0 0
    %338 = vmatpush1.bf16.msra.mxu0 %v306
    %339 = vmatprep.subr.bf16.mxu0 0
    %340 = vmatpush1.bf16.msra.mxu0 %v307
    %341 = vmatprep.subr.bf16.mxu0 0
    %342 = vmatpush1.bf16.msra.mxu0 %v308
    %343 = vmatprep.subr.bf16.mxu0 0
    %344 = vmatpush1.bf16.msra.mxu0 %v309
    %345 = vmatprep.subr.bf16.mxu0 0
    %346 = vmatpush1.bf16.msra.mxu0 %v310
    %347 = vmatprep.subr.bf16.mxu0 0
    %348 = vmatpush1.bf16.msra.mxu0 %v311
    %349 = vmatprep.subr.bf16.mxu0 0
    %350 = vmatpush1.bf16.msra.mxu0 %v312
    %351 = vmatprep.subr.bf16.mxu0 0
    %352 = vmatpush1.bf16.msra.mxu0 %v313
    %353 = vmatprep.subr.bf16.mxu0 0
    %354 = vmatpush1.bf16.msra.mxu0 %v314
    %355 = vmatprep.subr.bf16.mxu0 0
    %356 = vmatpush1.bf16.msra.mxu0 0
    %357 = vmatprep.subr.bf16.mxu0 0
    %358 = vmatpush1.bf16.msra.mxu0 0
    %359 = vmatprep.subr.bf16.mxu0 0
    %360 = vmatpush1.bf16.msra.mxu0 0
    %361 = vmatprep.subr.bf16.mxu0 0
    %362 = vmatpush1.bf16.msra.mxu0 0
    %363 = vmatprep.mubr.bf16.mxu0 %v329
    %364 = vmatmul.mubr.bf16.gmra.mrb[0].mxu0 %v222
    %v365 = vpop.f32.mrb[0].mxu0
    %v366 = vadd.f32 %v253, %v365
    %v367 = vpop.f32.mrb[0].mxu0
    %v368 = vpop.f32.mrb[0].mxu0
    %v369 = vpop.f32.mrb[0].mxu0
    %370 = vdwg.mxu0
    %v372 = vcombine.high %v366, %v366
    %v374 = vld [vmem:[%s3] sm:$0xf]
    %v375 = vadd.f32 %v366, %v374
    %v376 = vadd.f32 %v372, %v374
    %v377 = vld [vmem:[#allocation2] sm:$0x1]
    %v378 = vld [vmem:[#allocation4] sm:$0x1]
    %v379 = vld [vmem:[%s6] sm:$0xff]
    %v380 = vld [vmem:[%s6 + $0x8] sm:$0xf]
    %v381 = vld [vmem:[%s6 + $0xc] sm:$0xff]
    %v382 = vld [vmem:[%s6 + $0x14] sm:$0xf]
    %v383 = vld [vmem:[%s6 + $0x18] sm:$0xff]
    %v384 = vld [vmem:[%s6 + $0x20] sm:$0xf]
    %v385 = vld [vmem:[%s6 + $0x24] sm:$0xff]
    %v386 = vld [vmem:[%s6 + $0x2c] sm:$0xf]
    %v387 = vld [vmem:[%s6 + $0x30] sm:$0xff]
    %v388 = vld [vmem:[%s6 + $0x38] sm:$0xf]
    %v389 = vld [vmem:[%s6 + $0x3c] sm:$0xff]
    %v390 = vld [vmem:[%s6 + $0x44] sm:$0xf]
    %v391 = vld [vmem:[%s6 + $0x48] sm:$0xff]
    %v392 = vld [vmem:[%s6 + $0x50] sm:$0xf]
    %v393 = vld [vmem:[%s6 + $0x54] sm:$0xff]
    %v394 = vld [vmem:[%s6 + $0x5c] sm:$0xf]
    %v395 = vld [vmem:[%s6 + $0x60] sm:$0xff]
    %v396 = vld [vmem:[%s6 + $0x68] sm:$0xf]
    %v397 = vld [vmem:[%s6 + $0x6c] sm:$0xff]
    %v398 = vld [vmem:[%s6 + $0x74] sm:$0xf]
    %v399 = vld [vmem:[%s6 + $0x78] sm:$0xff]
    %v400 = vld [vmem:[%s6 + $0x80] sm:$0xf]
    %v401 = vld [vmem:[%s6 + $0x84] sm:$0xff]
    %v402 = vld [vmem:[%s6 + $0x8c] sm:$0xf]
    %v403 = vld [vmem:[%s6 + $0x90] sm:$0xff]
    %v404 = vld [vmem:[%s6 + $0x98] sm:$0xf]
    %v405 = vld [vmem:[%s6 + $0x9c] sm:$0xff]
    %v406 = vld [vmem:[%s6 + $0xa4] sm:$0xf]
    %v407 = vld [vmem:[%s6 + $0xa8] sm:$0xff]
    %v408 = vld [vmem:[%s6 + $0xb0] sm:$0xf]
    %v409 = vld [vmem:[%s6 + $0xb4] sm:$0xff]
    %v410 = vld [vmem:[%s6 + $0xbc] sm:$0xf]
    %v411 = vld [vmem:[#allocation6] sm:$0x7]
    %v412 = vld [vmem:[#allocation7] sm:$0xf]
    %v413 = vld [vmem:[#allocation7 + $0x4] sm:$0xf]
    %v414 = vld [vmem:[#allocation7 + $0x8] sm:$0xf]
    %v415 = vld [vmem:[#allocation7 + $0xc] sm:$0xf]
    %v416 = vld [vmem:[#allocation7 + $0x10] sm:$0xf]
    %v417 = vld [vmem:[#allocation7 + $0x14] sm:$0xf]
    %v418 = vld [vmem:[#allocation7 + $0x18] sm:$0xf]
    %v419 = vld [vmem:[#allocation7 + $0x1c] sm:$0xf]
    %v420 = vld [vmem:[#allocation7 + $0x20] sm:$0xf]
    %v421 = vld [vmem:[#allocation7 + $0x24] sm:$0xf]
    %v422 = vld [vmem:[#allocation7 + $0x28] sm:$0xf]
    %v423 = vld [vmem:[#allocation7 + $0x2c] sm:$0xf]
    %v424 = vld [vmem:[#allocation7 + $0x30] sm:$0xf]
    %v425 = vld [vmem:[#allocation7 + $0x34] sm:$0xf]
    %v426 = vld [vmem:[#allocation7 + $0x38] sm:$0xf]
    %v427 = vld [vmem:[#allocation7 + $0x3c] sm:$0xf]
    %v428 = vld [vmem:[#allocation9] sm:$0x1]
    %v429 = vld [vmem:[#allocation10] sm:$0x1]
    %v430 = vld [vmem:[#allocation12] sm:$0x1]
    %v431 = vld [vmem:[%s12] sm:$0xff]
    %v432 = vld [vmem:[%s12 + $0x8] sm:$0xff]
    %v433 = vld [vmem:[%s12 + $0x10] sm:$0xff]
    %v434 = vld [vmem:[%s12 + $0x18] sm:$0xff]
    %v435 = vld [vmem:[%s12 + $0x20] sm:$0xff]
    %v436 = vld [vmem:[%s12 + $0x28] sm:$0xff]
    %v437 = vld [vmem:[%s12 + $0x30] sm:$0xff]
    %v438 = vld [vmem:[%s12 + $0x38] sm:$0xff]
    %v439 = vld [vmem:[%s12 + $0x40] sm:$0xff]
    %v440 = vld [vmem:[%s12 + $0x48] sm:$0xff]
    %v441 = vld [vmem:[%s12 + $0x50] sm:$0xff]
    %v442 = vld [vmem:[%s12 + $0x58] sm:$0xff]
    %v443 = vld [vmem:[%s12 + $0x60] sm:$0xff]
    %v444 = vld [vmem:[%s12 + $0x68] sm:$0xff]
    %v445 = vld [vmem:[%s12 + $0x70] sm:$0xff]
    %v446 = vld [vmem:[%s12 + $0x78] sm:$0xff]
    %v447 = vld [vmem:[%s12 + $0x80] sm:$0xff]
    %v448 = vld [vmem:[%s12 + $0x88] sm:$0xff]
    %v449 = vld [vmem:[%s12 + $0x90] sm:$0xff]
    %v450 = vld [vmem:[%s12 + $0x98] sm:$0xff]
    %v451 = vld [vmem:[%s12 + $0xa0] sm:$0xff]
    %v452 = vld [vmem:[%s12 + $0xa8] sm:$0xff]
    %v453 = vld [vmem:[%s12 + $0xb0] sm:$0xff]
    %v454 = vld [vmem:[%s12 + $0xb8] sm:$0xff]
    %v455 = vld [vmem:[%s12 + $0xc0] sm:$0xff]
    %v456 = vld [vmem:[%s12 + $0xc8] sm:$0xff]
    %v457 = vld [vmem:[%s12 + $0xd0] sm:$0xff]
    %v458 = vld [vmem:[%s12 + $0xd8] sm:$0xff]
    %v459 = vld [vmem:[%s12 + $0xe0] sm:$0xff]
    %v460 = vld [vmem:[%s12 + $0xe8] sm:$0xff]
    %v461 = vld [vmem:[%s12 + $0xf0] sm:$0xff]
    %v462 = vld [vmem:[%s12 + $0xf8] sm:$0xff]
    %v463 = vld [vmem:[#allocation13] sm:$0xf]
    %v464 = vld [vmem:[%s14] sm:$0xf]
    %v465 = vld [vmem:[%s14 + $0x4] sm:$0xf]
    %v466 = vld [vmem:[%s14 + $0x8] sm:$0xf]
    %v467 = vld [vmem:[%s14 + $0xc] sm:$0xf]
    %v468 = vld [vmem:[%s14 + $0x10] sm:$0xf]
    %v469 = vld [vmem:[%s14 + $0x14] sm:$0xf]
    %v470 = vld [vmem:[%s14 + $0x18] sm:$0xf]
    %v471 = vld [vmem:[%s14 + $0x1c] sm:$0xf]
    %v472 = vld [vmem:[%s14 + $0x20] sm:$0xf]
    %v473 = vld [vmem:[%s14 + $0x24] sm:$0xf]
    %v474 = vld [vmem:[%s14 + $0x28] sm:$0xf]
    %v475 = vld [vmem:[%s14 + $0x2c] sm:$0xf]
    %v476 = vld [vmem:[%s14 + $0x30] sm:$0xf]
    %v477 = vld [vmem:[%s14 + $0x34] sm:$0xf]
    %v478 = vld [vmem:[%s14 + $0x38] sm:$0xf]
    %v479 = vld [vmem:[%s14 + $0x3c] sm:$0xf]
    %v480 = vld [vmem:[%s14 + $0x40] sm:$0xf]
    %v481 = vld [vmem:[%s14 + $0x44] sm:$0xf]
    %v482 = vld [vmem:[%s14 + $0x48] sm:$0xf]
    %v483 = vld [vmem:[%s14 + $0x4c] sm:$0xf]
    %v484 = vld [vmem:[%s14 + $0x50] sm:$0xf]
    %v485 = vld [vmem:[%s14 + $0x54] sm:$0xf]
    %v486 = vld [vmem:[%s14 + $0x58] sm:$0xf]
    %v487 = vld [vmem:[%s14 + $0x5c] sm:$0xf]
    %v488 = vld [vmem:[%s14 + $0x60] sm:$0xf]
    %v489 = vld [vmem:[%s14 + $0x64] sm:$0xf]
    %v490 = vld [vmem:[%s14 + $0x68] sm:$0xf]
    %v491 = vld [vmem:[%s14 + $0x6c] sm:$0xf]
    %v492 = vld [vmem:[%s14 + $0x70] sm:$0xf]
    %v493 = vld [vmem:[%s14 + $0x74] sm:$0xf]
    %v494 = vld [vmem:[%s14 + $0x78] sm:$0xf]
    %v495 = vld [vmem:[%s14 + $0x7c] sm:$0xf]
    %v496 = vld [vmem:[%s14 + $0x80] sm:$0xf]
    %v497 = vld [vmem:[%s14 + $0x84] sm:$0xf]
    %v498 = vld [vmem:[%s14 + $0x88] sm:$0xf]
    %v499 = vld [vmem:[%s14 + $0x8c] sm:$0xf]
    %v500 = vld [vmem:[%s14 + $0x90] sm:$0xf]
    %v501 = vld [vmem:[%s14 + $0x94] sm:$0xf]
    %v502 = vld [vmem:[%s14 + $0x98] sm:$0xf]
    %v503 = vld [vmem:[%s14 + $0x9c] sm:$0xf]
    %v504 = vld [vmem:[%s14 + $0xa0] sm:$0xf]
    %v505 = vld [vmem:[%s14 + $0xa4] sm:$0xf]
    %v506 = vld [vmem:[%s14 + $0xa8] sm:$0xf]
    %v507 = vld [vmem:[%s14 + $0xac] sm:$0xf]
    %v508 = vld [vmem:[%s14 + $0xb0] sm:$0xf]
    %v509 = vld [vmem:[%s14 + $0xb4] sm:$0xf]
    %v510 = vld [vmem:[%s14 + $0xb8] sm:$0xf]
    %v511 = vld [vmem:[%s14 + $0xbc] sm:$0xf]
    %v512 = vld [vmem:[%s14 + $0xc0] sm:$0xf]
    %v513 = vld [vmem:[%s14 + $0xc4] sm:$0xf]
    %v514 = vld [vmem:[%s14 + $0xc8] sm:$0xf]
    %v515 = vld [vmem:[%s14 + $0xcc] sm:$0xf]
    %v516 = vld [vmem:[%s14 + $0xd0] sm:$0xf]
    %v517 = vld [vmem:[%s14 + $0xd4] sm:$0xf]
    %v518 = vld [vmem:[%s14 + $0xd8] sm:$0xf]
    %v519 = vld [vmem:[%s14 + $0xdc] sm:$0xf]
    %v520 = vld [vmem:[%s14 + $0xe0] sm:$0xf]
    %v521 = vld [vmem:[%s14 + $0xe4] sm:$0xf]
    %v522 = vld [vmem:[%s14 + $0xe8] sm:$0xf]
    %v523 = vld [vmem:[%s14 + $0xec] sm:$0xf]
    %v524 = vld [vmem:[%s14 + $0xf0] sm:$0xf]
    %v525 = vld [vmem:[%s14 + $0xf4] sm:$0xf]
    %v526 = vld [vmem:[%s14 + $0xf8] sm:$0xf]
    %v527 = vld [vmem:[%s14 + $0xfc] sm:$0xf]
    %v528 = vld [vmem:[#allocation15] sm:$0x1]
    %v531 = vcombine.low %v375, %v376
    %533 = vadd.xlane.f32.xlu0 %v531
    %v534 = vpop.xlane.xlu0 %533
    %v535 = vrcp.pop 128.0
    %v536 = vmul.f32 %v534, %v535
    %v539 = vunpack.c.l.s4 839922192
    %v540 = vunpack.c.0.s8 %v539
    %v541 = vlaneseq
    %v542 = vshrl.u32 %v541, 7
    %v543 = vsub.s32 %v540, %v542
    %v544 = vrot.slane %v536, %v543
    %v546 = vunpack.c.l.s4 1985246804
    %v547 = vunpack.c.0.s8 %v546
    %v548 = vlaneseq
    %v549 = vshrl.u32 %v548, 7
    %v550 = vsub.s32 %v547, %v549
    %v551 = vrot.slane %v536, %v550
    %v554 = vsub.f32 %v375, %v544
    %v555 = vsub.f32 %v376, %v551
    %v556 = vmul.f32 %v554, %v554
    %v557 = vmul.f32 %v555, %v555
    %v560 = vcombine.low %v556, %v557
    %562 = vadd.xlane.f32.xlu0 %v560
    %v563 = vpop.xlane.xlu0 %562
    %v564 = vmul.f32 %v563, %v535
    %v565 = vadd.f32 %v564, 1e-05
    %v566 = vrsqrt.pop %v565
    %v569 = vunpack.c.l.s4 839922192
    %v570 = vunpack.c.0.s8 %v569
    %v571 = vlaneseq
    %v572 = vshrl.u32 %v571, 7
    %v573 = vsub.s32 %v570, %v572
    %v574 = vrot.slane %v566, %v573
    %v576 = vunpack.c.l.s4 1985246804
    %v577 = vunpack.c.0.s8 %v576
    %v578 = vlaneseq
    %v579 = vshrl.u32 %v578, 7
    %v580 = vsub.s32 %v577, %v579
    %v581 = vrot.slane %v566, %v580
    %v584 = vmul.f32 %v554, %v574
    %v585 = vmul.f32 %v555, %v581
    %v587 = vlaneseq
    %v588 = vshrl.u32 %v587, 7
    %v589 = vsub.s32 0, %v588
    %v590 = vrot.slane %v377, %v589
    %v592 = vcombine.high %v590, %v590
    %v594 = vmul.f32 %v584, %v590
    %v595 = vmul.f32 %v585, %v592
    %v597 = vlaneseq
    %v598 = vshrl.u32 %v597, 7
    %v599 = vsub.s32 0, %v598
    %v600 = vrot.slane %v378, %v599
    %v602 = vcombine.high %v600, %v600
    %v604 = vadd.f32 %v594, %v600
    %v605 = vadd.f32 %v595, %v602
    %v608 = vcombine.low %v604, %v605
    %v610 = vpack.c.bf16 %v608, %v608
    %v612 = vlaneseq
    %v613 = vshrl.u32 %v612, 7
    %v614 = vsub.s32 0, %v613
    %v615 = vrot.slane %v411, %v614
    %v616 = vlaneseq
    %v617 = vshrl.u32 %v616, 7
    %v618 = vsub.s32 1, %v617
    %v619 = vrot.slane %v411, %v618
    %v620 = vlaneseq
    %v621 = vshrl.u32 %v620, 7
    %v622 = vsub.s32 2, %v621
    %v623 = vrot.slane %v411, %v622
    %v659 = vunpack.c.l.b16 %v379
    %v660 = vunpack.c.h.b16 %v379
    %v661 = vunpack.c.l.b16 %v380
    %v662 = vunpack.c.l.b16 %v381
    %v663 = vunpack.c.h.b16 %v381
    %v664 = vunpack.c.l.b16 %v382
    %v665 = vunpack.c.l.b16 %v383
    %v666 = vunpack.c.h.b16 %v383
    %v667 = vunpack.c.l.b16 %v384
    %v668 = vunpack.c.l.b16 %v385
    %v669 = vunpack.c.h.b16 %v385
    %v670 = vunpack.c.l.b16 %v386
    %v671 = vunpack.c.l.b16 %v387
    %v672 = vunpack.c.h.b16 %v387
    %v673 = vunpack.c.l.b16 %v388
    %v674 = vunpack.c.l.b16 %v389
    %v675 = vunpack.c.h.b16 %v389
    %v676 = vunpack.c.l.b16 %v390
    %v677 = vunpack.c.l.b16 %v391
    %v678 = vunpack.c.h.b16 %v391
    %v679 = vunpack.c.l.b16 %v392
    %v680 = vunpack.c.l.b16 %v393
    %v681 = vunpack.c.h.b16 %v393
    %v682 = vunpack.c.l.b16 %v394
    %v683 = vunpack.c.l.b16 %v395
    %v684 = vunpack.c.h.b16 %v395
    %v685 = vunpack.c.l.b16 %v396
    %v686 = vunpack.c.l.b16 %v397
    %v687 = vunpack.c.h.b16 %v397
    %v688 = vunpack.c.l.b16 %v398
    %v689 = vunpack.c.l.b16 %v399
    %v690 = vunpack.c.h.b16 %v399
    %v691 = vunpack.c.l.b16 %v400
    %v692 = vunpack.c.l.b16 %v401
    %v693 = vunpack.c.h.b16 %v401
    %v694 = vunpack.c.l.b16 %v402
    %v695 = vunpack.c.l.b16 %v403
    %v696 = vunpack.c.h.b16 %v403
    %v697 = vunpack.c.l.b16 %v404
    %v698 = vunpack.c.l.b16 %v405
    %v699 = vunpack.c.h.b16 %v405
    %v700 = vunpack.c.l.b16 %v406
    %v701 = vunpack.c.l.b16 %v407
    %v702 = vunpack.c.h.b16 %v407
    %v703 = vunpack.c.l.b16 %v408
    %v704 = vunpack.c.l.b16 %v409
    %v705 = vunpack.c.h.b16 %v409
    %v706 = vunpack.c.l.b16 %v410
    %v707 = vpack.c.b16 %v662, %v659
    %v708 = vpack.c.b16 %v663, %v660
    %v709 = vpack.c.b16 %v664, %v661
    %v710 = vpack.c.b16 %v668, %v665
    %v711 = vpack.c.b16 %v669, %v666
    %v712 = vpack.c.b16 %v670, %v667
    %v713 = vpack.c.b16 %v674, %v671
    %v714 = vpack.c.b16 %v675, %v672
    %v715 = vpack.c.b16 %v676, %v673
    %v716 = vpack.c.b16 %v680, %v677
    %v717 = vpack.c.b16 %v681, %v678
    %v718 = vpack.c.b16 %v682, %v679
    %v719 = vpack.c.b16 %v686, %v683
    %v720 = vpack.c.b16 %v687, %v684
    %v721 = vpack.c.b16 %v688, %v685
    %v722 = vpack.c.b16 %v692, %v689
    %v723 = vpack.c.b16 %v693, %v690
    %v724 = vpack.c.b16 %v694, %v691
    %v725 = vpack.c.b16 %v698, %v695
    %v726 = vpack.c.b16 %v699, %v696
    %v727 = vpack.c.b16 %v700, %v697
    %v728 = vpack.c.b16 %v704, %v701
    %v729 = vpack.c.b16 %v705, %v702
    %v730 = vpack.c.b16 %v706, %v703
    %755 = vmatprep.subr.bf16.mxu0 %v708
    %756 = vmatpush1.bf16.msra.mxu0 %v707
    %757 = vmatprep.subr.bf16.mxu0 %v711
    %758 = vmatpush1.bf16.msra.mxu0 %v710
    %759 = vmatprep.subr.bf16.mxu0 %v714
    %760 = vmatpush1.bf16.msra.mxu0 %v713
    %761 = vmatprep.subr.bf16.mxu0 %v717
    %762 = vmatpush1.bf16.msra.mxu0 %v716
    %763 = vmatprep.subr.bf16.mxu0 %v720
    %764 = vmatpush1.bf16.msra.mxu0 %v719
    %765 = vmatprep.subr.bf16.mxu0 %v723
    %766 = vmatpush1.bf16.msra.mxu0 %v722
    %767 = vmatprep.subr.bf16.mxu0 %v726
    %768 = vmatpush1.bf16.msra.mxu0 %v725
    %769 = vmatprep.subr.bf16.mxu0 %v729
    %770 = vmatpush1.bf16.msra.mxu0 %v728
    %771 = vmatprep.subr.bf16.mxu0 0
    %772 = vmatpush1.bf16.msra.mxu0 0
    %773 = vmatprep.subr.bf16.mxu0 0
    %774 = vmatpush1.bf16.msra.mxu0 0
    %775 = vmatprep.subr.bf16.mxu0 0
    %776 = vmatpush1.bf16.msra.mxu0 0
    %777 = vmatprep.subr.bf16.mxu0 0
    %778 = vmatpush1.bf16.msra.mxu0 0
    %779 = vmatprep.subr.bf16.mxu0 0
    %780 = vmatpush1.bf16.msra.mxu0 0
    %781 = vmatprep.subr.bf16.mxu0 0
    %782 = vmatpush1.bf16.msra.mxu0 0
    %783 = vmatprep.subr.bf16.mxu0 0
    %784 = vmatpush1.bf16.msra.mxu0 0
    %785 = vmatprep.subr.bf16.mxu0 0
    %786 = vmatpush1.bf16.msra.mxu0 0
    %787 = vmatprep.mubr.bf16.mxu0 0
    %788 = vmatmul.mubr.bf16.gmra.mrb[0].mxu0 %v610
    %v789 = vpop.f32.mrb[0].mxu0
    %v790 = vadd.f32 %v615, %v789
    %v791 = vpop.f32.mrb[0].mxu0
    %v792 = vadd.f32 %v619, %v791
    %v793 = vpop.f32.mrb[0].mxu0
    %v794 = vpop.f32.mrb[0].mxu0
    %795 = vdwg.mxu0
    %796 = vmatprep.subr.bf16.mxu0 0
    %797 = vmatpush1.bf16.msra.mxu0 %v709
    %798 = vmatprep.subr.bf16.mxu0 0
    %799 = vmatpush1.bf16.msra.mxu0 %v712
    %800 = vmatprep.subr.bf16.mxu0 0
    %801 = vmatpush1.bf16.msra.mxu0 %v715
    %802 = vmatprep.subr.bf16.mxu0 0
    %803 = vmatpush1.bf16.msra.mxu0 %v718
    %804 = vmatprep.subr.bf16.mxu0 0
    %805 = vmatpush1.bf16.msra.mxu0 %v721
    %806 = vmatprep.subr.bf16.mxu0 0
    %807 = vmatpush1.bf16.msra.mxu0 %v724
    %808 = vmatprep.subr.bf16.mxu0 0
    %809 = vmatpush1.bf16.msra.mxu0 %v727
    %810 = vmatprep.subr.bf16.mxu0 0
    %811 = vmatpush1.bf16.msra.mxu0 %v730
    %812 = vmatprep.subr.bf16.mxu0 0
    %813 = vmatpush1.bf16.msra.mxu0 0
    %814 = vmatprep.subr.bf16.mxu0 0
    %815 = vmatpush1.bf16.msra.mxu0 0
    %816 = vmatprep.subr.bf16.mxu0 0
    %817 = vmatpush1.bf16.msra.mxu0 0
    %818 = vmatprep.subr.bf16.mxu0 0
    %819 = vmatpush1.bf16.msra.mxu0 0
    %820 = vmatprep.subr.bf16.mxu0 0
    %821 = vmatpush1.bf16.msra.mxu0 0
    %822 = vmatprep.subr.bf16.mxu0 0
    %823 = vmatpush1.bf16.msra.mxu0 0
    %824 = vmatprep.subr.bf16.mxu0 0
    %825 = vmatpush1.bf16.msra.mxu0 0
    %826 = vmatprep.subr.bf16.mxu0 0
    %827 = vmatpush1.bf16.msra.mxu0 0
    %828 = vmatprep.mubr.bf16.mxu0 0
    %829 = vmatmul.mubr.bf16.gmra.mrb[0].mxu0 %v610
    %v830 = vpop.f32.mrb[0].mxu0
    %v831 = vadd.f32 %v623, %v830
    %v832 = vpop.f32.mrb[0].mxu0
    %v833 = vpop.f32.mrb[0].mxu0
    %v834 = vpop.f32.mrb[0].mxu0
    %835 = vdwg.mxu0
    %v839 = vcombine.low %v790, %v792
    %v840 = vcombine.high %v790, %v792
    %v841 = vcombine.high %v831, %v831
    %v845 = vpack.c.bf16 %v839, %v839
    %v846 = vpack.c.bf16 %v840, %v840
    %v847 = vcombine.high %v839, %v839
    %v848 = vcombine.high %v840, %v840
    %v851 = vpack.c.bf16 %v847, %v847
    %v852 = vpack.c.bf16 %v848, %v848
    %vm853 = vcmask 261120
    %v855 = vsel %vm853, %v845, 0
    %v858 = vsel %vm853, %v851, 0
    %860 = vmatprep.subr.bf16.mxu0 0
    %861 = vmatpush1.bf16.xpose.msra.mxu0 %v858
    %862 = vmatprep.subr.bf16.mxu0 0
    %863 = vmatpush1.bf16.xpose.msra.mxu0 0
    %864 = vmatprep.subr.bf16.mxu0 0
    %865 = vmatpush1.bf16.xpose.msra.mxu0 0
    %866 = vmatprep.subr.bf16.mxu0 0
    %867 = vmatpush1.bf16.xpose.msra.mxu0 0
    %868 = vmatprep.subr.bf16.mxu0 0
    %869 = vmatpush1.bf16.xpose.msra.mxu0 0
    %870 = vmatprep.subr.bf16.mxu0 0
    %871 = vmatpush1.bf16.xpose.msra.mxu0 0
    %872 = vmatprep.subr.bf16.mxu0 0
    %873 = vmatpush1.bf16.xpose.msra.mxu0 0
    %874 = vmatprep.subr.bf16.mxu0 0
    %875 = vmatpush1.bf16.xpose.msra.mxu0 0
    %876 = vmatprep.subr.bf16.mxu0 0
    %877 = vmatpush1.bf16.xpose.msra.mxu0 0
    %878 = vmatprep.subr.bf16.mxu0 0
    %879 = vmatpush1.bf16.xpose.msra.mxu0 0
    %880 = vmatprep.subr.bf16.mxu0 0
    %881 = vmatpush1.bf16.xpose.msra.mxu0 0
    %882 = vmatprep.subr.bf16.mxu0 0
    %883 = vmatpush1.bf16.xpose.msra.mxu0 0
    %884 = vmatprep.subr.bf16.mxu0 0
    %885 = vmatpush1.bf16.xpose.msra.mxu0 0
    %886 = vmatprep.subr.bf16.mxu0 0
    %887 = vmatpush1.bf16.xpose.msra.mxu0 0
    %888 = vmatprep.subr.bf16.mxu0 0
    %889 = vmatpush1.bf16.xpose.msra.mxu0 0
    %890 = vmatprep.subr.bf16.mxu0 0
    %891 = vmatpush1.bf16.xpose.msra.mxu0 0
    %892 = vmatprep.mubr.bf16.mxu0 0
    %893 = vmatmul.mubr.bf16.gmra.mrb[0].mxu0 %v855
    %v894 = vpop.f32.mrb[0].mxu0
    %v895 = vadd.f32 0.0, %v894
    %v896 = vpop.f32.mrb[0].mxu0
    %v897 = vpop.f32.mrb[0].mxu0
    %v898 = vpop.f32.mrb[0].mxu0
    %899 = vdwg.mxu0
    %v901 = vsel %vm853, %v846, 0
    %v904 = vsel %vm853, %v852, 0
    %906 = vmatprep.subr.bf16.mxu0 0
    %907 = vmatpush1.bf16.xpose.msra.mxu0 %v904
    %908 = vmatprep.subr.bf16.mxu0 0
    %909 = vmatpush1.bf16.xpose.msra.mxu0 0
    %910 = vmatprep.subr.bf16.mxu0 0
    %911 = vmatpush1.bf16.xpose.msra.mxu0 0
    %912 = vmatprep.subr.bf16.mxu0 0
    %913 = vmatpush1.bf16.xpose.msra.mxu0 0
    %914 = vmatprep.subr.bf16.mxu0 0
    %915 = vmatpush1.bf16.xpose.msra.mxu0 0
    %916 = vmatprep.subr.bf16.mxu0 0
    %917 = vmatpush1.bf16.xpose.msra.mxu0 0
    %918 = vmatprep.subr.bf16.mxu0 0
    %919 = vmatpush1.bf16.xpose.msra.mxu0 0
    %920 = vmatprep.subr.bf16.mxu0 0
    %921 = vmatpush1.bf16.xpose.msra.mxu0 0
    %922 = vmatprep.subr.bf16.mxu0 0
    %923 = vmatpush1.bf16.xpose.msra.mxu0 0
    %924 = vmatprep.subr.bf16.mxu0 0
    %925 = vmatpush1.bf16.xpose.msra.mxu0 0
    %926 = vmatprep.subr.bf16.mxu0 0
    %927 = vmatpush1.bf16.xpose.msra.mxu0 0
    %928 = vmatprep.subr.bf16.mxu0 0
    %929 = vmatpush1.bf16.xpose.msra.mxu0 0
    %930 = vmatprep.subr.bf16.mxu0 0
    %931 = vmatpush1.bf16.xpose.msra.mxu0 0
    %932 = vmatprep.subr.bf16.mxu0 0
    %933 = vmatpush1.bf16.xpose.msra.mxu0 0
    %934 = vmatprep.subr.bf16.mxu0 0
    %935 = vmatpush1.bf16.xpose.msra.mxu0 0
    %936 = vmatprep.subr.bf16.mxu0 0
    %937 = vmatpush1.bf16.xpose.msra.mxu0 0
    %938 = vmatprep.mubr.bf16.mxu0 0
    %939 = vmatmul.mubr.bf16.gmra.mrb[0].mxu0 %v901
    %v940 = vpop.f32.mrb[0].mxu0
    %v941 = vadd.f32 0.0, %v940
    %v942 = vpop.f32.mrb[0].mxu0
    %v943 = vpop.f32.mrb[0].mxu0
    %v944 = vpop.f32.mrb[0].mxu0
    %945 = vdwg.mxu0
    %v946 = vmul.f32 %v895, 0.17677669
    %v947 = vmul.f32 %v941, 0.17677669
    %vm948 = vcmask 27648
    %v949 = vsel %vm948, %v946, -inf
    %950 = vmax.xlane.f32.xlu0 %v949
    %v951 = vpop.xlane.xlu0 %950
    %v952 = vsel %vm948, %v947, -inf
    %953 = vmax.xlane.f32.xlu0 %v952
    %v954 = vpop.xlane.xlu0 %953
    %v955 = vsub.f32 %v946, %v951
    %v956 = vsub.f32 %v947, %v954
    %v957 = vmul.f32 %v955, 1.442695
    %v958 = vpow.pop %v957
    %v959 = vmul.f32 %v956, 1.442695
    %v960 = vpow.pop %v959
    %v961 = vsel %vm948, %v958, 0.0
    %962 = vadd.xlane.f32.xlu0 %v961
    %v963 = vpop.xlane.xlu0 %962
    %v964 = vsel %vm948, %v960, 0.0
    %965 = vadd.xlane.f32.xlu0 %v964
    %v966 = vpop.xlane.xlu0 %965
    %v967 = vrcp.pop %v963
    %v968 = vrcp.pop %v966
    %v969 = vmul.f32 %v958, %v967
    %v970 = vmul.f32 %v960, %v968
    %v971 = vpack.c.bf16 %v969, %v969
    %v972 = vpack.c.bf16 %v970, %v970
    %v973 = vpack.c.bf16 %v831, %v831
    %v974 = vpack.c.bf16 %v841, %v841
    %vm975 = vcmask 31744
    %v977 = vsel %vm975, %v971, 0
    %vm979 = vcmask 1041408
    %v981 = vsel %vm979, %v973, 0
    %983 = vmatprep.subr.bf16.mxu0 0
    %984 = vmatpush1.bf16.msra.mxu0 %v981
    %985 = vmatprep.subr.bf16.mxu0 0
    %986 = vmatpush1.bf16.msra.mxu0 0
    %987 = vmatprep.subr.bf16.mxu0 0
    %988 = vmatpush1.bf16.msra.mxu0 0
    %989 = vmatprep.subr.bf16.mxu0 0
    %990 = vmatpush1.bf16.msra.mxu0 0
    %991 = vmatprep.subr.bf16.mxu0 0
    %992 = vmatpush1.bf16.msra.mxu0 0
    %993 = vmatprep.subr.bf16.mxu0 0
    %994 = vmatpush1.bf16.msra.mxu0 0
    %995 = vmatprep.subr.bf16.mxu0 0
    %996 = vmatpush1.bf16.msra.mxu0 0
    %997 = vmatprep.subr.bf16.mxu0 0
    %998 = vmatpush1.bf16.msra.mxu0 0
    %999 = vmatprep.subr.bf16.mxu0 0
    %1000 = vmatpush1.bf16.msra.mxu0 0
    %1001 = vmatprep.subr.bf16.mxu0 0
    %1002 = vmatpush1.bf16.msra.mxu0 0
    %1003 = vmatprep.subr.bf16.mxu0 0
    %1004 = vmatpush1.bf16.msra.mxu0 0
    %1005 = vmatprep.subr.bf16.mxu0 0
    %1006 = vmatpush1.bf16.msra.mxu0 0
    %1007 = vmatprep.subr.bf16.mxu0 0
    %1008 = vmatpush1.bf16.msra.mxu0 0
    %1009 = vmatprep.subr.bf16.mxu0 0
    %1010 = vmatpush1.bf16.msra.mxu0 0
    %1011 = vmatprep.subr.bf16.mxu0 0
    %1012 = vmatpush1.bf16.msra.mxu0 0
    %1013 = vmatprep.subr.bf16.mxu0 0
    %1014 = vmatpush1.bf16.msra.mxu0 0
    %1015 = vmatprep.mubr.bf16.mxu0 0
    %1016 = vmatmul.mubr.bf16.gmra.mrb[0].mxu0 %v977
    %v1017 = vpop.f32.mrb[0].mxu0
    %v1018 = vadd.f32 0.0, %v1017
    %v1019 = vpop.f32.mrb[0].mxu0
    %v1020 = vpop.f32.mrb[0].mxu0
    %v1021 = vpop.f32.mrb[0].mxu0
    %1022 = vdwg.mxu0
    %v1024 = vsel %vm975, %v972, 0
    %v1027 = vsel %vm979, %v974, 0
    %1029 = vmatprep.subr.bf16.mxu0 0
    %1030 = vmatpush1.bf16.msra.mxu0 %v1027
    %1031 = vmatprep.subr.bf16.mxu0 0
    %1032 = vmatpush1.bf16.msra.mxu0 0
    %1033 = vmatprep.subr.bf16.mxu0 0
    %1034 = vmatpush1.bf16.msra.mxu0 0
    %1035 = vmatprep.subr.bf16.mxu0 0
    %1036 = vmatpush1.bf16.msra.mxu0 0
    %1037 = vmatprep.subr.bf16.mxu0 0
    %1038 = vmatpush1.bf16.msra.mxu0 0
    %1039 = vmatprep.subr.bf16.mxu0 0
    %1040 = vmatpush1.bf16.msra.mxu0 0
    %1041 = vmatprep.subr.bf16.mxu0 0
    %1042 = vmatpush1.bf16.msra.mxu0 0
    %1043 = vmatprep.subr.bf16.mxu0 0
    %1044 = vmatpush1.bf16.msra.mxu0 0
    %1045 = vmatprep.subr.bf16.mxu0 0
    %1046 = vmatpush1.bf16.msra.mxu0 0
    %1047 = vmatprep.subr.bf16.mxu0 0
    %1048 = vmatpush1.bf16.msra.mxu0 0
    %1049 = vmatprep.subr.bf16.mxu0 0
    %1050 = vmatpush1.bf16.msra.mxu0 0
    %1051 = vmatprep.subr.bf16.mxu0 0
    %1052 = vmatpush1.bf16.msra.mxu0 0
    %1053 = vmatprep.subr.bf16.mxu0 0
    %1054 = vmatpush1.bf16.msra.mxu0 0
    %1055 = vmatprep.subr.bf16.mxu0 0
    %1056 = vmatpush1.bf16.msra.mxu0 0
    %1057 = vmatprep.subr.bf16.mxu0 0
    %1058 = vmatpush1.bf16.msra.mxu0 0
    %1059 = vmatprep.subr.bf16.mxu0 0
    %1060 = vmatpush1.bf16.msra.mxu0 0
    %1061 = vmatprep.mubr.bf16.mxu0 0
    %1062 = vmatmul.mubr.bf16.gmra.mrb[0].mxu0 %v1024
    %v1063 = vpop.f32.mrb[0].mxu0
    %v1064 = vadd.f32 0.0, %v1063
    %v1065 = vpop.f32.mrb[0].mxu0
    %v1066 = vpop.f32.mrb[0].mxu0
    %v1067 = vpop.f32.mrb[0].mxu0
    %1068 = vdwg.mxu0
    %1069 = vrot.lane.b32.xlu0 %v847, 96
    %v1070 = vpop.permute.xlu0 %1069
    %1071 = vrot.lane.b32.xlu0 %v848, 96
    %v1072 = vpop.permute.xlu0 %1071
    %v1075 = vpack.c.bf16 %v1070, %v1070
    %v1076 = vpack.c.bf16 %v1072, %v1072
    %1078 = vrot.lane.b32.xlu0 %v845, 96
    %v1079 = vpop.permute.xlu0 %1078
    %v1081 = vsel %vm853, %v1079, 0
    %v1084 = vsel %vm853, %v1075, 0
    %1086 = vmatprep.subr.bf16.mxu0 0
    %1087 = vmatpush1.bf16.xpose.msra.mxu0 %v1084
    %1088 = vmatprep.subr.bf16.mxu0 0
    %1089 = vmatpush1.bf16.xpose.msra.mxu0 0
    %1090 = vmatprep.subr.bf16.mxu0 0
    %1091 = vmatpush1.bf16.xpose.msra.mxu0 0
    %1092 = vmatprep.subr.bf16.mxu0 0
    %1093 = vmatpush1.bf16.xpose.msra.mxu0 0
    %1094 = vmatprep.subr.bf16.mxu0 0
    %1095 = vmatpush1.bf16.xpose.msra.mxu0 0
    %1096 = vmatprep.subr.bf16.mxu0 0
    %1097 = vmatpush1.bf16.xpose.msra.mxu0 0
    %1098 = vmatprep.subr.bf16.mxu0 0
    %1099 = vmatpush1.bf16.xpose.msra.mxu0 0
    %1100 = vmatprep.subr.bf16.mxu0 0
    %1101 = vmatpush1.bf16.xpose.msra.mxu0 0
    %1102 = vmatprep.subr.bf16.mxu0 0
    %1103 = vmatpush1.bf16.xpose.msra.mxu0 0
    %1104 = vmatprep.subr.bf16.mxu0 0
    %1105 = vmatpush1.bf16.xpose.msra.mxu0 0
    %1106 = vmatprep.subr.bf16.mxu0 0
    %1107 = vmatpush1.bf16.xpose.msra.mxu0 0
    %1108 = vmatprep.subr.bf16.mxu0 0
    %1109 = vmatpush1.bf16.xpose.msra.mxu0 0
    %1110 = vmatprep.subr.bf16.mxu0 0
    %1111 = vmatpush1.bf16.xpose.msra.mxu0 0
    %1112 = vmatprep.subr.bf16.mxu0 0
    %1113 = vmatpush1.bf16.xpose.msra.mxu0 0
    %1114 = vmatprep.subr.bf16.mxu0 0
    %1115 = vmatpush1.bf16.xpose.msra.mxu0 0
    %1116 = vmatprep.subr.bf16.mxu0 0
    %1117 = vmatpush1.bf16.xpose.msra.mxu0 0
    %1118 = vmatprep.mubr.bf16.mxu0 0
    %1119 = vmatmul.mubr.bf16.gmra.mrb[0].mxu0 %v1081
    %v1120 = vpop.f32.mrb[0].mxu0
    %v1121 = vadd.f32 0.0, %v1120
    %v1122 = vpop.f32.mrb[0].mxu0
    %v1123 = vpop.f32.mrb[0].mxu0
    %v1124 = vpop.f32.mrb[0].mxu0
    %1125 = vdwg.mxu0
    %1127 = vrot.lane.b32.xlu0 %v846, 96
    %v1128 = vpop.permute.xlu0 %1127
    %v1130 = vsel %vm853, %v1128, 0
    %v1133 = vsel %vm853, %v1076, 0
    %1135 = vmatprep.subr.bf16.mxu0 0
    %1136 = vmatpush1.bf16.xpose.msra.mxu0 %v1133
    %1137 = vmatprep.subr.bf16.mxu0 0
    %1138 = vmatpush1.bf16.xpose.msra.mxu0 0
    %1139 = vmatprep.subr.bf16.mxu0 0
    %1140 = vmatpush1.bf16.xpose.msra.mxu0 0
    %1141 = vmatprep.subr.bf16.mxu0 0
    %1142 = vmatpush1.bf16.xpose.msra.mxu0 0
    %1143 = vmatprep.subr.bf16.mxu0 0
    %1144 = vmatpush1.bf16.xpose.msra.mxu0 0
    %1145 = vmatprep.subr.bf16.mxu0 0
    %1146 = vmatpush1.bf16.xpose.msra.mxu0 0
    %1147 = vmatprep.subr.bf16.mxu0 0
    %1148 = vmatpush1.bf16.xpose.msra.mxu0 0
    %1149 = vmatprep.subr.bf16.mxu0 0
    %1150 = vmatpush1.bf16.xpose.msra.mxu0 0
    %1151 = vmatprep.subr.bf16.mxu0 0
    %1152 = vmatpush1.bf16.xpose.msra.mxu0 0
    %1153 = vmatprep.subr.bf16.mxu0 0
    %1154 = vmatpush1.bf16.xpose.msra.mxu0 0
    %1155 = vmatprep.subr.bf16.mxu0 0
    %1156 = vmatpush1.bf16.xpose.msra.mxu0 0
    %1157 = vmatprep.subr.bf16.mxu0 0
    %1158 = vmatpush1.bf16.xpose.msra.mxu0 0
    %1159 = vmatprep.subr.bf16.mxu0 0
    %1160 = vmatpush1.bf16.xpose.msra.mxu0 0
    %1161 = vmatprep.subr.bf16.mxu0 0
    %1162 = vmatpush1.bf16.xpose.msra.mxu0 0
    %1163 = vmatprep.subr.bf16.mxu0 0
    %1164 = vmatpush1.bf16.xpose.msra.mxu0 0
    %1165 = vmatprep.subr.bf16.mxu0 0
    %1166 = vmatpush1.bf16.xpose.msra.mxu0 0
    %1167 = vmatprep.mubr.bf16.mxu0 0
    %1168 = vmatmul.mubr.bf16.gmra.mrb[0].mxu0 %v1130
    %v1169 = vpop.f32.mrb[0].mxu0
    %v1170 = vadd.f32 0.0, %v1169
    %v1171 = vpop.f32.mrb[0].mxu0
    %v1172 = vpop.f32.mrb[0].mxu0
    %v1173 = vpop.f32.mrb[0].mxu0
    %1174 = vdwg.mxu0
    %v1175 = vmul.f32 %v1121, 0.17677669
    %v1176 = vmul.f32 %v1170, 0.17677669
    %v1177 = vsel %vm948, %v1175, -inf
    %1178 = vmax.xlane.f32.xlu0 %v1177
    %v1179 = vpop.xlane.xlu0 %1178
    %v1180 = vsel %vm948, %v1176, -inf
    %1181 = vmax.xlane.f32.xlu0 %v1180
    %v1182 = vpop.xlane.xlu0 %1181
    %v1183 = vsub.f32 %v1175, %v1179
    %v1184 = vsub.f32 %v1176, %v1182
    %v1185 = vmul.f32 %v1183, 1.442695
    %v1186 = vpow.pop %v1185
    %v1187 = vmul.f32 %v1184, 1.442695
    %v1188 = vpow.pop %v1187
    %v1189 = vsel %vm948, %v1186, 0.0
    %1190 = vadd.xlane.f32.xlu0 %v1189
    %v1191 = vpop.xlane.xlu0 %1190
    %v1192 = vsel %vm948, %v1188, 0.0
    %1193 = vadd.xlane.f32.xlu0 %v1192
    %v1194 = vpop.xlane.xlu0 %1193
    %v1195 = vrcp.pop %v1191
    %v1196 = vrcp.pop %v1194
    %v1197 = vmul.f32 %v1186, %v1195
    %v1198 = vmul.f32 %v1188, %v1196
    %v1199 = vpack.c.bf16 %v1197, %v1197
    %v1200 = vpack.c.bf16 %v1198, %v1198
    %1202 = vrot.lane.b32.xlu0 %v973, 96
    %v1203 = vpop.permute.xlu0 %1202
    %v1205 = vsel %vm975, %v1199, 0
    %v1208 = vsel %vm979, %v1203, 0
    %1210 = vmatprep.subr.bf16.mxu0 0
    %1211 = vmatpush1.bf16.msra.mxu0 %v1208
    %1212 = vmatprep.subr.bf16.mxu0 0
    %1213 = vmatpush1.bf16.msra.mxu0 0
    %1214 = vmatprep.subr.bf16.mxu0 0
    %1215 = vmatpush1.bf16.msra.mxu0 0
    %1216 = vmatprep.subr.bf16.mxu0 0
    %1217 = vmatpush1.bf16.msra.mxu0 0
    %1218 = vmatprep.subr.bf16.mxu0 0
    %1219 = vmatpush1.bf16.msra.mxu0 0
    %1220 = vmatprep.subr.bf16.mxu0 0
    %1221 = vmatpush1.bf16.msra.mxu0 0
    %1222 = vmatprep.subr.bf16.mxu0 0
    %1223 = vmatpush1.bf16.msra.mxu0 0
    %1224 = vmatprep.subr.bf16.mxu0 0
    %1225 = vmatpush1.bf16.msra.mxu0 0
    %1226 = vmatprep.subr.bf16.mxu0 0
    %1227 = vmatpush1.bf16.msra.mxu0 0
    %1228 = vmatprep.subr.bf16.mxu0 0
    %1229 = vmatpush1.bf16.msra.mxu0 0
    %1230 = vmatprep.subr.bf16.mxu0 0
    %1231 = vmatpush1.bf16.msra.mxu0 0
    %1232 = vmatprep.subr.bf16.mxu0 0
    %1233 = vmatpush1.bf16.msra.mxu0 0
    %1234 = vmatprep.subr.bf16.mxu0 0
    %1235 = vmatpush1.bf16.msra.mxu0 0
    %1236 = vmatprep.subr.bf16.mxu0 0
    %1237 = vmatpush1.bf16.msra.mxu0 0
    %1238 = vmatprep.subr.bf16.mxu0 0
    %1239 = vmatpush1.bf16.msra.mxu0 0
    %1240 = vmatprep.subr.bf16.mxu0 0
    %1241 = vmatpush1.bf16.msra.mxu0 0
    %1242 = vmatprep.mubr.bf16.mxu0 0
    %1243 = vmatmul.mubr.bf16.gmra.mrb[0].mxu0 %v1205
    %v1244 = vpop.f32.mrb[0].mxu0
    %v1245 = vadd.f32 0.0, %v1244
    %v1246 = vpop.f32.mrb[0].mxu0
    %v1247 = vpop.f32.mrb[0].mxu0
    %v1248 = vpop.f32.mrb[0].mxu0
    %1249 = vdwg.mxu0
    %1251 = vrot.lane.b32.xlu0 %v974, 96
    %v1252 = vpop.permute.xlu0 %1251
    %v1254 = vsel %vm975, %v1200, 0
    %v1257 = vsel %vm979, %v1252, 0
    %1259 = vmatprep.subr.bf16.mxu0 0
    %1260 = vmatpush1.bf16.msra.mxu0 %v1257
    %1261 = vmatprep.subr.bf16.mxu0 0
    %1262 = vmatpush1.bf16.msra.mxu0 0
    %1263 = vmatprep.subr.bf16.mxu0 0
    %1264 = vmatpush1.bf16.msra.mxu0 0
    %1265 = vmatprep.subr.bf16.mxu0 0
    %1266 = vmatpush1.bf16.msra.mxu0 0
    %1267 = vmatprep.subr.bf16.mxu0 0
    %1268 = vmatpush1.bf16.msra.mxu0 0
    %1269 = vmatprep.subr.bf16.mxu0 0
    %1270 = vmatpush1.bf16.msra.mxu0 0
    %1271 = vmatprep.subr.bf16.mxu0 0
    %1272 = vmatpush1.bf16.msra.mxu0 0
    %1273 = vmatprep.subr.bf16.mxu0 0
    %1274 = vmatpush1.bf16.msra.mxu0 0
    %1275 = vmatprep.subr.bf16.mxu0 0
    %1276 = vmatpush1.bf16.msra.mxu0 0
    %1277 = vmatprep.subr.bf16.mxu0 0
    %1278 = vmatpush1.bf16.msra.mxu0 0
    %1279 = vmatprep.subr.bf16.mxu0 0
    %1280 = vmatpush1.bf16.msra.mxu0 0
    %1281 = vmatprep.subr.bf16.mxu0 0
    %1282 = vmatpush1.bf16.msra.mxu0 0
    %1283 = vmatprep.subr.bf16.mxu0 0
    %1284 = vmatpush1.bf16.msra.mxu0 0
    %1285 = vmatprep.subr.bf16.mxu0 0
    %1286 = vmatpush1.bf16.msra.mxu0 0
    %1287 = vmatprep.subr.bf16.mxu0 0
    %1288 = vmatpush1.bf16.msra.mxu0 0
    %1289 = vmatprep.subr.bf16.mxu0 0
    %1290 = vmatpush1.bf16.msra.mxu0 0
    %1291 = vmatprep.mubr.bf16.mxu0 0
    %1292 = vmatmul.mubr.bf16.gmra.mrb[0].mxu0 %v1254
    %v1293 = vpop.f32.mrb[0].mxu0
    %v1294 = vadd.f32 0.0, %v1293
    %v1295 = vpop.f32.mrb[0].mxu0
    %v1296 = vpop.f32.mrb[0].mxu0
    %v1297 = vpop.f32.mrb[0].mxu0
    %1298 = vdwg.mxu0
    %1299 = vrot.lane.b32.xlu0 %v847, 64
    %v1300 = vpop.permute.xlu0 %1299
    %1301 = vrot.lane.b32.xlu0 %v848, 64
    %v1302 = vpop.permute.xlu0 %1301
    %v1305 = vpack.c.bf16 %v1300, %v1300
    %v1306 = vpack.c.bf16 %v1302, %v1302
    %1307 = vrot.lane.b32.xlu0 %v845, 64
    %v1308 = vpop.permute.xlu0 %1307
    %v1310 = vsel %vm853, %v1308, 0
    %v1313 = vsel %vm853, %v1305, 0
    %1315 = vmatprep.subr.bf16.mxu0 0
    %1316 = vmatpush1.bf16.xpose.msra.mxu0 %v1313
    %1317 = vmatprep.subr.bf16.mxu0 0
    %1318 = vmatpush1.bf16.xpose.msra.mxu0 0
    %1319 = vmatprep.subr.bf16.mxu0 0
    %1320 = vmatpush1.bf16.xpose.msra.mxu0 0
    %1321 = vmatprep.subr.bf16.mxu0 0
    %1322 = vmatpush1.bf16.xpose.msra.mxu0 0
    %1323 = vmatprep.subr.bf16.mxu0 0
    %1324 = vmatpush1.bf16.xpose.msra.mxu0 0
    %1325 = vmatprep.subr.bf16.mxu0 0
    %1326 = vmatpush1.bf16.xpose.msra.mxu0 0
    %1327 = vmatprep.subr.bf16.mxu0 0
    %1328 = vmatpush1.bf16.xpose.msra.mxu0 0
    %1329 = vmatprep.subr.bf16.mxu0 0
    %1330 = vmatpush1.bf16.xpose.msra.mxu0 0
    %1331 = vmatprep.subr.bf16.mxu0 0
    %1332 = vmatpush1.bf16.xpose.msra.mxu0 0
    %1333 = vmatprep.subr.bf16.mxu0 0
    %1334 = vmatpush1.bf16.xpose.msra.mxu0 0
    %1335 = vmatprep.subr.bf16.mxu0 0
    %1336 = vmatpush1.bf16.xpose.msra.mxu0 0
    %1337 = vmatprep.subr.bf16.mxu0 0
    %1338 = vmatpush1.bf16.xpose.msra.mxu0 0
    %1339 = vmatprep.subr.bf16.mxu0 0
    %1340 = vmatpush1.bf16.xpose.msra.mxu0 0
    %1341 = vmatprep.subr.bf16.mxu0 0
    %1342 = vmatpush1.bf16.xpose.msra.mxu0 0
    %1343 = vmatprep.subr.bf16.mxu0 0
    %1344 = vmatpush1.bf16.xpose.msra.mxu0 0
    %1345 = vmatprep.subr.bf16.mxu0 0
    %1346 = vmatpush1.bf16.xpose.msra.mxu0 0
    %1347 = vmatprep.mubr.bf16.mxu0 0
    %1348 = vmatmul.mubr.bf16.gmra.mrb[0].mxu0 %v1310
    %v1349 = vpop.f32.mrb[0].mxu0
    %v1350 = vadd.f32 0.0, %v1349
    %v1351 = vpop.f32.mrb[0].mxu0
    %v1352 = vpop.f32.mrb[0].mxu0
    %v1353 = vpop.f32.mrb[0].mxu0
    %1354 = vdwg.mxu0
    %1355 = vrot.lane.b32.xlu0 %v846, 64
    %v1356 = vpop.permute.xlu0 %1355
    %v1358 = vsel %vm853, %v1356, 0
    %v1361 = vsel %vm853, %v1306, 0
    %1363 = vmatprep.subr.bf16.mxu0 0
    %1364 = vmatpush1.bf16.xpose.msra.mxu0 %v1361
    %1365 = vmatprep.subr.bf16.mxu0 0
    %1366 = vmatpush1.bf16.xpose.msra.mxu0 0
    %1367 = vmatprep.subr.bf16.mxu0 0
    %1368 = vmatpush1.bf16.xpose.msra.mxu0 0
    %1369 = vmatprep.subr.bf16.mxu0 0
    %1370 = vmatpush1.bf16.xpose.msra.mxu0 0
    %1371 = vmatprep.subr.bf16.mxu0 0
    %1372 = vmatpush1.bf16.xpose.msra.mxu0 0
    %1373 = vmatprep.subr.bf16.mxu0 0
    %1374 = vmatpush1.bf16.xpose.msra.mxu0 0
    %1375 = vmatprep.subr.bf16.mxu0 0
    %1376 = vmatpush1.bf16.xpose.msra.mxu0 0
    %1377 = vmatprep.subr.bf16.mxu0 0
    %1378 = vmatpush1.bf16.xpose.msra.mxu0 0
    %1379 = vmatprep.subr.bf16.mxu0 0
    %1380 = vmatpush1.bf16.xpose.msra.mxu0 0
    %1381 = vmatprep.subr.bf16.mxu0 0
    %1382 = vmatpush1.bf16.xpose.msra.mxu0 0
    %1383 = vmatprep.subr.bf16.mxu0 0
    %1384 = vmatpush1.bf16.xpose.msra.mxu0 0
    %1385 = vmatprep.subr.bf16.mxu0 0
    %1386 = vmatpush1.bf16.xpose.msra.mxu0 0
    %1387 = vmatprep.subr.bf16.mxu0 0
    %1388 = vmatpush1.bf16.xpose.msra.mxu0 0
    %1389 = vmatprep.subr.bf16.mxu0 0
    %1390 = vmatpush1.bf16.xpose.msra.mxu0 0
    %1391 = vmatprep.subr.bf16.mxu0 0
    %1392 = vmatpush1.bf16.xpose.msra.mxu0 0
    %1393 = vmatprep.subr.bf16.mxu0 0
    %1394 = vmatpush1.bf16.xpose.msra.mxu0 0
    %1395 = vmatprep.mubr.bf16.mxu0 0
    %1396 = vmatmul.mubr.bf16.gmra.mrb[0].mxu0 %v1358
    %v1397 = vpop.f32.mrb[0].mxu0
    %v1398 = vadd.f32 0.0, %v1397
    %v1399 = vpop.f32.mrb[0].mxu0
    %v1400 = vpop.f32.mrb[0].mxu0
    %v1401 = vpop.f32.mrb[0].mxu0
    %1402 = vdwg.mxu0
    %v1403 = vmul.f32 %v1350, 0.17677669
    %v1404 = vmul.f32 %v1398, 0.17677669
    %v1405 = vsel %vm948, %v1403, -inf
    %1406 = vmax.xlane.f32.xlu0 %v1405
    %v1407 = vpop.xlane.xlu0 %1406
    %v1408 = vsel %vm948, %v1404, -inf
    %1409 = vmax.xlane.f32.xlu0 %v1408
    %v1410 = vpop.xlane.xlu0 %1409
    %v1411 = vsub.f32 %v1403, %v1407
    %v1412 = vsub.f32 %v1404, %v1410
    %v1413 = vmul.f32 %v1411, 1.442695
    %v1414 = vpow.pop %v1413
    %v1415 = vmul.f32 %v1412, 1.442695
    %v1416 = vpow.pop %v1415
    %v1417 = vsel %vm948, %v1414, 0.0
    %1418 = vadd.xlane.f32.xlu0 %v1417
    %v1419 = vpop.xlane.xlu0 %1418
    %v1420 = vsel %vm948, %v1416, 0.0
    %1421 = vadd.xlane.f32.xlu0 %v1420
    %v1422 = vpop.xlane.xlu0 %1421
    %v1423 = vrcp.pop %v1419
    %v1424 = vrcp.pop %v1422
    %v1425 = vmul.f32 %v1414, %v1423
    %v1426 = vmul.f32 %v1416, %v1424
    %v1427 = vpack.c.bf16 %v1425, %v1425
    %v1428 = vpack.c.bf16 %v1426, %v1426
    %1429 = vrot.lane.b32.xlu0 %v973, 64
    %v1430 = vpop.permute.xlu0 %1429
    %v1432 = vsel %vm975, %v1427, 0
    %v1435 = vsel %vm979, %v1430, 0
    %1437 = vmatprep.subr.bf16.mxu0 0
    %1438 = vmatpush1.bf16.msra.mxu0 %v1435
    %1439 = vmatprep.subr.bf16.mxu0 0
    %1440 = vmatpush1.bf16.msra.mxu0 0
    %1441 = vmatprep.subr.bf16.mxu0 0
    %1442 = vmatpush1.bf16.msra.mxu0 0
    %1443 = vmatprep.subr.bf16.mxu0 0
    %1444 = vmatpush1.bf16.msra.mxu0 0
    %1445 = vmatprep.subr.bf16.mxu0 0
    %1446 = vmatpush1.bf16.msra.mxu0 0
    %1447 = vmatprep.subr.bf16.mxu0 0
    %1448 = vmatpush1.bf16.msra.mxu0 0
    %1449 = vmatprep.subr.bf16.mxu0 0
    %1450 = vmatpush1.bf16.msra.mxu0 0
    %1451 = vmatprep.subr.bf16.mxu0 0
    %1452 = vmatpush1.bf16.msra.mxu0 0
    %1453 = vmatprep.subr.bf16.mxu0 0
    %1454 = vmatpush1.bf16.msra.mxu0 0
    %1455 = vmatprep.subr.bf16.mxu0 0
    %1456 = vmatpush1.bf16.msra.mxu0 0
    %1457 = vmatprep.subr.bf16.mxu0 0
    %1458 = vmatpush1.bf16.msra.mxu0 0
    %1459 = vmatprep.subr.bf16.mxu0 0
    %1460 = vmatpush1.bf16.msra.mxu0 0
    %1461 = vmatprep.subr.bf16.mxu0 0
    %1462 = vmatpush1.bf16.msra.mxu0 0
    %1463 = vmatprep.subr.bf16.mxu0 0
    %1464 = vmatpush1.bf16.msra.mxu0 0
    %1465 = vmatprep.subr.bf16.mxu0 0
    %1466 = vmatpush1.bf16.msra.mxu0 0
    %1467 = vmatprep.subr.bf16.mxu0 0
    %1468 = vmatpush1.bf16.msra.mxu0 0
    %1469 = vmatprep.mubr.bf16.mxu0 0
    %1470 = vmatmul.mubr.bf16.gmra.mrb[0].mxu0 %v1432
    %v1471 = vpop.f32.mrb[0].mxu0
    %v1472 = vadd.f32 0.0, %v1471
    %v1473 = vpop.f32.mrb[0].mxu0
    %v1474 = vpop.f32.mrb[0].mxu0
    %v1475 = vpop.f32.mrb[0].mxu0
    %1476 = vdwg.mxu0
    %1477 = vrot.lane.b32.xlu0 %v974, 64
    %v1478 = vpop.permute.xlu0 %1477
    %v1480 = vsel %vm975, %v1428, 0
    %v1483 = vsel %vm979, %v1478, 0
    %1485 = vmatprep.subr.bf16.mxu0 0
    %1486 = vmatpush1.bf16.msra.mxu0 %v1483
    %1487 = vmatprep.subr.bf16.mxu0 0
    %1488 = vmatpush1.bf16.msra.mxu0 0
    %1489 = vmatprep.subr.bf16.mxu0 0
    %1490 = vmatpush1.bf16.msra.mxu0 0
    %1491 = vmatprep.subr.bf16.mxu0 0
    %1492 = vmatpush1.bf16.msra.mxu0 0
    %1493 = vmatprep.subr.bf16.mxu0 0
    %1494 = vmatpush1.bf16.msra.mxu0 0
    %1495 = vmatprep.subr.bf16.mxu0 0
    %1496 = vmatpush1.bf16.msra.mxu0 0
    %1497 = vmatprep.subr.bf16.mxu0 0
    %1498 = vmatpush1.bf16.msra.mxu0 0
    %1499 = vmatprep.subr.bf16.mxu0 0
    %1500 = vmatpush1.bf16.msra.mxu0 0
    %1501 = vmatprep.subr.bf16.mxu0 0
    %1502 = vmatpush1.bf16.msra.mxu0 0
    %1503 = vmatprep.subr.bf16.mxu0 0
    %1504 = vmatpush1.bf16.msra.mxu0 0
    %1505 = vmatprep.subr.bf16.mxu0 0
    %1506 = vmatpush1.bf16.msra.mxu0 0
    %1507 = vmatprep.subr.bf16.mxu0 0
    %1508 = vmatpush1.bf16.msra.mxu0 0
    %1509 = vmatprep.subr.bf16.mxu0 0
    %1510 = vmatpush1.bf16.msra.mxu0 0
    %1511 = vmatprep.subr.bf16.mxu0 0
    %1512 = vmatpush1.bf16.msra.mxu0 0
    %1513 = vmatprep.subr.bf16.mxu0 0
    %1514 = vmatpush1.bf16.msra.mxu0 0
    %1515 = vmatprep.subr.bf16.mxu0 0
    %1516 = vmatpush1.bf16.msra.mxu0 0
    %1517 = vmatprep.mubr.bf16.mxu0 0
    %1518 = vmatmul.mubr.bf16.gmra.mrb[0].mxu0 %v1480
    %v1519 = vpop.f32.mrb[0].mxu0
    %v1520 = vadd.f32 0.0, %v1519
    %v1521 = vpop.f32.mrb[0].mxu0
    %v1522 = vpop.f32.mrb[0].mxu0
    %v1523 = vpop.f32.mrb[0].mxu0
    %1524 = vdwg.mxu0
    %1525 = vrot.lane.b32.xlu0 %v847, 32
    %v1526 = vpop.permute.xlu0 %1525
    %1527 = vrot.lane.b32.xlu0 %v848, 32
    %v1528 = vpop.permute.xlu0 %1527
    %v1531 = vpack.c.bf16 %v1526, %v1526
    %v1532 = vpack.c.bf16 %v1528, %v1528
    %1533 = vrot.lane.b32.xlu0 %v845, 32
    %v1534 = vpop.permute.xlu0 %1533
    %v1536 = vsel %vm853, %v1534, 0
    %v1539 = vsel %vm853, %v1531, 0
    %1541 = vmatprep.subr.bf16.mxu0 0
    %1542 = vmatpush1.bf16.xpose.msra.mxu0 %v1539
    %1543 = vmatprep.subr.bf16.mxu0 0
    %1544 = vmatpush1.bf16.xpose.msra.mxu0 0
    %1545 = vmatprep.subr.bf16.mxu0 0
    %1546 = vmatpush1.bf16.xpose.msra.mxu0 0
    %1547 = vmatprep.subr.bf16.mxu0 0
    %1548 = vmatpush1.bf16.xpose.msra.mxu0 0
    %1549 = vmatprep.subr.bf16.mxu0 0
    %1550 = vmatpush1.bf16.xpose.msra.mxu0 0
    %1551 = vmatprep.subr.bf16.mxu0 0
    %1552 = vmatpush1.bf16.xpose.msra.mxu0 0
    %1553 = vmatprep.subr.bf16.mxu0 0
    %1554 = vmatpush1.bf16.xpose.msra.mxu0 0
    %1555 = vmatprep.subr.bf16.mxu0 0
    %1556 = vmatpush1.bf16.xpose.msra.mxu0 0
    %1557 = vmatprep.subr.bf16.mxu0 0
    %1558 = vmatpush1.bf16.xpose.msra.mxu0 0
    %1559 = vmatprep.subr.bf16.mxu0 0
    %1560 = vmatpush1.bf16.xpose.msra.mxu0 0
    %1561 = vmatprep.subr.bf16.mxu0 0
    %1562 = vmatpush1.bf16.xpose.msra.mxu0 0
    %1563 = vmatprep.subr.bf16.mxu0 0
    %1564 = vmatpush1.bf16.xpose.msra.mxu0 0
    %1565 = vmatprep.subr.bf16.mxu0 0
    %1566 = vmatpush1.bf16.xpose.msra.mxu0 0
    %1567 = vmatprep.subr.bf16.mxu0 0
    %1568 = vmatpush1.bf16.xpose.msra.mxu0 0
    %1569 = vmatprep.subr.bf16.mxu0 0
    %1570 = vmatpush1.bf16.xpose.msra.mxu0 0
    %1571 = vmatprep.subr.bf16.mxu0 0
    %1572 = vmatpush1.bf16.xpose.msra.mxu0 0
    %1573 = vmatprep.mubr.bf16.mxu0 0
    %1574 = vmatmul.mubr.bf16.gmra.mrb[0].mxu0 %v1536
    %v1575 = vpop.f32.mrb[0].mxu0
    %v1576 = vadd.f32 0.0, %v1575
    %v1577 = vpop.f32.mrb[0].mxu0
    %v1578 = vpop.f32.mrb[0].mxu0
    %v1579 = vpop.f32.mrb[0].mxu0
    %1580 = vdwg.mxu0
    %1581 = vrot.lane.b32.xlu0 %v846, 32
    %v1582 = vpop.permute.xlu0 %1581
    %v1584 = vsel %vm853, %v1582, 0
    %v1587 = vsel %vm853, %v1532, 0
    %1589 = vmatprep.subr.bf16.mxu0 0
    %1590 = vmatpush1.bf16.xpose.msra.mxu0 %v1587
    %1591 = vmatprep.subr.bf16.mxu0 0
    %1592 = vmatpush1.bf16.xpose.msra.mxu0 0
    %1593 = vmatprep.subr.bf16.mxu0 0
    %1594 = vmatpush1.bf16.xpose.msra.mxu0 0
    %1595 = vmatprep.subr.bf16.mxu0 0
    %1596 = vmatpush1.bf16.xpose.msra.mxu0 0
    %1597 = vmatprep.subr.bf16.mxu0 0
    %1598 = vmatpush1.bf16.xpose.msra.mxu0 0
    %1599 = vmatprep.subr.bf16.mxu0 0
    %1600 = vmatpush1.bf16.xpose.msra.mxu0 0
    %1601 = vmatprep.subr.bf16.mxu0 0
    %1602 = vmatpush1.bf16.xpose.msra.mxu0 0
    %1603 = vmatprep.subr.bf16.mxu0 0
    %1604 = vmatpush1.bf16.xpose.msra.mxu0 0
    %1605 = vmatprep.subr.bf16.mxu0 0
    %1606 = vmatpush1.bf16.xpose.msra.mxu0 0
    %1607 = vmatprep.subr.bf16.mxu0 0
    %1608 = vmatpush1.bf16.xpose.msra.mxu0 0
    %1609 = vmatprep.subr.bf16.mxu0 0
    %1610 = vmatpush1.bf16.xpose.msra.mxu0 0
    %1611 = vmatprep.subr.bf16.mxu0 0
    %1612 = vmatpush1.bf16.xpose.msra.mxu0 0
    %1613 = vmatprep.subr.bf16.mxu0 0
    %1614 = vmatpush1.bf16.xpose.msra.mxu0 0
    %1615 = vmatprep.subr.bf16.mxu0 0
    %1616 = vmatpush1.bf16.xpose.msra.mxu0 0
    %1617 = vmatprep.subr.bf16.mxu0 0
    %1618 = vmatpush1.bf16.xpose.msra.mxu0 0
    %1619 = vmatprep.subr.bf16.mxu0 0
    %1620 = vmatpush1.bf16.xpose.msra.mxu0 0
    %1621 = vmatprep.mubr.bf16.mxu0 0
    %1622 = vmatmul.mubr.bf16.gmra.mrb[0].mxu0 %v1584
    %v1623 = vpop.f32.mrb[0].mxu0
    %v1624 = vadd.f32 0.0, %v1623
    %v1625 = vpop.f32.mrb[0].mxu0
    %v1626 = vpop.f32.mrb[0].mxu0
    %v1627 = vpop.f32.mrb[0].mxu0
    %1628 = vdwg.mxu0
    %v1629 = vmul.f32 %v1576, 0.17677669
    %v1630 = vmul.f32 %v1624, 0.17677669
    %v1631 = vsel %vm948, %v1629, -inf
    %1632 = vmax.xlane.f32.xlu0 %v1631
    %v1633 = vpop.xlane.xlu0 %1632
    %v1634 = vsel %vm948, %v1630, -inf
    %1635 = vmax.xlane.f32.xlu0 %v1634
    %v1636 = vpop.xlane.xlu0 %1635
    %v1637 = vsub.f32 %v1629, %v1633
    %v1638 = vsub.f32 %v1630, %v1636
    %v1639 = vmul.f32 %v1637, 1.442695
    %v1640 = vpow.pop %v1639
    %v1641 = vmul.f32 %v1638, 1.442695
    %v1642 = vpow.pop %v1641
    %v1643 = vsel %vm948, %v1640, 0.0
    %1644 = vadd.xlane.f32.xlu0 %v1643
    %v1645 = vpop.xlane.xlu0 %1644
    %v1646 = vsel %vm948, %v1642, 0.0
    %1647 = vadd.xlane.f32.xlu0 %v1646
    %v1648 = vpop.xlane.xlu0 %1647
    %v1649 = vrcp.pop %v1645
    %v1650 = vrcp.pop %v1648
    %v1651 = vmul.f32 %v1640, %v1649
    %v1652 = vmul.f32 %v1642, %v1650
    %v1653 = vpack.c.bf16 %v1651, %v1651
    %v1654 = vpack.c.bf16 %v1652, %v1652
    %1655 = vrot.lane.b32.xlu0 %v973, 32
    %v1656 = vpop.permute.xlu0 %1655
    %v1658 = vsel %vm975, %v1653, 0
    %v1661 = vsel %vm979, %v1656, 0
    %1663 = vmatprep.subr.bf16.mxu0 0
    %1664 = vmatpush1.bf16.msra.mxu0 %v1661
    %1665 = vmatprep.subr.bf16.mxu0 0
    %1666 = vmatpush1.bf16.msra.mxu0 0
    %1667 = vmatprep.subr.bf16.mxu0 0
    %1668 = vmatpush1.bf16.msra.mxu0 0
    %1669 = vmatprep.subr.bf16.mxu0 0
    %1670 = vmatpush1.bf16.msra.mxu0 0
    %1671 = vmatprep.subr.bf16.mxu0 0
    %1672 = vmatpush1.bf16.msra.mxu0 0
    %1673 = vmatprep.subr.bf16.mxu0 0
    %1674 = vmatpush1.bf16.msra.mxu0 0
    %1675 = vmatprep.subr.bf16.mxu0 0
    %1676 = vmatpush1.bf16.msra.mxu0 0
    %1677 = vmatprep.subr.bf16.mxu0 0
    %1678 = vmatpush1.bf16.msra.mxu0 0
    %1679 = vmatprep.subr.bf16.mxu0 0
    %1680 = vmatpush1.bf16.msra.mxu0 0
    %1681 = vmatprep.subr.bf16.mxu0 0
    %1682 = vmatpush1.bf16.msra.mxu0 0
    %1683 = vmatprep.subr.bf16.mxu0 0
    %1684 = vmatpush1.bf16.msra.mxu0 0
    %1685 = vmatprep.subr.bf16.mxu0 0
    %1686 = vmatpush1.bf16.msra.mxu0 0
    %1687 = vmatprep.subr.bf16.mxu0 0
    %1688 = vmatpush1.bf16.msra.mxu0 0
    %1689 = vmatprep.subr.bf16.mxu0 0
    %1690 = vmatpush1.bf16.msra.mxu0 0
    %1691 = vmatprep.subr.bf16.mxu0 0
    %1692 = vmatpush1.bf16.msra.mxu0 0
    %1693 = vmatprep.subr.bf16.mxu0 0
    %1694 = vmatpush1.bf16.msra.mxu0 0
    %1695 = vmatprep.mubr.bf16.mxu0 0
    %1696 = vmatmul.mubr.bf16.gmra.mrb[0].mxu0 %v1658
    %v1697 = vpop.f32.mrb[0].mxu0
    %v1698 = vadd.f32 0.0, %v1697
    %v1699 = vpop.f32.mrb[0].mxu0
    %v1700 = vpop.f32.mrb[0].mxu0
    %v1701 = vpop.f32.mrb[0].mxu0
    %1702 = vdwg.mxu0
    %1703 = vrot.lane.b32.xlu0 %v974, 32
    %v1704 = vpop.permute.xlu0 %1703
    %v1706 = vsel %vm975, %v1654, 0
    %v1709 = vsel %vm979, %v1704, 0
    %1711 = vmatprep.subr.bf16.mxu0 0
    %1712 = vmatpush1.bf16.msra.mxu0 %v1709
    %1713 = vmatprep.subr.bf16.mxu0 0
    %1714 = vmatpush1.bf16.msra.mxu0 0
    %1715 = vmatprep.subr.bf16.mxu0 0
    %1716 = vmatpush1.bf16.msra.mxu0 0
    %1717 = vmatprep.subr.bf16.mxu0 0
    %1718 = vmatpush1.bf16.msra.mxu0 0
    %1719 = vmatprep.subr.bf16.mxu0 0
    %1720 = vmatpush1.bf16.msra.mxu0 0
    %1721 = vmatprep.subr.bf16.mxu0 0
    %1722 = vmatpush1.bf16.msra.mxu0 0
    %1723 = vmatprep.subr.bf16.mxu0 0
    %1724 = vmatpush1.bf16.msra.mxu0 0
    %1725 = vmatprep.subr.bf16.mxu0 0
    %1726 = vmatpush1.bf16.msra.mxu0 0
    %1727 = vmatprep.subr.bf16.mxu0 0
    %1728 = vmatpush1.bf16.msra.mxu0 0
    %1729 = vmatprep.subr.bf16.mxu0 0
    %1730 = vmatpush1.bf16.msra.mxu0 0
    %1731 = vmatprep.subr.bf16.mxu0 0
    %1732 = vmatpush1.bf16.msra.mxu0 0
    %1733 = vmatprep.subr.bf16.mxu0 0
    %1734 = vmatpush1.bf16.msra.mxu0 0
    %1735 = vmatprep.subr.bf16.mxu0 0
    %1736 = vmatpush1.bf16.msra.mxu0 0
    %1737 = vmatprep.subr.bf16.mxu0 0
    %1738 = vmatpush1.bf16.msra.mxu0 0
    %1739 = vmatprep.subr.bf16.mxu0 0
    %1740 = vmatpush1.bf16.msra.mxu0 0
    %1741 = vmatprep.subr.bf16.mxu0 0
    %1742 = vmatpush1.bf16.msra.mxu0 0
    %1743 = vmatprep.mubr.bf16.mxu0 0
    %1744 = vmatmul.mubr.bf16.gmra.mrb[0].mxu0 %v1706
    %v1745 = vpop.f32.mrb[0].mxu0
    %v1746 = vadd.f32 0.0, %v1745
    %v1747 = vpop.f32.mrb[0].mxu0
    %v1748 = vpop.f32.mrb[0].mxu0
    %v1749 = vpop.f32.mrb[0].mxu0
    %1750 = vdwg.mxu0
    %1753 = vrot.lane.b32.xlu0 %v1245, 32
    %v1754 = vpop.permute.xlu0 %1753
    %1755 = vrot.lane.b32.xlu0 %v1294, 32
    %v1756 = vpop.permute.xlu0 %1755
    %1761 = vrot.lane.b32.xlu0 %v1472, 64
    %v1762 = vpop.permute.xlu0 %1761
    %1763 = vrot.lane.b32.xlu0 %v1520, 64
    %v1764 = vpop.permute.xlu0 %1763
    %1769 = vrot.lane.b32.xlu0 %v1698, 96
    %v1770 = vpop.permute.xlu0 %1769
    %1771 = vrot.lane.b32.xlu0 %v1746, 96
    %v1772 = vpop.permute.xlu0 %1771
    %v1775 = vsel %vm853, %v1018, %v1754
    %v1776 = vsel %vm853, %v1064, %v1756
    %v1777 = vsel %vm327, %v1775, %v1762
    %v1778 = vsel %vm327, %v1776, %v1764
    %vm1779 = vcmask 785408
    %v1780 = vsel %vm1779, %v1777, %v1770
    %v1781 = vsel %vm1779, %v1778, %v1772
    %v1784 = vcombine.low %v1780, %v1781
    %v1786 = vpack.c.bf16 %v1784, %v1784
    %v1788 = vlaneseq
    %v1789 = vshrl.u32 %v1788, 7
    %v1790 = vsub.s32 0, %v1789
    %v1791 = vrot.slane %v428, %v1790
    %v1809 = vunpack.c.l.b16 %v412
    %v1810 = vunpack.c.l.b16 %v413
    %v1811 = vunpack.c.l.b16 %v414
    %v1812 = vunpack.c.l.b16 %v415
    %v1813 = vunpack.c.l.b16 %v416
    %v1814 = vunpack.c.l.b16 %v417
    %v1815 = vunpack.c.l.b16 %v418
    %v1816 = vunpack.c.l.b16 %v419
    %v1817 = vunpack.c.l.b16 %v420
    %v1818 = vunpack.c.l.b16 %v421
    %v1819 = vunpack.c.l.b16 %v422
    %v1820 = vunpack.c.l.b16 %v423
    %v1821 = vunpack.c.l.b16 %v424
    %v1822 = vunpack.c.l.b16 %v425
    %v1823 = vunpack.c.l.b16 %v426
    %v1824 = vunpack.c.l.b16 %v427
    %v1825 = vpack.c.b16 %v1810, %v1809
    %v1826 = vpack.c.b16 %v1812, %v1811
    %v1827 = vpack.c.b16 %v1814, %v1813
    %v1828 = vpack.c.b16 %v1816, %v1815
    %v1829 = vpack.c.b16 %v1818, %v1817
    %v1830 = vpack.c.b16 %v1820, %v1819
    %v1831 = vpack.c.b16 %v1822, %v1821
    %v1832 = vpack.c.b16 %v1824, %v1823
    %1841 = vmatprep.subr.bf16.mxu0 0
    %1842 = vmatpush1.bf16.msra.mxu0 %v1825
    %1843 = vmatprep.subr.bf16.mxu0 0
    %1844 = vmatpush1.bf16.msra.mxu0 %v1826
    %1845 = vmatprep.subr.bf16.mxu0 0
    %1846 = vmatpush1.bf16.msra.mxu0 %v1827
    %1847 = vmatprep.subr.bf16.mxu0 0
    %1848 = vmatpush1.bf16.msra.mxu0 %v1828
    %1849 = vmatprep.subr.bf16.mxu0 0
    %1850 = vmatpush1.bf16.msra.mxu0 %v1829
    %1851 = vmatprep.subr.bf16.mxu0 0
    %1852 = vmatpush1.bf16.msra.mxu0 %v1830
    %1853 = vmatprep.subr.bf16.mxu0 0
    %1854 = vmatpush1.bf16.msra.mxu0 %v1831
    %1855 = vmatprep.subr.bf16.mxu0 0
    %1856 = vmatpush1.bf16.msra.mxu0 %v1832
    %1857 = vmatprep.subr.bf16.mxu0 0
    %1858 = vmatpush1.bf16.msra.mxu0 0
    %1859 = vmatprep.subr.bf16.mxu0 0
    %1860 = vmatpush1.bf16.msra.mxu0 0
    %1861 = vmatprep.subr.bf16.mxu0 0
    %1862 = vmatpush1.bf16.msra.mxu0 0
    %1863 = vmatprep.subr.bf16.mxu0 0
    %1864 = vmatpush1.bf16.msra.mxu0 0
    %1865 = vmatprep.subr.bf16.mxu0 0
    %1866 = vmatpush1.bf16.msra.mxu0 0
    %1867 = vmatprep.subr.bf16.mxu0 0
    %1868 = vmatpush1.bf16.msra.mxu0 0
    %1869 = vmatprep.subr.bf16.mxu0 0
    %1870 = vmatpush1.bf16.msra.mxu0 0
    %1871 = vmatprep.subr.bf16.mxu0 0
    %1872 = vmatpush1.bf16.msra.mxu0 0
    %1873 = vmatprep.mubr.bf16.mxu0 0
    %1874 = vmatmul.mubr.bf16.gmra.mrb[0].mxu0 %v1786
    %v1875 = vpop.f32.mrb[0].mxu0
    %v1876 = vadd.f32 %v1791, %v1875
    %v1877 = vpop.f32.mrb[0].mxu0
    %v1878 = vpop.f32.mrb[0].mxu0
    %v1879 = vpop.f32.mrb[0].mxu0
    %1880 = vdwg.mxu0
    %v1882 = vlaneseq
    %v1883 = vshrl.u32 %v1882, 7
    %v1884 = vsub.s32 0, %v1883
    %v1885 = vrot.slane %v429, %v1884
    %v1887 = vcombine.high %v1885, %v1885
    %v1889 = vmul.f32 %v584, %v1885
    %v1890 = vmul.f32 %v585, %v1887
    %v1892 = vlaneseq
    %v1893 = vshrl.u32 %v1892, 7
    %v1894 = vsub.s32 0, %v1893
    %v1895 = vrot.slane %v430, %v1894
    %v1897 = vcombine.high %v1895, %v1895
    %v1899 = vadd.f32 %v1889, %v1895
    %v1900 = vadd.f32 %v1890, %v1897
    %v1903 = vcombine.low %v1899, %v1900
    %v1905 = vpack.c.bf16 %v1903, %v1903
    %v1907 = vlaneseq
    %v1908 = vshrl.u32 %v1907, 7
    %v1909 = vsub.s32 0, %v1908
    %v1910 = vrot.slane %v463, %v1909
    %v1911 = vlaneseq
    %v1912 = vshrl.u32 %v1911, 7
    %v1913 = vsub.s32 1, %v1912
    %v1914 = vrot.slane %v463, %v1913
    %v1915 = vlaneseq
    %v1916 = vshrl.u32 %v1915, 7
    %v1917 = vsub.s32 2, %v1916
    %v1918 = vrot.slane %v463, %v1917
    %v1919 = vlaneseq
    %v1920 = vshrl.u32 %v1919, 7
    %v1921 = vsub.s32 3, %v1920
    %v1922 = vrot.slane %v463, %v1921
    %v1959 = vunpack.c.l.b16 %v431
    %v1960 = vunpack.c.h.b16 %v431
    %v1961 = vunpack.c.l.b16 %v432
    %v1962 = vunpack.c.h.b16 %v432
    %v1963 = vunpack.c.l.b16 %v433
    %v1964 = vunpack.c.h.b16 %v433
    %v1965 = vunpack.c.l.b16 %v434
    %v1966 = vunpack.c.h.b16 %v434
    %v1967 = vunpack.c.l.b16 %v435
    %v1968 = vunpack.c.h.b16 %v435
    %v1969 = vunpack.c.l.b16 %v436
    %v1970 = vunpack.c.h.b16 %v436
    %v1971 = vunpack.c.l.b16 %v437
    %v1972 = vunpack.c.h.b16 %v437
    %v1973 = vunpack.c.l.b16 %v438
    %v1974 = vunpack.c.h.b16 %v438
    %v1975 = vunpack.c.l.b16 %v439
    %v1976 = vunpack.c.h.b16 %v439
    %v1977 = vunpack.c.l.b16 %v440
    %v1978 = vunpack.c.h.b16 %v440
    %v1979 = vunpack.c.l.b16 %v441
    %v1980 = vunpack.c.h.b16 %v441
    %v1981 = vunpack.c.l.b16 %v442
    %v1982 = vunpack.c.h.b16 %v442
    %v1983 = vunpack.c.l.b16 %v443
    %v1984 = vunpack.c.h.b16 %v443
    %v1985 = vunpack.c.l.b16 %v444
    %v1986 = vunpack.c.h.b16 %v444
    %v1987 = vunpack.c.l.b16 %v445
    %v1988 = vunpack.c.h.b16 %v445
    %v1989 = vunpack.c.l.b16 %v446
    %v1990 = vunpack.c.h.b16 %v446
    %v1991 = vunpack.c.l.b16 %v447
    %v1992 = vunpack.c.h.b16 %v447
    %v1993 = vunpack.c.l.b16 %v448
    %v1994 = vunpack.c.h.b16 %v448
    %v1995 = vunpack.c.l.b16 %v449
    %v1996 = vunpack.c.h.b16 %v449
    %v1997 = vunpack.c.l.b16 %v450
    %v1998 = vunpack.c.h.b16 %v450
    %v1999 = vunpack.c.l.b16 %v451
    %v2000 = vunpack.c.h.b16 %v451
    %v2001 = vunpack.c.l.b16 %v452
    %v2002 = vunpack.c.h.b16 %v452
    %v2003 = vunpack.c.l.b16 %v453
    %v2004 = vunpack.c.h.b16 %v453
    %v2005 = vunpack.c.l.b16 %v454
    %v2006 = vunpack.c.h.b16 %v454
    %v2007 = vunpack.c.l.b16 %v455
    %v2008 = vunpack.c.h.b16 %v455
    %v2009 = vunpack.c.l.b16 %v456
    %v2010 = vunpack.c.h.b16 %v456
    %v2011 = vunpack.c.l.b16 %v457
    %v2012 = vunpack.c.h.b16 %v457
    %v2013 = vunpack.c.l.b16 %v458
    %v2014 = vunpack.c.h.b16 %v458
    %v2015 = vunpack.c.l.b16 %v459
    %v2016 = vunpack.c.h.b16 %v459
    %v2017 = vunpack.c.l.b16 %v460
    %v2018 = vunpack.c.h.b16 %v460
    %v2019 = vunpack.c.l.b16 %v461
    %v2020 = vunpack.c.h.b16 %v461
    %v2021 = vunpack.c.l.b16 %v462
    %v2022 = vunpack.c.h.b16 %v462
    %v2023 = vpack.c.b16 %v1963, %v1959
    %v2024 = vpack.c.b16 %v1964, %v1960
    %v2025 = vpack.c.b16 %v1965, %v1961
    %v2026 = vpack.c.b16 %v1966, %v1962
    %v2027 = vpack.c.b16 %v1971, %v1967
    %v2028 = vpack.c.b16 %v1972, %v1968
    %v2029 = vpack.c.b16 %v1973, %v1969
    %v2030 = vpack.c.b16 %v1974, %v1970
    %v2031 = vpack.c.b16 %v1979, %v1975
    %v2032 = vpack.c.b16 %v1980, %v1976
    %v2033 = vpack.c.b16 %v1981, %v1977
    %v2034 = vpack.c.b16 %v1982, %v1978
    %v2035 = vpack.c.b16 %v1987, %v1983
    %v2036 = vpack.c.b16 %v1988, %v1984
    %v2037 = vpack.c.b16 %v1989, %v1985
    %v2038 = vpack.c.b16 %v1990, %v1986
    %v2039 = vpack.c.b16 %v1995, %v1991
    %v2040 = vpack.c.b16 %v1996, %v1992
    %v2041 = vpack.c.b16 %v1997, %v1993
    %v2042 = vpack.c.b16 %v1998, %v1994
    %v2043 = vpack.c.b16 %v2003, %v1999
    %v2044 = vpack.c.b16 %v2004, %v2000
    %v2045 = vpack.c.b16 %v2005, %v2001
    %v2046 = vpack.c.b16 %v2006, %v2002
    %v2047 = vpack.c.b16 %v2011, %v2007
    %v2048 = vpack.c.b16 %v2012, %v2008
    %v2049 = vpack.c.b16 %v2013, %v2009
    %v2050 = vpack.c.b16 %v2014, %v2010
    %v2051 = vpack.c.b16 %v2019, %v2015
    %v2052 = vpack.c.b16 %v2020, %v2016
    %v2053 = vpack.c.b16 %v2021, %v2017
    %v2054 = vpack.c.b16 %v2022, %v2018
    %2087 = vmatprep.subr.bf16.mxu0 %v2024
    %2088 = vmatpush1.bf16.msra.mxu0 %v2023
    %2089 = vmatprep.subr.bf16.mxu0 %v2028
    %2090 = vmatpush1.bf16.msra.mxu0 %v2027
    %2091 = vmatprep.subr.bf16.mxu0 %v2032
    %2092 = vmatpush1.bf16.msra.mxu0 %v2031
    %2093 = vmatprep.subr.bf16.mxu0 %v2036
    %2094 = vmatpush1.bf16.msra.mxu0 %v2035
    %2095 = vmatprep.subr.bf16.mxu0 %v2040
    %2096 = vmatpush1.bf16.msra.mxu0 %v2039
    %2097 = vmatprep.subr.bf16.mxu0 %v2044
    %2098 = vmatpush1.bf16.msra.mxu0 %v2043
    %2099 = vmatprep.subr.bf16.mxu0 %v2048
    %2100 = vmatpush1.bf16.msra.mxu0 %v2047
    %2101 = vmatprep.subr.bf16.mxu0 %v2052
    %2102 = vmatpush1.bf16.msra.mxu0 %v2051
    %2103 = vmatprep.subr.bf16.mxu0 0
    %2104 = vmatpush1.bf16.msra.mxu0 0
    %2105 = vmatprep.subr.bf16.mxu0 0
    %2106 = vmatpush1.bf16.msra.mxu0 0
    %2107 = vmatprep.subr.bf16.mxu0 0
    %2108 = vmatpush1.bf16.msra.mxu0 0
    %2109 = vmatprep.subr.bf16.mxu0 0
    %2110 = vmatpush1.bf16.msra.mxu0 0
    %2111 = vmatprep.subr.bf16.mxu0 0
    %2112 = vmatpush1.bf16.msra.mxu0 0
    %2113 = vmatprep.subr.bf16.mxu0 0
    %2114 = vmatpush1.bf16.msra.mxu0 0
    %2115 = vmatprep.subr.bf16.mxu0 0
    %2116 = vmatpush1.bf16.msra.mxu0 0
    %2117 = vmatprep.subr.bf16.mxu0 0
    %2118 = vmatpush1.bf16.msra.mxu0 0
    %2119 = vmatprep.mubr.bf16.mxu0 0
    %2120 = vmatmul.mubr.bf16.gmra.mrb[0].mxu0 %v1905
    %v2121 = vpop.f32.mrb[0].mxu0
    %v2122 = vadd.f32 %v1910, %v2121
    %v2123 = vpop.f32.mrb[0].mxu0
    %v2124 = vadd.f32 %v1914, %v2123
    %v2125 = vpop.f32.mrb[0].mxu0
    %v2126 = vpop.f32.mrb[0].mxu0
    %2127 = vdwg.mxu0
    %2128 = vmatprep.subr.bf16.mxu0 %v2026
    %2129 = vmatpush1.bf16.msra.mxu0 %v2025
    %2130 = vmatprep.subr.bf16.mxu0 %v2030
    %2131 = vmatpush1.bf16.msra.mxu0 %v2029
    %2132 = vmatprep.subr.bf16.mxu0 %v2034
    %2133 = vmatpush1.bf16.msra.mxu0 %v2033
    %2134 = vmatprep.subr.bf16.mxu0 %v2038
    %2135 = vmatpush1.bf16.msra.mxu0 %v2037
    %2136 = vmatprep.subr.bf16.mxu0 %v2042
    %2137 = vmatpush1.bf16.msra.mxu0 %v2041
    %2138 = vmatprep.subr.bf16.mxu0 %v2046
    %2139 = vmatpush1.bf16.msra.mxu0 %v2045
    %2140 = vmatprep.subr.bf16.mxu0 %v2050
    %2141 = vmatpush1.bf16.msra.mxu0 %v2049
    %2142 = vmatprep.subr.bf16.mxu0 %v2054
    %2143 = vmatpush1.bf16.msra.mxu0 %v2053
    %2144 = vmatprep.subr.bf16.mxu0 0
    %2145 = vmatpush1.bf16.msra.mxu0 0
    %2146 = vmatprep.subr.bf16.mxu0 0
    %2147 = vmatpush1.bf16.msra.mxu0 0
    %2148 = vmatprep.subr.bf16.mxu0 0
    %2149 = vmatpush1.bf16.msra.mxu0 0
    %2150 = vmatprep.subr.bf16.mxu0 0
    %2151 = vmatpush1.bf16.msra.mxu0 0
    %2152 = vmatprep.subr.bf16.mxu0 0
    %2153 = vmatpush1.bf16.msra.mxu0 0
    %2154 = vmatprep.subr.bf16.mxu0 0
    %2155 = vmatpush1.bf16.msra.mxu0 0
    %2156 = vmatprep.subr.bf16.mxu0 0
    %2157 = vmatpush1.bf16.msra.mxu0 0
    %2158 = vmatprep.subr.bf16.mxu0 0
    %2159 = vmatpush1.bf16.msra.mxu0 0
    %2160 = vmatprep.mubr.bf16.mxu0 0
    %2161 = vmatmul.mubr.bf16.gmra.mrb[0].mxu0 %v1905
    %v2162 = vpop.f32.mrb[0].mxu0
    %v2163 = vadd.f32 %v1918, %v2162
    %v2164 = vpop.f32.mrb[0].mxu0
    %v2165 = vadd.f32 %v1922, %v2164
    %v2166 = vpop.f32.mrb[0].mxu0
    %v2167 = vpop.f32.mrb[0].mxu0
    %2168 = vdwg.mxu0
    %v2169 = vmul.f32 %v2122, %v2122
    %v2170 = vmul.f32 %v2124, %v2124
    %v2171 = vmul.f32 %v2163, %v2163
    %v2172 = vmul.f32 %v2165, %v2165
    %v2173 = vmul.f32 %v2122, %v2169
    %v2174 = vmul.f32 %v2124, %v2170
    %v2175 = vmul.f32 %v2163, %v2171
    %v2176 = vmul.f32 %v2165, %v2172
    %v2177 = vmul.f32 %v2173, 0.044715
    %v2178 = vmul.f32 %v2174, 0.044715
    %v2179 = vmul.f32 %v2175, 0.044715
    %v2180 = vmul.f32 %v2176, 0.044715
    %v2181 = vadd.f32 %v2122, %v2177
    %v2182 = vadd.f32 %v2124, %v2178
    %v2183 = vadd.f32 %v2163, %v2179
    %v2184 = vadd.f32 %v2165, %v2180
    %v2185 = vmul.f32 %v2181, 0.7978846
    %v2186 = vmul.f32 %v2182, 0.7978846
    %v2187 = vmul.f32 %v2183, 0.7978846
    %v2188 = vmul.f32 %v2184, 0.7978846
    %v2189 = vtanh.pop %v2185
    %v2190 = vtanh.pop %v2186
    %v2191 = vtanh.pop %v2187
    %v2192 = vtanh.pop %v2188
    %v2193 = vadd.f32 %v2189, 1.0
    %v2194 = vadd.f32 %v2190, 1.0
    %v2195 = vadd.f32 %v2191, 1.0
    %v2196 = vadd.f32 %v2192, 1.0
    %v2197 = vmul.f32 %v2193, 0.5
    %v2198 = vmul.f32 %v2194, 0.5
    %v2199 = vmul.f32 %v2195, 0.5
    %v2200 = vmul.f32 %v2196, 0.5
    %v2201 = vmul.f32 %v2122, %v2197
    %v2202 = vmul.f32 %v2124, %v2198
    %v2203 = vmul.f32 %v2163, %v2199
    %v2204 = vmul.f32 %v2165, %v2200
    %v2205 = vpack.c.bf16 %v2201, %v2201
    %v2206 = vpack.c.bf16 %v2202, %v2202
    %v2207 = vpack.c.bf16 %v2203, %v2203
    %v2208 = vpack.c.bf16 %v2204, %v2204
    %v2210 = vlaneseq
    %v2211 = vshrl.u32 %v2210, 7
    %v2212 = vsub.s32 0, %v2211
    %v2213 = vrot.slane %v528, %v2212
    %v2279 = vunpack.c.l.b16 %v464
    %v2280 = vunpack.c.l.b16 %v465
    %v2281 = vunpack.c.l.b16 %v466
    %v2282 = vunpack.c.l.b16 %v467
    %v2283 = vunpack.c.l.b16 %v468
    %v2284 = vunpack.c.l.b16 %v469
    %v2285 = vunpack.c.l.b16 %v470
    %v2286 = vunpack.c.l.b16 %v471
    %v2287 = vunpack.c.l.b16 %v472
    %v2288 = vunpack.c.l.b16 %v473
    %v2289 = vunpack.c.l.b16 %v474
    %v2290 = vunpack.c.l.b16 %v475
    %v2291 = vunpack.c.l.b16 %v476
    %v2292 = vunpack.c.l.b16 %v477
    %v2293 = vunpack.c.l.b16 %v478
    %v2294 = vunpack.c.l.b16 %v479
    %v2295 = vunpack.c.l.b16 %v480
    %v2296 = vunpack.c.l.b16 %v481
    %v2297 = vunpack.c.l.b16 %v482
    %v2298 = vunpack.c.l.b16 %v483
    %v2299 = vunpack.c.l.b16 %v484
    %v2300 = vunpack.c.l.b16 %v485
    %v2301 = vunpack.c.l.b16 %v486
    %v2302 = vunpack.c.l.b16 %v487
    %v2303 = vunpack.c.l.b16 %v488
    %v2304 = vunpack.c.l.b16 %v489
    %v2305 = vunpack.c.l.b16 %v490
    %v2306 = vunpack.c.l.b16 %v491
    %v2307 = vunpack.c.l.b16 %v492
    %v2308 = vunpack.c.l.b16 %v493
    %v2309 = vunpack.c.l.b16 %v494
    %v2310 = vunpack.c.l.b16 %v495
    %v2311 = vunpack.c.l.b16 %v496
    %v2312 = vunpack.c.l.b16 %v497
    %v2313 = vunpack.c.l.b16 %v498
    %v2314 = vunpack.c.l.b16 %v499
    %v2315 = vunpack.c.l.b16 %v500
    %v2316 = vunpack.c.l.b16 %v501
    %v2317 = vunpack.c.l.b16 %v502
    %v2318 = vunpack.c.l.b16 %v503
    %v2319 = vunpack.c.l.b16 %v504
    %v2320 = vunpack.c.l.b16 %v505
    %v2321 = vunpack.c.l.b16 %v506
    %v2322 = vunpack.c.l.b16 %v507
    %v2323 = vunpack.c.l.b16 %v508
    %v2324 = vunpack.c.l.b16 %v509
    %v2325 = vunpack.c.l.b16 %v510
    %v2326 = vunpack.c.l.b16 %v511
    %v2327 = vunpack.c.l.b16 %v512
    %v2328 = vunpack.c.l.b16 %v513
    %v2329 = vunpack.c.l.b16 %v514
    %v2330 = vunpack.c.l.b16 %v515
    %v2331 = vunpack.c.l.b16 %v516
    %v2332 = vunpack.c.l.b16 %v517
    %v2333 = vunpack.c.l.b16 %v518
    %v2334 = vunpack.c.l.b16 %v519
    %v2335 = vunpack.c.l.b16 %v520
    %v2336 = vunpack.c.l.b16 %v521
    %v2337 = vunpack.c.l.b16 %v522
    %v2338 = vunpack.c.l.b16 %v523
    %v2339 = vunpack.c.l.b16 %v524
    %v2340 = vunpack.c.l.b16 %v525
    %v2341 = vunpack.c.l.b16 %v526
    %v2342 = vunpack.c.l.b16 %v527
    %v2343 = vpack.c.b16 %v2280, %v2279
    %v2344 = vpack.c.b16 %v2282, %v2281
    %v2345 = vpack.c.b16 %v2284, %v2283
    %v2346 = vpack.c.b16 %v2286, %v2285
    %v2347 = vpack.c.b16 %v2288, %v2287
    %v2348 = vpack.c.b16 %v2290, %v2289
    %v2349 = vpack.c.b16 %v2292, %v2291
    %v2350 = vpack.c.b16 %v2294, %v2293
    %v2351 = vpack.c.b16 %v2296, %v2295
    %v2352 = vpack.c.b16 %v2298, %v2297
    %v2353 = vpack.c.b16 %v2300, %v2299
    %v2354 = vpack.c.b16 %v2302, %v2301
    %v2355 = vpack.c.b16 %v2304, %v2303
    %v2356 = vpack.c.b16 %v2306, %v2305
    %v2357 = vpack.c.b16 %v2308, %v2307
    %v2358 = vpack.c.b16 %v2310, %v2309
    %v2359 = vpack.c.b16 %v2312, %v2311
    %v2360 = vpack.c.b16 %v2314, %v2313
    %v2361 = vpack.c.b16 %v2316, %v2315
    %v2362 = vpack.c.b16 %v2318, %v2317
    %v2363 = vpack.c.b16 %v2320, %v2319
    %v2364 = vpack.c.b16 %v2322, %v2321
    %v2365 = vpack.c.b16 %v2324, %v2323
    %v2366 = vpack.c.b16 %v2326, %v2325
    %v2367 = vpack.c.b16 %v2328, %v2327
    %v2368 = vpack.c.b16 %v2330, %v2329
    %v2369 = vpack.c.b16 %v2332, %v2331
    %v2370 = vpack.c.b16 %v2334, %v2333
    %v2371 = vpack.c.b16 %v2336, %v2335
    %v2372 = vpack.c.b16 %v2338, %v2337
    %v2373 = vpack.c.b16 %v2340, %v2339
    %v2374 = vpack.c.b16 %v2342, %v2341
    %2407 = vmatprep.subr.bf16.mxu0 0
    %2408 = vmatpush1.bf16.msra.mxu0 %v2343
    %2409 = vmatprep.subr.bf16.mxu0 0
    %2410 = vmatpush1.bf16.msra.mxu0 %v2344
    %2411 = vmatprep.subr.bf16.mxu0 0
    %2412 = vmatpush1.bf16.msra.mxu0 %v2345
    %2413 = vmatprep.subr.bf16.mxu0 0
    %2414 = vmatpush1.bf16.msra.mxu0 %v2346
    %2415 = vmatprep.subr.bf16.mxu0 0
    %2416 = vmatpush1.bf16.msra.mxu0 %v2347
    %2417 = vmatprep.subr.bf16.mxu0 0
    %2418 = vmatpush1.bf16.msra.mxu0 %v2348
    %2419 = vmatprep.subr.bf16.mxu0 0
    %2420 = vmatpush1.bf16.msra.mxu0 %v2349
    %2421 = vmatprep.subr.bf16.mxu0 0
    %2422 = vmatpush1.bf16.msra.mxu0 %v2350
    %2423 = vmatprep.subr.bf16.mxu0 0
    %2424 = vmatpush1.bf16.msra.mxu0 %v2351
    %2425 = vmatprep.subr.bf16.mxu0 0
    %2426 = vmatpush1.bf16.msra.mxu0 %v2352
    %2427 = vmatprep.subr.bf16.mxu0 0
    %2428 = vmatpush1.bf16.msra.mxu0 %v2353
    %2429 = vmatprep.subr.bf16.mxu0 0
    %2430 = vmatpush1.bf16.msra.mxu0 %v2354
    %2431 = vmatprep.subr.bf16.mxu0 0
    %2432 = vmatpush1.bf16.msra.mxu0 %v2355
    %2433 = vmatprep.subr.bf16.mxu0 0
    %2434 = vmatpush1.bf16.msra.mxu0 %v2356
    %2435 = vmatprep.subr.bf16.mxu0 0
    %2436 = vmatpush1.bf16.msra.mxu0 %v2357
    %2437 = vmatprep.subr.bf16.mxu0 0
    %2438 = vmatpush1.bf16.msra.mxu0 %v2358
    %2439 = vmatprep.mubr.bf16.mxu0 %v2206
    %2440 = vmatmul.mubr.bf16.gmra.mrb[0].mxu0 %v2205
    %v2441 = vpop.f32.mrb[0].mxu0
    %v2442 = vadd.f32 %v2213, %v2441
    %v2443 = vpop.f32.mrb[0].mxu0
    %v2444 = vpop.f32.mrb[0].mxu0
    %v2445 = vpop.f32.mrb[0].mxu0
    %2446 = vdwg.mxu0
    %2447 = vmatprep.subr.bf16.mxu0 0
    %2448 = vmatpush1.bf16.msra.mxu0 %v2359
    %2449 = vmatprep.subr.bf16.mxu0 0
    %2450 = vmatpush1.bf16.msra.mxu0 %v2360
    %2451 = vmatprep.subr.bf16.mxu0 0
    %2452 = vmatpush1.bf16.msra.mxu0 %v2361
    %2453 = vmatprep.subr.bf16.mxu0 0
    %2454 = vmatpush1.bf16.msra.mxu0 %v2362
    %2455 = vmatprep.subr.bf16.mxu0 0
    %2456 = vmatpush1.bf16.msra.mxu0 %v2363
    %2457 = vmatprep.subr.bf16.mxu0 0
    %2458 = vmatpush1.bf16.msra.mxu0 %v2364
    %2459 = vmatprep.subr.bf16.mxu0 0
    %2460 = vmatpush1.bf16.msra.mxu0 %v2365
    %2461 = vmatprep.subr.bf16.mxu0 0
    %2462 = vmatpush1.bf16.msra.mxu0 %v2366
    %2463 = vmatprep.subr.bf16.mxu0 0
    %2464 = vmatpush1.bf16.msra.mxu0 %v2367
    %2465 = vmatprep.subr.bf16.mxu0 0
    %2466 = vmatpush1.bf16.msra.mxu0 %v2368
    %2467 = vmatprep.subr.bf16.mxu0 0
    %2468 = vmatpush1.bf16.msra.mxu0 %v2369
    %2469 = vmatprep.subr.bf16.mxu0 0
    %2470 = vmatpush1.bf16.msra.mxu0 %v2370
    %2471 = vmatprep.subr.bf16.mxu0 0
    %2472 = vmatpush1.bf16.msra.mxu0 %v2371
    %2473 = vmatprep.subr.bf16.mxu0 0
    %2474 = vmatpush1.bf16.msra.mxu0 %v2372
    %2475 = vmatprep.subr.bf16.mxu0 0
    %2476 = vmatpush1.bf16.msra.mxu0 %v2373
    %2477 = vmatprep.subr.bf16.mxu0 0
    %2478 = vmatpush1.bf16.msra.mxu0 %v2374
    %2479 = vmatprep.mubr.bf16.mxu0 %v2208
    %2480 = vmatmul.mubr.bf16.gmra.mrb[0].mxu0 %v2207
    %v2481 = vpop.f32.mrb[0].mxu0
    %v2482 = vadd.f32 %v2442, %v2481
    %v2483 = vpop.f32.mrb[0].mxu0
    %v2484 = vpop.f32.mrb[0].mxu0
    %v2485 = vpop.f32.mrb[0].mxu0
    %2486 = vdwg.mxu0
    %v2487 = vadd.f32 %v1876, %v2482
    %v2489 = vcombine.high %v2487, %v2487
    %v2491 = vadd.f32 %v375, %v2487
    %v2492 = vadd.f32 %v376, %v2489
    %v2493 = vld [vmem:[#allocation16] sm:$0x1]
    %v2494 = vld [vmem:[#allocation18] sm:$0x1]
    %v2497 = vcombine.low %v2491, %v2492
    %2499 = vadd.xlane.f32.xlu0 %v2497
    %v2500 = vpop.xlane.xlu0 %2499
    %v2501 = vmul.f32 %v2500, %v535
    %v2504 = vunpack.c.l.s4 839922192
    %v2505 = vunpack.c.0.s8 %v2504
    %v2506 = vlaneseq
    %v2507 = vshrl.u32 %v2506, 7
    %v2508 = vsub.s32 %v2505, %v2507
    %v2509 = vrot.slane %v2501, %v2508
    %v2511 = vunpack.c.l.s4 1985246804
    %v2512 = vunpack.c.0.s8 %v2511
    %v2513 = vlaneseq
    %v2514 = vshrl.u32 %v2513, 7
    %v2515 = vsub.s32 %v2512, %v2514
    %v2516 = vrot.slane %v2501, %v2515
    %v2519 = vsub.f32 %v2491, %v2509
    %v2520 = vsub.f32 %v2492, %v2516
    %v2521 = vmul.f32 %v2519, %v2519
    %v2522 = vmul.f32 %v2520, %v2520
    %v2525 = vcombine.low %v2521, %v2522
    %2527 = vadd.xlane.f32.xlu0 %v2525
    %v2528 = vpop.xlane.xlu0 %2527
    %v2529 = vmul.f32 %v2528, %v535
    %v2530 = vadd.f32 %v2529, 1e-05
    %v2531 = vrsqrt.pop %v2530
    %v2534 = vunpack.c.l.s4 839922192
    %v2535 = vunpack.c.0.s8 %v2534
    %v2536 = vlaneseq
    %v2537 = vshrl.u32 %v2536, 7
    %v2538 = vsub.s32 %v2535, %v2537
    %v2539 = vrot.slane %v2531, %v2538
    %v2541 = vunpack.c.l.s4 1985246804
    %v2542 = vunpack.c.0.s8 %v2541
    %v2543 = vlaneseq
    %v2544 = vshrl.u32 %v2543, 7
    %v2545 = vsub.s32 %v2542, %v2544
    %v2546 = vrot.slane %v2531, %v2545
    %v2549 = vmul.f32 %v2519, %v2539
    %v2550 = vmul.f32 %v2520, %v2546
    %v2552 = vlaneseq
    %v2553 = vshrl.u32 %v2552, 7
    %v2554 = vsub.s32 0, %v2553
    %v2555 = vrot.slane %v2493, %v2554
    %v2557 = vcombine.high %v2555, %v2555
    %v2559 = vmul.f32 %v2549, %v2555
    %v2560 = vmul.f32 %v2550, %v2557
    %v2562 = vlaneseq
    %v2563 = vshrl.u32 %v2562, 7
    %v2564 = vsub.s32 0, %v2563
    %v2565 = vrot.slane %v2494, %v2564
    %v2567 = vcombine.high %v2565, %v2565
    %v2569 = vadd.f32 %v2559, %v2565
    %v2570 = vadd.f32 %v2560, %v2567
    %v2573 = vcombine.low %v2569, %v2570
    %v2575 = vpack.c.bf16 %v2573, %v2573
    %v2576 = vld [vmem:[#allocation19] sm:$0xf]
    %v2577 = vld [vmem:[#allocation19 + $0x4] sm:$0xf]
    %v2578 = vld [vmem:[#allocation19 + $0x8] sm:$0xf]
    %v2579 = vld [vmem:[#allocation19 + $0xc] sm:$0xf]
    %v2580 = vld [vmem:[#allocation19 + $0x10] sm:$0xf]
    %v2581 = vld [vmem:[#allocation19 + $0x14] sm:$0xf]
    %v2582 = vld [vmem:[#allocation19 + $0x18] sm:$0xf]
    %v2583 = vld [vmem:[#allocation19 + $0x1c] sm:$0xf]
    %v2584 = vld [vmem:[#allocation19 + $0x20] sm:$0xf]
    %v2585 = vld [vmem:[#allocation19 + $0x24] sm:$0xf]
    %v2586 = vld [vmem:[#allocation19 + $0x28] sm:$0xf]
    %v2587 = vld [vmem:[#allocation19 + $0x2c] sm:$0xf]
    %v2588 = vld [vmem:[#allocation19 + $0x30] sm:$0xf]
    %v2589 = vld [vmem:[#allocation19 + $0x34] sm:$0xf]
    %v2590 = vld [vmem:[#allocation19 + $0x38] sm:$0xf]
    %v2591 = vld [vmem:[#allocation19 + $0x3c] sm:$0xf]
    %v2592 = vld [vmem:[#allocation21] sm:$0x1]
    %v2594 = vlaneseq
    %v2595 = vshrl.u32 %v2594, 7
    %v2596 = vsub.s32 0, %v2595
    %v2597 = vrot.slane %v2592, %v2596
    %v2615 = vunpack.c.l.b16 %v2576
    %v2616 = vunpack.c.l.b16 %v2577
    %v2617 = vunpack.c.l.b16 %v2578
    %v2618 = vunpack.c.l.b16 %v2579
    %v2619 = vunpack.c.l.b16 %v2580
    %v2620 = vunpack.c.l.b16 %v2581
    %v2621 = vunpack.c.l.b16 %v2582
    %v2622 = vunpack.c.l.b16 %v2583
    %v2623 = vunpack.c.l.b16 %v2584
    %v2624 = vunpack.c.l.b16 %v2585
    %v2625 = vunpack.c.l.b16 %v2586
    %v2626 = vunpack.c.l.b16 %v2587
    %v2627 = vunpack.c.l.b16 %v2588
    %v2628 = vunpack.c.l.b16 %v2589
    %v2629 = vunpack.c.l.b16 %v2590
    %v2630 = vunpack.c.l.b16 %v2591
    %v2631 = vpack.c.b16 %v2616, %v2615
    %v2632 = vpack.c.b16 %v2618, %v2617
    %v2633 = vpack.c.b16 %v2620, %v2619
    %v2634 = vpack.c.b16 %v2622, %v2621
    %v2635 = vpack.c.b16 %v2624, %v2623
    %v2636 = vpack.c.b16 %v2626, %v2625
    %v2637 = vpack.c.b16 %v2628, %v2627
    %v2638 = vpack.c.b16 %v2630, %v2629
    %2647 = vmatprep.subr.bf16.mxu0 0
    %2648 = vmatpush1.bf16.msra.mxu0 %v2631
    %2649 = vmatprep.subr.bf16.mxu0 0
    %2650 = vmatpush1.bf16.msra.mxu0 %v2632
    %2651 = vmatprep.subr.bf16.mxu0 0
    %2652 = vmatpush1.bf16.msra.mxu0 %v2633
    %2653 = vmatprep.subr.bf16.mxu0 0
    %2654 = vmatpush1.bf16.msra.mxu0 %v2634
    %2655 = vmatprep.subr.bf16.mxu0 0
    %2656 = vmatpush1.bf16.msra.mxu0 %v2635
    %2657 = vmatprep.subr.bf16.mxu0 0
    %2658 = vmatpush1.bf16.msra.mxu0 %v2636
    %2659 = vmatprep.subr.bf16.mxu0 0
    %2660 = vmatpush1.bf16.msra.mxu0 %v2637
    %2661 = vmatprep.subr.bf16.mxu0 0
    %2662 = vmatpush1.bf16.msra.mxu0 %v2638
    %2663 = vmatprep.subr.bf16.mxu0 0
    %2664 = vmatpush1.bf16.msra.mxu0 0
    %2665 = vmatprep.subr.bf16.mxu0 0
    %2666 = vmatpush1.bf16.msra.mxu0 0
    %2667 = vmatprep.subr.bf16.mxu0 0
    %2668 = vmatpush1.bf16.msra.mxu0 0
    %2669 = vmatprep.subr.bf16.mxu0 0
    %2670 = vmatpush1.bf16.msra.mxu0 0
    %2671 = vmatprep.subr.bf16.mxu0 0
    %2672 = vmatpush1.bf16.msra.mxu0 0
    %2673 = vmatprep.subr.bf16.mxu0 0
    %2674 = vmatpush1.bf16.msra.mxu0 0
    %2675 = vmatprep.subr.bf16.mxu0 0
    %2676 = vmatpush1.bf16.msra.mxu0 0
    %2677 = vmatprep.subr.bf16.mxu0 0
    %2678 = vmatpush1.bf16.msra.mxu0 0
    %2679 = vmatprep.mubr.bf16.mxu0 0
    %2680 = vmatmul.mubr.bf16.gmra.mrb[0].mxu0 %v2575
    %v2681 = vpop.f32.mrb[0].mxu0
    %v2682 = vadd.f32 %v2597, %v2681
    %v2683 = vpop.f32.mrb[0].mxu0
    %v2684 = vpop.f32.mrb[0].mxu0
    %v2685 = vpop.f32.mrb[0].mxu0
    %2686 = vdwg.mxu0
    %v2688 = vcombine.high %v2682, %v2682
    %2690 = vst [vmem:[%s20] sm:$0xf] %v2682
    %2691 = vst [vmem:[%s20 + $0x4] sm:$0xf] %v2688
    // Predicated region
    $region134: #{unified_tinyvla_forward.3} parent=1 // pred_check
      _
    $region135: #{unified_tinyvla_forward.3} parent=1 // pred_check_branch
      %2693 = sbr.rel (0) target = $region137
    $region136: #{unified_tinyvla_forward.3} parent=1 // pred_region
      _
    $region137: #{unified_tinyvla_forward.3} parent=1 // pred_fallthru
      _
    // Predicated region
    $region138: #{unified_tinyvla_forward.3} parent=1 // pred_check
      _
    $region139: #{unified_tinyvla_forward.3} parent=1 // pred_check_branch
      %2695 = sbr.rel (0) target = $region141
    $region140: #{unified_tinyvla_forward.3} parent=1 // pred_region
      _
    $region141: #{unified_tinyvla_forward.3} parent=1 // pred_fallthru
      _
    %2696 = vsyncpa [#allocation3], 1
    %2697 = vsyncpa [#allocation5], 1
    %2698 = vsyncpa [#allocation8], 1
    %2699 = vsyncpa [#allocation11], 1
    %2700 = vsyncpa [#allocation14], 1
    %2701 = vsyncpa [#allocation17], 1
    %2702 = vsyncpa [#allocation20], 1

// kernel: unified_tinyvla_forward.4
$region0: #{unified_tinyvla_forward.4}
  #allocation0 [shape = 'u32[]', space=smem, size = 0x4, offset = 0x4, fixed_abs, tag = 'smem constant byte address 0x4 - core index']
  #allocation1 [shape = 'u32[144,128]{1,0:T(1,128)}', space=vmem, size = 0x12000, scoped, tag = 'internal scratch']
  %s0 = inlined_call_operand.vmem [shape: f32[2,12,128], index: 0, kind: input, shape index: {}]
  %s1 = inlined_call_operand.hbm [shape: f32[12,128], index: 1, kind: input, shape index: {}]
  %s2 = inlined_call_operand.vmem [shape: f32[2,12,12], index: 2, kind: input, shape index: {}]
  %s3 = inlined_call_operand.vmem [shape: f32[2,1,128], index: 3, kind: input, shape index: {}]
  %s4 = inlined_call_operand.hbm [shape: f32[2,1,128], index: 4, kind: input, shape index: {}]
  %s5 = inlined_call_operand.vmem [shape: bf16[2,128,384], index: 5, kind: input, shape index: {}]
  %s6 = inlined_call_operand.hbm [shape: f32[2,1,384], index: 6, kind: input, shape index: {}]
  %s7 = inlined_call_operand.hbm [shape: bf16[2,128,128], index: 7, kind: input, shape index: {}]
  %s8 = inlined_call_operand.hbm [shape: f32[2,1,128], index: 8, kind: input, shape index: {}]
  %s9 = inlined_call_operand.hbm [shape: f32[2,1,128], index: 9, kind: input, shape index: {}]
  %s10 = inlined_call_operand.hbm [shape: f32[2,1,128], index: 10, kind: input, shape index: {}]
  %s11 = inlined_call_operand.vmem [shape: bf16[2,128,512], index: 11, kind: input, shape index: {}]
  %s12 = inlined_call_operand.hbm [shape: f32[2,1,512], index: 12, kind: input, shape index: {}]
  %s13 = inlined_call_operand.vmem [shape: bf16[2,512,128], index: 13, kind: input, shape index: {}]
  %s14 = inlined_call_operand.hbm [shape: f32[2,1,128], index: 14, kind: input, shape index: {}]
  %s15 = inlined_call_operand.vmem [shape: f32[2,12,128], index: 15, kind: output, shape index: {}]
  %s16 = sld [smem:[#allocation0]]
  $region106: #{unified_tinyvla_forward.4} parent=0
    _
  %s18 = ssub.s32 1, %s16
  %s19 = scalar_select 0, %s18, %s16
  $region1: #{unified_tinyvla_forward.4} parent=0
    #allocation2 [shape = 'u8[8192]{0}', space=vmem, size = 0x2000, scoped, tag = 'input window, operand 1, single buffered']
    #allocation3 [shape = 's32[1]{0}', space=sflag, size = 0x4, scoped, tag = 'scoped memory for unified_tinyvla_forward.4']
    #allocation4 [shape = 'u8[1024]{0}', space=vmem, size = 0x400, scoped, tag = 'input window, operand 4, single buffered']
    #allocation5 [shape = 's32[1]{0}', space=sflag, size = 0x4, scoped, tag = 'scoped memory for unified_tinyvla_forward.4']
    #allocation6 [shape = 'u8[3072]{0}', space=vmem, size = 0xc00, scoped, tag = 'input window, operand 6, single buffered']
    #allocation7 [shape = 'u8[65536]{0}', space=vmem, size = 0x10000, scoped, tag = 'input window, operand 7, single buffered']
    #allocation8 [shape = 's32[1]{0}', space=sflag, size = 0x4, scoped, tag = 'scoped memory for unified_tinyvla_forward.4']
    #allocation9 [shape = 'u8[1024]{0}', space=vmem, size = 0x400, scoped, tag = 'input window, operand 8, single buffered']
    #allocation10 [shape = 'u8[1024]{0}', space=vmem, size = 0x400, scoped, tag = 'input window, operand 9, single buffered']
    #allocation11 [shape = 's32[1]{0}', space=sflag, size = 0x4, scoped, tag = 'scoped memory for unified_tinyvla_forward.4']
    #allocation12 [shape = 'u8[1024]{0}', space=vmem, size = 0x400, scoped, tag = 'input window, operand 10, single buffered']
    #allocation13 [shape = 'u8[4096]{0}', space=vmem, size = 0x1000, scoped, tag = 'input window, operand 12, single buffered']
    #allocation14 [shape = 's32[1]{0}', space=sflag, size = 0x4, scoped, tag = 'scoped memory for unified_tinyvla_forward.4']
    #allocation15 [shape = 'u8[1024]{0}', space=vmem, size = 0x400, scoped, tag = 'input window, operand 14, single buffered']
    %20 = vsyncpa [#allocation3], 0
    %21 = vsyncpa [#allocation5], 0
    %22 = vsyncpa [#allocation8], 0
    %23 = vsyncpa [#allocation11], 0
    %24 = vsyncpa [#allocation14], 0
    // Predicated region
    $region2: #{unified_tinyvla_forward.4} parent=1 // pred_check
      _
    $region3: #{unified_tinyvla_forward.4} parent=1 // pred_check_branch
      %26 = sbr.rel (0) target = $region5
    $region4: #{unified_tinyvla_forward.4} parent=1 // pred_region
      _
    $region5: #{unified_tinyvla_forward.4} parent=1 // pred_fallthru
      _
    // Predicated region
    $region6: #{unified_tinyvla_forward.4} parent=1 // pred_check
      _
    $region7: #{unified_tinyvla_forward.4} parent=1 // pred_check_branch
      %28 = sbr.rel (0) target = $region9
    $region8: #{unified_tinyvla_forward.4} parent=1 // pred_region
      %s30 = ssub.s32 256, 256
      %31 = vsyncadd [#allocation3], %s30
      %s32 = sshll.u32 [#allocation2], 4
      %s33 = int_to_ptr.vmem [resolvable:$true] %s32
      %38 = dma.hbm_to_vmem [thread:$0]  %s1, 256, %s33, [#allocation3], 128, 128, 8
    $region9: #{unified_tinyvla_forward.4} parent=1 // pred_fallthru
      _
    // Predicated region
    $region10: #{unified_tinyvla_forward.4} parent=1 // pred_check
      _
    $region11: #{unified_tinyvla_forward.4} parent=1 // pred_check_branch
      %40 = sbr.rel (0) target = $region13
    $region12: #{unified_tinyvla_forward.4} parent=1 // pred_region
      _
    $region13: #{unified_tinyvla_forward.4} parent=1 // pred_fallthru
      _
    // Predicated region
    $region14: #{unified_tinyvla_forward.4} parent=1 // pred_check
      _
    $region15: #{unified_tinyvla_forward.4} parent=1 // pred_check_branch
      %42 = sbr.rel (0) target = $region17
    $region16: #{unified_tinyvla_forward.4} parent=1 // pred_region
      _
    $region17: #{unified_tinyvla_forward.4} parent=1 // pred_fallthru
      _
    // Predicated region
    $region18: #{unified_tinyvla_forward.4} parent=1 // pred_check
      _
    $region19: #{unified_tinyvla_forward.4} parent=1 // pred_check_branch
      %44 = sbr.rel (0) target = $region21
    $region20: #{unified_tinyvla_forward.4} parent=1 // pred_region
      %s46 = ssub.s32 32, 32
      %47 = vsyncadd [#allocation5], %s46
      %s48 = sshll.u32 [#allocation4], 4
      %s49 = int_to_ptr.vmem [resolvable:$true] %s48
      %54 = dma.hbm_to_vmem [thread:$0]  %s4, 32, %s49, [#allocation5], 16, 16, 1
    $region21: #{unified_tinyvla_forward.4} parent=1 // pred_fallthru
      _
    // Predicated region
    $region22: #{unified_tinyvla_forward.4} parent=1 // pred_check
      _
    $region23: #{unified_tinyvla_forward.4} parent=1 // pred_check_branch
      %56 = sbr.rel (0) target = $region25
    $region24: #{unified_tinyvla_forward.4} parent=1 // pred_region
      _
    $region25: #{unified_tinyvla_forward.4} parent=1 // pred_fallthru
      _
    // Predicated region
    $region26: #{unified_tinyvla_forward.4} parent=1 // pred_check
      _
    $region27: #{unified_tinyvla_forward.4} parent=1 // pred_check_branch
      %58 = sbr.rel (0) target = $region29
    $region28: #{unified_tinyvla_forward.4} parent=1 // pred_region
      %s60 = ssub.s32 96, 96
      %61 = vsyncadd [#allocation5], %s60
      %s62 = sshll.u32 [#allocation6], 4
      %s63 = int_to_ptr.vmem [resolvable:$true] %s62
      %68 = dma.hbm_to_vmem [thread:$0]  %s6, 96, %s63, [#allocation5], 48, 48, 3
    $region29: #{unified_tinyvla_forward.4} parent=1 // pred_fallthru
      _
    // Predicated region
    $region30: #{unified_tinyvla_forward.4} parent=1 // pred_check
      _
    $region31: #{unified_tinyvla_forward.4} parent=1 // pred_check_branch
      %70 = sbr.rel (0) target = $region33
    $region32: #{unified_tinyvla_forward.4} parent=1 // pred_region
      %s72 = ssub.s32 2048, 2048
      %73 = vsyncadd [#allocation8], %s72
      %s74 = sshll.u32 [#allocation7], 4
      %s75 = int_to_ptr.vmem [resolvable:$true] %s74
      %80 = dma.hbm_to_vmem [thread:$0]  %s7, 2048, %s75, [#allocation8], 64, 64, 4
    $region33: #{unified_tinyvla_forward.4} parent=1 // pred_fallthru
      _
    // Predicated region
    $region34: #{unified_tinyvla_forward.4} parent=1 // pred_check
      _
    $region35: #{unified_tinyvla_forward.4} parent=1 // pred_check_branch
      %82 = sbr.rel (0) target = $region37
    $region36: #{unified_tinyvla_forward.4} parent=1 // pred_region
      %s84 = ssub.s32 32, 32
      %85 = vsyncadd [#allocation8], %s84
      %s86 = sshll.u32 [#allocation9], 4
      %s87 = int_to_ptr.vmem [resolvable:$true] %s86
      %92 = dma.hbm_to_vmem [thread:$0]  %s8, 32, %s87, [#allocation8], 16, 16, 1
    $region37: #{unified_tinyvla_forward.4} parent=1 // pred_fallthru
      _
    // Predicated region
    $region38: #{unified_tinyvla_forward.4} parent=1 // pred_check
      _
    $region39: #{unified_tinyvla_forward.4} parent=1 // pred_check_branch
      %94 = sbr.rel (0) target = $region41
    $region40: #{unified_tinyvla_forward.4} parent=1 // pred_region
      %s96 = ssub.s32 32, 32
      %97 = vsyncadd [#allocation11], %s96
      %s98 = sshll.u32 [#allocation10], 4
      %s99 = int_to_ptr.vmem [resolvable:$true] %s98
      %104 = dma.hbm_to_vmem [thread:$0]  %s9, 32, %s99, [#allocation11], 16, 16, 1
    $region41: #{unified_tinyvla_forward.4} parent=1 // pred_fallthru
      _
    // Predicated region
    $region42: #{unified_tinyvla_forward.4} parent=1 // pred_check
      _
    $region43: #{unified_tinyvla_forward.4} parent=1 // pred_check_branch
      %106 = sbr.rel (0) target = $region45
    $region44: #{unified_tinyvla_forward.4} parent=1 // pred_region
      %s108 = ssub.s32 32, 32
      %109 = vsyncadd [#allocation11], %s108
      %s110 = sshll.u32 [#allocation12], 4
      %s111 = int_to_ptr.vmem [resolvable:$true] %s110
      %116 = dma.hbm_to_vmem [thread:$0]  %s10, 32, %s111, [#allocation11], 16, 16, 1
    $region45: #{unified_tinyvla_forward.4} parent=1 // pred_fallthru
      _
    // Predicated region
    $region46: #{unified_tinyvla_forward.4} parent=1 // pred_check
      _
    $region47: #{unified_tinyvla_forward.4} parent=1 // pred_check_branch
      %118 = sbr.rel (0) target = $region49
    $region48: #{unified_tinyvla_forward.4} parent=1 // pred_region
      _
    $region49: #{unified_tinyvla_forward.4} parent=1 // pred_fallthru
      _
    // Predicated region
    $region50: #{unified_tinyvla_forward.4} parent=1 // pred_check
      _
    $region51: #{unified_tinyvla_forward.4} parent=1 // pred_check_branch
      %120 = sbr.rel (0) target = $region53
    $region52: #{unified_tinyvla_forward.4} parent=1 // pred_region
      %s122 = ssub.s32 128, 128
      %123 = vsyncadd [#allocation14], %s122
      %s124 = sshll.u32 [#allocation13], 4
      %s125 = int_to_ptr.vmem [resolvable:$true] %s124
      %130 = dma.hbm_to_vmem [thread:$0]  %s12, 128, %s125, [#allocation14], 64, 64, 4
    $region53: #{unified_tinyvla_forward.4} parent=1 // pred_fallthru
      _
    // Predicated region
    $region54: #{unified_tinyvla_forward.4} parent=1 // pred_check
      _
    $region55: #{unified_tinyvla_forward.4} parent=1 // pred_check_branch
      %132 = sbr.rel (0) target = $region57
    $region56: #{unified_tinyvla_forward.4} parent=1 // pred_region
      _
    $region57: #{unified_tinyvla_forward.4} parent=1 // pred_fallthru
      _
    // Predicated region
    $region58: #{unified_tinyvla_forward.4} parent=1 // pred_check
      _
    $region59: #{unified_tinyvla_forward.4} parent=1 // pred_check_branch
      %134 = sbr.rel (0) target = $region61
    $region60: #{unified_tinyvla_forward.4} parent=1 // pred_region
      %s136 = ssub.s32 32, 32
      %137 = vsyncadd [#allocation14], %s136
      %s138 = sshll.u32 [#allocation15], 4
      %s139 = int_to_ptr.vmem [resolvable:$true] %s138
      %144 = dma.hbm_to_vmem [thread:$0]  %s14, 32, %s139, [#allocation14], 16, 16, 1
    $region61: #{unified_tinyvla_forward.4} parent=1 // pred_fallthru
      _
    // Predicated region
    $region62: #{unified_tinyvla_forward.4} parent=1 // pred_check
      _
    $region63: #{unified_tinyvla_forward.4} parent=1 // pred_check_branch
      %146 = sbr.rel (0) target = $region65
    $region64: #{unified_tinyvla_forward.4} parent=1 // pred_region
      %147 = dma.done [#allocation3], 256
    $region65: #{unified_tinyvla_forward.4} parent=1 // pred_fallthru
      _
    // Predicated region
    $region66: #{unified_tinyvla_forward.4} parent=1 // pred_check
      _
    $region67: #{unified_tinyvla_forward.4} parent=1 // pred_check_branch
      %149 = sbr.rel (0) target = $region69
    $region68: #{unified_tinyvla_forward.4} parent=1 // pred_region
      %150 = dma.done [#allocation5], 32
    $region69: #{unified_tinyvla_forward.4} parent=1 // pred_fallthru
      _
    // Predicated region
    $region70: #{unified_tinyvla_forward.4} parent=1 // pred_check
      _
    $region71: #{unified_tinyvla_forward.4} parent=1 // pred_check_branch
      %152 = sbr.rel (0) target = $region73
    $region72: #{unified_tinyvla_forward.4} parent=1 // pred_region
      %153 = dma.done [#allocation5], 96
    $region73: #{unified_tinyvla_forward.4} parent=1 // pred_fallthru
      _
    // Predicated region
    $region74: #{unified_tinyvla_forward.4} parent=1 // pred_check
      _
    $region75: #{unified_tinyvla_forward.4} parent=1 // pred_check_branch
      %155 = sbr.rel (0) target = $region77
    $region76: #{unified_tinyvla_forward.4} parent=1 // pred_region
      %156 = dma.done [#allocation8], 2048
    $region77: #{unified_tinyvla_forward.4} parent=1 // pred_fallthru
      _
    // Predicated region
    $region78: #{unified_tinyvla_forward.4} parent=1 // pred_check
      _
    $region79: #{unified_tinyvla_forward.4} parent=1 // pred_check_branch
      %158 = sbr.rel (0) target = $region81
    $region80: #{unified_tinyvla_forward.4} parent=1 // pred_region
      %159 = dma.done [#allocation8], 32
    $region81: #{unified_tinyvla_forward.4} parent=1 // pred_fallthru
      _
    // Predicated region
    $region82: #{unified_tinyvla_forward.4} parent=1 // pred_check
      _
    $region83: #{unified_tinyvla_forward.4} parent=1 // pred_check_branch
      %161 = sbr.rel (0) target = $region85
    $region84: #{unified_tinyvla_forward.4} parent=1 // pred_region
      %162 = dma.done [#allocation11], 32
    $region85: #{unified_tinyvla_forward.4} parent=1 // pred_fallthru
      _
    // Predicated region
    $region86: #{unified_tinyvla_forward.4} parent=1 // pred_check
      _
    $region87: #{unified_tinyvla_forward.4} parent=1 // pred_check_branch
      %164 = sbr.rel (0) target = $region89
    $region88: #{unified_tinyvla_forward.4} parent=1 // pred_region
      %165 = dma.done [#allocation11], 32
    $region89: #{unified_tinyvla_forward.4} parent=1 // pred_fallthru
      _
    // Predicated region
    $region90: #{unified_tinyvla_forward.4} parent=1 // pred_check
      _
    $region91: #{unified_tinyvla_forward.4} parent=1 // pred_check_branch
      %167 = sbr.rel (0) target = $region93
    $region92: #{unified_tinyvla_forward.4} parent=1 // pred_region
      %168 = dma.done [#allocation14], 128
    $region93: #{unified_tinyvla_forward.4} parent=1 // pred_fallthru
      _
    // Predicated region
    $region94: #{unified_tinyvla_forward.4} parent=1 // pred_check
      _
    $region95: #{unified_tinyvla_forward.4} parent=1 // pred_check_branch
      %170 = sbr.rel (0) target = $region97
    $region96: #{unified_tinyvla_forward.4} parent=1 // pred_region
      %171 = dma.done [#allocation14], 32
    $region97: #{unified_tinyvla_forward.4} parent=1 // pred_fallthru
      _
    %v173 = vld [vmem:[%s0] sm:$0xff]
    %v174 = vld [vmem:[%s0 + $0x8] sm:$0xf]
    %v175 = vld [vmem:[%s0 + $0x10] sm:$0xff]
    %v176 = vld [vmem:[%s0 + $0x18] sm:$0xf]
    %v177 = vld [vmem:[#allocation2] sm:$0xff]
    %v178 = vld [vmem:[#allocation2 + $0x8] sm:$0xf]
    %v179 = vadd.f32 %v173, %v177
    %v180 = vadd.f32 %v174, %v178
    %v181 = vadd.f32 %v175, %v177
    %v182 = vadd.f32 %v176, %v178
    %v183 = vld [vmem:[%s2] sm:$0xff]
    %v184 = vld [vmem:[%s2 + $0x8] sm:$0xf]
    %v185 = vld [vmem:[%s2 + $0x10] sm:$0xff]
    %v186 = vld [vmem:[%s2 + $0x18] sm:$0xf]
    %v187 = vld [vmem:[%s3] sm:$0x1]
    %v188 = vld [vmem:[#allocation4] sm:$0x1]
    %v189 = vld [vmem:[%s5] sm:$0xff]
    %v190 = vld [vmem:[%s5 + $0x8] sm:$0xf]
    %v191 = vld [vmem:[%s5 + $0xc] sm:$0xff]
    %v192 = vld [vmem:[%s5 + $0x14] sm:$0xf]
    %v193 = vld [vmem:[%s5 + $0x18] sm:$0xff]
    %v194 = vld [vmem:[%s5 + $0x20] sm:$0xf]
    %v195 = vld [vmem:[%s5 + $0x24] sm:$0xff]
    %v196 = vld [vmem:[%s5 + $0x2c] sm:$0xf]
    %v197 = vld [vmem:[%s5 + $0x30] sm:$0xff]
    %v198 = vld [vmem:[%s5 + $0x38] sm:$0xf]
    %v199 = vld [vmem:[%s5 + $0x3c] sm:$0xff]
    %v200 = vld [vmem:[%s5 + $0x44] sm:$0xf]
    %v201 = vld [vmem:[%s5 + $0x48] sm:$0xff]
    %v202 = vld [vmem:[%s5 + $0x50] sm:$0xf]
    %v203 = vld [vmem:[%s5 + $0x54] sm:$0xff]
    %v204 = vld [vmem:[%s5 + $0x5c] sm:$0xf]
    %v205 = vld [vmem:[%s5 + $0x60] sm:$0xff]
    %v206 = vld [vmem:[%s5 + $0x68] sm:$0xf]
    %v207 = vld [vmem:[%s5 + $0x6c] sm:$0xff]
    %v208 = vld [vmem:[%s5 + $0x74] sm:$0xf]
    %v209 = vld [vmem:[%s5 + $0x78] sm:$0xff]
    %v210 = vld [vmem:[%s5 + $0x80] sm:$0xf]
    %v211 = vld [vmem:[%s5 + $0x84] sm:$0xff]
    %v212 = vld [vmem:[%s5 + $0x8c] sm:$0xf]
    %v213 = vld [vmem:[%s5 + $0x90] sm:$0xff]
    %v214 = vld [vmem:[%s5 + $0x98] sm:$0xf]
    %v215 = vld [vmem:[%s5 + $0x9c] sm:$0xff]
    %v216 = vld [vmem:[%s5 + $0xa4] sm:$0xf]
    %v217 = vld [vmem:[%s5 + $0xa8] sm:$0xff]
    %v218 = vld [vmem:[%s5 + $0xb0] sm:$0xf]
    %v219 = vld [vmem:[%s5 + $0xb4] sm:$0xff]
    %v220 = vld [vmem:[%s5 + $0xbc] sm:$0xf]
    %v221 = vld [vmem:[#allocation6] sm:$0x7]
    %v222 = vld [vmem:[#allocation7] sm:$0xf]
    %v223 = vld [vmem:[#allocation7 + $0x4] sm:$0xf]
    %v224 = vld [vmem:[#allocation7 + $0x8] sm:$0xf]
    %v225 = vld [vmem:[#allocation7 + $0xc] sm:$0xf]
    %v226 = vld [vmem:[#allocation7 + $0x10] sm:$0xf]
    %v227 = vld [vmem:[#allocation7 + $0x14] sm:$0xf]
    %v228 = vld [vmem:[#allocation7 + $0x18] sm:$0xf]
    %v229 = vld [vmem:[#allocation7 + $0x1c] sm:$0xf]
    %v230 = vld [vmem:[#allocation7 + $0x20] sm:$0xf]
    %v231 = vld [vmem:[#allocation7 + $0x24] sm:$0xf]
    %v232 = vld [vmem:[#allocation7 + $0x28] sm:$0xf]
    %v233 = vld [vmem:[#allocation7 + $0x2c] sm:$0xf]
    %v234 = vld [vmem:[#allocation7 + $0x30] sm:$0xf]
    %v235 = vld [vmem:[#allocation7 + $0x34] sm:$0xf]
    %v236 = vld [vmem:[#allocation7 + $0x38] sm:$0xf]
    %v237 = vld [vmem:[#allocation7 + $0x3c] sm:$0xf]
    %v238 = vld [vmem:[#allocation9] sm:$0x1]
    %v239 = vld [vmem:[#allocation10] sm:$0x1]
    %v240 = vld [vmem:[#allocation12] sm:$0x1]
    %v241 = vld [vmem:[%s11] sm:$0xff]
    %v242 = vld [vmem:[%s11 + $0x8] sm:$0xff]
    %v243 = vld [vmem:[%s11 + $0x10] sm:$0xff]
    %v244 = vld [vmem:[%s11 + $0x18] sm:$0xff]
    %v245 = vld [vmem:[%s11 + $0x20] sm:$0xff]
    %v246 = vld [vmem:[%s11 + $0x28] sm:$0xff]
    %v247 = vld [vmem:[%s11 + $0x30] sm:$0xff]
    %v248 = vld [vmem:[%s11 + $0x38] sm:$0xff]
    %v249 = vld [vmem:[%s11 + $0x40] sm:$0xff]
    %v250 = vld [vmem:[%s11 + $0x48] sm:$0xff]
    %v251 = vld [vmem:[%s11 + $0x50] sm:$0xff]
    %v252 = vld [vmem:[%s11 + $0x58] sm:$0xff]
    %v253 = vld [vmem:[%s11 + $0x60] sm:$0xff]
    %v254 = vld [vmem:[%s11 + $0x68] sm:$0xff]
    %v255 = vld [vmem:[%s11 + $0x70] sm:$0xff]
    %v256 = vld [vmem:[%s11 + $0x78] sm:$0xff]
    %v257 = vld [vmem:[%s11 + $0x80] sm:$0xff]
    %v258 = vld [vmem:[%s11 + $0x88] sm:$0xff]
    %v259 = vld [vmem:[%s11 + $0x90] sm:$0xff]
    %v260 = vld [vmem:[%s11 + $0x98] sm:$0xff]
    %v261 = vld [vmem:[%s11 + $0xa0] sm:$0xff]
    %v262 = vld [vmem:[%s11 + $0xa8] sm:$0xff]
    %v263 = vld [vmem:[%s11 + $0xb0] sm:$0xff]
    %v264 = vld [vmem:[%s11 + $0xb8] sm:$0xff]
    %v265 = vld [vmem:[%s11 + $0xc0] sm:$0xff]
    %v266 = vld [vmem:[%s11 + $0xc8] sm:$0xff]
    %v267 = vld [vmem:[%s11 + $0xd0] sm:$0xff]
    %v268 = vld [vmem:[%s11 + $0xd8] sm:$0xff]
    %v269 = vld [vmem:[%s11 + $0xe0] sm:$0xff]
    %v270 = vld [vmem:[%s11 + $0xe8] sm:$0xff]
    %v271 = vld [vmem:[%s11 + $0xf0] sm:$0xff]
    %v272 = vld [vmem:[%s11 + $0xf8] sm:$0xff]
    %v273 = vld [vmem:[#allocation13] sm:$0xf]
    %v274 = vld [vmem:[%s13] sm:$0xf]
    %v275 = vld [vmem:[%s13 + $0x4] sm:$0xf]
    %v276 = vld [vmem:[%s13 + $0x8] sm:$0xf]
    %v277 = vld [vmem:[%s13 + $0xc] sm:$0xf]
    %v278 = vld [vmem:[%s13 + $0x10] sm:$0xf]
    %v279 = vld [vmem:[%s13 + $0x14] sm:$0xf]
    %v280 = vld [vmem:[%s13 + $0x18] sm:$0xf]
    %v281 = vld [vmem:[%s13 + $0x1c] sm:$0xf]
    %v282 = vld [vmem:[%s13 + $0x20] sm:$0xf]
    %v283 = vld [vmem:[%s13 + $0x24] sm:$0xf]
    %v284 = vld [vmem:[%s13 + $0x28] sm:$0xf]
    %v285 = vld [vmem:[%s13 + $0x2c] sm:$0xf]
    %v286 = vld [vmem:[%s13 + $0x30] sm:$0xf]
    %v287 = vld [vmem:[%s13 + $0x34] sm:$0xf]
    %v288 = vld [vmem:[%s13 + $0x38] sm:$0xf]
    %v289 = vld [vmem:[%s13 + $0x3c] sm:$0xf]
    %v290 = vld [vmem:[%s13 + $0x40] sm:$0xf]
    %v291 = vld [vmem:[%s13 + $0x44] sm:$0xf]
    %v292 = vld [vmem:[%s13 + $0x48] sm:$0xf]
    %v293 = vld [vmem:[%s13 + $0x4c] sm:$0xf]
    %v294 = vld [vmem:[%s13 + $0x50] sm:$0xf]
    %v295 = vld [vmem:[%s13 + $0x54] sm:$0xf]
    %v296 = vld [vmem:[%s13 + $0x58] sm:$0xf]
    %v297 = vld [vmem:[%s13 + $0x5c] sm:$0xf]
    %v298 = vld [vmem:[%s13 + $0x60] sm:$0xf]
    %v299 = vld [vmem:[%s13 + $0x64] sm:$0xf]
    %v300 = vld [vmem:[%s13 + $0x68] sm:$0xf]
    %v301 = vld [vmem:[%s13 + $0x6c] sm:$0xf]
    %v302 = vld [vmem:[%s13 + $0x70] sm:$0xf]
    %v303 = vld [vmem:[%s13 + $0x74] sm:$0xf]
    %v304 = vld [vmem:[%s13 + $0x78] sm:$0xf]
    %v305 = vld [vmem:[%s13 + $0x7c] sm:$0xf]
    %v306 = vld [vmem:[%s13 + $0x80] sm:$0xf]
    %v307 = vld [vmem:[%s13 + $0x84] sm:$0xf]
    %v308 = vld [vmem:[%s13 + $0x88] sm:$0xf]
    %v309 = vld [vmem:[%s13 + $0x8c] sm:$0xf]
    %v310 = vld [vmem:[%s13 + $0x90] sm:$0xf]
    %v311 = vld [vmem:[%s13 + $0x94] sm:$0xf]
    %v312 = vld [vmem:[%s13 + $0x98] sm:$0xf]
    %v313 = vld [vmem:[%s13 + $0x9c] sm:$0xf]
    %v314 = vld [vmem:[%s13 + $0xa0] sm:$0xf]
    %v315 = vld [vmem:[%s13 + $0xa4] sm:$0xf]
    %v316 = vld [vmem:[%s13 + $0xa8] sm:$0xf]
    %v317 = vld [vmem:[%s13 + $0xac] sm:$0xf]
    %v318 = vld [vmem:[%s13 + $0xb0] sm:$0xf]
    %v319 = vld [vmem:[%s13 + $0xb4] sm:$0xf]
    %v320 = vld [vmem:[%s13 + $0xb8] sm:$0xf]
    %v321 = vld [vmem:[%s13 + $0xbc] sm:$0xf]
    %v322 = vld [vmem:[%s13 + $0xc0] sm:$0xf]
    %v323 = vld [vmem:[%s13 + $0xc4] sm:$0xf]
    %v324 = vld [vmem:[%s13 + $0xc8] sm:$0xf]
    %v325 = vld [vmem:[%s13 + $0xcc] sm:$0xf]
    %v326 = vld [vmem:[%s13 + $0xd0] sm:$0xf]
    %v327 = vld [vmem:[%s13 + $0xd4] sm:$0xf]
    %v328 = vld [vmem:[%s13 + $0xd8] sm:$0xf]
    %v329 = vld [vmem:[%s13 + $0xdc] sm:$0xf]
    %v330 = vld [vmem:[%s13 + $0xe0] sm:$0xf]
    %v331 = vld [vmem:[%s13 + $0xe4] sm:$0xf]
    %v332 = vld [vmem:[%s13 + $0xe8] sm:$0xf]
    %v333 = vld [vmem:[%s13 + $0xec] sm:$0xf]
    %v334 = vld [vmem:[%s13 + $0xf0] sm:$0xf]
    %v335 = vld [vmem:[%s13 + $0xf4] sm:$0xf]
    %v336 = vld [vmem:[%s13 + $0xf8] sm:$0xf]
    %v337 = vld [vmem:[%s13 + $0xfc] sm:$0xf]
    %v338 = vld [vmem:[#allocation15] sm:$0x1]
    %v343 = vcombine.high %v179, %v179
    %v344 = vcombine.high %v181, %v181
    %v347 = vcombine.low %v179, %v343
    %v348 = vcombine.low %v180, %v181
    %v349 = vcombine.low %v344, %v182
    %353 = vadd.xlane.f32.xlu0 %v347
    %v354 = vpop.xlane.xlu0 %353
    %355 = vadd.xlane.f32.xlu0 %v348
    %v356 = vpop.xlane.xlu0 %355
    %357 = vadd.xlane.f32.xlu0 %v349
    %v358 = vpop.xlane.xlu0 %357
    %v359 = vrcp.pop 128.0
    %v360 = vmul.f32 %v354, %v359
    %v361 = vmul.f32 %v356, %v359
    %v362 = vmul.f32 %v358, %v359
    %v367 = vunpack.c.l.s4 839922192
    %v368 = vunpack.c.0.s8 %v367
    %v369 = vlaneseq
    %v370 = vshrl.u32 %v369, 7
    %v371 = vsub.s32 %v368, %v370
    %v372 = vrot.slane %v360, %v371
    %v374 = vunpack.c.l.s4 1985246804
    %v375 = vunpack.c.0.s8 %v374
    %v376 = vlaneseq
    %v377 = vshrl.u32 %v376, 7
    %v378 = vsub.s32 %v375, %v377
    %v379 = vrot.slane %v360, %v378
    %v381 = vunpack.c.l.s4 839922192
    %v382 = vunpack.c.0.s8 %v381
    %v383 = vlaneseq
    %v384 = vshrl.u32 %v383, 7
    %v385 = vsub.s32 %v382, %v384
    %v386 = vrot.slane %v361, %v385
    %v388 = vunpack.c.l.s4 1985246804
    %v389 = vunpack.c.0.s8 %v388
    %v390 = vlaneseq
    %v391 = vshrl.u32 %v390, 7
    %v392 = vsub.s32 %v389, %v391
    %v393 = vrot.slane %v361, %v392
    %v395 = vunpack.c.l.s4 839922192
    %v396 = vunpack.c.0.s8 %v395
    %v397 = vlaneseq
    %v398 = vshrl.u32 %v397, 7
    %v399 = vsub.s32 %v396, %v398
    %v400 = vrot.slane %v362, %v399
    %v402 = vunpack.c.l.s4 1985246804
    %v403 = vunpack.c.0.s8 %v402
    %v404 = vlaneseq
    %v405 = vshrl.u32 %v404, 7
    %v406 = vsub.s32 %v403, %v405
    %v407 = vrot.slane %v362, %v406
    %v414 = vsub.f32 %v179, %v372
    %v415 = vsub.f32 %v343, %v379
    %v416 = vsub.f32 %v180, %v386
    %v417 = vsub.f32 %v181, %v393
    %v418 = vsub.f32 %v344, %v400
    %v419 = vsub.f32 %v182, %v407
    %v420 = vmul.f32 %v414, %v414
    %v421 = vmul.f32 %v415, %v415
    %v422 = vmul.f32 %v416, %v416
    %v423 = vmul.f32 %v417, %v417
    %v424 = vmul.f32 %v418, %v418
    %v425 = vmul.f32 %v419, %v419
    %v432 = vcombine.low %v420, %v421
    %v433 = vcombine.low %v422, %v423
    %v434 = vcombine.low %v424, %v425
    %438 = vadd.xlane.f32.xlu0 %v432
    %v439 = vpop.xlane.xlu0 %438
    %440 = vadd.xlane.f32.xlu0 %v433
    %v441 = vpop.xlane.xlu0 %440
    %442 = vadd.xlane.f32.xlu0 %v434
    %v443 = vpop.xlane.xlu0 %442
    %v444 = vmul.f32 %v439, %v359
    %v445 = vmul.f32 %v441, %v359
    %v446 = vmul.f32 %v443, %v359
    %v447 = vadd.f32 %v444, 1e-05
    %v448 = vadd.f32 %v445, 1e-05
    %v449 = vadd.f32 %v446, 1e-05
    %v450 = vrsqrt.pop %v447
    %v451 = vrsqrt.pop %v448
    %v452 = vrsqrt.pop %v449
    %v457 = vunpack.c.l.s4 839922192
    %v458 = vunpack.c.0.s8 %v457
    %v459 = vlaneseq
    %v460 = vshrl.u32 %v459, 7
    %v461 = vsub.s32 %v458, %v460
    %v462 = vrot.slane %v450, %v461
    %v464 = vunpack.c.l.s4 1985246804
    %v465 = vunpack.c.0.s8 %v464
    %v466 = vlaneseq
    %v467 = vshrl.u32 %v466, 7
    %v468 = vsub.s32 %v465, %v467
    %v469 = vrot.slane %v450, %v468
    %v471 = vunpack.c.l.s4 839922192
    %v472 = vunpack.c.0.s8 %v471
    %v473 = vlaneseq
    %v474 = vshrl.u32 %v473, 7
    %v475 = vsub.s32 %v472, %v474
    %v476 = vrot.slane %v451, %v475
    %v478 = vunpack.c.l.s4 1985246804
    %v479 = vunpack.c.0.s8 %v478
    %v480 = vlaneseq
    %v481 = vshrl.u32 %v480, 7
    %v482 = vsub.s32 %v479, %v481
    %v483 = vrot.slane %v451, %v482
    %v485 = vunpack.c.l.s4 839922192
    %v486 = vunpack.c.0.s8 %v485
    %v487 = vlaneseq
    %v488 = vshrl.u32 %v487, 7
    %v489 = vsub.s32 %v486, %v488
    %v490 = vrot.slane %v452, %v489
    %v492 = vunpack.c.l.s4 1985246804
    %v493 = vunpack.c.0.s8 %v492
    %v494 = vlaneseq
    %v495 = vshrl.u32 %v494, 7
    %v496 = vsub.s32 %v493, %v495
    %v497 = vrot.slane %v452, %v496
    %v504 = vmul.f32 %v414, %v462
    %v505 = vmul.f32 %v415, %v469
    %v506 = vmul.f32 %v416, %v476
    %v507 = vmul.f32 %v417, %v483
    %v508 = vmul.f32 %v418, %v490
    %v509 = vmul.f32 %v419, %v497
    %v511 = vlaneseq
    %v512 = vshrl.u32 %v511, 7
    %v513 = vsub.s32 0, %v512
    %v514 = vrot.slane %v187, %v513
    %v516 = vcombine.high %v514, %v514
    %v518 = vmul.f32 %v504, %v514
    %v519 = vmul.f32 %v505, %v516
    %v520 = vmul.f32 %v506, %v514
    %v521 = vmul.f32 %v507, %v516
    %v522 = vmul.f32 %v508, %v514
    %v523 = vmul.f32 %v509, %v516
    %v525 = vlaneseq
    %v526 = vshrl.u32 %v525, 7
    %v527 = vsub.s32 0, %v526
    %v528 = vrot.slane %v188, %v527
    %v530 = vcombine.high %v528, %v528
    %v532 = vadd.f32 %v518, %v528
    %v533 = vadd.f32 %v519, %v530
    %v534 = vadd.f32 %v520, %v528
    %v535 = vadd.f32 %v521, %v530
    %v536 = vadd.f32 %v522, %v528
    %v537 = vadd.f32 %v523, %v530
    %v544 = vcombine.low %v532, %v533
    %v545 = vcombine.low %v534, %v535
    %v546 = vcombine.low %v536, %v537
    %v550 = vpack.c.bf16 %v545, %v544
    %v551 = vpack.c.bf16 %v546, %v546
    %v553 = vlaneseq
    %v554 = vshrl.u32 %v553, 7
    %v555 = vsub.s32 0, %v554
    %v556 = vrot.slane %v221, %v555
    %v557 = vlaneseq
    %v558 = vshrl.u32 %v557, 7
    %v559 = vsub.s32 1, %v558
    %v560 = vrot.slane %v221, %v559
    %v561 = vlaneseq
    %v562 = vshrl.u32 %v561, 7
    %v563 = vsub.s32 2, %v562
    %v564 = vrot.slane %v221, %v563
    %v600 = vunpack.c.l.b16 %v189
    %v601 = vunpack.c.h.b16 %v189
    %v602 = vunpack.c.l.b16 %v190
    %v603 = vunpack.c.l.b16 %v191
    %v604 = vunpack.c.h.b16 %v191
    %v605 = vunpack.c.l.b16 %v192
    %v606 = vunpack.c.l.b16 %v193
    %v607 = vunpack.c.h.b16 %v193
    %v608 = vunpack.c.l.b16 %v194
    %v609 = vunpack.c.l.b16 %v195
    %v610 = vunpack.c.h.b16 %v195
    %v611 = vunpack.c.l.b16 %v196
    %v612 = vunpack.c.l.b16 %v197
    %v613 = vunpack.c.h.b16 %v197
    %v614 = vunpack.c.l.b16 %v198
    %v615 = vunpack.c.l.b16 %v199
    %v616 = vunpack.c.h.b16 %v199
    %v617 = vunpack.c.l.b16 %v200
    %v618 = vunpack.c.l.b16 %v201
    %v619 = vunpack.c.h.b16 %v201
    %v620 = vunpack.c.l.b16 %v202
    %v621 = vunpack.c.l.b16 %v203
    %v622 = vunpack.c.h.b16 %v203
    %v623 = vunpack.c.l.b16 %v204
    %v624 = vunpack.c.l.b16 %v205
    %v625 = vunpack.c.h.b16 %v205
    %v626 = vunpack.c.l.b16 %v206
    %v627 = vunpack.c.l.b16 %v207
    %v628 = vunpack.c.h.b16 %v207
    %v629 = vunpack.c.l.b16 %v208
    %v630 = vunpack.c.l.b16 %v209
    %v631 = vunpack.c.h.b16 %v209
    %v632 = vunpack.c.l.b16 %v210
    %v633 = vunpack.c.l.b16 %v211
    %v634 = vunpack.c.h.b16 %v211
    %v635 = vunpack.c.l.b16 %v212
    %v636 = vunpack.c.l.b16 %v213
    %v637 = vunpack.c.h.b16 %v213
    %v638 = vunpack.c.l.b16 %v214
    %v639 = vunpack.c.l.b16 %v215
    %v640 = vunpack.c.h.b16 %v215
    %v641 = vunpack.c.l.b16 %v216
    %v642 = vunpack.c.l.b16 %v217
    %v643 = vunpack.c.h.b16 %v217
    %v644 = vunpack.c.l.b16 %v218
    %v645 = vunpack.c.l.b16 %v219
    %v646 = vunpack.c.h.b16 %v219
    %v647 = vunpack.c.l.b16 %v220
    %v648 = vpack.c.b16 %v603, %v600
    %v649 = vpack.c.b16 %v604, %v601
    %v650 = vpack.c.b16 %v605, %v602
    %v651 = vpack.c.b16 %v609, %v606
    %v652 = vpack.c.b16 %v610, %v607
    %v653 = vpack.c.b16 %v611, %v608
    %v654 = vpack.c.b16 %v615, %v612
    %v655 = vpack.c.b16 %v616, %v613
    %v656 = vpack.c.b16 %v617, %v614
    %v657 = vpack.c.b16 %v621, %v618
    %v658 = vpack.c.b16 %v622, %v619
    %v659 = vpack.c.b16 %v623, %v620
    %v660 = vpack.c.b16 %v627, %v624
    %v661 = vpack.c.b16 %v628, %v625
    %v662 = vpack.c.b16 %v629, %v626
    %v663 = vpack.c.b16 %v633, %v630
    %v664 = vpack.c.b16 %v634, %v631
    %v665 = vpack.c.b16 %v635, %v632
    %v666 = vpack.c.b16 %v639, %v636
    %v667 = vpack.c.b16 %v640, %v637
    %v668 = vpack.c.b16 %v641, %v638
    %v669 = vpack.c.b16 %v645, %v642
    %v670 = vpack.c.b16 %v646, %v643
    %v671 = vpack.c.b16 %v647, %v644
    %696 = vmatprep.subr.bf16.mxu0 %v649
    %697 = vmatpush1.bf16.msra.mxu0 %v648
    %698 = vmatprep.subr.bf16.mxu0 %v652
    %699 = vmatpush1.bf16.msra.mxu0 %v651
    %700 = vmatprep.subr.bf16.mxu0 %v655
    %701 = vmatpush1.bf16.msra.mxu0 %v654
    %702 = vmatprep.subr.bf16.mxu0 %v658
    %703 = vmatpush1.bf16.msra.mxu0 %v657
    %704 = vmatprep.subr.bf16.mxu0 %v661
    %705 = vmatpush1.bf16.msra.mxu0 %v660
    %706 = vmatprep.subr.bf16.mxu0 %v664
    %707 = vmatpush1.bf16.msra.mxu0 %v663
    %708 = vmatprep.subr.bf16.mxu0 %v667
    %709 = vmatpush1.bf16.msra.mxu0 %v666
    %710 = vmatprep.subr.bf16.mxu0 %v670
    %711 = vmatpush1.bf16.msra.mxu0 %v669
    %712 = vmatprep.subr.bf16.mxu0 0
    %713 = vmatpush1.bf16.msra.mxu0 0
    %714 = vmatprep.subr.bf16.mxu0 0
    %715 = vmatpush1.bf16.msra.mxu0 0
    %716 = vmatprep.subr.bf16.mxu0 0
    %717 = vmatpush1.bf16.msra.mxu0 0
    %718 = vmatprep.subr.bf16.mxu0 0
    %719 = vmatpush1.bf16.msra.mxu0 0
    %720 = vmatprep.subr.bf16.mxu0 0
    %721 = vmatpush1.bf16.msra.mxu0 0
    %722 = vmatprep.subr.bf16.mxu0 0
    %723 = vmatpush1.bf16.msra.mxu0 0
    %724 = vmatprep.subr.bf16.mxu0 0
    %725 = vmatpush1.bf16.msra.mxu0 0
    %726 = vmatprep.subr.bf16.mxu0 0
    %727 = vmatpush1.bf16.msra.mxu0 0
    %728 = vmatprep.mubr.bf16.mxu0 0
    %729 = vmatmul.mubr.bf16.gmra.mrb[0].mxu0 %v550
    %v730 = vpop.f32.mrb[0].mxu0
    %v731 = vadd.f32 %v556, %v730
    %v732 = vpop.f32.mrb[0].mxu0
    %v733 = vadd.f32 %v560, %v732
    %v734 = vpop.f32.mrb[0].mxu0
    %v735 = vadd.f32 %v556, %v734
    %v736 = vpop.f32.mrb[0].mxu0
    %v737 = vadd.f32 %v560, %v736
    %738 = vmatprep.mubr.bf16.mxu0 0
    %739 = vmatmul.mubr.bf16.gmra.mrb[0].mxu0 %v551
    %v740 = vpop.f32.mrb[0].mxu0
    %v741 = vadd.f32 %v556, %v740
    %v742 = vpop.f32.mrb[0].mxu0
    %v743 = vadd.f32 %v560, %v742
    %v744 = vpop.f32.mrb[0].mxu0
    %v745 = vpop.f32.mrb[0].mxu0
    %746 = vdwg.mxu0
    %747 = vmatprep.subr.bf16.mxu0 0
    %748 = vmatpush1.bf16.msra.mxu0 %v650
    %749 = vmatprep.subr.bf16.mxu0 0
    %750 = vmatpush1.bf16.msra.mxu0 %v653
    %751 = vmatprep.subr.bf16.mxu0 0
    %752 = vmatpush1.bf16.msra.mxu0 %v656
    %753 = vmatprep.subr.bf16.mxu0 0
    %754 = vmatpush1.bf16.msra.mxu0 %v659
    %755 = vmatprep.subr.bf16.mxu0 0
    %756 = vmatpush1.bf16.msra.mxu0 %v662
    %757 = vmatprep.subr.bf16.mxu0 0
    %758 = vmatpush1.bf16.msra.mxu0 %v665
    %759 = vmatprep.subr.bf16.mxu0 0
    %760 = vmatpush1.bf16.msra.mxu0 %v668
    %761 = vmatprep.subr.bf16.mxu0 0
    %762 = vmatpush1.bf16.msra.mxu0 %v671
    %763 = vmatprep.subr.bf16.mxu0 0
    %764 = vmatpush1.bf16.msra.mxu0 0
    %765 = vmatprep.subr.bf16.mxu0 0
    %766 = vmatpush1.bf16.msra.mxu0 0
    %767 = vmatprep.subr.bf16.mxu0 0
    %768 = vmatpush1.bf16.msra.mxu0 0
    %769 = vmatprep.subr.bf16.mxu0 0
    %770 = vmatpush1.bf16.msra.mxu0 0
    %771 = vmatprep.subr.bf16.mxu0 0
    %772 = vmatpush1.bf16.msra.mxu0 0
    %773 = vmatprep.subr.bf16.mxu0 0
    %774 = vmatpush1.bf16.msra.mxu0 0
    %775 = vmatprep.subr.bf16.mxu0 0
    %776 = vmatpush1.bf16.msra.mxu0 0
    %777 = vmatprep.subr.bf16.mxu0 0
    %778 = vmatpush1.bf16.msra.mxu0 0
    %779 = vmatprep.mubr.bf16.mxu0 0
    %780 = vmatmul.mubr.bf16.gmra.mrb[0].mxu0 %v550
    %v781 = vpop.f32.mrb[0].mxu0
    %v782 = vadd.f32 %v564, %v781
    %v783 = vpop.f32.mrb[0].mxu0
    %v784 = vpop.f32.mrb[0].mxu0
    %v785 = vadd.f32 %v564, %v784
    %v786 = vpop.f32.mrb[0].mxu0
    %787 = vmatprep.mubr.bf16.mxu0 0
    %788 = vmatmul.mubr.bf16.gmra.mrb[0].mxu0 %v551
    %v789 = vpop.f32.mrb[0].mxu0
    %v790 = vadd.f32 %v564, %v789
    %v791 = vpop.f32.mrb[0].mxu0
    %v792 = vpop.f32.mrb[0].mxu0
    %v793 = vpop.f32.mrb[0].mxu0
    %794 = vdwg.mxu0
    %v804 = vcombine.low %v731, %v733
    %v805 = vcombine.high %v731, %v733
    %v806 = vcombine.high %v782, %v782
    %v807 = vcombine.low %v735, %v737
    %v808 = vcombine.high %v735, %v737
    %v809 = vcombine.high %v785, %v785
    %v810 = vcombine.low %v741, %v743
    %v811 = vcombine.high %v741, %v743
    %v812 = vcombine.high %v790, %v790
    %v816 = vcombine.low %v804, %v805
    %v817 = vcombine.low %v808, %v810
    %v820 = vpack.c.bf16 %v807, %v816
    %v821 = vpack.c.bf16 %v811, %v817
    %v822 = vcombine.high %v804, %v805
    %v823 = vcombine.high %v807, %v807
    %v824 = vcombine.high %v808, %v810
    %v825 = vcombine.high %v811, %v811
    %v830 = vpack.c.bf16 %v823, %v822
    %v831 = vpack.c.bf16 %v825, %v824
    %vm832 = vcmask 261120
    %v834 = vsel %vm832, %v820, 0
    %v837 = vsel %vm832, %v830, 0
    %839 = vmatprep.subr.bf16.mxu0 0
    %840 = vmatpush1.bf16.xpose.msra.mxu0 %v837
    %841 = vmatprep.subr.bf16.mxu0 0
    %842 = vmatpush1.bf16.xpose.msra.mxu0 0
    %843 = vmatprep.subr.bf16.mxu0 0
    %844 = vmatpush1.bf16.xpose.msra.mxu0 0
    %845 = vmatprep.subr.bf16.mxu0 0
    %846 = vmatpush1.bf16.xpose.msra.mxu0 0
    %847 = vmatprep.subr.bf16.mxu0 0
    %848 = vmatpush1.bf16.xpose.msra.mxu0 0
    %849 = vmatprep.subr.bf16.mxu0 0
    %850 = vmatpush1.bf16.xpose.msra.mxu0 0
    %851 = vmatprep.subr.bf16.mxu0 0
    %852 = vmatpush1.bf16.xpose.msra.mxu0 0
    %853 = vmatprep.subr.bf16.mxu0 0
    %854 = vmatpush1.bf16.xpose.msra.mxu0 0
    %855 = vmatprep.subr.bf16.mxu0 0
    %856 = vmatpush1.bf16.xpose.msra.mxu0 0
    %857 = vmatprep.subr.bf16.mxu0 0
    %858 = vmatpush1.bf16.xpose.msra.mxu0 0
    %859 = vmatprep.subr.bf16.mxu0 0
    %860 = vmatpush1.bf16.xpose.msra.mxu0 0
    %861 = vmatprep.subr.bf16.mxu0 0
    %862 = vmatpush1.bf16.xpose.msra.mxu0 0
    %863 = vmatprep.subr.bf16.mxu0 0
    %864 = vmatpush1.bf16.xpose.msra.mxu0 0
    %865 = vmatprep.subr.bf16.mxu0 0
    %866 = vmatpush1.bf16.xpose.msra.mxu0 0
    %867 = vmatprep.subr.bf16.mxu0 0
    %868 = vmatpush1.bf16.xpose.msra.mxu0 0
    %869 = vmatprep.subr.bf16.mxu0 0
    %870 = vmatpush1.bf16.xpose.msra.mxu0 0
    %871 = vmatprep.mubr.bf16.mxu0 0
    %872 = vmatmul.mubr.bf16.gmra.mrb[0].mxu0 %v834
    %v873 = vpop.f32.mrb[0].mxu0
    %v874 = vadd.f32 0.0, %v873
    %v875 = vpop.f32.mrb[0].mxu0
    %v876 = vpop.f32.mrb[0].mxu0
    %v877 = vadd.f32 0.0, %v876
    %v878 = vpop.f32.mrb[0].mxu0
    %879 = vdwg.mxu0
    %v881 = vsel %vm832, %v821, 0
    %v884 = vsel %vm832, %v831, 0
    %886 = vmatprep.subr.bf16.mxu0 0
    %887 = vmatpush1.bf16.xpose.msra.mxu0 %v884
    %888 = vmatprep.subr.bf16.mxu0 0
    %889 = vmatpush1.bf16.xpose.msra.mxu0 0
    %890 = vmatprep.subr.bf16.mxu0 0
    %891 = vmatpush1.bf16.xpose.msra.mxu0 0
    %892 = vmatprep.subr.bf16.mxu0 0
    %893 = vmatpush1.bf16.xpose.msra.mxu0 0
    %894 = vmatprep.subr.bf16.mxu0 0
    %895 = vmatpush1.bf16.xpose.msra.mxu0 0
    %896 = vmatprep.subr.bf16.mxu0 0
    %897 = vmatpush1.bf16.xpose.msra.mxu0 0
    %898 = vmatprep.subr.bf16.mxu0 0
    %899 = vmatpush1.bf16.xpose.msra.mxu0 0
    %900 = vmatprep.subr.bf16.mxu0 0
    %901 = vmatpush1.bf16.xpose.msra.mxu0 0
    %902 = vmatprep.subr.bf16.mxu0 0
    %903 = vmatpush1.bf16.xpose.msra.mxu0 0
    %904 = vmatprep.subr.bf16.mxu0 0
    %905 = vmatpush1.bf16.xpose.msra.mxu0 0
    %906 = vmatprep.subr.bf16.mxu0 0
    %907 = vmatpush1.bf16.xpose.msra.mxu0 0
    %908 = vmatprep.subr.bf16.mxu0 0
    %909 = vmatpush1.bf16.xpose.msra.mxu0 0
    %910 = vmatprep.subr.bf16.mxu0 0
    %911 = vmatpush1.bf16.xpose.msra.mxu0 0
    %912 = vmatprep.subr.bf16.mxu0 0
    %913 = vmatpush1.bf16.xpose.msra.mxu0 0
    %914 = vmatprep.subr.bf16.mxu0 0
    %915 = vmatpush1.bf16.xpose.msra.mxu0 0
    %916 = vmatprep.subr.bf16.mxu0 0
    %917 = vmatpush1.bf16.xpose.msra.mxu0 0
    %918 = vmatprep.mubr.bf16.mxu0 0
    %919 = vmatmul.mubr.bf16.gmra.mrb[0].mxu0 %v881
    %v920 = vpop.f32.mrb[0].mxu0
    %v921 = vadd.f32 0.0, %v920
    %v922 = vpop.f32.mrb[0].mxu0
    %v923 = vpop.f32.mrb[0].mxu0
    %v924 = vadd.f32 0.0, %v923
    %v925 = vpop.f32.mrb[0].mxu0
    %926 = vdwg.mxu0
    %v927 = vmul.f32 %v874, 0.17677669
    %v928 = vmul.f32 %v877, 0.17677669
    %v929 = vmul.f32 %v921, 0.17677669
    %v930 = vmul.f32 %v924, 0.17677669
    %v931 = vadd.f32 %v927, %v183
    %v932 = vadd.f32 %v928, %v184
    %v933 = vadd.f32 %v929, %v185
    %v934 = vadd.f32 %v930, %v186
    %vm935 = vcmask 97280
    %v936 = vsel %vm935, %v931, -inf
    %937 = vmax.xlane.f32.xlu0 %v936
    %v938 = vpop.xlane.xlu0 %937
    %vm939 = vcmask 93184
    %v940 = vsel %vm939, %v932, -inf
    %941 = vmax.xlane.f32.xlu0 %v940
    %v942 = vpop.xlane.xlu0 %941
    %v943 = vsel %vm935, %v933, -inf
    %944 = vmax.xlane.f32.xlu0 %v943
    %v945 = vpop.xlane.xlu0 %944
    %v946 = vsel %vm939, %v934, -inf
    %947 = vmax.xlane.f32.xlu0 %v946
    %v948 = vpop.xlane.xlu0 %947
    %v949 = vsub.f32 %v931, %v938
    %v950 = vsub.f32 %v932, %v942
    %v951 = vsub.f32 %v933, %v945
    %v952 = vsub.f32 %v934, %v948
    %v953 = vmul.f32 %v949, 1.442695
    %v954 = vpow.pop %v953
    %v955 = vmul.f32 %v950, 1.442695
    %v956 = vpow.pop %v955
    %v957 = vmul.f32 %v951, 1.442695
    %v958 = vpow.pop %v957
    %v959 = vmul.f32 %v952, 1.442695
    %v960 = vpow.pop %v959
    %v961 = vsel %vm935, %v954, 0.0
    %962 = vadd.xlane.f32.xlu0 %v961
    %v963 = vpop.xlane.xlu0 %962
    %v964 = vsel %vm939, %v956, 0.0
    %965 = vadd.xlane.f32.xlu0 %v964
    %v966 = vpop.xlane.xlu0 %965
    %v967 = vsel %vm935, %v958, 0.0
    %968 = vadd.xlane.f32.xlu0 %v967
    %v969 = vpop.xlane.xlu0 %968
    %v970 = vsel %vm939, %v960, 0.0
    %971 = vadd.xlane.f32.xlu0 %v970
    %v972 = vpop.xlane.xlu0 %971
    %v973 = vrcp.pop %v963
    %v974 = vrcp.pop %v966
    %v975 = vrcp.pop %v969
    %v976 = vrcp.pop %v972
    %v977 = vmul.f32 %v954, %v973
    %v978 = vmul.f32 %v956, %v974
    %v979 = vmul.f32 %v958, %v975
    %v980 = vmul.f32 %v960, %v976
    %v981 = vpack.c.bf16 %v978, %v977
    %v982 = vpack.c.bf16 %v980, %v979
    %v983 = vcombine.low %v782, %v806
    %v984 = vcombine.low %v809, %v790
    %v987 = vpack.c.bf16 %v785, %v983
    %v988 = vpack.c.bf16 %v812, %v984
    %v990 = vsel %vm935, %v981, 0
    %vm992 = vcmask 1045504
    %v994 = vsel %vm992, %v987, 0
    %996 = vmatprep.subr.bf16.mxu0 0
    %997 = vmatpush1.bf16.msra.mxu0 %v994
    %998 = vmatprep.subr.bf16.mxu0 0
    %999 = vmatpush1.bf16.msra.mxu0 0
    %1000 = vmatprep.subr.bf16.mxu0 0
    %1001 = vmatpush1.bf16.msra.mxu0 0
    %1002 = vmatprep.subr.bf16.mxu0 0
    %1003 = vmatpush1.bf16.msra.mxu0 0
    %1004 = vmatprep.subr.bf16.mxu0 0
    %1005 = vmatpush1.bf16.msra.mxu0 0
    %1006 = vmatprep.subr.bf16.mxu0 0
    %1007 = vmatpush1.bf16.msra.mxu0 0
    %1008 = vmatprep.subr.bf16.mxu0 0
    %1009 = vmatpush1.bf16.msra.mxu0 0
    %1010 = vmatprep.subr.bf16.mxu0 0
    %1011 = vmatpush1.bf16.msra.mxu0 0
    %1012 = vmatprep.subr.bf16.mxu0 0
    %1013 = vmatpush1.bf16.msra.mxu0 0
    %1014 = vmatprep.subr.bf16.mxu0 0
    %1015 = vmatpush1.bf16.msra.mxu0 0
    %1016 = vmatprep.subr.bf16.mxu0 0
    %1017 = vmatpush1.bf16.msra.mxu0 0
    %1018 = vmatprep.subr.bf16.mxu0 0
    %1019 = vmatpush1.bf16.msra.mxu0 0
    %1020 = vmatprep.subr.bf16.mxu0 0
    %1021 = vmatpush1.bf16.msra.mxu0 0
    %1022 = vmatprep.subr.bf16.mxu0 0
    %1023 = vmatpush1.bf16.msra.mxu0 0
    %1024 = vmatprep.subr.bf16.mxu0 0
    %1025 = vmatpush1.bf16.msra.mxu0 0
    %1026 = vmatprep.subr.bf16.mxu0 0
    %1027 = vmatpush1.bf16.msra.mxu0 0
    %1028 = vmatprep.mubr.bf16.mxu0 0
    %1029 = vmatmul.mubr.bf16.gmra.mrb[0].mxu0 %v990
    %v1030 = vpop.f32.mrb[0].mxu0
    %v1031 = vadd.f32 0.0, %v1030
    %v1032 = vpop.f32.mrb[0].mxu0
    %v1033 = vpop.f32.mrb[0].mxu0
    %v1034 = vadd.f32 0.0, %v1033
    %v1035 = vpop.f32.mrb[0].mxu0
    %1036 = vdwg.mxu0
    %v1038 = vsel %vm935, %v982, 0
    %v1041 = vsel %vm992, %v988, 0
    %1043 = vmatprep.subr.bf16.mxu0 0
    %1044 = vmatpush1.bf16.msra.mxu0 %v1041
    %1045 = vmatprep.subr.bf16.mxu0 0
    %1046 = vmatpush1.bf16.msra.mxu0 0
    %1047 = vmatprep.subr.bf16.mxu0 0
    %1048 = vmatpush1.bf16.msra.mxu0 0
    %1049 = vmatprep.subr.bf16.mxu0 0
    %1050 = vmatpush1.bf16.msra.mxu0 0
    %1051 = vmatprep.subr.bf16.mxu0 0
    %1052 = vmatpush1.bf16.msra.mxu0 0
    %1053 = vmatprep.subr.bf16.mxu0 0
    %1054 = vmatpush1.bf16.msra.mxu0 0
    %1055 = vmatprep.subr.bf16.mxu0 0
    %1056 = vmatpush1.bf16.msra.mxu0 0
    %1057 = vmatprep.subr.bf16.mxu0 0
    %1058 = vmatpush1.bf16.msra.mxu0 0
    %1059 = vmatprep.subr.bf16.mxu0 0
    %1060 = vmatpush1.bf16.msra.mxu0 0
    %1061 = vmatprep.subr.bf16.mxu0 0
    %1062 = vmatpush1.bf16.msra.mxu0 0
    %1063 = vmatprep.subr.bf16.mxu0 0
    %1064 = vmatpush1.bf16.msra.mxu0 0
    %1065 = vmatprep.subr.bf16.mxu0 0
    %1066 = vmatpush1.bf16.msra.mxu0 0
    %1067 = vmatprep.subr.bf16.mxu0 0
    %1068 = vmatpush1.bf16.msra.mxu0 0
    %1069 = vmatprep.subr.bf16.mxu0 0
    %1070 = vmatpush1.bf16.msra.mxu0 0
    %1071 = vmatprep.subr.bf16.mxu0 0
    %1072 = vmatpush1.bf16.msra.mxu0 0
    %1073 = vmatprep.subr.bf16.mxu0 0
    %1074 = vmatpush1.bf16.msra.mxu0 0
    %1075 = vmatprep.mubr.bf16.mxu0 0
    %1076 = vmatmul.mubr.bf16.gmra.mrb[0].mxu0 %v1038
    %v1077 = vpop.f32.mrb[0].mxu0
    %v1078 = vadd.f32 0.0, %v1077
    %v1079 = vpop.f32.mrb[0].mxu0
    %v1080 = vpop.f32.mrb[0].mxu0
    %v1081 = vadd.f32 0.0, %v1080
    %v1082 = vpop.f32.mrb[0].mxu0
    %1083 = vdwg.mxu0
    %1084 = vrot.lane.b32.xlu0 %v822, 96
    %v1085 = vpop.permute.xlu0 %1084
    %1086 = vrot.lane.b32.xlu0 %v823, 96
    %v1087 = vpop.permute.xlu0 %1086
    %1088 = vrot.lane.b32.xlu0 %v824, 96
    %v1089 = vpop.permute.xlu0 %1088
    %1090 = vrot.lane.b32.xlu0 %v825, 96
    %v1091 = vpop.permute.xlu0 %1090
    %v1096 = vpack.c.bf16 %v1087, %v1085
    %v1097 = vpack.c.bf16 %v1091, %v1089
    %1099 = vrot.lane.b32.xlu0 %v820, 96
    %v1100 = vpop.permute.xlu0 %1099
    %v1102 = vsel %vm832, %v1100, 0
    %v1105 = vsel %vm832, %v1096, 0
    %1107 = vmatprep.subr.bf16.mxu0 0
    %1108 = vmatpush1.bf16.xpose.msra.mxu0 %v1105
    %1109 = vmatprep.subr.bf16.mxu0 0
    %1110 = vmatpush1.bf16.xpose.msra.mxu0 0
    %1111 = vmatprep.subr.bf16.mxu0 0
    %1112 = vmatpush1.bf16.xpose.msra.mxu0 0
    %1113 = vmatprep.subr.bf16.mxu0 0
    %1114 = vmatpush1.bf16.xpose.msra.mxu0 0
    %1115 = vmatprep.subr.bf16.mxu0 0
    %1116 = vmatpush1.bf16.xpose.msra.mxu0 0
    %1117 = vmatprep.subr.bf16.mxu0 0
    %1118 = vmatpush1.bf16.xpose.msra.mxu0 0
    %1119 = vmatprep.subr.bf16.mxu0 0
    %1120 = vmatpush1.bf16.xpose.msra.mxu0 0
    %1121 = vmatprep.subr.bf16.mxu0 0
    %1122 = vmatpush1.bf16.xpose.msra.mxu0 0
    %1123 = vmatprep.subr.bf16.mxu0 0
    %1124 = vmatpush1.bf16.xpose.msra.mxu0 0
    %1125 = vmatprep.subr.bf16.mxu0 0
    %1126 = vmatpush1.bf16.xpose.msra.mxu0 0
    %1127 = vmatprep.subr.bf16.mxu0 0
    %1128 = vmatpush1.bf16.xpose.msra.mxu0 0
    %1129 = vmatprep.subr.bf16.mxu0 0
    %1130 = vmatpush1.bf16.xpose.msra.mxu0 0
    %1131 = vmatprep.subr.bf16.mxu0 0
    %1132 = vmatpush1.bf16.xpose.msra.mxu0 0
    %1133 = vmatprep.subr.bf16.mxu0 0
    %1134 = vmatpush1.bf16.xpose.msra.mxu0 0
    %1135 = vmatprep.subr.bf16.mxu0 0
    %1136 = vmatpush1.bf16.xpose.msra.mxu0 0
    %1137 = vmatprep.subr.bf16.mxu0 0
    %1138 = vmatpush1.bf16.xpose.msra.mxu0 0
    %1139 = vmatprep.mubr.bf16.mxu0 0
    %1140 = vmatmul.mubr.bf16.gmra.mrb[0].mxu0 %v1102
    %v1141 = vpop.f32.mrb[0].mxu0
    %v1142 = vadd.f32 0.0, %v1141
    %v1143 = vpop.f32.mrb[0].mxu0
    %v1144 = vpop.f32.mrb[0].mxu0
    %v1145 = vadd.f32 0.0, %v1144
    %v1146 = vpop.f32.mrb[0].mxu0
    %1147 = vdwg.mxu0
    %1149 = vrot.lane.b32.xlu0 %v821, 96
    %v1150 = vpop.permute.xlu0 %1149
    %v1152 = vsel %vm832, %v1150, 0
    %v1155 = vsel %vm832, %v1097, 0
    %1157 = vmatprep.subr.bf16.mxu0 0
    %1158 = vmatpush1.bf16.xpose.msra.mxu0 %v1155
    %1159 = vmatprep.subr.bf16.mxu0 0
    %1160 = vmatpush1.bf16.xpose.msra.mxu0 0
    %1161 = vmatprep.subr.bf16.mxu0 0
    %1162 = vmatpush1.bf16.xpose.msra.mxu0 0
    %1163 = vmatprep.subr.bf16.mxu0 0
    %1164 = vmatpush1.bf16.xpose.msra.mxu0 0
    %1165 = vmatprep.subr.bf16.mxu0 0
    %1166 = vmatpush1.bf16.xpose.msra.mxu0 0
    %1167 = vmatprep.subr.bf16.mxu0 0
    %1168 = vmatpush1.bf16.xpose.msra.mxu0 0
    %1169 = vmatprep.subr.bf16.mxu0 0
    %1170 = vmatpush1.bf16.xpose.msra.mxu0 0
    %1171 = vmatprep.subr.bf16.mxu0 0
    %1172 = vmatpush1.bf16.xpose.msra.mxu0 0
    %1173 = vmatprep.subr.bf16.mxu0 0
    %1174 = vmatpush1.bf16.xpose.msra.mxu0 0
    %1175 = vmatprep.subr.bf16.mxu0 0
    %1176 = vmatpush1.bf16.xpose.msra.mxu0 0
    %1177 = vmatprep.subr.bf16.mxu0 0
    %1178 = vmatpush1.bf16.xpose.msra.mxu0 0
    %1179 = vmatprep.subr.bf16.mxu0 0
    %1180 = vmatpush1.bf16.xpose.msra.mxu0 0
    %1181 = vmatprep.subr.bf16.mxu0 0
    %1182 = vmatpush1.bf16.xpose.msra.mxu0 0
    %1183 = vmatprep.subr.bf16.mxu0 0
    %1184 = vmatpush1.bf16.xpose.msra.mxu0 0
    %1185 = vmatprep.subr.bf16.mxu0 0
    %1186 = vmatpush1.bf16.xpose.msra.mxu0 0
    %1187 = vmatprep.subr.bf16.mxu0 0
    %1188 = vmatpush1.bf16.xpose.msra.mxu0 0
    %1189 = vmatprep.mubr.bf16.mxu0 0
    %1190 = vmatmul.mubr.bf16.gmra.mrb[0].mxu0 %v1152
    %v1191 = vpop.f32.mrb[0].mxu0
    %v1192 = vadd.f32 0.0, %v1191
    %v1193 = vpop.f32.mrb[0].mxu0
    %v1194 = vpop.f32.mrb[0].mxu0
    %v1195 = vadd.f32 0.0, %v1194
    %v1196 = vpop.f32.mrb[0].mxu0
    %1197 = vdwg.mxu0
    %v1198 = vmul.f32 %v1142, 0.17677669
    %v1199 = vmul.f32 %v1145, 0.17677669
    %v1200 = vmul.f32 %v1192, 0.17677669
    %v1201 = vmul.f32 %v1195, 0.17677669
    %v1202 = vadd.f32 %v1198, %v183
    %v1203 = vadd.f32 %v1199, %v184
    %v1204 = vadd.f32 %v1200, %v185
    %v1205 = vadd.f32 %v1201, %v186
    %v1206 = vsel %vm935, %v1202, -inf
    %1207 = vmax.xlane.f32.xlu0 %v1206
    %v1208 = vpop.xlane.xlu0 %1207
    %v1209 = vsel %vm939, %v1203, -inf
    %1210 = vmax.xlane.f32.xlu0 %v1209
    %v1211 = vpop.xlane.xlu0 %1210
    %v1212 = vsel %vm935, %v1204, -inf
    %1213 = vmax.xlane.f32.xlu0 %v1212
    %v1214 = vpop.xlane.xlu0 %1213
    %v1215 = vsel %vm939, %v1205, -inf
    %1216 = vmax.xlane.f32.xlu0 %v1215
    %v1217 = vpop.xlane.xlu0 %1216
    %v1218 = vsub.f32 %v1202, %v1208
    %v1219 = vsub.f32 %v1203, %v1211
    %v1220 = vsub.f32 %v1204, %v1214
    %v1221 = vsub.f32 %v1205, %v1217
    %v1222 = vmul.f32 %v1218, 1.442695
    %v1223 = vpow.pop %v1222
    %v1224 = vmul.f32 %v1219, 1.442695
    %v1225 = vpow.pop %v1224
    %v1226 = vmul.f32 %v1220, 1.442695
    %v1227 = vpow.pop %v1226
    %v1228 = vmul.f32 %v1221, 1.442695
    %v1229 = vpow.pop %v1228
    %v1230 = vsel %vm935, %v1223, 0.0
    %1231 = vadd.xlane.f32.xlu0 %v1230
    %v1232 = vpop.xlane.xlu0 %1231
    %v1233 = vsel %vm939, %v1225, 0.0
    %1234 = vadd.xlane.f32.xlu0 %v1233
    %v1235 = vpop.xlane.xlu0 %1234
    %v1236 = vsel %vm935, %v1227, 0.0
    %1237 = vadd.xlane.f32.xlu0 %v1236
    %v1238 = vpop.xlane.xlu0 %1237
    %v1239 = vsel %vm939, %v1229, 0.0
    %1240 = vadd.xlane.f32.xlu0 %v1239
    %v1241 = vpop.xlane.xlu0 %1240
    %v1242 = vrcp.pop %v1232
    %v1243 = vrcp.pop %v1235
    %v1244 = vrcp.pop %v1238
    %v1245 = vrcp.pop %v1241
    %v1246 = vmul.f32 %v1223, %v1242
    %v1247 = vmul.f32 %v1225, %v1243
    %v1248 = vmul.f32 %v1227, %v1244
    %v1249 = vmul.f32 %v1229, %v1245
    %v1250 = vpack.c.bf16 %v1247, %v1246
    %v1251 = vpack.c.bf16 %v1249, %v1248
    %1253 = vrot.lane.b32.xlu0 %v987, 96
    %v1254 = vpop.permute.xlu0 %1253
    %v1256 = vsel %vm935, %v1250, 0
    %v1259 = vsel %vm992, %v1254, 0
    %1261 = vmatprep.subr.bf16.mxu0 0
    %1262 = vmatpush1.bf16.msra.mxu0 %v1259
    %1263 = vmatprep.subr.bf16.mxu0 0
    %1264 = vmatpush1.bf16.msra.mxu0 0
    %1265 = vmatprep.subr.bf16.mxu0 0
    %1266 = vmatpush1.bf16.msra.mxu0 0
    %1267 = vmatprep.subr.bf16.mxu0 0
    %1268 = vmatpush1.bf16.msra.mxu0 0
    %1269 = vmatprep.subr.bf16.mxu0 0
    %1270 = vmatpush1.bf16.msra.mxu0 0
    %1271 = vmatprep.subr.bf16.mxu0 0
    %1272 = vmatpush1.bf16.msra.mxu0 0
    %1273 = vmatprep.subr.bf16.mxu0 0
    %1274 = vmatpush1.bf16.msra.mxu0 0
    %1275 = vmatprep.subr.bf16.mxu0 0
    %1276 = vmatpush1.bf16.msra.mxu0 0
    %1277 = vmatprep.subr.bf16.mxu0 0
    %1278 = vmatpush1.bf16.msra.mxu0 0
    %1279 = vmatprep.subr.bf16.mxu0 0
    %1280 = vmatpush1.bf16.msra.mxu0 0
    %1281 = vmatprep.subr.bf16.mxu0 0
    %1282 = vmatpush1.bf16.msra.mxu0 0
    %1283 = vmatprep.subr.bf16.mxu0 0
    %1284 = vmatpush1.bf16.msra.mxu0 0
    %1285 = vmatprep.subr.bf16.mxu0 0
    %1286 = vmatpush1.bf16.msra.mxu0 0
    %1287 = vmatprep.subr.bf16.mxu0 0
    %1288 = vmatpush1.bf16.msra.mxu0 0
    %1289 = vmatprep.subr.bf16.mxu0 0
    %1290 = vmatpush1.bf16.msra.mxu0 0
    %1291 = vmatprep.subr.bf16.mxu0 0
    %1292 = vmatpush1.bf16.msra.mxu0 0
    %1293 = vmatprep.mubr.bf16.mxu0 0
    %1294 = vmatmul.mubr.bf16.gmra.mrb[0].mxu0 %v1256
    %v1295 = vpop.f32.mrb[0].mxu0
    %v1296 = vadd.f32 0.0, %v1295
    %v1297 = vpop.f32.mrb[0].mxu0
    %v1298 = vpop.f32.mrb[0].mxu0
    %v1299 = vadd.f32 0.0, %v1298
    %v1300 = vpop.f32.mrb[0].mxu0
    %1301 = vdwg.mxu0
    %1303 = vrot.lane.b32.xlu0 %v988, 96
    %v1304 = vpop.permute.xlu0 %1303
    %v1306 = vsel %vm935, %v1251, 0
    %v1309 = vsel %vm992, %v1304, 0
    %1311 = vmatprep.subr.bf16.mxu0 0
    %1312 = vmatpush1.bf16.msra.mxu0 %v1309
    %1313 = vmatprep.subr.bf16.mxu0 0
    %1314 = vmatpush1.bf16.msra.mxu0 0
    %1315 = vmatprep.subr.bf16.mxu0 0
    %1316 = vmatpush1.bf16.msra.mxu0 0
    %1317 = vmatprep.subr.bf16.mxu0 0
    %1318 = vmatpush1.bf16.msra.mxu0 0
    %1319 = vmatprep.subr.bf16.mxu0 0
    %1320 = vmatpush1.bf16.msra.mxu0 0
    %1321 = vmatprep.subr.bf16.mxu0 0
    %1322 = vmatpush1.bf16.msra.mxu0 0
    %1323 = vmatprep.subr.bf16.mxu0 0
    %1324 = vmatpush1.bf16.msra.mxu0 0
    %1325 = vmatprep.subr.bf16.mxu0 0
    %1326 = vmatpush1.bf16.msra.mxu0 0
    %1327 = vmatprep.subr.bf16.mxu0 0
    %1328 = vmatpush1.bf16.msra.mxu0 0
    %1329 = vmatprep.subr.bf16.mxu0 0
    %1330 = vmatpush1.bf16.msra.mxu0 0
    %1331 = vmatprep.subr.bf16.mxu0 0
    %1332 = vmatpush1.bf16.msra.mxu0 0
    %1333 = vmatprep.subr.bf16.mxu0 0
    %1334 = vmatpush1.bf16.msra.mxu0 0
    %1335 = vmatprep.subr.bf16.mxu0 0
    %1336 = vmatpush1.bf16.msra.mxu0 0
    %1337 = vmatprep.subr.bf16.mxu0 0
    %1338 = vmatpush1.bf16.msra.mxu0 0
    %1339 = vmatprep.subr.bf16.mxu0 0
    %1340 = vmatpush1.bf16.msra.mxu0 0
    %1341 = vmatprep.subr.bf16.mxu0 0
    %1342 = vmatpush1.bf16.msra.mxu0 0
    %1343 = vmatprep.mubr.bf16.mxu0 0
    %1344 = vmatmul.mubr.bf16.gmra.mrb[0].mxu0 %v1306
    %v1345 = vpop.f32.mrb[0].mxu0
    %v1346 = vadd.f32 0.0, %v1345
    %v1347 = vpop.f32.mrb[0].mxu0
    %v1348 = vpop.f32.mrb[0].mxu0
    %v1349 = vadd.f32 0.0, %v1348
    %v1350 = vpop.f32.mrb[0].mxu0
    %1351 = vdwg.mxu0
    %1352 = vrot.lane.b32.xlu0 %v822, 64
    %v1353 = vpop.permute.xlu0 %1352
    %1354 = vrot.lane.b32.xlu0 %v823, 64
    %v1355 = vpop.permute.xlu0 %1354
    %1356 = vrot.lane.b32.xlu0 %v824, 64
    %v1357 = vpop.permute.xlu0 %1356
    %1358 = vrot.lane.b32.xlu0 %v825, 64
    %v1359 = vpop.permute.xlu0 %1358
    %v1364 = vpack.c.bf16 %v1355, %v1353
    %v1365 = vpack.c.bf16 %v1359, %v1357
    %1366 = vrot.lane.b32.xlu0 %v820, 64
    %v1367 = vpop.permute.xlu0 %1366
    %v1369 = vsel %vm832, %v1367, 0
    %v1372 = vsel %vm832, %v1364, 0
    %1374 = vmatprep.subr.bf16.mxu0 0
    %1375 = vmatpush1.bf16.xpose.msra.mxu0 %v1372
    %1376 = vmatprep.subr.bf16.mxu0 0
    %1377 = vmatpush1.bf16.xpose.msra.mxu0 0
    %1378 = vmatprep.subr.bf16.mxu0 0
    %1379 = vmatpush1.bf16.xpose.msra.mxu0 0
    %1380 = vmatprep.subr.bf16.mxu0 0
    %1381 = vmatpush1.bf16.xpose.msra.mxu0 0
    %1382 = vmatprep.subr.bf16.mxu0 0
    %1383 = vmatpush1.bf16.xpose.msra.mxu0 0
    %1384 = vmatprep.subr.bf16.mxu0 0
    %1385 = vmatpush1.bf16.xpose.msra.mxu0 0
    %1386 = vmatprep.subr.bf16.mxu0 0
    %1387 = vmatpush1.bf16.xpose.msra.mxu0 0
    %1388 = vmatprep.subr.bf16.mxu0 0
    %1389 = vmatpush1.bf16.xpose.msra.mxu0 0
    %1390 = vmatprep.subr.bf16.mxu0 0
    %1391 = vmatpush1.bf16.xpose.msra.mxu0 0
    %1392 = vmatprep.subr.bf16.mxu0 0
    %1393 = vmatpush1.bf16.xpose.msra.mxu0 0
    %1394 = vmatprep.subr.bf16.mxu0 0
    %1395 = vmatpush1.bf16.xpose.msra.mxu0 0
    %1396 = vmatprep.subr.bf16.mxu0 0
    %1397 = vmatpush1.bf16.xpose.msra.mxu0 0
    %1398 = vmatprep.subr.bf16.mxu0 0
    %1399 = vmatpush1.bf16.xpose.msra.mxu0 0
    %1400 = vmatprep.subr.bf16.mxu0 0
    %1401 = vmatpush1.bf16.xpose.msra.mxu0 0
    %1402 = vmatprep.subr.bf16.mxu0 0
    %1403 = vmatpush1.bf16.xpose.msra.mxu0 0
    %1404 = vmatprep.subr.bf16.mxu0 0
    %1405 = vmatpush1.bf16.xpose.msra.mxu0 0
    %1406 = vmatprep.mubr.bf16.mxu0 0
    %1407 = vmatmul.mubr.bf16.gmra.mrb[0].mxu0 %v1369
    %v1408 = vpop.f32.mrb[0].mxu0
    %v1409 = vadd.f32 0.0, %v1408
    %v1410 = vpop.f32.mrb[0].mxu0
    %v1411 = vpop.f32.mrb[0].mxu0
    %v1412 = vadd.f32 0.0, %v1411
    %v1413 = vpop.f32.mrb[0].mxu0
    %1414 = vdwg.mxu0
    %1415 = vrot.lane.b32.xlu0 %v821, 64
    %v1416 = vpop.permute.xlu0 %1415
    %v1418 = vsel %vm832, %v1416, 0
    %v1421 = vsel %vm832, %v1365, 0
    %1423 = vmatprep.subr.bf16.mxu0 0
    %1424 = vmatpush1.bf16.xpose.msra.mxu0 %v1421
    %1425 = vmatprep.subr.bf16.mxu0 0
    %1426 = vmatpush1.bf16.xpose.msra.mxu0 0
    %1427 = vmatprep.subr.bf16.mxu0 0
    %1428 = vmatpush1.bf16.xpose.msra.mxu0 0
    %1429 = vmatprep.subr.bf16.mxu0 0
    %1430 = vmatpush1.bf16.xpose.msra.mxu0 0
    %1431 = vmatprep.subr.bf16.mxu0 0
    %1432 = vmatpush1.bf16.xpose.msra.mxu0 0
    %1433 = vmatprep.subr.bf16.mxu0 0
    %1434 = vmatpush1.bf16.xpose.msra.mxu0 0
    %1435 = vmatprep.subr.bf16.mxu0 0
    %1436 = vmatpush1.bf16.xpose.msra.mxu0 0
    %1437 = vmatprep.subr.bf16.mxu0 0
    %1438 = vmatpush1.bf16.xpose.msra.mxu0 0
    %1439 = vmatprep.subr.bf16.mxu0 0
    %1440 = vmatpush1.bf16.xpose.msra.mxu0 0
    %1441 = vmatprep.subr.bf16.mxu0 0
    %1442 = vmatpush1.bf16.xpose.msra.mxu0 0
    %1443 = vmatprep.subr.bf16.mxu0 0
    %1444 = vmatpush1.bf16.xpose.msra.mxu0 0
    %1445 = vmatprep.subr.bf16.mxu0 0
    %1446 = vmatpush1.bf16.xpose.msra.mxu0 0
    %1447 = vmatprep.subr.bf16.mxu0 0
    %1448 = vmatpush1.bf16.xpose.msra.mxu0 0
    %1449 = vmatprep.subr.bf16.mxu0 0
    %1450 = vmatpush1.bf16.xpose.msra.mxu0 0
    %1451 = vmatprep.subr.bf16.mxu0 0
    %1452 = vmatpush1.bf16.xpose.msra.mxu0 0
    %1453 = vmatprep.subr.bf16.mxu0 0
    %1454 = vmatpush1.bf16.xpose.msra.mxu0 0
    %1455 = vmatprep.mubr.bf16.mxu0 0
    %1456 = vmatmul.mubr.bf16.gmra.mrb[0].mxu0 %v1418
    %v1457 = vpop.f32.mrb[0].mxu0
    %v1458 = vadd.f32 0.0, %v1457
    %v1459 = vpop.f32.mrb[0].mxu0
    %v1460 = vpop.f32.mrb[0].mxu0
    %v1461 = vadd.f32 0.0, %v1460
    %v1462 = vpop.f32.mrb[0].mxu0
    %1463 = vdwg.mxu0
    %v1464 = vmul.f32 %v1409, 0.17677669
    %v1465 = vmul.f32 %v1412, 0.17677669
    %v1466 = vmul.f32 %v1458, 0.17677669
    %v1467 = vmul.f32 %v1461, 0.17677669
    %v1468 = vadd.f32 %v1464, %v183
    %v1469 = vadd.f32 %v1465, %v184
    %v1470 = vadd.f32 %v1466, %v185
    %v1471 = vadd.f32 %v1467, %v186
    %v1472 = vsel %vm935, %v1468, -inf
    %1473 = vmax.xlane.f32.xlu0 %v1472
    %v1474 = vpop.xlane.xlu0 %1473
    %v1475 = vsel %vm939, %v1469, -inf
    %1476 = vmax.xlane.f32.xlu0 %v1475
    %v1477 = vpop.xlane.xlu0 %1476
    %v1478 = vsel %vm935, %v1470, -inf
    %1479 = vmax.xlane.f32.xlu0 %v1478
    %v1480 = vpop.xlane.xlu0 %1479
    %v1481 = vsel %vm939, %v1471, -inf
    %1482 = vmax.xlane.f32.xlu0 %v1481
    %v1483 = vpop.xlane.xlu0 %1482
    %v1484 = vsub.f32 %v1468, %v1474
    %v1485 = vsub.f32 %v1469, %v1477
    %v1486 = vsub.f32 %v1470, %v1480
    %v1487 = vsub.f32 %v1471, %v1483
    %v1488 = vmul.f32 %v1484, 1.442695
    %v1489 = vpow.pop %v1488
    %v1490 = vmul.f32 %v1485, 1.442695
    %v1491 = vpow.pop %v1490
    %v1492 = vmul.f32 %v1486, 1.442695
    %v1493 = vpow.pop %v1492
    %v1494 = vmul.f32 %v1487, 1.442695
    %v1495 = vpow.pop %v1494
    %v1496 = vsel %vm935, %v1489, 0.0
    %1497 = vadd.xlane.f32.xlu0 %v1496
    %v1498 = vpop.xlane.xlu0 %1497
    %v1499 = vsel %vm939, %v1491, 0.0
    %1500 = vadd.xlane.f32.xlu0 %v1499
    %v1501 = vpop.xlane.xlu0 %1500
    %v1502 = vsel %vm935, %v1493, 0.0
    %1503 = vadd.xlane.f32.xlu0 %v1502
    %v1504 = vpop.xlane.xlu0 %1503
    %v1505 = vsel %vm939, %v1495, 0.0
    %1506 = vadd.xlane.f32.xlu0 %v1505
    %v1507 = vpop.xlane.xlu0 %1506
    %v1508 = vrcp.pop %v1498
    %v1509 = vrcp.pop %v1501
    %v1510 = vrcp.pop %v1504
    %v1511 = vrcp.pop %v1507
    %v1512 = vmul.f32 %v1489, %v1508
    %v1513 = vmul.f32 %v1491, %v1509
    %v1514 = vmul.f32 %v1493, %v1510
    %v1515 = vmul.f32 %v1495, %v1511
    %v1516 = vpack.c.bf16 %v1513, %v1512
    %v1517 = vpack.c.bf16 %v1515, %v1514
    %1518 = vrot.lane.b32.xlu0 %v987, 64
    %v1519 = vpop.permute.xlu0 %1518
    %v1521 = vsel %vm935, %v1516, 0
    %v1524 = vsel %vm992, %v1519, 0
    %1526 = vmatprep.subr.bf16.mxu0 0
    %1527 = vmatpush1.bf16.msra.mxu0 %v1524
    %1528 = vmatprep.subr.bf16.mxu0 0
    %1529 = vmatpush1.bf16.msra.mxu0 0
    %1530 = vmatprep.subr.bf16.mxu0 0
    %1531 = vmatpush1.bf16.msra.mxu0 0
    %1532 = vmatprep.subr.bf16.mxu0 0
    %1533 = vmatpush1.bf16.msra.mxu0 0
    %1534 = vmatprep.subr.bf16.mxu0 0
    %1535 = vmatpush1.bf16.msra.mxu0 0
    %1536 = vmatprep.subr.bf16.mxu0 0
    %1537 = vmatpush1.bf16.msra.mxu0 0
    %1538 = vmatprep.subr.bf16.mxu0 0
    %1539 = vmatpush1.bf16.msra.mxu0 0
    %1540 = vmatprep.subr.bf16.mxu0 0
    %1541 = vmatpush1.bf16.msra.mxu0 0
    %1542 = vmatprep.subr.bf16.mxu0 0
    %1543 = vmatpush1.bf16.msra.mxu0 0
    %1544 = vmatprep.subr.bf16.mxu0 0
    %1545 = vmatpush1.bf16.msra.mxu0 0
    %1546 = vmatprep.subr.bf16.mxu0 0
    %1547 = vmatpush1.bf16.msra.mxu0 0
    %1548 = vmatprep.subr.bf16.mxu0 0
    %1549 = vmatpush1.bf16.msra.mxu0 0
    %1550 = vmatprep.subr.bf16.mxu0 0
    %1551 = vmatpush1.bf16.msra.mxu0 0
    %1552 = vmatprep.subr.bf16.mxu0 0
    %1553 = vmatpush1.bf16.msra.mxu0 0
    %1554 = vmatprep.subr.bf16.mxu0 0
    %1555 = vmatpush1.bf16.msra.mxu0 0
    %1556 = vmatprep.subr.bf16.mxu0 0
    %1557 = vmatpush1.bf16.msra.mxu0 0
    %1558 = vmatprep.mubr.bf16.mxu0 0
    %1559 = vmatmul.mubr.bf16.gmra.mrb[0].mxu0 %v1521
    %v1560 = vpop.f32.mrb[0].mxu0
    %v1561 = vadd.f32 0.0, %v1560
    %v1562 = vpop.f32.mrb[0].mxu0
    %v1563 = vpop.f32.mrb[0].mxu0
    %v1564 = vadd.f32 0.0, %v1563
    %v1565 = vpop.f32.mrb[0].mxu0
    %1566 = vdwg.mxu0
    %1567 = vrot.lane.b32.xlu0 %v988, 64
    %v1568 = vpop.permute.xlu0 %1567
    %v1570 = vsel %vm935, %v1517, 0
    %v1573 = vsel %vm992, %v1568, 0
    %1575 = vmatprep.subr.bf16.mxu0 0
    %1576 = vmatpush1.bf16.msra.mxu0 %v1573
    %1577 = vmatprep.subr.bf16.mxu0 0
    %1578 = vmatpush1.bf16.msra.mxu0 0
    %1579 = vmatprep.subr.bf16.mxu0 0
    %1580 = vmatpush1.bf16.msra.mxu0 0
    %1581 = vmatprep.subr.bf16.mxu0 0
    %1582 = vmatpush1.bf16.msra.mxu0 0
    %1583 = vmatprep.subr.bf16.mxu0 0
    %1584 = vmatpush1.bf16.msra.mxu0 0
    %1585 = vmatprep.subr.bf16.mxu0 0
    %1586 = vmatpush1.bf16.msra.mxu0 0
    %1587 = vmatprep.subr.bf16.mxu0 0
    %1588 = vmatpush1.bf16.msra.mxu0 0
    %1589 = vmatprep.subr.bf16.mxu0 0
    %1590 = vmatpush1.bf16.msra.mxu0 0
    %1591 = vmatprep.subr.bf16.mxu0 0
    %1592 = vmatpush1.bf16.msra.mxu0 0
    %1593 = vmatprep.subr.bf16.mxu0 0
    %1594 = vmatpush1.bf16.msra.mxu0 0
    %1595 = vmatprep.subr.bf16.mxu0 0
    %1596 = vmatpush1.bf16.msra.mxu0 0
    %1597 = vmatprep.subr.bf16.mxu0 0
    %1598 = vmatpush1.bf16.msra.mxu0 0
    %1599 = vmatprep.subr.bf16.mxu0 0
    %1600 = vmatpush1.bf16.msra.mxu0 0
    %1601 = vmatprep.subr.bf16.mxu0 0
    %1602 = vmatpush1.bf16.msra.mxu0 0
    %1603 = vmatprep.subr.bf16.mxu0 0
    %1604 = vmatpush1.bf16.msra.mxu0 0
    %1605 = vmatprep.subr.bf16.mxu0 0
    %1606 = vmatpush1.bf16.msra.mxu0 0
    %1607 = vmatprep.mubr.bf16.mxu0 0
    %1608 = vmatmul.mubr.bf16.gmra.mrb[0].mxu0 %v1570
    %v1609 = vpop.f32.mrb[0].mxu0
    %v1610 = vadd.f32 0.0, %v1609
    %v1611 = vpop.f32.mrb[0].mxu0
    %v1612 = vpop.f32.mrb[0].mxu0
    %v1613 = vadd.f32 0.0, %v1612
    %v1614 = vpop.f32.mrb[0].mxu0
    %1615 = vdwg.mxu0
    %1616 = vrot.lane.b32.xlu0 %v822, 32
    %v1617 = vpop.permute.xlu0 %1616
    %1618 = vrot.lane.b32.xlu0 %v823, 32
    %v1619 = vpop.permute.xlu0 %1618
    %1620 = vrot.lane.b32.xlu0 %v824, 32
    %v1621 = vpop.permute.xlu0 %1620
    %1622 = vrot.lane.b32.xlu0 %v825, 32
    %v1623 = vpop.permute.xlu0 %1622
    %v1628 = vpack.c.bf16 %v1619, %v1617
    %v1629 = vpack.c.bf16 %v1623, %v1621
    %1630 = vrot.lane.b32.xlu0 %v820, 32
    %v1631 = vpop.permute.xlu0 %1630
    %v1633 = vsel %vm832, %v1631, 0
    %v1636 = vsel %vm832, %v1628, 0
    %1638 = vmatprep.subr.bf16.mxu0 0
    %1639 = vmatpush1.bf16.xpose.msra.mxu0 %v1636
    %1640 = vmatprep.subr.bf16.mxu0 0
    %1641 = vmatpush1.bf16.xpose.msra.mxu0 0
    %1642 = vmatprep.subr.bf16.mxu0 0
    %1643 = vmatpush1.bf16.xpose.msra.mxu0 0
    %1644 = vmatprep.subr.bf16.mxu0 0
    %1645 = vmatpush1.bf16.xpose.msra.mxu0 0
    %1646 = vmatprep.subr.bf16.mxu0 0
    %1647 = vmatpush1.bf16.xpose.msra.mxu0 0
    %1648 = vmatprep.subr.bf16.mxu0 0
    %1649 = vmatpush1.bf16.xpose.msra.mxu0 0
    %1650 = vmatprep.subr.bf16.mxu0 0
    %1651 = vmatpush1.bf16.xpose.msra.mxu0 0
    %1652 = vmatprep.subr.bf16.mxu0 0
    %1653 = vmatpush1.bf16.xpose.msra.mxu0 0
    %1654 = vmatprep.subr.bf16.mxu0 0
    %1655 = vmatpush1.bf16.xpose.msra.mxu0 0
    %1656 = vmatprep.subr.bf16.mxu0 0
    %1657 = vmatpush1.bf16.xpose.msra.mxu0 0
    %1658 = vmatprep.subr.bf16.mxu0 0
    %1659 = vmatpush1.bf16.xpose.msra.mxu0 0
    %1660 = vmatprep.subr.bf16.mxu0 0
    %1661 = vmatpush1.bf16.xpose.msra.mxu0 0
    %1662 = vmatprep.subr.bf16.mxu0 0
    %1663 = vmatpush1.bf16.xpose.msra.mxu0 0
    %1664 = vmatprep.subr.bf16.mxu0 0
    %1665 = vmatpush1.bf16.xpose.msra.mxu0 0
    %1666 = vmatprep.subr.bf16.mxu0 0
    %1667 = vmatpush1.bf16.xpose.msra.mxu0 0
    %1668 = vmatprep.subr.bf16.mxu0 0
    %1669 = vmatpush1.bf16.xpose.msra.mxu0 0
    %1670 = vmatprep.mubr.bf16.mxu0 0
    %1671 = vmatmul.mubr.bf16.gmra.mrb[0].mxu0 %v1633
    %v1672 = vpop.f32.mrb[0].mxu0
    %v1673 = vadd.f32 0.0, %v1672
    %v1674 = vpop.f32.mrb[0].mxu0
    %v1675 = vpop.f32.mrb[0].mxu0
    %v1676 = vadd.f32 0.0, %v1675
    %v1677 = vpop.f32.mrb[0].mxu0
    %1678 = vdwg.mxu0
    %1679 = vrot.lane.b32.xlu0 %v821, 32
    %v1680 = vpop.permute.xlu0 %1679
    %v1682 = vsel %vm832, %v1680, 0
    %v1685 = vsel %vm832, %v1629, 0
    %1687 = vmatprep.subr.bf16.mxu0 0
    %1688 = vmatpush1.bf16.xpose.msra.mxu0 %v1685
    %1689 = vmatprep.subr.bf16.mxu0 0
    %1690 = vmatpush1.bf16.xpose.msra.mxu0 0
    %1691 = vmatprep.subr.bf16.mxu0 0
    %1692 = vmatpush1.bf16.xpose.msra.mxu0 0
    %1693 = vmatprep.subr.bf16.mxu0 0
    %1694 = vmatpush1.bf16.xpose.msra.mxu0 0
    %1695 = vmatprep.subr.bf16.mxu0 0
    %1696 = vmatpush1.bf16.xpose.msra.mxu0 0
    %1697 = vmatprep.subr.bf16.mxu0 0
    %1698 = vmatpush1.bf16.xpose.msra.mxu0 0
    %1699 = vmatprep.subr.bf16.mxu0 0
    %1700 = vmatpush1.bf16.xpose.msra.mxu0 0
    %1701 = vmatprep.subr.bf16.mxu0 0
    %1702 = vmatpush1.bf16.xpose.msra.mxu0 0
    %1703 = vmatprep.subr.bf16.mxu0 0
    %1704 = vmatpush1.bf16.xpose.msra.mxu0 0
    %1705 = vmatprep.subr.bf16.mxu0 0
    %1706 = vmatpush1.bf16.xpose.msra.mxu0 0
    %1707 = vmatprep.subr.bf16.mxu0 0
    %1708 = vmatpush1.bf16.xpose.msra.mxu0 0
    %1709 = vmatprep.subr.bf16.mxu0 0
    %1710 = vmatpush1.bf16.xpose.msra.mxu0 0
    %1711 = vmatprep.subr.bf16.mxu0 0
    %1712 = vmatpush1.bf16.xpose.msra.mxu0 0
    %1713 = vmatprep.subr.bf16.mxu0 0
    %1714 = vmatpush1.bf16.xpose.msra.mxu0 0
    %1715 = vmatprep.subr.bf16.mxu0 0
    %1716 = vmatpush1.bf16.xpose.msra.mxu0 0
    %1717 = vmatprep.subr.bf16.mxu0 0
    %1718 = vmatpush1.bf16.xpose.msra.mxu0 0
    %1719 = vmatprep.mubr.bf16.mxu0 0
    %1720 = vmatmul.mubr.bf16.gmra.mrb[0].mxu0 %v1682
    %v1721 = vpop.f32.mrb[0].mxu0
    %v1722 = vadd.f32 0.0, %v1721
    %v1723 = vpop.f32.mrb[0].mxu0
    %v1724 = vpop.f32.mrb[0].mxu0
    %v1725 = vadd.f32 0.0, %v1724
    %v1726 = vpop.f32.mrb[0].mxu0
    %1727 = vdwg.mxu0
    %v1728 = vmul.f32 %v1673, 0.17677669
    %v1729 = vmul.f32 %v1676, 0.17677669
    %v1730 = vmul.f32 %v1722, 0.17677669
    %v1731 = vmul.f32 %v1725, 0.17677669
    %v1732 = vadd.f32 %v1728, %v183
    %v1733 = vadd.f32 %v1729, %v184
    %v1734 = vadd.f32 %v1730, %v185
    %v1735 = vadd.f32 %v1731, %v186
    %v1736 = vsel %vm935, %v1732, -inf
    %1737 = vmax.xlane.f32.xlu0 %v1736
    %v1738 = vpop.xlane.xlu0 %1737
    %v1739 = vsel %vm939, %v1733, -inf
    %1740 = vmax.xlane.f32.xlu0 %v1739
    %v1741 = vpop.xlane.xlu0 %1740
    %v1742 = vsel %vm935, %v1734, -inf
    %1743 = vmax.xlane.f32.xlu0 %v1742
    %v1744 = vpop.xlane.xlu0 %1743
    %v1745 = vsel %vm939, %v1735, -inf
    %1746 = vmax.xlane.f32.xlu0 %v1745
    %v1747 = vpop.xlane.xlu0 %1746
    %v1748 = vsub.f32 %v1732, %v1738
    %v1749 = vsub.f32 %v1733, %v1741
    %v1750 = vsub.f32 %v1734, %v1744
    %v1751 = vsub.f32 %v1735, %v1747
    %v1752 = vmul.f32 %v1748, 1.442695
    %v1753 = vpow.pop %v1752
    %v1754 = vmul.f32 %v1749, 1.442695
    %v1755 = vpow.pop %v1754
    %v1756 = vmul.f32 %v1750, 1.442695
    %v1757 = vpow.pop %v1756
    %v1758 = vmul.f32 %v1751, 1.442695
    %v1759 = vpow.pop %v1758
    %v1760 = vsel %vm935, %v1753, 0.0
    %1761 = vadd.xlane.f32.xlu0 %v1760
    %v1762 = vpop.xlane.xlu0 %1761
    %v1763 = vsel %vm939, %v1755, 0.0
    %1764 = vadd.xlane.f32.xlu0 %v1763
    %v1765 = vpop.xlane.xlu0 %1764
    %v1766 = vsel %vm935, %v1757, 0.0
    %1767 = vadd.xlane.f32.xlu0 %v1766
    %v1768 = vpop.xlane.xlu0 %1767
    %v1769 = vsel %vm939, %v1759, 0.0
    %1770 = vadd.xlane.f32.xlu0 %v1769
    %v1771 = vpop.xlane.xlu0 %1770
    %v1772 = vrcp.pop %v1762
    %v1773 = vrcp.pop %v1765
    %v1774 = vrcp.pop %v1768
    %v1775 = vrcp.pop %v1771
    %v1776 = vmul.f32 %v1753, %v1772
    %v1777 = vmul.f32 %v1755, %v1773
    %v1778 = vmul.f32 %v1757, %v1774
    %v1779 = vmul.f32 %v1759, %v1775
    %v1780 = vpack.c.bf16 %v1777, %v1776
    %v1781 = vpack.c.bf16 %v1779, %v1778
    %1782 = vrot.lane.b32.xlu0 %v987, 32
    %v1783 = vpop.permute.xlu0 %1782
    %v1785 = vsel %vm935, %v1780, 0
    %v1788 = vsel %vm992, %v1783, 0
    %1790 = vmatprep.subr.bf16.mxu0 0
    %1791 = vmatpush1.bf16.msra.mxu0 %v1788
    %1792 = vmatprep.subr.bf16.mxu0 0
    %1793 = vmatpush1.bf16.msra.mxu0 0
    %1794 = vmatprep.subr.bf16.mxu0 0
    %1795 = vmatpush1.bf16.msra.mxu0 0
    %1796 = vmatprep.subr.bf16.mxu0 0
    %1797 = vmatpush1.bf16.msra.mxu0 0
    %1798 = vmatprep.subr.bf16.mxu0 0
    %1799 = vmatpush1.bf16.msra.mxu0 0
    %1800 = vmatprep.subr.bf16.mxu0 0
    %1801 = vmatpush1.bf16.msra.mxu0 0
    %1802 = vmatprep.subr.bf16.mxu0 0
    %1803 = vmatpush1.bf16.msra.mxu0 0
    %1804 = vmatprep.subr.bf16.mxu0 0
    %1805 = vmatpush1.bf16.msra.mxu0 0
    %1806 = vmatprep.subr.bf16.mxu0 0
    %1807 = vmatpush1.bf16.msra.mxu0 0
    %1808 = vmatprep.subr.bf16.mxu0 0
    %1809 = vmatpush1.bf16.msra.mxu0 0
    %1810 = vmatprep.subr.bf16.mxu0 0
    %1811 = vmatpush1.bf16.msra.mxu0 0
    %1812 = vmatprep.subr.bf16.mxu0 0
    %1813 = vmatpush1.bf16.msra.mxu0 0
    %1814 = vmatprep.subr.bf16.mxu0 0
    %1815 = vmatpush1.bf16.msra.mxu0 0
    %1816 = vmatprep.subr.bf16.mxu0 0
    %1817 = vmatpush1.bf16.msra.mxu0 0
    %1818 = vmatprep.subr.bf16.mxu0 0
    %1819 = vmatpush1.bf16.msra.mxu0 0
    %1820 = vmatprep.subr.bf16.mxu0 0
    %1821 = vmatpush1.bf16.msra.mxu0 0
    %1822 = vmatprep.mubr.bf16.mxu0 0
    %1823 = vmatmul.mubr.bf16.gmra.mrb[0].mxu0 %v1785
    %v1824 = vpop.f32.mrb[0].mxu0
    %v1825 = vadd.f32 0.0, %v1824
    %v1826 = vpop.f32.mrb[0].mxu0
    %v1827 = vpop.f32.mrb[0].mxu0
    %v1828 = vadd.f32 0.0, %v1827
    %v1829 = vpop.f32.mrb[0].mxu0
    %1830 = vdwg.mxu0
    %1831 = vrot.lane.b32.xlu0 %v988, 32
    %v1832 = vpop.permute.xlu0 %1831
    %v1834 = vsel %vm935, %v1781, 0
    %v1837 = vsel %vm992, %v1832, 0
    %1839 = vmatprep.subr.bf16.mxu0 0
    %1840 = vmatpush1.bf16.msra.mxu0 %v1837
    %1841 = vmatprep.subr.bf16.mxu0 0
    %1842 = vmatpush1.bf16.msra.mxu0 0
    %1843 = vmatprep.subr.bf16.mxu0 0
    %1844 = vmatpush1.bf16.msra.mxu0 0
    %1845 = vmatprep.subr.bf16.mxu0 0
    %1846 = vmatpush1.bf16.msra.mxu0 0
    %1847 = vmatprep.subr.bf16.mxu0 0
    %1848 = vmatpush1.bf16.msra.mxu0 0
    %1849 = vmatprep.subr.bf16.mxu0 0
    %1850 = vmatpush1.bf16.msra.mxu0 0
    %1851 = vmatprep.subr.bf16.mxu0 0
    %1852 = vmatpush1.bf16.msra.mxu0 0
    %1853 = vmatprep.subr.bf16.mxu0 0
    %1854 = vmatpush1.bf16.msra.mxu0 0
    %1855 = vmatprep.subr.bf16.mxu0 0
    %1856 = vmatpush1.bf16.msra.mxu0 0
    %1857 = vmatprep.subr.bf16.mxu0 0
    %1858 = vmatpush1.bf16.msra.mxu0 0
    %1859 = vmatprep.subr.bf16.mxu0 0
    %1860 = vmatpush1.bf16.msra.mxu0 0
    %1861 = vmatprep.subr.bf16.mxu0 0
    %1862 = vmatpush1.bf16.msra.mxu0 0
    %1863 = vmatprep.subr.bf16.mxu0 0
    %1864 = vmatpush1.bf16.msra.mxu0 0
    %1865 = vmatprep.subr.bf16.mxu0 0
    %1866 = vmatpush1.bf16.msra.mxu0 0
    %1867 = vmatprep.subr.bf16.mxu0 0
    %1868 = vmatpush1.bf16.msra.mxu0 0
    %1869 = vmatprep.subr.bf16.mxu0 0
    %1870 = vmatpush1.bf16.msra.mxu0 0
    %1871 = vmatprep.mubr.bf16.mxu0 0
    %1872 = vmatmul.mubr.bf16.gmra.mrb[0].mxu0 %v1834
    %v1873 = vpop.f32.mrb[0].mxu0
    %v1874 = vadd.f32 0.0, %v1873
    %v1875 = vpop.f32.mrb[0].mxu0
    %v1876 = vpop.f32.mrb[0].mxu0
    %v1877 = vadd.f32 0.0, %v1876
    %v1878 = vpop.f32.mrb[0].mxu0
    %1879 = vdwg.mxu0
    %1884 = vrot.lane.b32.xlu0 %v1296, 32
    %v1885 = vpop.permute.xlu0 %1884
    %1886 = vrot.lane.b32.xlu0 %v1299, 32
    %v1887 = vpop.permute.xlu0 %1886
    %1888 = vrot.lane.b32.xlu0 %v1346, 32
    %v1889 = vpop.permute.xlu0 %1888
    %1890 = vrot.lane.b32.xlu0 %v1349, 32
    %v1891 = vpop.permute.xlu0 %1890
    %1900 = vrot.lane.b32.xlu0 %v1561, 64
    %v1901 = vpop.permute.xlu0 %1900
    %1902 = vrot.lane.b32.xlu0 %v1564, 64
    %v1903 = vpop.permute.xlu0 %1902
    %1904 = vrot.lane.b32.xlu0 %v1610, 64
    %v1905 = vpop.permute.xlu0 %1904
    %1906 = vrot.lane.b32.xlu0 %v1613, 64
    %v1907 = vpop.permute.xlu0 %1906
    %1916 = vrot.lane.b32.xlu0 %v1825, 96
    %v1917 = vpop.permute.xlu0 %1916
    %1918 = vrot.lane.b32.xlu0 %v1828, 96
    %v1919 = vpop.permute.xlu0 %1918
    %1920 = vrot.lane.b32.xlu0 %v1874, 96
    %v1921 = vpop.permute.xlu0 %1920
    %1922 = vrot.lane.b32.xlu0 %v1877, 96
    %v1923 = vpop.permute.xlu0 %1922
    %v1928 = vsel %vm832, %v1031, %v1885
    %v1929 = vsel %vm832, %v1034, %v1887
    %v1930 = vsel %vm832, %v1078, %v1889
    %v1931 = vsel %vm832, %v1081, %v1891
    %vm1932 = vcmask 523264
    %v1933 = vsel %vm1932, %v1928, %v1901
    %v1934 = vsel %vm1932, %v1929, %v1903
    %v1935 = vsel %vm1932, %v1930, %v1905
    %v1936 = vsel %vm1932, %v1931, %v1907
    %vm1937 = vcmask 785408
    %v1938 = vsel %vm1937, %v1933, %v1917
    %v1939 = vsel %vm1937, %v1934, %v1919
    %v1940 = vsel %vm1937, %v1935, %v1921
    %v1941 = vsel %vm1937, %v1936, %v1923
    %v1946 = vcombine.high %v1938, %v1938
    %v1947 = vcombine.high %v1940, %v1940
    %v1948 = vcombine.low %v1938, %v1946
    %v1949 = vcombine.low %v1939, %v1940
    %v1950 = vcombine.low %v1947, %v1941
    %v1954 = vpack.c.bf16 %v1949, %v1948
    %v1955 = vpack.c.bf16 %v1950, %v1950
    %v1957 = vlaneseq
    %v1958 = vshrl.u32 %v1957, 7
    %v1959 = vsub.s32 0, %v1958
    %v1960 = vrot.slane %v238, %v1959
    %v1978 = vunpack.c.l.b16 %v222
    %v1979 = vunpack.c.l.b16 %v223
    %v1980 = vunpack.c.l.b16 %v224
    %v1981 = vunpack.c.l.b16 %v225
    %v1982 = vunpack.c.l.b16 %v226
    %v1983 = vunpack.c.l.b16 %v227
    %v1984 = vunpack.c.l.b16 %v228
    %v1985 = vunpack.c.l.b16 %v229
    %v1986 = vunpack.c.l.b16 %v230
    %v1987 = vunpack.c.l.b16 %v231
    %v1988 = vunpack.c.l.b16 %v232
    %v1989 = vunpack.c.l.b16 %v233
    %v1990 = vunpack.c.l.b16 %v234
    %v1991 = vunpack.c.l.b16 %v235
    %v1992 = vunpack.c.l.b16 %v236
    %v1993 = vunpack.c.l.b16 %v237
    %v1994 = vpack.c.b16 %v1979, %v1978
    %v1995 = vpack.c.b16 %v1981, %v1980
    %v1996 = vpack.c.b16 %v1983, %v1982
    %v1997 = vpack.c.b16 %v1985, %v1984
    %v1998 = vpack.c.b16 %v1987, %v1986
    %v1999 = vpack.c.b16 %v1989, %v1988
    %v2000 = vpack.c.b16 %v1991, %v1990
    %v2001 = vpack.c.b16 %v1993, %v1992
    %2010 = vmatprep.subr.bf16.mxu0 0
    %2011 = vmatpush1.bf16.msra.mxu0 %v1994
    %2012 = vmatprep.subr.bf16.mxu0 0
    %2013 = vmatpush1.bf16.msra.mxu0 %v1995
    %2014 = vmatprep.subr.bf16.mxu0 0
    %2015 = vmatpush1.bf16.msra.mxu0 %v1996
    %2016 = vmatprep.subr.bf16.mxu0 0
    %2017 = vmatpush1.bf16.msra.mxu0 %v1997
    %2018 = vmatprep.subr.bf16.mxu0 0
    %2019 = vmatpush1.bf16.msra.mxu0 %v1998
    %2020 = vmatprep.subr.bf16.mxu0 0
    %2021 = vmatpush1.bf16.msra.mxu0 %v1999
    %2022 = vmatprep.subr.bf16.mxu0 0
    %2023 = vmatpush1.bf16.msra.mxu0 %v2000
    %2024 = vmatprep.subr.bf16.mxu0 0
    %2025 = vmatpush1.bf16.msra.mxu0 %v2001
    %2026 = vmatprep.subr.bf16.mxu0 0
    %2027 = vmatpush1.bf16.msra.mxu0 0
    %2028 = vmatprep.subr.bf16.mxu0 0
    %2029 = vmatpush1.bf16.msra.mxu0 0
    %2030 = vmatprep.subr.bf16.mxu0 0
    %2031 = vmatpush1.bf16.msra.mxu0 0
    %2032 = vmatprep.subr.bf16.mxu0 0
    %2033 = vmatpush1.bf16.msra.mxu0 0
    %2034 = vmatprep.subr.bf16.mxu0 0
    %2035 = vmatpush1.bf16.msra.mxu0 0
    %2036 = vmatprep.subr.bf16.mxu0 0
    %2037 = vmatpush1.bf16.msra.mxu0 0
    %2038 = vmatprep.subr.bf16.mxu0 0
    %2039 = vmatpush1.bf16.msra.mxu0 0
    %2040 = vmatprep.subr.bf16.mxu0 0
    %2041 = vmatpush1.bf16.msra.mxu0 0
    %2042 = vmatprep.mubr.bf16.mxu0 0
    %2043 = vmatmul.mubr.bf16.gmra.mrb[0].mxu0 %v1954
    %v2044 = vpop.f32.mrb[0].mxu0
    %v2045 = vadd.f32 %v1960, %v2044
    %v2046 = vpop.f32.mrb[0].mxu0
    %v2047 = vpop.f32.mrb[0].mxu0
    %v2048 = vadd.f32 %v1960, %v2047
    %v2049 = vpop.f32.mrb[0].mxu0
    %2050 = vmatprep.mubr.bf16.mxu0 0
    %2051 = vmatmul.mubr.bf16.gmra.mrb[0].mxu0 %v1955
    %v2052 = vpop.f32.mrb[0].mxu0
    %v2053 = vadd.f32 %v1960, %v2052
    %v2054 = vpop.f32.mrb[0].mxu0
    %v2055 = vpop.f32.mrb[0].mxu0
    %v2056 = vpop.f32.mrb[0].mxu0
    %2057 = vdwg.mxu0
    %v2059 = vlaneseq
    %v2060 = vshrl.u32 %v2059, 7
    %v2061 = vsub.s32 0, %v2060
    %v2062 = vrot.slane %v239, %v2061
    %v2064 = vcombine.high %v2062, %v2062
    %v2066 = vmul.f32 %v504, %v2062
    %v2067 = vmul.f32 %v505, %v2064
    %v2068 = vmul.f32 %v506, %v2062
    %v2069 = vmul.f32 %v507, %v2064
    %v2070 = vmul.f32 %v508, %v2062
    %v2071 = vmul.f32 %v509, %v2064
    %v2073 = vlaneseq
    %v2074 = vshrl.u32 %v2073, 7
    %v2075 = vsub.s32 0, %v2074
    %v2076 = vrot.slane %v240, %v2075
    %v2078 = vcombine.high %v2076, %v2076
    %v2080 = vadd.f32 %v2066, %v2076
    %v2081 = vadd.f32 %v2067, %v2078
    %v2082 = vadd.f32 %v2068, %v2076
    %v2083 = vadd.f32 %v2069, %v2078
    %v2084 = vadd.f32 %v2070, %v2076
    %v2085 = vadd.f32 %v2071, %v2078
    %v2092 = vcombine.low %v2080, %v2081
    %v2093 = vcombine.low %v2082, %v2083
    %v2094 = vcombine.low %v2084, %v2085
    %v2098 = vpack.c.bf16 %v2093, %v2092
    %v2099 = vpack.c.bf16 %v2094, %v2094
    %v2101 = vlaneseq
    %v2102 = vshrl.u32 %v2101, 7
    %v2103 = vsub.s32 0, %v2102
    %v2104 = vrot.slane %v273, %v2103
    %v2105 = vlaneseq
    %v2106 = vshrl.u32 %v2105, 7
    %v2107 = vsub.s32 1, %v2106
    %v2108 = vrot.slane %v273, %v2107
    %v2109 = vlaneseq
    %v2110 = vshrl.u32 %v2109, 7
    %v2111 = vsub.s32 2, %v2110
    %v2112 = vrot.slane %v273, %v2111
    %v2113 = vlaneseq
    %v2114 = vshrl.u32 %v2113, 7
    %v2115 = vsub.s32 3, %v2114
    %v2116 = vrot.slane %v273, %v2115
    %v2153 = vunpack.c.l.b16 %v241
    %v2154 = vunpack.c.h.b16 %v241
    %v2155 = vunpack.c.l.b16 %v242
    %v2156 = vunpack.c.h.b16 %v242
    %v2157 = vunpack.c.l.b16 %v243
    %v2158 = vunpack.c.h.b16 %v243
    %v2159 = vunpack.c.l.b16 %v244
    %v2160 = vunpack.c.h.b16 %v244
    %v2161 = vunpack.c.l.b16 %v245
    %v2162 = vunpack.c.h.b16 %v245
    %v2163 = vunpack.c.l.b16 %v246
    %v2164 = vunpack.c.h.b16 %v246
    %v2165 = vunpack.c.l.b16 %v247
    %v2166 = vunpack.c.h.b16 %v247
    %v2167 = vunpack.c.l.b16 %v248
    %v2168 = vunpack.c.h.b16 %v248
    %v2169 = vunpack.c.l.b16 %v249
    %v2170 = vunpack.c.h.b16 %v249
    %v2171 = vunpack.c.l.b16 %v250
    %v2172 = vunpack.c.h.b16 %v250
    %v2173 = vunpack.c.l.b16 %v251
    %v2174 = vunpack.c.h.b16 %v251
    %v2175 = vunpack.c.l.b16 %v252
    %v2176 = vunpack.c.h.b16 %v252
    %v2177 = vunpack.c.l.b16 %v253
    %v2178 = vunpack.c.h.b16 %v253
    %v2179 = vunpack.c.l.b16 %v254
    %v2180 = vunpack.c.h.b16 %v254
    %v2181 = vunpack.c.l.b16 %v255
    %v2182 = vunpack.c.h.b16 %v255
    %v2183 = vunpack.c.l.b16 %v256
    %v2184 = vunpack.c.h.b16 %v256
    %v2185 = vunpack.c.l.b16 %v257
    %v2186 = vunpack.c.h.b16 %v257
    %v2187 = vunpack.c.l.b16 %v258
    %v2188 = vunpack.c.h.b16 %v258
    %v2189 = vunpack.c.l.b16 %v259
    %v2190 = vunpack.c.h.b16 %v259
    %v2191 = vunpack.c.l.b16 %v260
    %v2192 = vunpack.c.h.b16 %v260
    %v2193 = vunpack.c.l.b16 %v261
    %v2194 = vunpack.c.h.b16 %v261
    %v2195 = vunpack.c.l.b16 %v262
    %v2196 = vunpack.c.h.b16 %v262
    %v2197 = vunpack.c.l.b16 %v263
    %v2198 = vunpack.c.h.b16 %v263
    %v2199 = vunpack.c.l.b16 %v264
    %v2200 = vunpack.c.h.b16 %v264
    %v2201 = vunpack.c.l.b16 %v265
    %v2202 = vunpack.c.h.b16 %v265
    %v2203 = vunpack.c.l.b16 %v266
    %v2204 = vunpack.c.h.b16 %v266
    %v2205 = vunpack.c.l.b16 %v267
    %v2206 = vunpack.c.h.b16 %v267
    %v2207 = vunpack.c.l.b16 %v268
    %v2208 = vunpack.c.h.b16 %v268
    %v2209 = vunpack.c.l.b16 %v269
    %v2210 = vunpack.c.h.b16 %v269
    %v2211 = vunpack.c.l.b16 %v270
    %v2212 = vunpack.c.h.b16 %v270
    %v2213 = vunpack.c.l.b16 %v271
    %v2214 = vunpack.c.h.b16 %v271
    %v2215 = vunpack.c.l.b16 %v272
    %v2216 = vunpack.c.h.b16 %v272
    %v2217 = vpack.c.b16 %v2157, %v2153
    %v2218 = vpack.c.b16 %v2158, %v2154
    %v2219 = vpack.c.b16 %v2159, %v2155
    %v2220 = vpack.c.b16 %v2160, %v2156
    %v2221 = vpack.c.b16 %v2165, %v2161
    %v2222 = vpack.c.b16 %v2166, %v2162
    %v2223 = vpack.c.b16 %v2167, %v2163
    %v2224 = vpack.c.b16 %v2168, %v2164
    %v2225 = vpack.c.b16 %v2173, %v2169
    %v2226 = vpack.c.b16 %v2174, %v2170
    %v2227 = vpack.c.b16 %v2175, %v2171
    %v2228 = vpack.c.b16 %v2176, %v2172
    %v2229 = vpack.c.b16 %v2181, %v2177
    %v2230 = vpack.c.b16 %v2182, %v2178
    %v2231 = vpack.c.b16 %v2183, %v2179
    %v2232 = vpack.c.b16 %v2184, %v2180
    %v2233 = vpack.c.b16 %v2189, %v2185
    %v2234 = vpack.c.b16 %v2190, %v2186
    %v2235 = vpack.c.b16 %v2191, %v2187
    %v2236 = vpack.c.b16 %v2192, %v2188
    %v2237 = vpack.c.b16 %v2197, %v2193
    %v2238 = vpack.c.b16 %v2198, %v2194
    %v2239 = vpack.c.b16 %v2199, %v2195
    %v2240 = vpack.c.b16 %v2200, %v2196
    %v2241 = vpack.c.b16 %v2205, %v2201
    %v2242 = vpack.c.b16 %v2206, %v2202
    %v2243 = vpack.c.b16 %v2207, %v2203
    %v2244 = vpack.c.b16 %v2208, %v2204
    %v2245 = vpack.c.b16 %v2213, %v2209
    %v2246 = vpack.c.b16 %v2214, %v2210
    %v2247 = vpack.c.b16 %v2215, %v2211
    %v2248 = vpack.c.b16 %v2216, %v2212
    %2281 = vmatprep.subr.bf16.mxu0 %v2218
    %2282 = vmatpush1.bf16.msra.mxu0 %v2217
    %2283 = vmatprep.subr.bf16.mxu0 %v2222
    %2284 = vmatpush1.bf16.msra.mxu0 %v2221
    %2285 = vmatprep.subr.bf16.mxu0 %v2226
    %2286 = vmatpush1.bf16.msra.mxu0 %v2225
    %2287 = vmatprep.subr.bf16.mxu0 %v2230
    %2288 = vmatpush1.bf16.msra.mxu0 %v2229
    %2289 = vmatprep.subr.bf16.mxu0 %v2234
    %2290 = vmatpush1.bf16.msra.mxu0 %v2233
    %2291 = vmatprep.subr.bf16.mxu0 %v2238
    %2292 = vmatpush1.bf16.msra.mxu0 %v2237
    %2293 = vmatprep.subr.bf16.mxu0 %v2242
    %2294 = vmatpush1.bf16.msra.mxu0 %v2241
    %2295 = vmatprep.subr.bf16.mxu0 %v2246
    %2296 = vmatpush1.bf16.msra.mxu0 %v2245
    %2297 = vmatprep.subr.bf16.mxu0 0
    %2298 = vmatpush1.bf16.msra.mxu0 0
    %2299 = vmatprep.subr.bf16.mxu0 0
    %2300 = vmatpush1.bf16.msra.mxu0 0
    %2301 = vmatprep.subr.bf16.mxu0 0
    %2302 = vmatpush1.bf16.msra.mxu0 0
    %2303 = vmatprep.subr.bf16.mxu0 0
    %2304 = vmatpush1.bf16.msra.mxu0 0
    %2305 = vmatprep.subr.bf16.mxu0 0
    %2306 = vmatpush1.bf16.msra.mxu0 0
    %2307 = vmatprep.subr.bf16.mxu0 0
    %2308 = vmatpush1.bf16.msra.mxu0 0
    %2309 = vmatprep.subr.bf16.mxu0 0
    %2310 = vmatpush1.bf16.msra.mxu0 0
    %2311 = vmatprep.subr.bf16.mxu0 0
    %2312 = vmatpush1.bf16.msra.mxu0 0
    %2313 = vmatprep.mubr.bf16.mxu0 0
    %2314 = vmatmul.mubr.bf16.gmra.mrb[0].mxu0 %v2098
    %v2315 = vpop.f32.mrb[0].mxu0
    %v2316 = vadd.f32 %v2104, %v2315
    %v2317 = vpop.f32.mrb[0].mxu0
    %v2318 = vadd.f32 %v2108, %v2317
    %v2319 = vpop.f32.mrb[0].mxu0
    %v2320 = vadd.f32 %v2104, %v2319
    %v2321 = vpop.f32.mrb[0].mxu0
    %v2322 = vadd.f32 %v2108, %v2321
    %2323 = vmatprep.mubr.bf16.mxu0 0
    %2324 = vmatmul.mubr.bf16.gmra.mrb[0].mxu0 %v2099
    %v2325 = vpop.f32.mrb[0].mxu0
    %v2326 = vadd.f32 %v2104, %v2325
    %v2327 = vpop.f32.mrb[0].mxu0
    %v2328 = vadd.f32 %v2108, %v2327
    %v2329 = vpop.f32.mrb[0].mxu0
    %v2330 = vpop.f32.mrb[0].mxu0
    %2331 = vdwg.mxu0
    %2332 = vmatprep.subr.bf16.mxu0 %v2220
    %2333 = vmatpush1.bf16.msra.mxu0 %v2219
    %2334 = vmatprep.subr.bf16.mxu0 %v2224
    %2335 = vmatpush1.bf16.msra.mxu0 %v2223
    %2336 = vmatprep.subr.bf16.mxu0 %v2228
    %2337 = vmatpush1.bf16.msra.mxu0 %v2227
    %2338 = vmatprep.subr.bf16.mxu0 %v2232
    %2339 = vmatpush1.bf16.msra.mxu0 %v2231
    %2340 = vmatprep.subr.bf16.mxu0 %v2236
    %2341 = vmatpush1.bf16.msra.mxu0 %v2235
    %2342 = vmatprep.subr.bf16.mxu0 %v2240
    %2343 = vmatpush1.bf16.msra.mxu0 %v2239
    %2344 = vmatprep.subr.bf16.mxu0 %v2244
    %2345 = vmatpush1.bf16.msra.mxu0 %v2243
    %2346 = vmatprep.subr.bf16.mxu0 %v2248
    %2347 = vmatpush1.bf16.msra.mxu0 %v2247
    %2348 = vmatprep.subr.bf16.mxu0 0
    %2349 = vmatpush1.bf16.msra.mxu0 0
    %2350 = vmatprep.subr.bf16.mxu0 0
    %2351 = vmatpush1.bf16.msra.mxu0 0
    %2352 = vmatprep.subr.bf16.mxu0 0
    %2353 = vmatpush1.bf16.msra.mxu0 0
    %2354 = vmatprep.subr.bf16.mxu0 0
    %2355 = vmatpush1.bf16.msra.mxu0 0
    %2356 = vmatprep.subr.bf16.mxu0 0
    %2357 = vmatpush1.bf16.msra.mxu0 0
    %2358 = vmatprep.subr.bf16.mxu0 0
    %2359 = vmatpush1.bf16.msra.mxu0 0
    %2360 = vmatprep.subr.bf16.mxu0 0
    %2361 = vmatpush1.bf16.msra.mxu0 0
    %2362 = vmatprep.subr.bf16.mxu0 0
    %2363 = vmatpush1.bf16.msra.mxu0 0
    %2364 = vmatprep.mubr.bf16.mxu0 0
    %2365 = vmatmul.mubr.bf16.gmra.mrb[0].mxu0 %v2098
    %v2366 = vpop.f32.mrb[0].mxu0
    %v2367 = vadd.f32 %v2112, %v2366
    %v2368 = vpop.f32.mrb[0].mxu0
    %v2369 = vadd.f32 %v2116, %v2368
    %v2370 = vpop.f32.mrb[0].mxu0
    %v2371 = vadd.f32 %v2112, %v2370
    %v2372 = vpop.f32.mrb[0].mxu0
    %v2373 = vadd.f32 %v2116, %v2372
    %2374 = vmatprep.mubr.bf16.mxu0 0
    %2375 = vmatmul.mubr.bf16.gmra.mrb[0].mxu0 %v2099
    %v2376 = vpop.f32.mrb[0].mxu0
    %v2377 = vadd.f32 %v2112, %v2376
    %v2378 = vpop.f32.mrb[0].mxu0
    %v2379 = vadd.f32 %v2116, %v2378
    %v2380 = vpop.f32.mrb[0].mxu0
    %v2381 = vpop.f32.mrb[0].mxu0
    %2382 = vdwg.mxu0
    %v2383 = vmul.f32 %v2316, %v2316
    %v2384 = vmul.f32 %v2318, %v2318
    %v2385 = vmul.f32 %v2367, %v2367
    %v2386 = vmul.f32 %v2369, %v2369
    %v2387 = vmul.f32 %v2320, %v2320
    %v2388 = vmul.f32 %v2322, %v2322
    %v2389 = vmul.f32 %v2371, %v2371
    %v2390 = vmul.f32 %v2373, %v2373
    %v2391 = vmul.f32 %v2326, %v2326
    %v2392 = vmul.f32 %v2328, %v2328
    %v2393 = vmul.f32 %v2377, %v2377
    %v2394 = vmul.f32 %v2379, %v2379
    %v2395 = vmul.f32 %v2316, %v2383
    %v2396 = vmul.f32 %v2318, %v2384
    %v2397 = vmul.f32 %v2367, %v2385
    %v2398 = vmul.f32 %v2369, %v2386
    %v2399 = vmul.f32 %v2320, %v2387
    %v2400 = vmul.f32 %v2322, %v2388
    %v2401 = vmul.f32 %v2371, %v2389
    %v2402 = vmul.f32 %v2373, %v2390
    %v2403 = vmul.f32 %v2326, %v2391
    %v2404 = vmul.f32 %v2328, %v2392
    %v2405 = vmul.f32 %v2377, %v2393
    %v2406 = vmul.f32 %v2379, %v2394
    %v2407 = vmul.f32 %v2395, 0.044715
    %v2408 = vmul.f32 %v2396, 0.044715
    %v2409 = vmul.f32 %v2397, 0.044715
    %v2410 = vmul.f32 %v2398, 0.044715
    %v2411 = vmul.f32 %v2399, 0.044715
    %v2412 = vmul.f32 %v2400, 0.044715
    %v2413 = vmul.f32 %v2401, 0.044715
    %v2414 = vmul.f32 %v2402, 0.044715
    %v2415 = vmul.f32 %v2403, 0.044715
    %v2416 = vmul.f32 %v2404, 0.044715
    %v2417 = vmul.f32 %v2405, 0.044715
    %v2418 = vmul.f32 %v2406, 0.044715
    %v2419 = vadd.f32 %v2316, %v2407
    %v2420 = vadd.f32 %v2318, %v2408
    %v2421 = vadd.f32 %v2367, %v2409
    %v2422 = vadd.f32 %v2369, %v2410
    %v2423 = vadd.f32 %v2320, %v2411
    %v2424 = vadd.f32 %v2322, %v2412
    %v2425 = vadd.f32 %v2371, %v2413
    %v2426 = vadd.f32 %v2373, %v2414
    %v2427 = vadd.f32 %v2326, %v2415
    %v2428 = vadd.f32 %v2328, %v2416
    %v2429 = vadd.f32 %v2377, %v2417
    %v2430 = vadd.f32 %v2379, %v2418
    %v2431 = vmul.f32 %v2419, 0.7978846
    %v2432 = vmul.f32 %v2420, 0.7978846
    %v2433 = vmul.f32 %v2421, 0.7978846
    %v2434 = vmul.f32 %v2422, 0.7978846
    %v2435 = vmul.f32 %v2423, 0.7978846
    %v2436 = vmul.f32 %v2424, 0.7978846
    %v2437 = vmul.f32 %v2425, 0.7978846
    %v2438 = vmul.f32 %v2426, 0.7978846
    %v2439 = vmul.f32 %v2427, 0.7978846
    %v2440 = vmul.f32 %v2428, 0.7978846
    %v2441 = vmul.f32 %v2429, 0.7978846
    %v2442 = vmul.f32 %v2430, 0.7978846
    %v2443 = vtanh.pop %v2431
    %v2444 = vtanh.pop %v2432
    %v2445 = vtanh.pop %v2433
    %v2446 = vtanh.pop %v2434
    %v2447 = vtanh.pop %v2435
    %v2448 = vtanh.pop %v2436
    %v2449 = vtanh.pop %v2437
    %v2450 = vtanh.pop %v2438
    %v2451 = vtanh.pop %v2439
    %v2452 = vtanh.pop %v2440
    %v2453 = vtanh.pop %v2441
    %v2454 = vtanh.pop %v2442
    %v2455 = vadd.f32 %v2443, 1.0
    %v2456 = vadd.f32 %v2444, 1.0
    %v2457 = vadd.f32 %v2445, 1.0
    %v2458 = vadd.f32 %v2446, 1.0
    %v2459 = vadd.f32 %v2447, 1.0
    %v2460 = vadd.f32 %v2448, 1.0
    %v2461 = vadd.f32 %v2449, 1.0
    %v2462 = vadd.f32 %v2450, 1.0
    %v2463 = vadd.f32 %v2451, 1.0
    %v2464 = vadd.f32 %v2452, 1.0
    %v2465 = vadd.f32 %v2453, 1.0
    %v2466 = vadd.f32 %v2454, 1.0
    %v2467 = vmul.f32 %v2455, 0.5
    %v2468 = vmul.f32 %v2456, 0.5
    %v2469 = vmul.f32 %v2457, 0.5
    %v2470 = vmul.f32 %v2458, 0.5
    %v2471 = vmul.f32 %v2459, 0.5
    %v2472 = vmul.f32 %v2460, 0.5
    %v2473 = vmul.f32 %v2461, 0.5
    %v2474 = vmul.f32 %v2462, 0.5
    %v2475 = vmul.f32 %v2463, 0.5
    %v2476 = vmul.f32 %v2464, 0.5
    %v2477 = vmul.f32 %v2465, 0.5
    %v2478 = vmul.f32 %v2466, 0.5
    %v2479 = vmul.f32 %v2316, %v2467
    %v2480 = vmul.f32 %v2318, %v2468
    %v2481 = vmul.f32 %v2367, %v2469
    %v2482 = vmul.f32 %v2369, %v2470
    %v2483 = vmul.f32 %v2320, %v2471
    %v2484 = vmul.f32 %v2322, %v2472
    %v2485 = vmul.f32 %v2371, %v2473
    %v2486 = vmul.f32 %v2373, %v2474
    %v2487 = vmul.f32 %v2326, %v2475
    %v2488 = vmul.f32 %v2328, %v2476
    %v2489 = vmul.f32 %v2377, %v2477
    %v2490 = vmul.f32 %v2379, %v2478
    %v2491 = vpack.c.bf16 %v2483, %v2479
    %v2492 = vpack.c.bf16 %v2484, %v2480
    %v2493 = vpack.c.bf16 %v2485, %v2481
    %v2494 = vpack.c.bf16 %v2486, %v2482
    %v2495 = vpack.c.bf16 %v2487, %v2487
    %v2496 = vpack.c.bf16 %v2488, %v2488
    %v2497 = vpack.c.bf16 %v2489, %v2489
    %v2498 = vpack.c.bf16 %v2490, %v2490
    %v2500 = vlaneseq
    %v2501 = vshrl.u32 %v2500, 7
    %v2502 = vsub.s32 0, %v2501
    %v2503 = vrot.slane %v338, %v2502
    %v2569 = vunpack.c.l.b16 %v274
    %v2570 = vunpack.c.l.b16 %v275
    %v2571 = vunpack.c.l.b16 %v276
    %v2572 = vunpack.c.l.b16 %v277
    %v2573 = vunpack.c.l.b16 %v278
    %v2574 = vunpack.c.l.b16 %v279
    %v2575 = vunpack.c.l.b16 %v280
    %v2576 = vunpack.c.l.b16 %v281
    %v2577 = vunpack.c.l.b16 %v282
    %v2578 = vunpack.c.l.b16 %v283
    %v2579 = vunpack.c.l.b16 %v284
    %v2580 = vunpack.c.l.b16 %v285
    %v2581 = vunpack.c.l.b16 %v286
    %v2582 = vunpack.c.l.b16 %v287
    %v2583 = vunpack.c.l.b16 %v288
    %v2584 = vunpack.c.l.b16 %v289
    %v2585 = vunpack.c.l.b16 %v290
    %v2586 = vunpack.c.l.b16 %v291
    %v2587 = vunpack.c.l.b16 %v292
    %v2588 = vunpack.c.l.b16 %v293
    %v2589 = vunpack.c.l.b16 %v294
    %v2590 = vunpack.c.l.b16 %v295
    %v2591 = vunpack.c.l.b16 %v296
    %v2592 = vunpack.c.l.b16 %v297
    %v2593 = vunpack.c.l.b16 %v298
    %v2594 = vunpack.c.l.b16 %v299
    %v2595 = vunpack.c.l.b16 %v300
    %v2596 = vunpack.c.l.b16 %v301
    %v2597 = vunpack.c.l.b16 %v302
    %v2598 = vunpack.c.l.b16 %v303
    %v2599 = vunpack.c.l.b16 %v304
    %v2600 = vunpack.c.l.b16 %v305
    %v2601 = vunpack.c.l.b16 %v306
    %v2602 = vunpack.c.l.b16 %v307
    %v2603 = vunpack.c.l.b16 %v308
    %v2604 = vunpack.c.l.b16 %v309
    %v2605 = vunpack.c.l.b16 %v310
    %v2606 = vunpack.c.l.b16 %v311
    %v2607 = vunpack.c.l.b16 %v312
    %v2608 = vunpack.c.l.b16 %v313
    %v2609 = vunpack.c.l.b16 %v314
    %v2610 = vunpack.c.l.b16 %v315
    %v2611 = vunpack.c.l.b16 %v316
    %v2612 = vunpack.c.l.b16 %v317
    %v2613 = vunpack.c.l.b16 %v318
    %v2614 = vunpack.c.l.b16 %v319
    %v2615 = vunpack.c.l.b16 %v320
    %v2616 = vunpack.c.l.b16 %v321
    %v2617 = vunpack.c.l.b16 %v322
    %v2618 = vunpack.c.l.b16 %v323
    %v2619 = vunpack.c.l.b16 %v324
    %v2620 = vunpack.c.l.b16 %v325
    %v2621 = vunpack.c.l.b16 %v326
    %v2622 = vunpack.c.l.b16 %v327
    %v2623 = vunpack.c.l.b16 %v328
    %v2624 = vunpack.c.l.b16 %v329
    %v2625 = vunpack.c.l.b16 %v330
    %v2626 = vunpack.c.l.b16 %v331
    %v2627 = vunpack.c.l.b16 %v332
    %v2628 = vunpack.c.l.b16 %v333
    %v2629 = vunpack.c.l.b16 %v334
    %v2630 = vunpack.c.l.b16 %v335
    %v2631 = vunpack.c.l.b16 %v336
    %v2632 = vunpack.c.l.b16 %v337
    %v2633 = vpack.c.b16 %v2570, %v2569
    %v2634 = vpack.c.b16 %v2572, %v2571
    %v2635 = vpack.c.b16 %v2574, %v2573
    %v2636 = vpack.c.b16 %v2576, %v2575
    %v2637 = vpack.c.b16 %v2578, %v2577
    %v2638 = vpack.c.b16 %v2580, %v2579
    %v2639 = vpack.c.b16 %v2582, %v2581
    %v2640 = vpack.c.b16 %v2584, %v2583
    %v2641 = vpack.c.b16 %v2586, %v2585
    %v2642 = vpack.c.b16 %v2588, %v2587
    %v2643 = vpack.c.b16 %v2590, %v2589
    %v2644 = vpack.c.b16 %v2592, %v2591
    %v2645 = vpack.c.b16 %v2594, %v2593
    %v2646 = vpack.c.b16 %v2596, %v2595
    %v2647 = vpack.c.b16 %v2598, %v2597
    %v2648 = vpack.c.b16 %v2600, %v2599
    %v2649 = vpack.c.b16 %v2602, %v2601
    %v2650 = vpack.c.b16 %v2604, %v2603
    %v2651 = vpack.c.b16 %v2606, %v2605
    %v2652 = vpack.c.b16 %v2608, %v2607
    %v2653 = vpack.c.b16 %v2610, %v2609
    %v2654 = vpack.c.b16 %v2612, %v2611
    %v2655 = vpack.c.b16 %v2614, %v2613
    %v2656 = vpack.c.b16 %v2616, %v2615
    %v2657 = vpack.c.b16 %v2618, %v2617
    %v2658 = vpack.c.b16 %v2620, %v2619
    %v2659 = vpack.c.b16 %v2622, %v2621
    %v2660 = vpack.c.b16 %v2624, %v2623
    %v2661 = vpack.c.b16 %v2626, %v2625
    %v2662 = vpack.c.b16 %v2628, %v2627
    %v2663 = vpack.c.b16 %v2630, %v2629
    %v2664 = vpack.c.b16 %v2632, %v2631
    %2697 = vmatprep.subr.bf16.mxu0 0
    %2698 = vmatpush1.bf16.msra.mxu0 %v2633
    %2699 = vmatprep.subr.bf16.mxu0 0
    %2700 = vmatpush1.bf16.msra.mxu0 %v2634
    %2701 = vmatprep.subr.bf16.mxu0 0
    %2702 = vmatpush1.bf16.msra.mxu0 %v2635
    %2703 = vmatprep.subr.bf16.mxu0 0
    %2704 = vmatpush1.bf16.msra.mxu0 %v2636
    %2705 = vmatprep.subr.bf16.mxu0 0
    %2706 = vmatpush1.bf16.msra.mxu0 %v2637
    %2707 = vmatprep.subr.bf16.mxu0 0
    %2708 = vmatpush1.bf16.msra.mxu0 %v2638
    %2709 = vmatprep.subr.bf16.mxu0 0
    %2710 = vmatpush1.bf16.msra.mxu0 %v2639
    %2711 = vmatprep.subr.bf16.mxu0 0
    %2712 = vmatpush1.bf16.msra.mxu0 %v2640
    %2713 = vmatprep.subr.bf16.mxu0 0
    %2714 = vmatpush1.bf16.msra.mxu0 %v2641
    %2715 = vmatprep.subr.bf16.mxu0 0
    %2716 = vmatpush1.bf16.msra.mxu0 %v2642
    %2717 = vmatprep.subr.bf16.mxu0 0
    %2718 = vmatpush1.bf16.msra.mxu0 %v2643
    %2719 = vmatprep.subr.bf16.mxu0 0
    %2720 = vmatpush1.bf16.msra.mxu0 %v2644
    %2721 = vmatprep.subr.bf16.mxu0 0
    %2722 = vmatpush1.bf16.msra.mxu0 %v2645
    %2723 = vmatprep.subr.bf16.mxu0 0
    %2724 = vmatpush1.bf16.msra.mxu0 %v2646
    %2725 = vmatprep.subr.bf16.mxu0 0
    %2726 = vmatpush1.bf16.msra.mxu0 %v2647
    %2727 = vmatprep.subr.bf16.mxu0 0
    %2728 = vmatpush1.bf16.msra.mxu0 %v2648
    %2729 = vmatprep.mubr.bf16.mxu0 %v2492
    %2730 = vmatmul.mubr.bf16.gmra.mrb[0].mxu0 %v2491
    %v2731 = vpop.f32.mrb[0].mxu0
    %v2732 = vadd.f32 %v2503, %v2731
    %v2733 = vpop.f32.mrb[0].mxu0
    %v2734 = vpop.f32.mrb[0].mxu0
    %v2735 = vadd.f32 %v2503, %v2734
    %v2736 = vpop.f32.mrb[0].mxu0
    %2737 = vmatprep.mubr.bf16.mxu0 %v2496
    %2738 = vmatmul.mubr.bf16.gmra.mrb[0].mxu0 %v2495
    %v2739 = vpop.f32.mrb[0].mxu0
    %v2740 = vadd.f32 %v2503, %v2739
    %v2741 = vpop.f32.mrb[0].mxu0
    %v2742 = vpop.f32.mrb[0].mxu0
    %v2743 = vpop.f32.mrb[0].mxu0
    %2744 = vdwg.mxu0
    %2745 = vmatprep.subr.bf16.mxu0 0
    %2746 = vmatpush1.bf16.msra.mxu0 %v2649
    %2747 = vmatprep.subr.bf16.mxu0 0
    %2748 = vmatpush1.bf16.msra.mxu0 %v2650
    %2749 = vmatprep.subr.bf16.mxu0 0
    %2750 = vmatpush1.bf16.msra.mxu0 %v2651
    %2751 = vmatprep.subr.bf16.mxu0 0
    %2752 = vmatpush1.bf16.msra.mxu0 %v2652
    %2753 = vmatprep.subr.bf16.mxu0 0
    %2754 = vmatpush1.bf16.msra.mxu0 %v2653
    %2755 = vmatprep.subr.bf16.mxu0 0
    %2756 = vmatpush1.bf16.msra.mxu0 %v2654
    %2757 = vmatprep.subr.bf16.mxu0 0
    %2758 = vmatpush1.bf16.msra.mxu0 %v2655
    %2759 = vmatprep.subr.bf16.mxu0 0
    %2760 = vmatpush1.bf16.msra.mxu0 %v2656
    %2761 = vmatprep.subr.bf16.mxu0 0
    %2762 = vmatpush1.bf16.msra.mxu0 %v2657
    %2763 = vmatprep.subr.bf16.mxu0 0
    %2764 = vmatpush1.bf16.msra.mxu0 %v2658
    %2765 = vmatprep.subr.bf16.mxu0 0
    %2766 = vmatpush1.bf16.msra.mxu0 %v2659
    %2767 = vmatprep.subr.bf16.mxu0 0
    %2768 = vmatpush1.bf16.msra.mxu0 %v2660
    %2769 = vmatprep.subr.bf16.mxu0 0
    %2770 = vmatpush1.bf16.msra.mxu0 %v2661
    %2771 = vmatprep.subr.bf16.mxu0 0
    %2772 = vmatpush1.bf16.msra.mxu0 %v2662
    %2773 = vmatprep.subr.bf16.mxu0 0
    %2774 = vmatpush1.bf16.msra.mxu0 %v2663
    %2775 = vmatprep.subr.bf16.mxu0 0
    %2776 = vmatpush1.bf16.msra.mxu0 %v2664
    %2777 = vmatprep.mubr.bf16.mxu0 %v2494
    %2778 = vmatmul.mubr.bf16.gmra.mrb[0].mxu0 %v2493
    %v2779 = vpop.f32.mrb[0].mxu0
    %v2780 = vadd.f32 %v2732, %v2779
    %v2781 = vpop.f32.mrb[0].mxu0
    %v2782 = vpop.f32.mrb[0].mxu0
    %v2783 = vadd.f32 %v2735, %v2782
    %v2784 = vpop.f32.mrb[0].mxu0
    %2785 = vmatprep.mubr.bf16.mxu0 %v2498
    %2786 = vmatmul.mubr.bf16.gmra.mrb[0].mxu0 %v2497
    %v2787 = vpop.f32.mrb[0].mxu0
    %v2788 = vadd.f32 %v2740, %v2787
    %v2789 = vpop.f32.mrb[0].mxu0
    %v2790 = vpop.f32.mrb[0].mxu0
    %v2791 = vpop.f32.mrb[0].mxu0
    %2792 = vdwg.mxu0
    %v2793 = vadd.f32 %v2045, %v2780
    %v2794 = vadd.f32 %v2048, %v2783
    %v2795 = vadd.f32 %v2053, %v2788
    %v2799 = vcombine.high %v2793, %v2793
    %v2800 = vcombine.high %v2794, %v2794
    %v2801 = vcombine.high %v2795, %v2795
    %v2803 = vcombine.low %v2793, %v2799
    %v2804 = vcombine.low %v2800, %v2795
    %v2807 = vadd.f32 %v179, %v2803
    %v2808 = vadd.f32 %v180, %v2794
    %v2809 = vadd.f32 %v181, %v2804
    %v2810 = vadd.f32 %v182, %v2801
    %s2811 = scalar_lea.vmem %s3, 1
    %v2812 = vld [vmem:[%s2811] sm:$0x1]
    %s2813 = scalar_lea.vmem [#allocation4], 1
    %v2814 = vld [vmem:[%s2813] sm:$0x1]
    %s2815 = scalar_lea.vmem %s5, 192
    %v2816 = vld [vmem:[%s2815] sm:$0xff]
    %v2817 = vld [vmem:[%s2815 + $0x8] sm:$0xf]
    %v2818 = vld [vmem:[%s2815 + $0xc] sm:$0xff]
    %v2819 = vld [vmem:[%s2815 + $0x14] sm:$0xf]
    %v2820 = vld [vmem:[%s2815 + $0x18] sm:$0xff]
    %v2821 = vld [vmem:[%s2815 + $0x20] sm:$0xf]
    %v2822 = vld [vmem:[%s2815 + $0x24] sm:$0xff]
    %v2823 = vld [vmem:[%s2815 + $0x2c] sm:$0xf]
    %v2824 = vld [vmem:[%s2815 + $0x30] sm:$0xff]
    %v2825 = vld [vmem:[%s2815 + $0x38] sm:$0xf]
    %v2826 = vld [vmem:[%s2815 + $0x3c] sm:$0xff]
    %v2827 = vld [vmem:[%s2815 + $0x44] sm:$0xf]
    %v2828 = vld [vmem:[%s2815 + $0x48] sm:$0xff]
    %v2829 = vld [vmem:[%s2815 + $0x50] sm:$0xf]
    %v2830 = vld [vmem:[%s2815 + $0x54] sm:$0xff]
    %v2831 = vld [vmem:[%s2815 + $0x5c] sm:$0xf]
    %v2832 = vld [vmem:[%s2815 + $0x60] sm:$0xff]
    %v2833 = vld [vmem:[%s2815 + $0x68] sm:$0xf]
    %v2834 = vld [vmem:[%s2815 + $0x6c] sm:$0xff]
    %v2835 = vld [vmem:[%s2815 + $0x74] sm:$0xf]
    %v2836 = vld [vmem:[%s2815 + $0x78] sm:$0xff]
    %v2837 = vld [vmem:[%s2815 + $0x80] sm:$0xf]
    %v2838 = vld [vmem:[%s2815 + $0x84] sm:$0xff]
    %v2839 = vld [vmem:[%s2815 + $0x8c] sm:$0xf]
    %v2840 = vld [vmem:[%s2815 + $0x90] sm:$0xff]
    %v2841 = vld [vmem:[%s2815 + $0x98] sm:$0xf]
    %v2842 = vld [vmem:[%s2815 + $0x9c] sm:$0xff]
    %v2843 = vld [vmem:[%s2815 + $0xa4] sm:$0xf]
    %v2844 = vld [vmem:[%s2815 + $0xa8] sm:$0xff]
    %v2845 = vld [vmem:[%s2815 + $0xb0] sm:$0xf]
    %v2846 = vld [vmem:[%s2815 + $0xb4] sm:$0xff]
    %v2847 = vld [vmem:[%s2815 + $0xbc] sm:$0xf]
    %s2848 = scalar_lea.vmem [#allocation6], 3
    %v2849 = vld [vmem:[%s2848] sm:$0x7]
    %s2850 = scalar_lea.vmem [#allocation7], 64
    %v2851 = vld [vmem:[%s2850] sm:$0xf]
    %v2852 = vld [vmem:[%s2850 + $0x4] sm:$0xf]
    %v2853 = vld [vmem:[%s2850 + $0x8] sm:$0xf]
    %v2854 = vld [vmem:[%s2850 + $0xc] sm:$0xf]
    %v2855 = vld [vmem:[%s2850 + $0x10] sm:$0xf]
    %v2856 = vld [vmem:[%s2850 + $0x14] sm:$0xf]
    %v2857 = vld [vmem:[%s2850 + $0x18] sm:$0xf]
    %v2858 = vld [vmem:[%s2850 + $0x1c] sm:$0xf]
    %v2859 = vld [vmem:[%s2850 + $0x20] sm:$0xf]
    %v2860 = vld [vmem:[%s2850 + $0x24] sm:$0xf]
    %v2861 = vld [vmem:[%s2850 + $0x28] sm:$0xf]
    %v2862 = vld [vmem:[%s2850 + $0x2c] sm:$0xf]
    %v2863 = vld [vmem:[%s2850 + $0x30] sm:$0xf]
    %v2864 = vld [vmem:[%s2850 + $0x34] sm:$0xf]
    %v2865 = vld [vmem:[%s2850 + $0x38] sm:$0xf]
    %v2866 = vld [vmem:[%s2850 + $0x3c] sm:$0xf]
    %s2867 = scalar_lea.vmem [#allocation9], 1
    %v2868 = vld [vmem:[%s2867] sm:$0x1]
    %s2869 = scalar_lea.vmem [#allocation10], 1
    %v2870 = vld [vmem:[%s2869] sm:$0x1]
    %s2871 = scalar_lea.vmem [#allocation12], 1
    %v2872 = vld [vmem:[%s2871] sm:$0x1]
    %s2873 = scalar_lea.vmem %s11, 256
    %v2874 = vld [vmem:[%s2873] sm:$0xff]
    %v2875 = vld [vmem:[%s2873 + $0x8] sm:$0xff]
    %v2876 = vld [vmem:[%s2873 + $0x10] sm:$0xff]
    %v2877 = vld [vmem:[%s2873 + $0x18] sm:$0xff]
    %v2878 = vld [vmem:[%s2873 + $0x20] sm:$0xff]
    %v2879 = vld [vmem:[%s2873 + $0x28] sm:$0xff]
    %v2880 = vld [vmem:[%s2873 + $0x30] sm:$0xff]
    %v2881 = vld [vmem:[%s2873 + $0x38] sm:$0xff]
    %v2882 = vld [vmem:[%s2873 + $0x40] sm:$0xff]
    %v2883 = vld [vmem:[%s2873 + $0x48] sm:$0xff]
    %v2884 = vld [vmem:[%s2873 + $0x50] sm:$0xff]
    %v2885 = vld [vmem:[%s2873 + $0x58] sm:$0xff]
    %v2886 = vld [vmem:[%s2873 + $0x60] sm:$0xff]
    %v2887 = vld [vmem:[%s2873 + $0x68] sm:$0xff]
    %v2888 = vld [vmem:[%s2873 + $0x70] sm:$0xff]
    %v2889 = vld [vmem:[%s2873 + $0x78] sm:$0xff]
    %v2890 = vld [vmem:[%s2873 + $0x80] sm:$0xff]
    %v2891 = vld [vmem:[%s2873 + $0x88] sm:$0xff]
    %v2892 = vld [vmem:[%s2873 + $0x90] sm:$0xff]
    %v2893 = vld [vmem:[%s2873 + $0x98] sm:$0xff]
    %v2894 = vld [vmem:[%s2873 + $0xa0] sm:$0xff]
    %v2895 = vld [vmem:[%s2873 + $0xa8] sm:$0xff]
    %v2896 = vld [vmem:[%s2873 + $0xb0] sm:$0xff]
    %v2897 = vld [vmem:[%s2873 + $0xb8] sm:$0xff]
    %v2898 = vld [vmem:[%s2873 + $0xc0] sm:$0xff]
    %v2899 = vld [vmem:[%s2873 + $0xc8] sm:$0xff]
    %v2900 = vld [vmem:[%s2873 + $0xd0] sm:$0xff]
    %v2901 = vld [vmem:[%s2873 + $0xd8] sm:$0xff]
    %v2902 = vld [vmem:[%s2873 + $0xe0] sm:$0xff]
    %v2903 = vld [vmem:[%s2873 + $0xe8] sm:$0xff]
    %v2904 = vld [vmem:[%s2873 + $0xf0] sm:$0xff]
    %v2905 = vld [vmem:[%s2873 + $0xf8] sm:$0xff]
    %s2906 = scalar_lea.vmem [#allocation13], 4
    %v2907 = vld [vmem:[%s2906] sm:$0xf]
    %s2908 = scalar_lea.vmem %s13, 256
    %v2909 = vld [vmem:[%s2908] sm:$0xf]
    %v2910 = vld [vmem:[%s2908 + $0x4] sm:$0xf]
    %v2911 = vld [vmem:[%s2908 + $0x8] sm:$0xf]
    %v2912 = vld [vmem:[%s2908 + $0xc] sm:$0xf]
    %v2913 = vld [vmem:[%s2908 + $0x10] sm:$0xf]
    %v2914 = vld [vmem:[%s2908 + $0x14] sm:$0xf]
    %v2915 = vld [vmem:[%s2908 + $0x18] sm:$0xf]
    %v2916 = vld [vmem:[%s2908 + $0x1c] sm:$0xf]
    %v2917 = vld [vmem:[%s2908 + $0x20] sm:$0xf]
    %v2918 = vld [vmem:[%s2908 + $0x24] sm:$0xf]
    %v2919 = vld [vmem:[%s2908 + $0x28] sm:$0xf]
    %v2920 = vld [vmem:[%s2908 + $0x2c] sm:$0xf]
    %v2921 = vld [vmem:[%s2908 + $0x30] sm:$0xf]
    %v2922 = vld [vmem:[%s2908 + $0x34] sm:$0xf]
    %v2923 = vld [vmem:[%s2908 + $0x38] sm:$0xf]
    %v2924 = vld [vmem:[%s2908 + $0x3c] sm:$0xf]
    %v2925 = vld [vmem:[%s2908 + $0x40] sm:$0xf]
    %v2926 = vld [vmem:[%s2908 + $0x44] sm:$0xf]
    %v2927 = vld [vmem:[%s2908 + $0x48] sm:$0xf]
    %v2928 = vld [vmem:[%s2908 + $0x4c] sm:$0xf]
    %v2929 = vld [vmem:[%s2908 + $0x50] sm:$0xf]
    %v2930 = vld [vmem:[%s2908 + $0x54] sm:$0xf]
    %v2931 = vld [vmem:[%s2908 + $0x58] sm:$0xf]
    %v2932 = vld [vmem:[%s2908 + $0x5c] sm:$0xf]
    %v2933 = vld [vmem:[%s2908 + $0x60] sm:$0xf]
    %v2934 = vld [vmem:[%s2908 + $0x64] sm:$0xf]
    %v2935 = vld [vmem:[%s2908 + $0x68] sm:$0xf]
    %v2936 = vld [vmem:[%s2908 + $0x6c] sm:$0xf]
    %v2937 = vld [vmem:[%s2908 + $0x70] sm:$0xf]
    %v2938 = vld [vmem:[%s2908 + $0x74] sm:$0xf]
    %v2939 = vld [vmem:[%s2908 + $0x78] sm:$0xf]
    %v2940 = vld [vmem:[%s2908 + $0x7c] sm:$0xf]
    %v2941 = vld [vmem:[%s2908 + $0x80] sm:$0xf]
    %v2942 = vld [vmem:[%s2908 + $0x84] sm:$0xf]
    %v2943 = vld [vmem:[%s2908 + $0x88] sm:$0xf]
    %v2944 = vld [vmem:[%s2908 + $0x8c] sm:$0xf]
    %v2945 = vld [vmem:[%s2908 + $0x90] sm:$0xf]
    %v2946 = vld [vmem:[%s2908 + $0x94] sm:$0xf]
    %v2947 = vld [vmem:[%s2908 + $0x98] sm:$0xf]
    %v2948 = vld [vmem:[%s2908 + $0x9c] sm:$0xf]
    %v2949 = vld [vmem:[%s2908 + $0xa0] sm:$0xf]
    %v2950 = vld [vmem:[%s2908 + $0xa4] sm:$0xf]
    %v2951 = vld [vmem:[%s2908 + $0xa8] sm:$0xf]
    %v2952 = vld [vmem:[%s2908 + $0xac] sm:$0xf]
    %v2953 = vld [vmem:[%s2908 + $0xb0] sm:$0xf]
    %v2954 = vld [vmem:[%s2908 + $0xb4] sm:$0xf]
    %v2955 = vld [vmem:[%s2908 + $0xb8] sm:$0xf]
    %v2956 = vld [vmem:[%s2908 + $0xbc] sm:$0xf]
    %v2957 = vld [vmem:[%s2908 + $0xc0] sm:$0xf]
    %v2958 = vld [vmem:[%s2908 + $0xc4] sm:$0xf]
    %v2959 = vld [vmem:[%s2908 + $0xc8] sm:$0xf]
    %v2960 = vld [vmem:[%s2908 + $0xcc] sm:$0xf]
    %v2961 = vld [vmem:[%s2908 + $0xd0] sm:$0xf]
    %v2962 = vld [vmem:[%s2908 + $0xd4] sm:$0xf]
    %v2963 = vld [vmem:[%s2908 + $0xd8] sm:$0xf]
    %v2964 = vld [vmem:[%s2908 + $0xdc] sm:$0xf]
    %v2965 = vld [vmem:[%s2908 + $0xe0] sm:$0xf]
    %v2966 = vld [vmem:[%s2908 + $0xe4] sm:$0xf]
    %v2967 = vld [vmem:[%s2908 + $0xe8] sm:$0xf]
    %v2968 = vld [vmem:[%s2908 + $0xec] sm:$0xf]
    %v2969 = vld [vmem:[%s2908 + $0xf0] sm:$0xf]
    %v2970 = vld [vmem:[%s2908 + $0xf4] sm:$0xf]
    %v2971 = vld [vmem:[%s2908 + $0xf8] sm:$0xf]
    %v2972 = vld [vmem:[%s2908 + $0xfc] sm:$0xf]
    %s2973 = scalar_lea.vmem [#allocation15], 1
    %v2974 = vld [vmem:[%s2973] sm:$0x1]
    %v2979 = vcombine.high %v2807, %v2807
    %v2980 = vcombine.high %v2809, %v2809
    %v2983 = vcombine.low %v2807, %v2979
    %v2984 = vcombine.low %v2808, %v2809
    %v2985 = vcombine.low %v2980, %v2810
    %2989 = vadd.xlane.f32.xlu0 %v2983
    %v2990 = vpop.xlane.xlu0 %2989
    %2991 = vadd.xlane.f32.xlu0 %v2984
    %v2992 = vpop.xlane.xlu0 %2991
    %2993 = vadd.xlane.f32.xlu0 %v2985
    %v2994 = vpop.xlane.xlu0 %2993
    %v2995 = vmul.f32 %v2990, %v359
    %v2996 = vmul.f32 %v2992, %v359
    %v2997 = vmul.f32 %v2994, %v359
    %v3002 = vunpack.c.l.s4 839922192
    %v3003 = vunpack.c.0.s8 %v3002
    %v3004 = vlaneseq
    %v3005 = vshrl.u32 %v3004, 7
    %v3006 = vsub.s32 %v3003, %v3005
    %v3007 = vrot.slane %v2995, %v3006
    %v3009 = vunpack.c.l.s4 1985246804
    %v3010 = vunpack.c.0.s8 %v3009
    %v3011 = vlaneseq
    %v3012 = vshrl.u32 %v3011, 7
    %v3013 = vsub.s32 %v3010, %v3012
    %v3014 = vrot.slane %v2995, %v3013
    %v3016 = vunpack.c.l.s4 839922192
    %v3017 = vunpack.c.0.s8 %v3016
    %v3018 = vlaneseq
    %v3019 = vshrl.u32 %v3018, 7
    %v3020 = vsub.s32 %v3017, %v3019
    %v3021 = vrot.slane %v2996, %v3020
    %v3023 = vunpack.c.l.s4 1985246804
    %v3024 = vunpack.c.0.s8 %v3023
    %v3025 = vlaneseq
    %v3026 = vshrl.u32 %v3025, 7
    %v3027 = vsub.s32 %v3024, %v3026
    %v3028 = vrot.slane %v2996, %v3027
    %v3030 = vunpack.c.l.s4 839922192
    %v3031 = vunpack.c.0.s8 %v3030
    %v3032 = vlaneseq
    %v3033 = vshrl.u32 %v3032, 7
    %v3034 = vsub.s32 %v3031, %v3033
    %v3035 = vrot.slane %v2997, %v3034
    %v3037 = vunpack.c.l.s4 1985246804
    %v3038 = vunpack.c.0.s8 %v3037
    %v3039 = vlaneseq
    %v3040 = vshrl.u32 %v3039, 7
    %v3041 = vsub.s32 %v3038, %v3040
    %v3042 = vrot.slane %v2997, %v3041
    %v3049 = vsub.f32 %v2807, %v3007
    %v3050 = vsub.f32 %v2979, %v3014
    %v3051 = vsub.f32 %v2808, %v3021
    %v3052 = vsub.f32 %v2809, %v3028
    %v3053 = vsub.f32 %v2980, %v3035
    %v3054 = vsub.f32 %v2810, %v3042
    %v3055 = vmul.f32 %v3049, %v3049
    %v3056 = vmul.f32 %v3050, %v3050
    %v3057 = vmul.f32 %v3051, %v3051
    %v3058 = vmul.f32 %v3052, %v3052
    %v3059 = vmul.f32 %v3053, %v3053
    %v3060 = vmul.f32 %v3054, %v3054
    %v3067 = vcombine.low %v3055, %v3056
    %v3068 = vcombine.low %v3057, %v3058
    %v3069 = vcombine.low %v3059, %v3060
    %3073 = vadd.xlane.f32.xlu0 %v3067
    %v3074 = vpop.xlane.xlu0 %3073
    %3075 = vadd.xlane.f32.xlu0 %v3068
    %v3076 = vpop.xlane.xlu0 %3075
    %3077 = vadd.xlane.f32.xlu0 %v3069
    %v3078 = vpop.xlane.xlu0 %3077
    %v3079 = vmul.f32 %v3074, %v359
    %v3080 = vmul.f32 %v3076, %v359
    %v3081 = vmul.f32 %v3078, %v359
    %v3082 = vadd.f32 %v3079, 1e-05
    %v3083 = vadd.f32 %v3080, 1e-05
    %v3084 = vadd.f32 %v3081, 1e-05
    %v3085 = vrsqrt.pop %v3082
    %v3086 = vrsqrt.pop %v3083
    %v3087 = vrsqrt.pop %v3084
    %v3092 = vunpack.c.l.s4 839922192
    %v3093 = vunpack.c.0.s8 %v3092
    %v3094 = vlaneseq
    %v3095 = vshrl.u32 %v3094, 7
    %v3096 = vsub.s32 %v3093, %v3095
    %v3097 = vrot.slane %v3085, %v3096
    %v3099 = vunpack.c.l.s4 1985246804
    %v3100 = vunpack.c.0.s8 %v3099
    %v3101 = vlaneseq
    %v3102 = vshrl.u32 %v3101, 7
    %v3103 = vsub.s32 %v3100, %v3102
    %v3104 = vrot.slane %v3085, %v3103
    %v3106 = vunpack.c.l.s4 839922192
    %v3107 = vunpack.c.0.s8 %v3106
    %v3108 = vlaneseq
    %v3109 = vshrl.u32 %v3108, 7
    %v3110 = vsub.s32 %v3107, %v3109
    %v3111 = vrot.slane %v3086, %v3110
    %v3113 = vunpack.c.l.s4 1985246804
    %v3114 = vunpack.c.0.s8 %v3113
    %v3115 = vlaneseq
    %v3116 = vshrl.u32 %v3115, 7
    %v3117 = vsub.s32 %v3114, %v3116
    %v3118 = vrot.slane %v3086, %v3117
    %v3120 = vunpack.c.l.s4 839922192
    %v3121 = vunpack.c.0.s8 %v3120
    %v3122 = vlaneseq
    %v3123 = vshrl.u32 %v3122, 7
    %v3124 = vsub.s32 %v3121, %v3123
    %v3125 = vrot.slane %v3087, %v3124
    %v3127 = vunpack.c.l.s4 1985246804
    %v3128 = vunpack.c.0.s8 %v3127
    %v3129 = vlaneseq
    %v3130 = vshrl.u32 %v3129, 7
    %v3131 = vsub.s32 %v3128, %v3130
    %v3132 = vrot.slane %v3087, %v3131
    %v3139 = vmul.f32 %v3049, %v3097
    %v3140 = vmul.f32 %v3050, %v3104
    %v3141 = vmul.f32 %v3051, %v3111
    %v3142 = vmul.f32 %v3052, %v3118
    %v3143 = vmul.f32 %v3053, %v3125
    %v3144 = vmul.f32 %v3054, %v3132
    %v3146 = vlaneseq
    %v3147 = vshrl.u32 %v3146, 7
    %v3148 = vsub.s32 0, %v3147
    %v3149 = vrot.slane %v2812, %v3148
    %v3151 = vcombine.high %v3149, %v3149
    %v3153 = vmul.f32 %v3139, %v3149
    %v3154 = vmul.f32 %v3140, %v3151
    %v3155 = vmul.f32 %v3141, %v3149
    %v3156 = vmul.f32 %v3142, %v3151
    %v3157 = vmul.f32 %v3143, %v3149
    %v3158 = vmul.f32 %v3144, %v3151
    %v3160 = vlaneseq
    %v3161 = vshrl.u32 %v3160, 7
    %v3162 = vsub.s32 0, %v3161
    %v3163 = vrot.slane %v2814, %v3162
    %v3165 = vcombine.high %v3163, %v3163
    %v3167 = vadd.f32 %v3153, %v3163
    %v3168 = vadd.f32 %v3154, %v3165
    %v3169 = vadd.f32 %v3155, %v3163
    %v3170 = vadd.f32 %v3156, %v3165
    %v3171 = vadd.f32 %v3157, %v3163
    %v3172 = vadd.f32 %v3158, %v3165
    %v3179 = vcombine.low %v3167, %v3168
    %v3180 = vcombine.low %v3169, %v3170
    %v3181 = vcombine.low %v3171, %v3172
    %v3185 = vpack.c.bf16 %v3180, %v3179
    %v3186 = vpack.c.bf16 %v3181, %v3181
    %v3188 = vlaneseq
    %v3189 = vshrl.u32 %v3188, 7
    %v3190 = vsub.s32 0, %v3189
    %v3191 = vrot.slane %v2849, %v3190
    %v3192 = vlaneseq
    %v3193 = vshrl.u32 %v3192, 7
    %v3194 = vsub.s32 1, %v3193
    %v3195 = vrot.slane %v2849, %v3194
    %v3196 = vlaneseq
    %v3197 = vshrl.u32 %v3196, 7
    %v3198 = vsub.s32 2, %v3197
    %v3199 = vrot.slane %v2849, %v3198
    %v3235 = vunpack.c.l.b16 %v2816
    %v3236 = vunpack.c.h.b16 %v2816
    %v3237 = vunpack.c.l.b16 %v2817
    %v3238 = vunpack.c.l.b16 %v2818
    %v3239 = vunpack.c.h.b16 %v2818
    %v3240 = vunpack.c.l.b16 %v2819
    %v3241 = vunpack.c.l.b16 %v2820
    %v3242 = vunpack.c.h.b16 %v2820
    %v3243 = vunpack.c.l.b16 %v2821
    %v3244 = vunpack.c.l.b16 %v2822
    %v3245 = vunpack.c.h.b16 %v2822
    %v3246 = vunpack.c.l.b16 %v2823
    %v3247 = vunpack.c.l.b16 %v2824
    %v3248 = vunpack.c.h.b16 %v2824
    %v3249 = vunpack.c.l.b16 %v2825
    %v3250 = vunpack.c.l.b16 %v2826
    %v3251 = vunpack.c.h.b16 %v2826
    %v3252 = vunpack.c.l.b16 %v2827
    %v3253 = vunpack.c.l.b16 %v2828
    %v3254 = vunpack.c.h.b16 %v2828
    %v3255 = vunpack.c.l.b16 %v2829
    %v3256 = vunpack.c.l.b16 %v2830
    %v3257 = vunpack.c.h.b16 %v2830
    %v3258 = vunpack.c.l.b16 %v2831
    %v3259 = vunpack.c.l.b16 %v2832
    %v3260 = vunpack.c.h.b16 %v2832
    %v3261 = vunpack.c.l.b16 %v2833
    %v3262 = vunpack.c.l.b16 %v2834
    %v3263 = vunpack.c.h.b16 %v2834
    %v3264 = vunpack.c.l.b16 %v2835
    %v3265 = vunpack.c.l.b16 %v2836
    %v3266 = vunpack.c.h.b16 %v2836
    %v3267 = vunpack.c.l.b16 %v2837
    %v3268 = vunpack.c.l.b16 %v2838
    %v3269 = vunpack.c.h.b16 %v2838
    %v3270 = vunpack.c.l.b16 %v2839
    %v3271 = vunpack.c.l.b16 %v2840
    %v3272 = vunpack.c.h.b16 %v2840
    %v3273 = vunpack.c.l.b16 %v2841
    %v3274 = vunpack.c.l.b16 %v2842
    %v3275 = vunpack.c.h.b16 %v2842
    %v3276 = vunpack.c.l.b16 %v2843
    %v3277 = vunpack.c.l.b16 %v2844
    %v3278 = vunpack.c.h.b16 %v2844
    %v3279 = vunpack.c.l.b16 %v2845
    %v3280 = vunpack.c.l.b16 %v2846
    %v3281 = vunpack.c.h.b16 %v2846
    %v3282 = vunpack.c.l.b16 %v2847
    %v3283 = vpack.c.b16 %v3238, %v3235
    %v3284 = vpack.c.b16 %v3239, %v3236
    %v3285 = vpack.c.b16 %v3240, %v3237
    %v3286 = vpack.c.b16 %v3244, %v3241
    %v3287 = vpack.c.b16 %v3245, %v3242
    %v3288 = vpack.c.b16 %v3246, %v3243
    %v3289 = vpack.c.b16 %v3250, %v3247
    %v3290 = vpack.c.b16 %v3251, %v3248
    %v3291 = vpack.c.b16 %v3252, %v3249
    %v3292 = vpack.c.b16 %v3256, %v3253
    %v3293 = vpack.c.b16 %v3257, %v3254
    %v3294 = vpack.c.b16 %v3258, %v3255
    %v3295 = vpack.c.b16 %v3262, %v3259
    %v3296 = vpack.c.b16 %v3263, %v3260
    %v3297 = vpack.c.b16 %v3264, %v3261
    %v3298 = vpack.c.b16 %v3268, %v3265
    %v3299 = vpack.c.b16 %v3269, %v3266
    %v3300 = vpack.c.b16 %v3270, %v3267
    %v3301 = vpack.c.b16 %v3274, %v3271
    %v3302 = vpack.c.b16 %v3275, %v3272
    %v3303 = vpack.c.b16 %v3276, %v3273
    %v3304 = vpack.c.b16 %v3280, %v3277
    %v3305 = vpack.c.b16 %v3281, %v3278
    %v3306 = vpack.c.b16 %v3282, %v3279
    %3331 = vmatprep.subr.bf16.mxu0 %v3284
    %3332 = vmatpush1.bf16.msra.mxu0 %v3283
    %3333 = vmatprep.subr.bf16.mxu0 %v3287
    %3334 = vmatpush1.bf16.msra.mxu0 %v3286
    %3335 = vmatprep.subr.bf16.mxu0 %v3290
    %3336 = vmatpush1.bf16.msra.mxu0 %v3289
    %3337 = vmatprep.subr.bf16.mxu0 %v3293
    %3338 = vmatpush1.bf16.msra.mxu0 %v3292
    %3339 = vmatprep.subr.bf16.mxu0 %v3296
    %3340 = vmatpush1.bf16.msra.mxu0 %v3295
    %3341 = vmatprep.subr.bf16.mxu0 %v3299
    %3342 = vmatpush1.bf16.msra.mxu0 %v3298
    %3343 = vmatprep.subr.bf16.mxu0 %v3302
    %3344 = vmatpush1.bf16.msra.mxu0 %v3301
    %3345 = vmatprep.subr.bf16.mxu0 %v3305
    %3346 = vmatpush1.bf16.msra.mxu0 %v3304
    %3347 = vmatprep.subr.bf16.mxu0 0
    %3348 = vmatpush1.bf16.msra.mxu0 0
    %3349 = vmatprep.subr.bf16.mxu0 0
    %3350 = vmatpush1.bf16.msra.mxu0 0
    %3351 = vmatprep.subr.bf16.mxu0 0
    %3352 = vmatpush1.bf16.msra.mxu0 0
    %3353 = vmatprep.subr.bf16.mxu0 0
    %3354 = vmatpush1.bf16.msra.mxu0 0
    %3355 = vmatprep.subr.bf16.mxu0 0
    %3356 = vmatpush1.bf16.msra.mxu0 0
    %3357 = vmatprep.subr.bf16.mxu0 0
    %3358 = vmatpush1.bf16.msra.mxu0 0
    %3359 = vmatprep.subr.bf16.mxu0 0
    %3360 = vmatpush1.bf16.msra.mxu0 0
    %3361 = vmatprep.subr.bf16.mxu0 0
    %3362 = vmatpush1.bf16.msra.mxu0 0
    %3363 = vmatprep.mubr.bf16.mxu0 0
    %3364 = vmatmul.mubr.bf16.gmra.mrb[0].mxu0 %v3185
    %v3365 = vpop.f32.mrb[0].mxu0
    %v3366 = vadd.f32 %v3191, %v3365
    %v3367 = vpop.f32.mrb[0].mxu0
    %v3368 = vadd.f32 %v3195, %v3367
    %v3369 = vpop.f32.mrb[0].mxu0
    %v3370 = vadd.f32 %v3191, %v3369
    %v3371 = vpop.f32.mrb[0].mxu0
    %v3372 = vadd.f32 %v3195, %v3371
    %3373 = vmatprep.mubr.bf16.mxu0 0
    %3374 = vmatmul.mubr.bf16.gmra.mrb[0].mxu0 %v3186
    %v3375 = vpop.f32.mrb[0].mxu0
    %v3376 = vadd.f32 %v3191, %v3375
    %v3377 = vpop.f32.mrb[0].mxu0
    %v3378 = vadd.f32 %v3195, %v3377
    %v3379 = vpop.f32.mrb[0].mxu0
    %v3380 = vpop.f32.mrb[0].mxu0
    %3381 = vdwg.mxu0
    %3382 = vmatprep.subr.bf16.mxu0 0
    %3383 = vmatpush1.bf16.msra.mxu0 %v3285
    %3384 = vmatprep.subr.bf16.mxu0 0
    %3385 = vmatpush1.bf16.msra.mxu0 %v3288
    %3386 = vmatprep.subr.bf16.mxu0 0
    %3387 = vmatpush1.bf16.msra.mxu0 %v3291
    %3388 = vmatprep.subr.bf16.mxu0 0
    %3389 = vmatpush1.bf16.msra.mxu0 %v3294
    %3390 = vmatprep.subr.bf16.mxu0 0
    %3391 = vmatpush1.bf16.msra.mxu0 %v3297
    %3392 = vmatprep.subr.bf16.mxu0 0
    %3393 = vmatpush1.bf16.msra.mxu0 %v3300
    %3394 = vmatprep.subr.bf16.mxu0 0
    %3395 = vmatpush1.bf16.msra.mxu0 %v3303
    %3396 = vmatprep.subr.bf16.mxu0 0
    %3397 = vmatpush1.bf16.msra.mxu0 %v3306
    %3398 = vmatprep.subr.bf16.mxu0 0
    %3399 = vmatpush1.bf16.msra.mxu0 0
    %3400 = vmatprep.subr.bf16.mxu0 0
    %3401 = vmatpush1.bf16.msra.mxu0 0
    %3402 = vmatprep.subr.bf16.mxu0 0
    %3403 = vmatpush1.bf16.msra.mxu0 0
    %3404 = vmatprep.subr.bf16.mxu0 0
    %3405 = vmatpush1.bf16.msra.mxu0 0
    %3406 = vmatprep.subr.bf16.mxu0 0
    %3407 = vmatpush1.bf16.msra.mxu0 0
    %3408 = vmatprep.subr.bf16.mxu0 0
    %3409 = vmatpush1.bf16.msra.mxu0 0
    %3410 = vmatprep.subr.bf16.mxu0 0
    %3411 = vmatpush1.bf16.msra.mxu0 0
    %3412 = vmatprep.subr.bf16.mxu0 0
    %3413 = vmatpush1.bf16.msra.mxu0 0
    %3414 = vmatprep.mubr.bf16.mxu0 0
    %3415 = vmatmul.mubr.bf16.gmra.mrb[0].mxu0 %v3185
    %v3416 = vpop.f32.mrb[0].mxu0
    %v3417 = vadd.f32 %v3199, %v3416
    %v3418 = vpop.f32.mrb[0].mxu0
    %v3419 = vpop.f32.mrb[0].mxu0
    %v3420 = vadd.f32 %v3199, %v3419
    %v3421 = vpop.f32.mrb[0].mxu0
    %3422 = vmatprep.mubr.bf16.mxu0 0
    %3423 = vmatmul.mubr.bf16.gmra.mrb[0].mxu0 %v3186
    %v3424 = vpop.f32.mrb[0].mxu0
    %v3425 = vadd.f32 %v3199, %v3424
    %v3426 = vpop.f32.mrb[0].mxu0
    %v3427 = vpop.f32.mrb[0].mxu0
    %v3428 = vpop.f32.mrb[0].mxu0
    %3429 = vdwg.mxu0
    %v3439 = vcombine.low %v3366, %v3368
    %v3440 = vcombine.high %v3366, %v3368
    %v3441 = vcombine.high %v3417, %v3417
    %v3442 = vcombine.low %v3370, %v3372
    %v3443 = vcombine.high %v3370, %v3372
    %v3444 = vcombine.high %v3420, %v3420
    %v3445 = vcombine.low %v3376, %v3378
    %v3446 = vcombine.high %v3376, %v3378
    %v3447 = vcombine.high %v3425, %v3425
    %v3451 = vcombine.low %v3439, %v3440
    %v3452 = vcombine.low %v3443, %v3445
    %v3455 = vpack.c.bf16 %v3442, %v3451
    %v3456 = vpack.c.bf16 %v3446, %v3452
    %v3457 = vcombine.high %v3439, %v3440
    %v3458 = vcombine.high %v3442, %v3442
    %v3459 = vcombine.high %v3443, %v3445
    %v3460 = vcombine.high %v3446, %v3446
    %v3465 = vpack.c.bf16 %v3458, %v3457
    %v3466 = vpack.c.bf16 %v3460, %v3459
    %v3468 = vsel %vm832, %v3455, 0
    %v3471 = vsel %vm832, %v3465, 0
    %3473 = vmatprep.subr.bf16.mxu0 0
    %3474 = vmatpush1.bf16.xpose.msra.mxu0 %v3471
    %3475 = vmatprep.subr.bf16.mxu0 0
    %3476 = vmatpush1.bf16.xpose.msra.mxu0 0
    %3477 = vmatprep.subr.bf16.mxu0 0
    %3478 = vmatpush1.bf16.xpose.msra.mxu0 0
    %3479 = vmatprep.subr.bf16.mxu0 0
    %3480 = vmatpush1.bf16.xpose.msra.mxu0 0
    %3481 = vmatprep.subr.bf16.mxu0 0
    %3482 = vmatpush1.bf16.xpose.msra.mxu0 0
    %3483 = vmatprep.subr.bf16.mxu0 0
    %3484 = vmatpush1.bf16.xpose.msra.mxu0 0
    %3485 = vmatprep.subr.bf16.mxu0 0
    %3486 = vmatpush1.bf16.xpose.msra.mxu0 0
    %3487 = vmatprep.subr.bf16.mxu0 0
    %3488 = vmatpush1.bf16.xpose.msra.mxu0 0
    %3489 = vmatprep.subr.bf16.mxu0 0
    %3490 = vmatpush1.bf16.xpose.msra.mxu0 0
    %3491 = vmatprep.subr.bf16.mxu0 0
    %3492 = vmatpush1.bf16.xpose.msra.mxu0 0
    %3493 = vmatprep.subr.bf16.mxu0 0
    %3494 = vmatpush1.bf16.xpose.msra.mxu0 0
    %3495 = vmatprep.subr.bf16.mxu0 0
    %3496 = vmatpush1.bf16.xpose.msra.mxu0 0
    %3497 = vmatprep.subr.bf16.mxu0 0
    %3498 = vmatpush1.bf16.xpose.msra.mxu0 0
    %3499 = vmatprep.subr.bf16.mxu0 0
    %3500 = vmatpush1.bf16.xpose.msra.mxu0 0
    %3501 = vmatprep.subr.bf16.mxu0 0
    %3502 = vmatpush1.bf16.xpose.msra.mxu0 0
    %3503 = vmatprep.subr.bf16.mxu0 0
    %3504 = vmatpush1.bf16.xpose.msra.mxu0 0
    %3505 = vmatprep.mubr.bf16.mxu0 0
    %3506 = vmatmul.mubr.bf16.gmra.mrb[0].mxu0 %v3468
    %v3507 = vpop.f32.mrb[0].mxu0
    %v3508 = vadd.f32 0.0, %v3507
    %v3509 = vpop.f32.mrb[0].mxu0
    %v3510 = vpop.f32.mrb[0].mxu0
    %v3511 = vadd.f32 0.0, %v3510
    %v3512 = vpop.f32.mrb[0].mxu0
    %3513 = vdwg.mxu0
    %v3515 = vsel %vm832, %v3456, 0
    %v3518 = vsel %vm832, %v3466, 0
    %3520 = vmatprep.subr.bf16.mxu0 0
    %3521 = vmatpush1.bf16.xpose.msra.mxu0 %v3518
    %3522 = vmatprep.subr.bf16.mxu0 0
    %3523 = vmatpush1.bf16.xpose.msra.mxu0 0
    %3524 = vmatprep.subr.bf16.mxu0 0
    %3525 = vmatpush1.bf16.xpose.msra.mxu0 0
    %3526 = vmatprep.subr.bf16.mxu0 0
    %3527 = vmatpush1.bf16.xpose.msra.mxu0 0
    %3528 = vmatprep.subr.bf16.mxu0 0
    %3529 = vmatpush1.bf16.xpose.msra.mxu0 0
    %3530 = vmatprep.subr.bf16.mxu0 0
    %3531 = vmatpush1.bf16.xpose.msra.mxu0 0
    %3532 = vmatprep.subr.bf16.mxu0 0
    %3533 = vmatpush1.bf16.xpose.msra.mxu0 0
    %3534 = vmatprep.subr.bf16.mxu0 0
    %3535 = vmatpush1.bf16.xpose.msra.mxu0 0
    %3536 = vmatprep.subr.bf16.mxu0 0
    %3537 = vmatpush1.bf16.xpose.msra.mxu0 0
    %3538 = vmatprep.subr.bf16.mxu0 0
    %3539 = vmatpush1.bf16.xpose.msra.mxu0 0
    %3540 = vmatprep.subr.bf16.mxu0 0
    %3541 = vmatpush1.bf16.xpose.msra.mxu0 0
    %3542 = vmatprep.subr.bf16.mxu0 0
    %3543 = vmatpush1.bf16.xpose.msra.mxu0 0
    %3544 = vmatprep.subr.bf16.mxu0 0
    %3545 = vmatpush1.bf16.xpose.msra.mxu0 0
    %3546 = vmatprep.subr.bf16.mxu0 0
    %3547 = vmatpush1.bf16.xpose.msra.mxu0 0
    %3548 = vmatprep.subr.bf16.mxu0 0
    %3549 = vmatpush1.bf16.xpose.msra.mxu0 0
    %3550 = vmatprep.subr.bf16.mxu0 0
    %3551 = vmatpush1.bf16.xpose.msra.mxu0 0
    %3552 = vmatprep.mubr.bf16.mxu0 0
    %3553 = vmatmul.mubr.bf16.gmra.mrb[0].mxu0 %v3515
    %v3554 = vpop.f32.mrb[0].mxu0
    %v3555 = vadd.f32 0.0, %v3554
    %v3556 = vpop.f32.mrb[0].mxu0
    %v3557 = vpop.f32.mrb[0].mxu0
    %v3558 = vadd.f32 0.0, %v3557
    %v3559 = vpop.f32.mrb[0].mxu0
    %3560 = vdwg.mxu0
    %v3561 = vmul.f32 %v3508, 0.17677669
    %v3562 = vmul.f32 %v3511, 0.17677669
    %v3563 = vmul.f32 %v3555, 0.17677669
    %v3564 = vmul.f32 %v3558, 0.17677669
    %v3565 = vadd.f32 %v3561, %v183
    %v3566 = vadd.f32 %v3562, %v184
    %v3567 = vadd.f32 %v3563, %v185
    %v3568 = vadd.f32 %v3564, %v186
    %v3569 = vsel %vm935, %v3565, -inf
    %3570 = vmax.xlane.f32.xlu0 %v3569
    %v3571 = vpop.xlane.xlu0 %3570
    %v3572 = vsel %vm939, %v3566, -inf
    %3573 = vmax.xlane.f32.xlu0 %v3572
    %v3574 = vpop.xlane.xlu0 %3573
    %v3575 = vsel %vm935, %v3567, -inf
    %3576 = vmax.xlane.f32.xlu0 %v3575
    %v3577 = vpop.xlane.xlu0 %3576
    %v3578 = vsel %vm939, %v3568, -inf
    %3579 = vmax.xlane.f32.xlu0 %v3578
    %v3580 = vpop.xlane.xlu0 %3579
    %v3581 = vsub.f32 %v3565, %v3571
    %v3582 = vsub.f32 %v3566, %v3574
    %v3583 = vsub.f32 %v3567, %v3577
    %v3584 = vsub.f32 %v3568, %v3580
    %v3585 = vmul.f32 %v3581, 1.442695
    %v3586 = vpow.pop %v3585
    %v3587 = vmul.f32 %v3582, 1.442695
    %v3588 = vpow.pop %v3587
    %v3589 = vmul.f32 %v3583, 1.442695
    %v3590 = vpow.pop %v3589
    %v3591 = vmul.f32 %v3584, 1.442695
    %v3592 = vpow.pop %v3591
    %v3593 = vsel %vm935, %v3586, 0.0
    %3594 = vadd.xlane.f32.xlu0 %v3593
    %v3595 = vpop.xlane.xlu0 %3594
    %v3596 = vsel %vm939, %v3588, 0.0
    %3597 = vadd.xlane.f32.xlu0 %v3596
    %v3598 = vpop.xlane.xlu0 %3597
    %v3599 = vsel %vm935, %v3590, 0.0
    %3600 = vadd.xlane.f32.xlu0 %v3599
    %v3601 = vpop.xlane.xlu0 %3600
    %v3602 = vsel %vm939, %v3592, 0.0
    %3603 = vadd.xlane.f32.xlu0 %v3602
    %v3604 = vpop.xlane.xlu0 %3603
    %v3605 = vrcp.pop %v3595
    %v3606 = vrcp.pop %v3598
    %v3607 = vrcp.pop %v3601
    %v3608 = vrcp.pop %v3604
    %v3609 = vmul.f32 %v3586, %v3605
    %v3610 = vmul.f32 %v3588, %v3606
    %v3611 = vmul.f32 %v3590, %v3607
    %v3612 = vmul.f32 %v3592, %v3608
    %v3613 = vpack.c.bf16 %v3610, %v3609
    %v3614 = vpack.c.bf16 %v3612, %v3611
    %v3615 = vcombine.low %v3417, %v3441
    %v3616 = vcombine.low %v3444, %v3425
    %v3619 = vpack.c.bf16 %v3420, %v3615
    %v3620 = vpack.c.bf16 %v3447, %v3616
    %v3622 = vsel %vm935, %v3613, 0
    %v3625 = vsel %vm992, %v3619, 0
    %3627 = vmatprep.subr.bf16.mxu0 0
    %3628 = vmatpush1.bf16.msra.mxu0 %v3625
    %3629 = vmatprep.subr.bf16.mxu0 0
    %3630 = vmatpush1.bf16.msra.mxu0 0
    %3631 = vmatprep.subr.bf16.mxu0 0
    %3632 = vmatpush1.bf16.msra.mxu0 0
    %3633 = vmatprep.subr.bf16.mxu0 0
    %3634 = vmatpush1.bf16.msra.mxu0 0
    %3635 = vmatprep.subr.bf16.mxu0 0
    %3636 = vmatpush1.bf16.msra.mxu0 0
    %3637 = vmatprep.subr.bf16.mxu0 0
    %3638 = vmatpush1.bf16.msra.mxu0 0
    %3639 = vmatprep.subr.bf16.mxu0 0
    %3640 = vmatpush1.bf16.msra.mxu0 0
    %3641 = vmatprep.subr.bf16.mxu0 0
    %3642 = vmatpush1.bf16.msra.mxu0 0
    %3643 = vmatprep.subr.bf16.mxu0 0
    %3644 = vmatpush1.bf16.msra.mxu0 0
    %3645 = vmatprep.subr.bf16.mxu0 0
    %3646 = vmatpush1.bf16.msra.mxu0 0
    %3647 = vmatprep.subr.bf16.mxu0 0
    %3648 = vmatpush1.bf16.msra.mxu0 0
    %3649 = vmatprep.subr.bf16.mxu0 0
    %3650 = vmatpush1.bf16.msra.mxu0 0
    %3651 = vmatprep.subr.bf16.mxu0 0
    %3652 = vmatpush1.bf16.msra.mxu0 0
    %3653 = vmatprep.subr.bf16.mxu0 0
    %3654 = vmatpush1.bf16.msra.mxu0 0
    %3655 = vmatprep.subr.bf16.mxu0 0
    %3656 = vmatpush1.bf16.msra.mxu0 0
    %3657 = vmatprep.subr.bf16.mxu0 0
    %3658 = vmatpush1.bf16.msra.mxu0 0
    %3659 = vmatprep.mubr.bf16.mxu0 0
    %3660 = vmatmul.mubr.bf16.gmra.mrb[0].mxu0 %v3622
    %v3661 = vpop.f32.mrb[0].mxu0
    %v3662 = vadd.f32 0.0, %v3661
    %v3663 = vpop.f32.mrb[0].mxu0
    %v3664 = vpop.f32.mrb[0].mxu0
    %v3665 = vadd.f32 0.0, %v3664
    %v3666 = vpop.f32.mrb[0].mxu0
    %3667 = vdwg.mxu0
    %v3669 = vsel %vm935, %v3614, 0
    %v3672 = vsel %vm992, %v3620, 0
    %3674 = vmatprep.subr.bf16.mxu0 0
    %3675 = vmatpush1.bf16.msra.mxu0 %v3672
    %3676 = vmatprep.subr.bf16.mxu0 0
    %3677 = vmatpush1.bf16.msra.mxu0 0
    %3678 = vmatprep.subr.bf16.mxu0 0
    %3679 = vmatpush1.bf16.msra.mxu0 0
    %3680 = vmatprep.subr.bf16.mxu0 0
    %3681 = vmatpush1.bf16.msra.mxu0 0
    %3682 = vmatprep.subr.bf16.mxu0 0
    %3683 = vmatpush1.bf16.msra.mxu0 0
    %3684 = vmatprep.subr.bf16.mxu0 0
    %3685 = vmatpush1.bf16.msra.mxu0 0
    %3686 = vmatprep.subr.bf16.mxu0 0
    %3687 = vmatpush1.bf16.msra.mxu0 0
    %3688 = vmatprep.subr.bf16.mxu0 0
    %3689 = vmatpush1.bf16.msra.mxu0 0
    %3690 = vmatprep.subr.bf16.mxu0 0
    %3691 = vmatpush1.bf16.msra.mxu0 0
    %3692 = vmatprep.subr.bf16.mxu0 0
    %3693 = vmatpush1.bf16.msra.mxu0 0
    %3694 = vmatprep.subr.bf16.mxu0 0
    %3695 = vmatpush1.bf16.msra.mxu0 0
    %3696 = vmatprep.subr.bf16.mxu0 0
    %3697 = vmatpush1.bf16.msra.mxu0 0
    %3698 = vmatprep.subr.bf16.mxu0 0
    %3699 = vmatpush1.bf16.msra.mxu0 0
    %3700 = vmatprep.subr.bf16.mxu0 0
    %3701 = vmatpush1.bf16.msra.mxu0 0
    %3702 = vmatprep.subr.bf16.mxu0 0
    %3703 = vmatpush1.bf16.msra.mxu0 0
    %3704 = vmatprep.subr.bf16.mxu0 0
    %3705 = vmatpush1.bf16.msra.mxu0 0
    %3706 = vmatprep.mubr.bf16.mxu0 0
    %3707 = vmatmul.mubr.bf16.gmra.mrb[0].mxu0 %v3669
    %v3708 = vpop.f32.mrb[0].mxu0
    %v3709 = vadd.f32 0.0, %v3708
    %v3710 = vpop.f32.mrb[0].mxu0
    %v3711 = vpop.f32.mrb[0].mxu0
    %v3712 = vadd.f32 0.0, %v3711
    %v3713 = vpop.f32.mrb[0].mxu0
    %3714 = vdwg.mxu0
    %3715 = vrot.lane.b32.xlu0 %v3457, 96
    %v3716 = vpop.permute.xlu0 %3715
    %3717 = vrot.lane.b32.xlu0 %v3458, 96
    %v3718 = vpop.permute.xlu0 %3717
    %3719 = vrot.lane.b32.xlu0 %v3459, 96
    %v3720 = vpop.permute.xlu0 %3719
    %3721 = vrot.lane.b32.xlu0 %v3460, 96
    %v3722 = vpop.permute.xlu0 %3721
    %v3727 = vpack.c.bf16 %v3718, %v3716
    %v3728 = vpack.c.bf16 %v3722, %v3720
    %3730 = vrot.lane.b32.xlu0 %v3455, 96
    %v3731 = vpop.permute.xlu0 %3730
    %v3733 = vsel %vm832, %v3731, 0
    %v3736 = vsel %vm832, %v3727, 0
    %3738 = vmatprep.subr.bf16.mxu0 0
    %3739 = vmatpush1.bf16.xpose.msra.mxu0 %v3736
    %3740 = vmatprep.subr.bf16.mxu0 0
    %3741 = vmatpush1.bf16.xpose.msra.mxu0 0
    %3742 = vmatprep.subr.bf16.mxu0 0
    %3743 = vmatpush1.bf16.xpose.msra.mxu0 0
    %3744 = vmatprep.subr.bf16.mxu0 0
    %3745 = vmatpush1.bf16.xpose.msra.mxu0 0
    %3746 = vmatprep.subr.bf16.mxu0 0
    %3747 = vmatpush1.bf16.xpose.msra.mxu0 0
    %3748 = vmatprep.subr.bf16.mxu0 0
    %3749 = vmatpush1.bf16.xpose.msra.mxu0 0
    %3750 = vmatprep.subr.bf16.mxu0 0
    %3751 = vmatpush1.bf16.xpose.msra.mxu0 0
    %3752 = vmatprep.subr.bf16.mxu0 0
    %3753 = vmatpush1.bf16.xpose.msra.mxu0 0
    %3754 = vmatprep.subr.bf16.mxu0 0
    %3755 = vmatpush1.bf16.xpose.msra.mxu0 0
    %3756 = vmatprep.subr.bf16.mxu0 0
    %3757 = vmatpush1.bf16.xpose.msra.mxu0 0
    %3758 = vmatprep.subr.bf16.mxu0 0
    %3759 = vmatpush1.bf16.xpose.msra.mxu0 0
    %3760 = vmatprep.subr.bf16.mxu0 0
    %3761 = vmatpush1.bf16.xpose.msra.mxu0 0
    %3762 = vmatprep.subr.bf16.mxu0 0
    %3763 = vmatpush1.bf16.xpose.msra.mxu0 0
    %3764 = vmatprep.subr.bf16.mxu0 0
    %3765 = vmatpush1.bf16.xpose.msra.mxu0 0
    %3766 = vmatprep.subr.bf16.mxu0 0
    %3767 = vmatpush1.bf16.xpose.msra.mxu0 0
    %3768 = vmatprep.subr.bf16.mxu0 0
    %3769 = vmatpush1.bf16.xpose.msra.mxu0 0
    %3770 = vmatprep.mubr.bf16.mxu0 0
    %3771 = vmatmul.mubr.bf16.gmra.mrb[0].mxu0 %v3733
    %v3772 = vpop.f32.mrb[0].mxu0
    %v3773 = vadd.f32 0.0, %v3772
    %v3774 = vpop.f32.mrb[0].mxu0
    %v3775 = vpop.f32.mrb[0].mxu0
    %v3776 = vadd.f32 0.0, %v3775
    %v3777 = vpop.f32.mrb[0].mxu0
    %3778 = vdwg.mxu0
    %3780 = vrot.lane.b32.xlu0 %v3456, 96
    %v3781 = vpop.permute.xlu0 %3780
    %v3783 = vsel %vm832, %v3781, 0
    %v3786 = vsel %vm832, %v3728, 0
    %3788 = vmatprep.subr.bf16.mxu0 0
    %3789 = vmatpush1.bf16.xpose.msra.mxu0 %v3786
    %3790 = vmatprep.subr.bf16.mxu0 0
    %3791 = vmatpush1.bf16.xpose.msra.mxu0 0
    %3792 = vmatprep.subr.bf16.mxu0 0
    %3793 = vmatpush1.bf16.xpose.msra.mxu0 0
    %3794 = vmatprep.subr.bf16.mxu0 0
    %3795 = vmatpush1.bf16.xpose.msra.mxu0 0
    %3796 = vmatprep.subr.bf16.mxu0 0
    %3797 = vmatpush1.bf16.xpose.msra.mxu0 0
    %3798 = vmatprep.subr.bf16.mxu0 0
    %3799 = vmatpush1.bf16.xpose.msra.mxu0 0
    %3800 = vmatprep.subr.bf16.mxu0 0
    %3801 = vmatpush1.bf16.xpose.msra.mxu0 0
    %3802 = vmatprep.subr.bf16.mxu0 0
    %3803 = vmatpush1.bf16.xpose.msra.mxu0 0
    %3804 = vmatprep.subr.bf16.mxu0 0
    %3805 = vmatpush1.bf16.xpose.msra.mxu0 0
    %3806 = vmatprep.subr.bf16.mxu0 0
    %3807 = vmatpush1.bf16.xpose.msra.mxu0 0
    %3808 = vmatprep.subr.bf16.mxu0 0
    %3809 = vmatpush1.bf16.xpose.msra.mxu0 0
    %3810 = vmatprep.subr.bf16.mxu0 0
    %3811 = vmatpush1.bf16.xpose.msra.mxu0 0
    %3812 = vmatprep.subr.bf16.mxu0 0
    %3813 = vmatpush1.bf16.xpose.msra.mxu0 0
    %3814 = vmatprep.subr.bf16.mxu0 0
    %3815 = vmatpush1.bf16.xpose.msra.mxu0 0
    %3816 = vmatprep.subr.bf16.mxu0 0
    %3817 = vmatpush1.bf16.xpose.msra.mxu0 0
    %3818 = vmatprep.subr.bf16.mxu0 0
    %3819 = vmatpush1.bf16.xpose.msra.mxu0 0
    %3820 = vmatprep.mubr.bf16.mxu0 0
    %3821 = vmatmul.mubr.bf16.gmra.mrb[0].mxu0 %v3783
    %v3822 = vpop.f32.mrb[0].mxu0
    %v3823 = vadd.f32 0.0, %v3822
    %v3824 = vpop.f32.mrb[0].mxu0
    %v3825 = vpop.f32.mrb[0].mxu0
    %v3826 = vadd.f32 0.0, %v3825
    %v3827 = vpop.f32.mrb[0].mxu0
    %3828 = vdwg.mxu0
    %v3829 = vmul.f32 %v3773, 0.17677669
    %v3830 = vmul.f32 %v3776, 0.17677669
    %v3831 = vmul.f32 %v3823, 0.17677669
    %v3832 = vmul.f32 %v3826, 0.17677669
    %v3833 = vadd.f32 %v3829, %v183
    %v3834 = vadd.f32 %v3830, %v184
    %v3835 = vadd.f32 %v3831, %v185
    %v3836 = vadd.f32 %v3832, %v186
    %v3837 = vsel %vm935, %v3833, -inf
    %3838 = vmax.xlane.f32.xlu0 %v3837
    %v3839 = vpop.xlane.xlu0 %3838
    %v3840 = vsel %vm939, %v3834, -inf
    %3841 = vmax.xlane.f32.xlu0 %v3840
    %v3842 = vpop.xlane.xlu0 %3841
    %v3843 = vsel %vm935, %v3835, -inf
    %3844 = vmax.xlane.f32.xlu0 %v3843
    %v3845 = vpop.xlane.xlu0 %3844
    %v3846 = vsel %vm939, %v3836, -inf
    %3847 = vmax.xlane.f32.xlu0 %v3846
    %v3848 = vpop.xlane.xlu0 %3847
    %v3849 = vsub.f32 %v3833, %v3839
    %v3850 = vsub.f32 %v3834, %v3842
    %v3851 = vsub.f32 %v3835, %v3845
    %v3852 = vsub.f32 %v3836, %v3848
    %v3853 = vmul.f32 %v3849, 1.442695
    %v3854 = vpow.pop %v3853
    %v3855 = vmul.f32 %v3850, 1.442695
    %v3856 = vpow.pop %v3855
    %v3857 = vmul.f32 %v3851, 1.442695
    %v3858 = vpow.pop %v3857
    %v3859 = vmul.f32 %v3852, 1.442695
    %v3860 = vpow.pop %v3859
    %v3861 = vsel %vm935, %v3854, 0.0
    %3862 = vadd.xlane.f32.xlu0 %v3861
    %v3863 = vpop.xlane.xlu0 %3862
    %v3864 = vsel %vm939, %v3856, 0.0
    %3865 = vadd.xlane.f32.xlu0 %v3864
    %v3866 = vpop.xlane.xlu0 %3865
    %v3867 = vsel %vm935, %v3858, 0.0
    %3868 = vadd.xlane.f32.xlu0 %v3867
    %v3869 = vpop.xlane.xlu0 %3868
    %v3870 = vsel %vm939, %v3860, 0.0
    %3871 = vadd.xlane.f32.xlu0 %v3870
    %v3872 = vpop.xlane.xlu0 %3871
    %v3873 = vrcp.pop %v3863
    %v3874 = vrcp.pop %v3866
    %v3875 = vrcp.pop %v3869
    %v3876 = vrcp.pop %v3872
    %v3877 = vmul.f32 %v3854, %v3873
    %v3878 = vmul.f32 %v3856, %v3874
    %v3879 = vmul.f32 %v3858, %v3875
    %v3880 = vmul.f32 %v3860, %v3876
    %v3881 = vpack.c.bf16 %v3878, %v3877
    %v3882 = vpack.c.bf16 %v3880, %v3879
    %3884 = vrot.lane.b32.xlu0 %v3619, 96
    %v3885 = vpop.permute.xlu0 %3884
    %v3887 = vsel %vm935, %v3881, 0
    %v3890 = vsel %vm992, %v3885, 0
    %3892 = vmatprep.subr.bf16.mxu0 0
    %3893 = vmatpush1.bf16.msra.mxu0 %v3890
    %3894 = vmatprep.subr.bf16.mxu0 0
    %3895 = vmatpush1.bf16.msra.mxu0 0
    %3896 = vmatprep.subr.bf16.mxu0 0
    %3897 = vmatpush1.bf16.msra.mxu0 0
    %3898 = vmatprep.subr.bf16.mxu0 0
    %3899 = vmatpush1.bf16.msra.mxu0 0
    %3900 = vmatprep.subr.bf16.mxu0 0
    %3901 = vmatpush1.bf16.msra.mxu0 0
    %3902 = vmatprep.subr.bf16.mxu0 0
    %3903 = vmatpush1.bf16.msra.mxu0 0
    %3904 = vmatprep.subr.bf16.mxu0 0
    %3905 = vmatpush1.bf16.msra.mxu0 0
    %3906 = vmatprep.subr.bf16.mxu0 0
    %3907 = vmatpush1.bf16.msra.mxu0 0
    %3908 = vmatprep.subr.bf16.mxu0 0
    %3909 = vmatpush1.bf16.msra.mxu0 0
    %3910 = vmatprep.subr.bf16.mxu0 0
    %3911 = vmatpush1.bf16.msra.mxu0 0
    %3912 = vmatprep.subr.bf16.mxu0 0
    %3913 = vmatpush1.bf16.msra.mxu0 0
    %3914 = vmatprep.subr.bf16.mxu0 0
    %3915 = vmatpush1.bf16.msra.mxu0 0
    %3916 = vmatprep.subr.bf16.mxu0 0
    %3917 = vmatpush1.bf16.msra.mxu0 0
    %3918 = vmatprep.subr.bf16.mxu0 0
    %3919 = vmatpush1.bf16.msra.mxu0 0
    %3920 = vmatprep.subr.bf16.mxu0 0
    %3921 = vmatpush1.bf16.msra.mxu0 0
    %3922 = vmatprep.subr.bf16.mxu0 0
    %3923 = vmatpush1.bf16.msra.mxu0 0
    %3924 = vmatprep.mubr.bf16.mxu0 0
    %3925 = vmatmul.mubr.bf16.gmra.mrb[0].mxu0 %v3887
    %v3926 = vpop.f32.mrb[0].mxu0
    %v3927 = vadd.f32 0.0, %v3926
    %v3928 = vpop.f32.mrb[0].mxu0
    %v3929 = vpop.f32.mrb[0].mxu0
    %v3930 = vadd.f32 0.0, %v3929
    %v3931 = vpop.f32.mrb[0].mxu0
    %3932 = vdwg.mxu0
    %3934 = vrot.lane.b32.xlu0 %v3620, 96
    %v3935 = vpop.permute.xlu0 %3934
    %v3937 = vsel %vm935, %v3882, 0
    %v3940 = vsel %vm992, %v3935, 0
    %3942 = vmatprep.subr.bf16.mxu0 0
    %3943 = vmatpush1.bf16.msra.mxu0 %v3940
    %3944 = vmatprep.subr.bf16.mxu0 0
    %3945 = vmatpush1.bf16.msra.mxu0 0
    %3946 = vmatprep.subr.bf16.mxu0 0
    %3947 = vmatpush1.bf16.msra.mxu0 0
    %3948 = vmatprep.subr.bf16.mxu0 0
    %3949 = vmatpush1.bf16.msra.mxu0 0
    %3950 = vmatprep.subr.bf16.mxu0 0
    %3951 = vmatpush1.bf16.msra.mxu0 0
    %3952 = vmatprep.subr.bf16.mxu0 0
    %3953 = vmatpush1.bf16.msra.mxu0 0
    %3954 = vmatprep.subr.bf16.mxu0 0
    %3955 = vmatpush1.bf16.msra.mxu0 0
    %3956 = vmatprep.subr.bf16.mxu0 0
    %3957 = vmatpush1.bf16.msra.mxu0 0
    %3958 = vmatprep.subr.bf16.mxu0 0
    %3959 = vmatpush1.bf16.msra.mxu0 0
    %3960 = vmatprep.subr.bf16.mxu0 0
    %3961 = vmatpush1.bf16.msra.mxu0 0
    %3962 = vmatprep.subr.bf16.mxu0 0
    %3963 = vmatpush1.bf16.msra.mxu0 0
    %3964 = vmatprep.subr.bf16.mxu0 0
    %3965 = vmatpush1.bf16.msra.mxu0 0
    %3966 = vmatprep.subr.bf16.mxu0 0
    %3967 = vmatpush1.bf16.msra.mxu0 0
    %3968 = vmatprep.subr.bf16.mxu0 0
    %3969 = vmatpush1.bf16.msra.mxu0 0
    %3970 = vmatprep.subr.bf16.mxu0 0
    %3971 = vmatpush1.bf16.msra.mxu0 0
    %3972 = vmatprep.subr.bf16.mxu0 0
    %3973 = vmatpush1.bf16.msra.mxu0 0
    %3974 = vmatprep.mubr.bf16.mxu0 0
    %3975 = vmatmul.mubr.bf16.gmra.mrb[0].mxu0 %v3937
    %v3976 = vpop.f32.mrb[0].mxu0
    %v3977 = vadd.f32 0.0, %v3976
    %v3978 = vpop.f32.mrb[0].mxu0
    %v3979 = vpop.f32.mrb[0].mxu0
    %v3980 = vadd.f32 0.0, %v3979
    %v3981 = vpop.f32.mrb[0].mxu0
    %3982 = vdwg.mxu0
    %3983 = vrot.lane.b32.xlu0 %v3457, 64
    %v3984 = vpop.permute.xlu0 %3983
    %3985 = vrot.lane.b32.xlu0 %v3458, 64
    %v3986 = vpop.permute.xlu0 %3985
    %3987 = vrot.lane.b32.xlu0 %v3459, 64
    %v3988 = vpop.permute.xlu0 %3987
    %3989 = vrot.lane.b32.xlu0 %v3460, 64
    %v3990 = vpop.permute.xlu0 %3989
    %v3995 = vpack.c.bf16 %v3986, %v3984
    %v3996 = vpack.c.bf16 %v3990, %v3988
    %3997 = vrot.lane.b32.xlu0 %v3455, 64
    %v3998 = vpop.permute.xlu0 %3997
    %v4000 = vsel %vm832, %v3998, 0
    %v4003 = vsel %vm832, %v3995, 0
    %4005 = vmatprep.subr.bf16.mxu0 0
    %4006 = vmatpush1.bf16.xpose.msra.mxu0 %v4003
    %4007 = vmatprep.subr.bf16.mxu0 0
    %4008 = vmatpush1.bf16.xpose.msra.mxu0 0
    %4009 = vmatprep.subr.bf16.mxu0 0
    %4010 = vmatpush1.bf16.xpose.msra.mxu0 0
    %4011 = vmatprep.subr.bf16.mxu0 0
    %4012 = vmatpush1.bf16.xpose.msra.mxu0 0
    %4013 = vmatprep.subr.bf16.mxu0 0
    %4014 = vmatpush1.bf16.xpose.msra.mxu0 0
    %4015 = vmatprep.subr.bf16.mxu0 0
    %4016 = vmatpush1.bf16.xpose.msra.mxu0 0
    %4017 = vmatprep.subr.bf16.mxu0 0
    %4018 = vmatpush1.bf16.xpose.msra.mxu0 0
    %4019 = vmatprep.subr.bf16.mxu0 0
    %4020 = vmatpush1.bf16.xpose.msra.mxu0 0
    %4021 = vmatprep.subr.bf16.mxu0 0
    %4022 = vmatpush1.bf16.xpose.msra.mxu0 0
    %4023 = vmatprep.subr.bf16.mxu0 0
    %4024 = vmatpush1.bf16.xpose.msra.mxu0 0
    %4025 = vmatprep.subr.bf16.mxu0 0
    %4026 = vmatpush1.bf16.xpose.msra.mxu0 0
    %4027 = vmatprep.subr.bf16.mxu0 0
    %4028 = vmatpush1.bf16.xpose.msra.mxu0 0
    %4029 = vmatprep.subr.bf16.mxu0 0
    %4030 = vmatpush1.bf16.xpose.msra.mxu0 0
    %4031 = vmatprep.subr.bf16.mxu0 0
    %4032 = vmatpush1.bf16.xpose.msra.mxu0 0
    %4033 = vmatprep.subr.bf16.mxu0 0
    %4034 = vmatpush1.bf16.xpose.msra.mxu0 0
    %4035 = vmatprep.subr.bf16.mxu0 0
    %4036 = vmatpush1.bf16.xpose.msra.mxu0 0
    %4037 = vmatprep.mubr.bf16.mxu0 0
    %4038 = vmatmul.mubr.bf16.gmra.mrb[0].mxu0 %v4000
    %v4039 = vpop.f32.mrb[0].mxu0
    %v4040 = vadd.f32 0.0, %v4039
    %v4041 = vpop.f32.mrb[0].mxu0
    %v4042 = vpop.f32.mrb[0].mxu0
    %v4043 = vadd.f32 0.0, %v4042
    %v4044 = vpop.f32.mrb[0].mxu0
    %4045 = vdwg.mxu0
    %4046 = vrot.lane.b32.xlu0 %v3456, 64
    %v4047 = vpop.permute.xlu0 %4046
    %v4049 = vsel %vm832, %v4047, 0
    %v4052 = vsel %vm832, %v3996, 0
    %4054 = vmatprep.subr.bf16.mxu0 0
    %4055 = vmatpush1.bf16.xpose.msra.mxu0 %v4052
    %4056 = vmatprep.subr.bf16.mxu0 0
    %4057 = vmatpush1.bf16.xpose.msra.mxu0 0
    %4058 = vmatprep.subr.bf16.mxu0 0
    %4059 = vmatpush1.bf16.xpose.msra.mxu0 0
    %4060 = vmatprep.subr.bf16.mxu0 0
    %4061 = vmatpush1.bf16.xpose.msra.mxu0 0
    %4062 = vmatprep.subr.bf16.mxu0 0
    %4063 = vmatpush1.bf16.xpose.msra.mxu0 0
    %4064 = vmatprep.subr.bf16.mxu0 0
    %4065 = vmatpush1.bf16.xpose.msra.mxu0 0
    %4066 = vmatprep.subr.bf16.mxu0 0
    %4067 = vmatpush1.bf16.xpose.msra.mxu0 0
    %4068 = vmatprep.subr.bf16.mxu0 0
    %4069 = vmatpush1.bf16.xpose.msra.mxu0 0
    %4070 = vmatprep.subr.bf16.mxu0 0
    %4071 = vmatpush1.bf16.xpose.msra.mxu0 0
    %4072 = vmatprep.subr.bf16.mxu0 0
    %4073 = vmatpush1.bf16.xpose.msra.mxu0 0
    %4074 = vmatprep.subr.bf16.mxu0 0
    %4075 = vmatpush1.bf16.xpose.msra.mxu0 0
    %4076 = vmatprep.subr.bf16.mxu0 0
    %4077 = vmatpush1.bf16.xpose.msra.mxu0 0
    %4078 = vmatprep.subr.bf16.mxu0 0
    %4079 = vmatpush1.bf16.xpose.msra.mxu0 0
    %4080 = vmatprep.subr.bf16.mxu0 0
    %4081 = vmatpush1.bf16.xpose.msra.mxu0 0
    %4082 = vmatprep.subr.bf16.mxu0 0
    %4083 = vmatpush1.bf16.xpose.msra.mxu0 0
    %4084 = vmatprep.subr.bf16.mxu0 0
    %4085 = vmatpush1.bf16.xpose.msra.mxu0 0
    %4086 = vmatprep.mubr.bf16.mxu0 0
    %4087 = vmatmul.mubr.bf16.gmra.mrb[0].mxu0 %v4049
    %v4088 = vpop.f32.mrb[0].mxu0
    %v4089 = vadd.f32 0.0, %v4088
    %v4090 = vpop.f32.mrb[0].mxu0
    %v4091 = vpop.f32.mrb[0].mxu0
    %v4092 = vadd.f32 0.0, %v4091
    %v4093 = vpop.f32.mrb[0].mxu0
    %4094 = vdwg.mxu0
    %v4095 = vmul.f32 %v4040, 0.17677669
    %v4096 = vmul.f32 %v4043, 0.17677669
    %v4097 = vmul.f32 %v4089, 0.17677669
    %v4098 = vmul.f32 %v4092, 0.17677669
    %v4099 = vadd.f32 %v4095, %v183
    %v4100 = vadd.f32 %v4096, %v184
    %v4101 = vadd.f32 %v4097, %v185
    %v4102 = vadd.f32 %v4098, %v186
    %v4103 = vsel %vm935, %v4099, -inf
    %4104 = vmax.xlane.f32.xlu0 %v4103
    %v4105 = vpop.xlane.xlu0 %4104
    %v4106 = vsel %vm939, %v4100, -inf
    %4107 = vmax.xlane.f32.xlu0 %v4106
    %v4108 = vpop.xlane.xlu0 %4107
    %v4109 = vsel %vm935, %v4101, -inf
    %4110 = vmax.xlane.f32.xlu0 %v4109
    %v4111 = vpop.xlane.xlu0 %4110
    %v4112 = vsel %vm939, %v4102, -inf
    %4113 = vmax.xlane.f32.xlu0 %v4112
    %v4114 = vpop.xlane.xlu0 %4113
    %v4115 = vsub.f32 %v4099, %v4105
    %v4116 = vsub.f32 %v4100, %v4108
    %v4117 = vsub.f32 %v4101, %v4111
    %v4118 = vsub.f32 %v4102, %v4114
    %v4119 = vmul.f32 %v4115, 1.442695
    %v4120 = vpow.pop %v4119
    %v4121 = vmul.f32 %v4116, 1.442695
    %v4122 = vpow.pop %v4121
    %v4123 = vmul.f32 %v4117, 1.442695
    %v4124 = vpow.pop %v4123
    %v4125 = vmul.f32 %v4118, 1.442695
    %v4126 = vpow.pop %v4125
    %v4127 = vsel %vm935, %v4120, 0.0
    %4128 = vadd.xlane.f32.xlu0 %v4127
    %v4129 = vpop.xlane.xlu0 %4128
    %v4130 = vsel %vm939, %v4122, 0.0
    %4131 = vadd.xlane.f32.xlu0 %v4130
    %v4132 = vpop.xlane.xlu0 %4131
    %v4133 = vsel %vm935, %v4124, 0.0
    %4134 = vadd.xlane.f32.xlu0 %v4133
    %v4135 = vpop.xlane.xlu0 %4134
    %v4136 = vsel %vm939, %v4126, 0.0
    %4137 = vadd.xlane.f32.xlu0 %v4136
    %v4138 = vpop.xlane.xlu0 %4137
    %v4139 = vrcp.pop %v4129
    %v4140 = vrcp.pop %v4132
    %v4141 = vrcp.pop %v4135
    %v4142 = vrcp.pop %v4138
    %v4143 = vmul.f32 %v4120, %v4139
    %v4144 = vmul.f32 %v4122, %v4140
    %v4145 = vmul.f32 %v4124, %v4141
    %v4146 = vmul.f32 %v4126, %v4142
    %v4147 = vpack.c.bf16 %v4144, %v4143
    %v4148 = vpack.c.bf16 %v4146, %v4145
    %4149 = vrot.lane.b32.xlu0 %v3619, 64
    %v4150 = vpop.permute.xlu0 %4149
    %v4152 = vsel %vm935, %v4147, 0
    %v4155 = vsel %vm992, %v4150, 0
    %4157 = vmatprep.subr.bf16.mxu0 0
    %4158 = vmatpush1.bf16.msra.mxu0 %v4155
    %4159 = vmatprep.subr.bf16.mxu0 0
    %4160 = vmatpush1.bf16.msra.mxu0 0
    %4161 = vmatprep.subr.bf16.mxu0 0
    %4162 = vmatpush1.bf16.msra.mxu0 0
    %4163 = vmatprep.subr.bf16.mxu0 0
    %4164 = vmatpush1.bf16.msra.mxu0 0
    %4165 = vmatprep.subr.bf16.mxu0 0
    %4166 = vmatpush1.bf16.msra.mxu0 0
    %4167 = vmatprep.subr.bf16.mxu0 0
    %4168 = vmatpush1.bf16.msra.mxu0 0
    %4169 = vmatprep.subr.bf16.mxu0 0
    %4170 = vmatpush1.bf16.msra.mxu0 0
    %4171 = vmatprep.subr.bf16.mxu0 0
    %4172 = vmatpush1.bf16.msra.mxu0 0
    %4173 = vmatprep.subr.bf16.mxu0 0
    %4174 = vmatpush1.bf16.msra.mxu0 0
    %4175 = vmatprep.subr.bf16.mxu0 0
    %4176 = vmatpush1.bf16.msra.mxu0 0
    %4177 = vmatprep.subr.bf16.mxu0 0
    %4178 = vmatpush1.bf16.msra.mxu0 0
    %4179 = vmatprep.subr.bf16.mxu0 0
    %4180 = vmatpush1.bf16.msra.mxu0 0
    %4181 = vmatprep.subr.bf16.mxu0 0
    %4182 = vmatpush1.bf16.msra.mxu0 0
    %4183 = vmatprep.subr.bf16.mxu0 0
    %4184 = vmatpush1.bf16.msra.mxu0 0
    %4185 = vmatprep.subr.bf16.mxu0 0
    %4186 = vmatpush1.bf16.msra.mxu0 0
    %4187 = vmatprep.subr.bf16.mxu0 0
    %4188 = vmatpush1.bf16.msra.mxu0 0
    %4189 = vmatprep.mubr.bf16.mxu0 0
    %4190 = vmatmul.mubr.bf16.gmra.mrb[0].mxu0 %v4152
    %v4191 = vpop.f32.mrb[0].mxu0
    %v4192 = vadd.f32 0.0, %v4191
    %v4193 = vpop.f32.mrb[0].mxu0
    %v4194 = vpop.f32.mrb[0].mxu0
    %v4195 = vadd.f32 0.0, %v4194
    %v4196 = vpop.f32.mrb[0].mxu0
    %4197 = vdwg.mxu0
    %4198 = vrot.lane.b32.xlu0 %v3620, 64
    %v4199 = vpop.permute.xlu0 %4198
    %v4201 = vsel %vm935, %v4148, 0
    %v4204 = vsel %vm992, %v4199, 0
    %4206 = vmatprep.subr.bf16.mxu0 0
    %4207 = vmatpush1.bf16.msra.mxu0 %v4204
    %4208 = vmatprep.subr.bf16.mxu0 0
    %4209 = vmatpush1.bf16.msra.mxu0 0
    %4210 = vmatprep.subr.bf16.mxu0 0
    %4211 = vmatpush1.bf16.msra.mxu0 0
    %4212 = vmatprep.subr.bf16.mxu0 0
    %4213 = vmatpush1.bf16.msra.mxu0 0
    %4214 = vmatprep.subr.bf16.mxu0 0
    %4215 = vmatpush1.bf16.msra.mxu0 0
    %4216 = vmatprep.subr.bf16.mxu0 0
    %4217 = vmatpush1.bf16.msra.mxu0 0
    %4218 = vmatprep.subr.bf16.mxu0 0
    %4219 = vmatpush1.bf16.msra.mxu0 0
    %4220 = vmatprep.subr.bf16.mxu0 0
    %4221 = vmatpush1.bf16.msra.mxu0 0
    %4222 = vmatprep.subr.bf16.mxu0 0
    %4223 = vmatpush1.bf16.msra.mxu0 0
    %4224 = vmatprep.subr.bf16.mxu0 0
    %4225 = vmatpush1.bf16.msra.mxu0 0
    %4226 = vmatprep.subr.bf16.mxu0 0
    %4227 = vmatpush1.bf16.msra.mxu0 0
    %4228 = vmatprep.subr.bf16.mxu0 0
    %4229 = vmatpush1.bf16.msra.mxu0 0
    %4230 = vmatprep.subr.bf16.mxu0 0
    %4231 = vmatpush1.bf16.msra.mxu0 0
    %4232 = vmatprep.subr.bf16.mxu0 0
    %4233 = vmatpush1.bf16.msra.mxu0 0
    %4234 = vmatprep.subr.bf16.mxu0 0
    %4235 = vmatpush1.bf16.msra.mxu0 0
    %4236 = vmatprep.subr.bf16.mxu0 0
    %4237 = vmatpush1.bf16.msra.mxu0 0
    %4238 = vmatprep.mubr.bf16.mxu0 0
    %4239 = vmatmul.mubr.bf16.gmra.mrb[0].mxu0 %v4201
    %v4240 = vpop.f32.mrb[0].mxu0
    %v4241 = vadd.f32 0.0, %v4240
    %v4242 = vpop.f32.mrb[0].mxu0
    %v4243 = vpop.f32.mrb[0].mxu0
    %v4244 = vadd.f32 0.0, %v4243
    %v4245 = vpop.f32.mrb[0].mxu0
    %4246 = vdwg.mxu0
    %4247 = vrot.lane.b32.xlu0 %v3457, 32
    %v4248 = vpop.permute.xlu0 %4247
    %4249 = vrot.lane.b32.xlu0 %v3458, 32
    %v4250 = vpop.permute.xlu0 %4249
    %4251 = vrot.lane.b32.xlu0 %v3459, 32
    %v4252 = vpop.permute.xlu0 %4251
    %4253 = vrot.lane.b32.xlu0 %v3460, 32
    %v4254 = vpop.permute.xlu0 %4253
    %v4259 = vpack.c.bf16 %v4250, %v4248
    %v4260 = vpack.c.bf16 %v4254, %v4252
    %4261 = vrot.lane.b32.xlu0 %v3455, 32
    %v4262 = vpop.permute.xlu0 %4261
    %v4264 = vsel %vm832, %v4262, 0
    %v4267 = vsel %vm832, %v4259, 0
    %4269 = vmatprep.subr.bf16.mxu0 0
    %4270 = vmatpush1.bf16.xpose.msra.mxu0 %v4267
    %4271 = vmatprep.subr.bf16.mxu0 0
    %4272 = vmatpush1.bf16.xpose.msra.mxu0 0
    %4273 = vmatprep.subr.bf16.mxu0 0
    %4274 = vmatpush1.bf16.xpose.msra.mxu0 0
    %4275 = vmatprep.subr.bf16.mxu0 0
    %4276 = vmatpush1.bf16.xpose.msra.mxu0 0
    %4277 = vmatprep.subr.bf16.mxu0 0
    %4278 = vmatpush1.bf16.xpose.msra.mxu0 0
    %4279 = vmatprep.subr.bf16.mxu0 0
    %4280 = vmatpush1.bf16.xpose.msra.mxu0 0
    %4281 = vmatprep.subr.bf16.mxu0 0
    %4282 = vmatpush1.bf16.xpose.msra.mxu0 0
    %4283 = vmatprep.subr.bf16.mxu0 0
    %4284 = vmatpush1.bf16.xpose.msra.mxu0 0
    %4285 = vmatprep.subr.bf16.mxu0 0
    %4286 = vmatpush1.bf16.xpose.msra.mxu0 0
    %4287 = vmatprep.subr.bf16.mxu0 0
    %4288 = vmatpush1.bf16.xpose.msra.mxu0 0
    %4289 = vmatprep.subr.bf16.mxu0 0
    %4290 = vmatpush1.bf16.xpose.msra.mxu0 0
    %4291 = vmatprep.subr.bf16.mxu0 0
    %4292 = vmatpush1.bf16.xpose.msra.mxu0 0
    %4293 = vmatprep.subr.bf16.mxu0 0
    %4294 = vmatpush1.bf16.xpose.msra.mxu0 0
    %4295 = vmatprep.subr.bf16.mxu0 0
    %4296 = vmatpush1.bf16.xpose.msra.mxu0 0
    %4297 = vmatprep.subr.bf16.mxu0 0
    %4298 = vmatpush1.bf16.xpose.msra.mxu0 0
    %4299 = vmatprep.subr.bf16.mxu0 0
    %4300 = vmatpush1.bf16.xpose.msra.mxu0 0
    %4301 = vmatprep.mubr.bf16.mxu0 0
    %4302 = vmatmul.mubr.bf16.gmra.mrb[0].mxu0 %v4264
    %v4303 = vpop.f32.mrb[0].mxu0
    %v4304 = vadd.f32 0.0, %v4303
    %v4305 = vpop.f32.mrb[0].mxu0
    %v4306 = vpop.f32.mrb[0].mxu0
    %v4307 = vadd.f32 0.0, %v4306
    %v4308 = vpop.f32.mrb[0].mxu0
    %4309 = vdwg.mxu0
    %4310 = vrot.lane.b32.xlu0 %v3456, 32
    %v4311 = vpop.permute.xlu0 %4310
    %v4313 = vsel %vm832, %v4311, 0
    %v4316 = vsel %vm832, %v4260, 0
    %4318 = vmatprep.subr.bf16.mxu0 0
    %4319 = vmatpush1.bf16.xpose.msra.mxu0 %v4316
    %4320 = vmatprep.subr.bf16.mxu0 0
    %4321 = vmatpush1.bf16.xpose.msra.mxu0 0
    %4322 = vmatprep.subr.bf16.mxu0 0
    %4323 = vmatpush1.bf16.xpose.msra.mxu0 0
    %4324 = vmatprep.subr.bf16.mxu0 0
    %4325 = vmatpush1.bf16.xpose.msra.mxu0 0
    %4326 = vmatprep.subr.bf16.mxu0 0
    %4327 = vmatpush1.bf16.xpose.msra.mxu0 0
    %4328 = vmatprep.subr.bf16.mxu0 0
    %4329 = vmatpush1.bf16.xpose.msra.mxu0 0
    %4330 = vmatprep.subr.bf16.mxu0 0
    %4331 = vmatpush1.bf16.xpose.msra.mxu0 0
    %4332 = vmatprep.subr.bf16.mxu0 0
    %4333 = vmatpush1.bf16.xpose.msra.mxu0 0
    %4334 = vmatprep.subr.bf16.mxu0 0
    %4335 = vmatpush1.bf16.xpose.msra.mxu0 0
    %4336 = vmatprep.subr.bf16.mxu0 0
    %4337 = vmatpush1.bf16.xpose.msra.mxu0 0
    %4338 = vmatprep.subr.bf16.mxu0 0
    %4339 = vmatpush1.bf16.xpose.msra.mxu0 0
    %4340 = vmatprep.subr.bf16.mxu0 0
    %4341 = vmatpush1.bf16.xpose.msra.mxu0 0
    %4342 = vmatprep.subr.bf16.mxu0 0
    %4343 = vmatpush1.bf16.xpose.msra.mxu0 0
    %4344 = vmatprep.subr.bf16.mxu0 0
    %4345 = vmatpush1.bf16.xpose.msra.mxu0 0
    %4346 = vmatprep.subr.bf16.mxu0 0
    %4347 = vmatpush1.bf16.xpose.msra.mxu0 0
    %4348 = vmatprep.subr.bf16.mxu0 0
    %4349 = vmatpush1.bf16.xpose.msra.mxu0 0
    %4350 = vmatprep.mubr.bf16.mxu0 0
    %4351 = vmatmul.mubr.bf16.gmra.mrb[0].mxu0 %v4313
    %v4352 = vpop.f32.mrb[0].mxu0
    %v4353 = vadd.f32 0.0, %v4352
    %v4354 = vpop.f32.mrb[0].mxu0
    %v4355 = vpop.f32.mrb[0].mxu0
    %v4356 = vadd.f32 0.0, %v4355
    %v4357 = vpop.f32.mrb[0].mxu0
    %4358 = vdwg.mxu0
    %v4359 = vmul.f32 %v4304, 0.17677669
    %v4360 = vmul.f32 %v4307, 0.17677669
    %v4361 = vmul.f32 %v4353, 0.17677669
    %v4362 = vmul.f32 %v4356, 0.17677669
    %v4363 = vadd.f32 %v4359, %v183
    %v4364 = vadd.f32 %v4360, %v184
    %v4365 = vadd.f32 %v4361, %v185
    %v4366 = vadd.f32 %v4362, %v186
    %v4367 = vsel %vm935, %v4363, -inf
    %4368 = vmax.xlane.f32.xlu0 %v4367
    %v4369 = vpop.xlane.xlu0 %4368
    %v4370 = vsel %vm939, %v4364, -inf
    %4371 = vmax.xlane.f32.xlu0 %v4370
    %v4372 = vpop.xlane.xlu0 %4371
    %v4373 = vsel %vm935, %v4365, -inf
    %4374 = vmax.xlane.f32.xlu0 %v4373
    %v4375 = vpop.xlane.xlu0 %4374
    %v4376 = vsel %vm939, %v4366, -inf
    %4377 = vmax.xlane.f32.xlu0 %v4376
    %v4378 = vpop.xlane.xlu0 %4377
    %v4379 = vsub.f32 %v4363, %v4369
    %v4380 = vsub.f32 %v4364, %v4372
    %v4381 = vsub.f32 %v4365, %v4375
    %v4382 = vsub.f32 %v4366, %v4378
    %v4383 = vmul.f32 %v4379, 1.442695
    %v4384 = vpow.pop %v4383
    %v4385 = vmul.f32 %v4380, 1.442695
    %v4386 = vpow.pop %v4385
    %v4387 = vmul.f32 %v4381, 1.442695
    %v4388 = vpow.pop %v4387
    %v4389 = vmul.f32 %v4382, 1.442695
    %v4390 = vpow.pop %v4389
    %v4391 = vsel %vm935, %v4384, 0.0
    %4392 = vadd.xlane.f32.xlu0 %v4391
    %v4393 = vpop.xlane.xlu0 %4392
    %v4394 = vsel %vm939, %v4386, 0.0
    %4395 = vadd.xlane.f32.xlu0 %v4394
    %v4396 = vpop.xlane.xlu0 %4395
    %v4397 = vsel %vm935, %v4388, 0.0
    %4398 = vadd.xlane.f32.xlu0 %v4397
    %v4399 = vpop.xlane.xlu0 %4398
    %v4400 = vsel %vm939, %v4390, 0.0
    %4401 = vadd.xlane.f32.xlu0 %v4400
    %v4402 = vpop.xlane.xlu0 %4401
    %v4403 = vrcp.pop %v4393
    %v4404 = vrcp.pop %v4396
    %v4405 = vrcp.pop %v4399
    %v4406 = vrcp.pop %v4402
    %v4407 = vmul.f32 %v4384, %v4403
    %v4408 = vmul.f32 %v4386, %v4404
    %v4409 = vmul.f32 %v4388, %v4405
    %v4410 = vmul.f32 %v4390, %v4406
    %v4411 = vpack.c.bf16 %v4408, %v4407
    %v4412 = vpack.c.bf16 %v4410, %v4409
    %4413 = vrot.lane.b32.xlu0 %v3619, 32
    %v4414 = vpop.permute.xlu0 %4413
    %v4416 = vsel %vm935, %v4411, 0
    %v4419 = vsel %vm992, %v4414, 0
    %4421 = vmatprep.subr.bf16.mxu0 0
    %4422 = vmatpush1.bf16.msra.mxu0 %v4419
    %4423 = vmatprep.subr.bf16.mxu0 0
    %4424 = vmatpush1.bf16.msra.mxu0 0
    %4425 = vmatprep.subr.bf16.mxu0 0
    %4426 = vmatpush1.bf16.msra.mxu0 0
    %4427 = vmatprep.subr.bf16.mxu0 0
    %4428 = vmatpush1.bf16.msra.mxu0 0
    %4429 = vmatprep.subr.bf16.mxu0 0
    %4430 = vmatpush1.bf16.msra.mxu0 0
    %4431 = vmatprep.subr.bf16.mxu0 0
    %4432 = vmatpush1.bf16.msra.mxu0 0
    %4433 = vmatprep.subr.bf16.mxu0 0
    %4434 = vmatpush1.bf16.msra.mxu0 0
    %4435 = vmatprep.subr.bf16.mxu0 0
    %4436 = vmatpush1.bf16.msra.mxu0 0
    %4437 = vmatprep.subr.bf16.mxu0 0
    %4438 = vmatpush1.bf16.msra.mxu0 0
    %4439 = vmatprep.subr.bf16.mxu0 0
    %4440 = vmatpush1.bf16.msra.mxu0 0
    %4441 = vmatprep.subr.bf16.mxu0 0
    %4442 = vmatpush1.bf16.msra.mxu0 0
    %4443 = vmatprep.subr.bf16.mxu0 0
    %4444 = vmatpush1.bf16.msra.mxu0 0
    %4445 = vmatprep.subr.bf16.mxu0 0
    %4446 = vmatpush1.bf16.msra.mxu0 0
    %4447 = vmatprep.subr.bf16.mxu0 0
    %4448 = vmatpush1.bf16.msra.mxu0 0
    %4449 = vmatprep.subr.bf16.mxu0 0
    %4450 = vmatpush1.bf16.msra.mxu0 0
    %4451 = vmatprep.subr.bf16.mxu0 0
    %4452 = vmatpush1.bf16.msra.mxu0 0
    %4453 = vmatprep.mubr.bf16.mxu0 0
    %4454 = vmatmul.mubr.bf16.gmra.mrb[0].mxu0 %v4416
    %v4455 = vpop.f32.mrb[0].mxu0
    %v4456 = vadd.f32 0.0, %v4455
    %v4457 = vpop.f32.mrb[0].mxu0
    %v4458 = vpop.f32.mrb[0].mxu0
    %v4459 = vadd.f32 0.0, %v4458
    %v4460 = vpop.f32.mrb[0].mxu0
    %4461 = vdwg.mxu0
    %4462 = vrot.lane.b32.xlu0 %v3620, 32
    %v4463 = vpop.permute.xlu0 %4462
    %v4465 = vsel %vm935, %v4412, 0
    %v4468 = vsel %vm992, %v4463, 0
    %4470 = vmatprep.subr.bf16.mxu0 0
    %4471 = vmatpush1.bf16.msra.mxu0 %v4468
    %4472 = vmatprep.subr.bf16.mxu0 0
    %4473 = vmatpush1.bf16.msra.mxu0 0
    %4474 = vmatprep.subr.bf16.mxu0 0
    %4475 = vmatpush1.bf16.msra.mxu0 0
    %4476 = vmatprep.subr.bf16.mxu0 0
    %4477 = vmatpush1.bf16.msra.mxu0 0
    %4478 = vmatprep.subr.bf16.mxu0 0
    %4479 = vmatpush1.bf16.msra.mxu0 0
    %4480 = vmatprep.subr.bf16.mxu0 0
    %4481 = vmatpush1.bf16.msra.mxu0 0
    %4482 = vmatprep.subr.bf16.mxu0 0
    %4483 = vmatpush1.bf16.msra.mxu0 0
    %4484 = vmatprep.subr.bf16.mxu0 0
    %4485 = vmatpush1.bf16.msra.mxu0 0
    %4486 = vmatprep.subr.bf16.mxu0 0
    %4487 = vmatpush1.bf16.msra.mxu0 0
    %4488 = vmatprep.subr.bf16.mxu0 0
    %4489 = vmatpush1.bf16.msra.mxu0 0
    %4490 = vmatprep.subr.bf16.mxu0 0
    %4491 = vmatpush1.bf16.msra.mxu0 0
    %4492 = vmatprep.subr.bf16.mxu0 0
    %4493 = vmatpush1.bf16.msra.mxu0 0
    %4494 = vmatprep.subr.bf16.mxu0 0
    %4495 = vmatpush1.bf16.msra.mxu0 0
    %4496 = vmatprep.subr.bf16.mxu0 0
    %4497 = vmatpush1.bf16.msra.mxu0 0
    %4498 = vmatprep.subr.bf16.mxu0 0
    %4499 = vmatpush1.bf16.msra.mxu0 0
    %4500 = vmatprep.subr.bf16.mxu0 0
    %4501 = vmatpush1.bf16.msra.mxu0 0
    %4502 = vmatprep.mubr.bf16.mxu0 0
    %4503 = vmatmul.mubr.bf16.gmra.mrb[0].mxu0 %v4465
    %v4504 = vpop.f32.mrb[0].mxu0
    %v4505 = vadd.f32 0.0, %v4504
    %v4506 = vpop.f32.mrb[0].mxu0
    %v4507 = vpop.f32.mrb[0].mxu0
    %v4508 = vadd.f32 0.0, %v4507
    %v4509 = vpop.f32.mrb[0].mxu0
    %4510 = vdwg.mxu0
    %4515 = vrot.lane.b32.xlu0 %v3927, 32
    %v4516 = vpop.permute.xlu0 %4515
    %4517 = vrot.lane.b32.xlu0 %v3930, 32
    %v4518 = vpop.permute.xlu0 %4517
    %4519 = vrot.lane.b32.xlu0 %v3977, 32
    %v4520 = vpop.permute.xlu0 %4519
    %4521 = vrot.lane.b32.xlu0 %v3980, 32
    %v4522 = vpop.permute.xlu0 %4521
    %4531 = vrot.lane.b32.xlu0 %v4192, 64
    %v4532 = vpop.permute.xlu0 %4531
    %4533 = vrot.lane.b32.xlu0 %v4195, 64
    %v4534 = vpop.permute.xlu0 %4533
    %4535 = vrot.lane.b32.xlu0 %v4241, 64
    %v4536 = vpop.permute.xlu0 %4535
    %4537 = vrot.lane.b32.xlu0 %v4244, 64
    %v4538 = vpop.permute.xlu0 %4537
    %4547 = vrot.lane.b32.xlu0 %v4456, 96
    %v4548 = vpop.permute.xlu0 %4547
    %4549 = vrot.lane.b32.xlu0 %v4459, 96
    %v4550 = vpop.permute.xlu0 %4549
    %4551 = vrot.lane.b32.xlu0 %v4505, 96
    %v4552 = vpop.permute.xlu0 %4551
    %4553 = vrot.lane.b32.xlu0 %v4508, 96
    %v4554 = vpop.permute.xlu0 %4553
    %v4559 = vsel %vm832, %v3662, %v4516
    %v4560 = vsel %vm832, %v3665, %v4518
    %v4561 = vsel %vm832, %v3709, %v4520
    %v4562 = vsel %vm832, %v3712, %v4522
    %v4563 = vsel %vm1932, %v4559, %v4532
    %v4564 = vsel %vm1932, %v4560, %v4534
    %v4565 = vsel %vm1932, %v4561, %v4536
    %v4566 = vsel %vm1932, %v4562, %v4538
    %v4567 = vsel %vm1937, %v4563, %v4548
    %v4568 = vsel %vm1937, %v4564, %v4550
    %v4569 = vsel %vm1937, %v4565, %v4552
    %v4570 = vsel %vm1937, %v4566, %v4554
    %v4575 = vcombine.high %v4567, %v4567
    %v4576 = vcombine.high %v4569, %v4569
    %v4577 = vcombine.low %v4567, %v4575
    %v4578 = vcombine.low %v4568, %v4569
    %v4579 = vcombine.low %v4576, %v4570
    %v4583 = vpack.c.bf16 %v4578, %v4577
    %v4584 = vpack.c.bf16 %v4579, %v4579
    %v4586 = vlaneseq
    %v4587 = vshrl.u32 %v4586, 7
    %v4588 = vsub.s32 0, %v4587
    %v4589 = vrot.slane %v2868, %v4588
    %v4607 = vunpack.c.l.b16 %v2851
    %v4608 = vunpack.c.l.b16 %v2852
    %v4609 = vunpack.c.l.b16 %v2853
    %v4610 = vunpack.c.l.b16 %v2854
    %v4611 = vunpack.c.l.b16 %v2855
    %v4612 = vunpack.c.l.b16 %v2856
    %v4613 = vunpack.c.l.b16 %v2857
    %v4614 = vunpack.c.l.b16 %v2858
    %v4615 = vunpack.c.l.b16 %v2859
    %v4616 = vunpack.c.l.b16 %v2860
    %v4617 = vunpack.c.l.b16 %v2861
    %v4618 = vunpack.c.l.b16 %v2862
    %v4619 = vunpack.c.l.b16 %v2863
    %v4620 = vunpack.c.l.b16 %v2864
    %v4621 = vunpack.c.l.b16 %v2865
    %v4622 = vunpack.c.l.b16 %v2866
    %v4623 = vpack.c.b16 %v4608, %v4607
    %v4624 = vpack.c.b16 %v4610, %v4609
    %v4625 = vpack.c.b16 %v4612, %v4611
    %v4626 = vpack.c.b16 %v4614, %v4613
    %v4627 = vpack.c.b16 %v4616, %v4615
    %v4628 = vpack.c.b16 %v4618, %v4617
    %v4629 = vpack.c.b16 %v4620, %v4619
    %v4630 = vpack.c.b16 %v4622, %v4621
    %4639 = vmatprep.subr.bf16.mxu0 0
    %4640 = vmatpush1.bf16.msra.mxu0 %v4623
    %4641 = vmatprep.subr.bf16.mxu0 0
    %4642 = vmatpush1.bf16.msra.mxu0 %v4624
    %4643 = vmatprep.subr.bf16.mxu0 0
    %4644 = vmatpush1.bf16.msra.mxu0 %v4625
    %4645 = vmatprep.subr.bf16.mxu0 0
    %4646 = vmatpush1.bf16.msra.mxu0 %v4626
    %4647 = vmatprep.subr.bf16.mxu0 0
    %4648 = vmatpush1.bf16.msra.mxu0 %v4627
    %4649 = vmatprep.subr.bf16.mxu0 0
    %4650 = vmatpush1.bf16.msra.mxu0 %v4628
    %4651 = vmatprep.subr.bf16.mxu0 0
    %4652 = vmatpush1.bf16.msra.mxu0 %v4629
    %4653 = vmatprep.subr.bf16.mxu0 0
    %4654 = vmatpush1.bf16.msra.mxu0 %v4630
    %4655 = vmatprep.subr.bf16.mxu0 0
    %4656 = vmatpush1.bf16.msra.mxu0 0
    %4657 = vmatprep.subr.bf16.mxu0 0
    %4658 = vmatpush1.bf16.msra.mxu0 0
    %4659 = vmatprep.subr.bf16.mxu0 0
    %4660 = vmatpush1.bf16.msra.mxu0 0
    %4661 = vmatprep.subr.bf16.mxu0 0
    %4662 = vmatpush1.bf16.msra.mxu0 0
    %4663 = vmatprep.subr.bf16.mxu0 0
    %4664 = vmatpush1.bf16.msra.mxu0 0
    %4665 = vmatprep.subr.bf16.mxu0 0
    %4666 = vmatpush1.bf16.msra.mxu0 0
    %4667 = vmatprep.subr.bf16.mxu0 0
    %4668 = vmatpush1.bf16.msra.mxu0 0
    %4669 = vmatprep.subr.bf16.mxu0 0
    %4670 = vmatpush1.bf16.msra.mxu0 0
    %4671 = vmatprep.mubr.bf16.mxu0 0
    %4672 = vmatmul.mubr.bf16.gmra.mrb[0].mxu0 %v4583
    %v4673 = vpop.f32.mrb[0].mxu0
    %v4674 = vadd.f32 %v4589, %v4673
    %v4675 = vpop.f32.mrb[0].mxu0
    %v4676 = vpop.f32.mrb[0].mxu0
    %v4677 = vadd.f32 %v4589, %v4676
    %v4678 = vpop.f32.mrb[0].mxu0
    %4679 = vmatprep.mubr.bf16.mxu0 0
    %4680 = vmatmul.mubr.bf16.gmra.mrb[0].mxu0 %v4584
    %v4681 = vpop.f32.mrb[0].mxu0
    %v4682 = vadd.f32 %v4589, %v4681
    %v4683 = vpop.f32.mrb[0].mxu0
    %v4684 = vpop.f32.mrb[0].mxu0
    %v4685 = vpop.f32.mrb[0].mxu0
    %4686 = vdwg.mxu0
    %v4688 = vlaneseq
    %v4689 = vshrl.u32 %v4688, 7
    %v4690 = vsub.s32 0, %v4689
    %v4691 = vrot.slane %v2870, %v4690
    %v4693 = vcombine.high %v4691, %v4691
    %v4695 = vmul.f32 %v3139, %v4691
    %v4696 = vmul.f32 %v3140, %v4693
    %v4697 = vmul.f32 %v3141, %v4691
    %v4698 = vmul.f32 %v3142, %v4693
    %v4699 = vmul.f32 %v3143, %v4691
    %v4700 = vmul.f32 %v3144, %v4693
    %v4702 = vlaneseq
    %v4703 = vshrl.u32 %v4702, 7
    %v4704 = vsub.s32 0, %v4703
    %v4705 = vrot.slane %v2872, %v4704
    %v4707 = vcombine.high %v4705, %v4705
    %v4709 = vadd.f32 %v4695, %v4705
    %v4710 = vadd.f32 %v4696, %v4707
    %v4711 = vadd.f32 %v4697, %v4705
    %v4712 = vadd.f32 %v4698, %v4707
    %v4713 = vadd.f32 %v4699, %v4705
    %v4714 = vadd.f32 %v4700, %v4707
    %v4721 = vcombine.low %v4709, %v4710
    %v4722 = vcombine.low %v4711, %v4712
    %v4723 = vcombine.low %v4713, %v4714
    %v4727 = vpack.c.bf16 %v4722, %v4721
    %v4728 = vpack.c.bf16 %v4723, %v4723
    %v4730 = vlaneseq
    %v4731 = vshrl.u32 %v4730, 7
    %v4732 = vsub.s32 0, %v4731
    %v4733 = vrot.slane %v2907, %v4732
    %v4734 = vlaneseq
    %v4735 = vshrl.u32 %v4734, 7
    %v4736 = vsub.s32 1, %v4735
    %v4737 = vrot.slane %v2907, %v4736
    %v4738 = vlaneseq
    %v4739 = vshrl.u32 %v4738, 7
    %v4740 = vsub.s32 2, %v4739
    %v4741 = vrot.slane %v2907, %v4740
    %v4742 = vlaneseq
    %v4743 = vshrl.u32 %v4742, 7
    %v4744 = vsub.s32 3, %v4743
    %v4745 = vrot.slane %v2907, %v4744
    %v4782 = vunpack.c.l.b16 %v2874
    %v4783 = vunpack.c.h.b16 %v2874
    %v4784 = vunpack.c.l.b16 %v2875
    %v4785 = vunpack.c.h.b16 %v2875
    %v4786 = vunpack.c.l.b16 %v2876
    %v4787 = vunpack.c.h.b16 %v2876
    %v4788 = vunpack.c.l.b16 %v2877
    %v4789 = vunpack.c.h.b16 %v2877
    %v4790 = vunpack.c.l.b16 %v2878
    %v4791 = vunpack.c.h.b16 %v2878
    %v4792 = vunpack.c.l.b16 %v2879
    %v4793 = vunpack.c.h.b16 %v2879
    %v4794 = vunpack.c.l.b16 %v2880
    %v4795 = vunpack.c.h.b16 %v2880
    %v4796 = vunpack.c.l.b16 %v2881
    %v4797 = vunpack.c.h.b16 %v2881
    %v4798 = vunpack.c.l.b16 %v2882
    %v4799 = vunpack.c.h.b16 %v2882
    %v4800 = vunpack.c.l.b16 %v2883
    %v4801 = vunpack.c.h.b16 %v2883
    %v4802 = vunpack.c.l.b16 %v2884
    %v4803 = vunpack.c.h.b16 %v2884
    %v4804 = vunpack.c.l.b16 %v2885
    %v4805 = vunpack.c.h.b16 %v2885
    %v4806 = vunpack.c.l.b16 %v2886
    %v4807 = vunpack.c.h.b16 %v2886
    %v4808 = vunpack.c.l.b16 %v2887
    %v4809 = vunpack.c.h.b16 %v2887
    %v4810 = vunpack.c.l.b16 %v2888
    %v4811 = vunpack.c.h.b16 %v2888
    %v4812 = vunpack.c.l.b16 %v2889
    %v4813 = vunpack.c.h.b16 %v2889
    %v4814 = vunpack.c.l.b16 %v2890
    %v4815 = vunpack.c.h.b16 %v2890
    %v4816 = vunpack.c.l.b16 %v2891
    %v4817 = vunpack.c.h.b16 %v2891
    %v4818 = vunpack.c.l.b16 %v2892
    %v4819 = vunpack.c.h.b16 %v2892
    %v4820 = vunpack.c.l.b16 %v2893
    %v4821 = vunpack.c.h.b16 %v2893
    %v4822 = vunpack.c.l.b16 %v2894
    %v4823 = vunpack.c.h.b16 %v2894
    %v4824 = vunpack.c.l.b16 %v2895
    %v4825 = vunpack.c.h.b16 %v2895
    %v4826 = vunpack.c.l.b16 %v2896
    %v4827 = vunpack.c.h.b16 %v2896
    %v4828 = vunpack.c.l.b16 %v2897
    %v4829 = vunpack.c.h.b16 %v2897
    %v4830 = vunpack.c.l.b16 %v2898
    %v4831 = vunpack.c.h.b16 %v2898
    %v4832 = vunpack.c.l.b16 %v2899
    %v4833 = vunpack.c.h.b16 %v2899
    %v4834 = vunpack.c.l.b16 %v2900
    %v4835 = vunpack.c.h.b16 %v2900
    %v4836 = vunpack.c.l.b16 %v2901
    %v4837 = vunpack.c.h.b16 %v2901
    %v4838 = vunpack.c.l.b16 %v2902
    %v4839 = vunpack.c.h.b16 %v2902
    %v4840 = vunpack.c.l.b16 %v2903
    %v4841 = vunpack.c.h.b16 %v2903
    %v4842 = vunpack.c.l.b16 %v2904
    %v4843 = vunpack.c.h.b16 %v2904
    %v4844 = vunpack.c.l.b16 %v2905
    %v4845 = vunpack.c.h.b16 %v2905
    %v4846 = vpack.c.b16 %v4786, %v4782
    %v4847 = vpack.c.b16 %v4787, %v4783
    %v4848 = vpack.c.b16 %v4788, %v4784
    %v4849 = vpack.c.b16 %v4789, %v4785
    %v4850 = vpack.c.b16 %v4794, %v4790
    %v4851 = vpack.c.b16 %v4795, %v4791
    %v4852 = vpack.c.b16 %v4796, %v4792
    %v4853 = vpack.c.b16 %v4797, %v4793
    %v4854 = vpack.c.b16 %v4802, %v4798
    %v4855 = vpack.c.b16 %v4803, %v4799
    %v4856 = vpack.c.b16 %v4804, %v4800
    %v4857 = vpack.c.b16 %v4805, %v4801
    %v4858 = vpack.c.b16 %v4810, %v4806
    %v4859 = vpack.c.b16 %v4811, %v4807
    %v4860 = vpack.c.b16 %v4812, %v4808
    %v4861 = vpack.c.b16 %v4813, %v4809
    %v4862 = vpack.c.b16 %v4818, %v4814
    %v4863 = vpack.c.b16 %v4819, %v4815
    %v4864 = vpack.c.b16 %v4820, %v4816
    %v4865 = vpack.c.b16 %v4821, %v4817
    %v4866 = vpack.c.b16 %v4826, %v4822
    %v4867 = vpack.c.b16 %v4827, %v4823
    %v4868 = vpack.c.b16 %v4828, %v4824
    %v4869 = vpack.c.b16 %v4829, %v4825
    %v4870 = vpack.c.b16 %v4834, %v4830
    %v4871 = vpack.c.b16 %v4835, %v4831
    %v4872 = vpack.c.b16 %v4836, %v4832
    %v4873 = vpack.c.b16 %v4837, %v4833
    %v4874 = vpack.c.b16 %v4842, %v4838
    %v4875 = vpack.c.b16 %v4843, %v4839
    %v4876 = vpack.c.b16 %v4844, %v4840
    %v4877 = vpack.c.b16 %v4845, %v4841
    %4910 = vmatprep.subr.bf16.mxu0 %v4847
    %4911 = vmatpush1.bf16.msra.mxu0 %v4846
    %4912 = vmatprep.subr.bf16.mxu0 %v4851
    %4913 = vmatpush1.bf16.msra.mxu0 %v4850
    %4914 = vmatprep.subr.bf16.mxu0 %v4855
    %4915 = vmatpush1.bf16.msra.mxu0 %v4854
    %4916 = vmatprep.subr.bf16.mxu0 %v4859
    %4917 = vmatpush1.bf16.msra.mxu0 %v4858
    %4918 = vmatprep.subr.bf16.mxu0 %v4863
    %4919 = vmatpush1.bf16.msra.mxu0 %v4862
    %4920 = vmatprep.subr.bf16.mxu0 %v4867
    %4921 = vmatpush1.bf16.msra.mxu0 %v4866
    %4922 = vmatprep.subr.bf16.mxu0 %v4871
    %4923 = vmatpush1.bf16.msra.mxu0 %v4870
    %4924 = vmatprep.subr.bf16.mxu0 %v4875
    %4925 = vmatpush1.bf16.msra.mxu0 %v4874
    %4926 = vmatprep.subr.bf16.mxu0 0
    %4927 = vmatpush1.bf16.msra.mxu0 0
    %4928 = vmatprep.subr.bf16.mxu0 0
    %4929 = vmatpush1.bf16.msra.mxu0 0
    %4930 = vmatprep.subr.bf16.mxu0 0
    %4931 = vmatpush1.bf16.msra.mxu0 0
    %4932 = vmatprep.subr.bf16.mxu0 0
    %4933 = vmatpush1.bf16.msra.mxu0 0
    %4934 = vmatprep.subr.bf16.mxu0 0
    %4935 = vmatpush1.bf16.msra.mxu0 0
    %4936 = vmatprep.subr.bf16.mxu0 0
    %4937 = vmatpush1.bf16.msra.mxu0 0
    %4938 = vmatprep.subr.bf16.mxu0 0
    %4939 = vmatpush1.bf16.msra.mxu0 0
    %4940 = vmatprep.subr.bf16.mxu0 0
    %4941 = vmatpush1.bf16.msra.mxu0 0
    %4942 = vmatprep.mubr.bf16.mxu0 0
    %4943 = vmatmul.mubr.bf16.gmra.mrb[0].mxu0 %v4727
    %v4944 = vpop.f32.mrb[0].mxu0
    %v4945 = vadd.f32 %v4733, %v4944
    %v4946 = vpop.f32.mrb[0].mxu0
    %v4947 = vadd.f32 %v4737, %v4946
    %v4948 = vpop.f32.mrb[0].mxu0
    %v4949 = vadd.f32 %v4733, %v4948
    %v4950 = vpop.f32.mrb[0].mxu0
    %v4951 = vadd.f32 %v4737, %v4950
    %4952 = vmatprep.mubr.bf16.mxu0 0
    %4953 = vmatmul.mubr.bf16.gmra.mrb[0].mxu0 %v4728
    %v4954 = vpop.f32.mrb[0].mxu0
    %v4955 = vadd.f32 %v4733, %v4954
    %v4956 = vpop.f32.mrb[0].mxu0
    %v4957 = vadd.f32 %v4737, %v4956
    %v4958 = vpop.f32.mrb[0].mxu0
    %v4959 = vpop.f32.mrb[0].mxu0
    %4960 = vdwg.mxu0
    %4961 = vmatprep.subr.bf16.mxu0 %v4849
    %4962 = vmatpush1.bf16.msra.mxu0 %v4848
    %4963 = vmatprep.subr.bf16.mxu0 %v4853
    %4964 = vmatpush1.bf16.msra.mxu0 %v4852
    %4965 = vmatprep.subr.bf16.mxu0 %v4857
    %4966 = vmatpush1.bf16.msra.mxu0 %v4856
    %4967 = vmatprep.subr.bf16.mxu0 %v4861
    %4968 = vmatpush1.bf16.msra.mxu0 %v4860
    %4969 = vmatprep.subr.bf16.mxu0 %v4865
    %4970 = vmatpush1.bf16.msra.mxu0 %v4864
    %4971 = vmatprep.subr.bf16.mxu0 %v4869
    %4972 = vmatpush1.bf16.msra.mxu0 %v4868
    %4973 = vmatprep.subr.bf16.mxu0 %v4873
    %4974 = vmatpush1.bf16.msra.mxu0 %v4872
    %4975 = vmatprep.subr.bf16.mxu0 %v4877
    %4976 = vmatpush1.bf16.msra.mxu0 %v4876
    %4977 = vmatprep.subr.bf16.mxu0 0
    %4978 = vmatpush1.bf16.msra.mxu0 0
    %4979 = vmatprep.subr.bf16.mxu0 0
    %4980 = vmatpush1.bf16.msra.mxu0 0
    %4981 = vmatprep.subr.bf16.mxu0 0
    %4982 = vmatpush1.bf16.msra.mxu0 0
    %4983 = vmatprep.subr.bf16.mxu0 0
    %4984 = vmatpush1.bf16.msra.mxu0 0
    %4985 = vmatprep.subr.bf16.mxu0 0
    %4986 = vmatpush1.bf16.msra.mxu0 0
    %4987 = vmatprep.subr.bf16.mxu0 0
    %4988 = vmatpush1.bf16.msra.mxu0 0
    %4989 = vmatprep.subr.bf16.mxu0 0
    %4990 = vmatpush1.bf16.msra.mxu0 0
    %4991 = vmatprep.subr.bf16.mxu0 0
    %4992 = vmatpush1.bf16.msra.mxu0 0
    %4993 = vmatprep.mubr.bf16.mxu0 0
    %4994 = vmatmul.mubr.bf16.gmra.mrb[0].mxu0 %v4727
    %v4995 = vpop.f32.mrb[0].mxu0
    %v4996 = vadd.f32 %v4741, %v4995
    %v4997 = vpop.f32.mrb[0].mxu0
    %v4998 = vadd.f32 %v4745, %v4997
    %v4999 = vpop.f32.mrb[0].mxu0
    %v5000 = vadd.f32 %v4741, %v4999
    %v5001 = vpop.f32.mrb[0].mxu0
    %v5002 = vadd.f32 %v4745, %v5001
    %5003 = vmatprep.mubr.bf16.mxu0 0
    %5004 = vmatmul.mubr.bf16.gmra.mrb[0].mxu0 %v4728
    %v5005 = vpop.f32.mrb[0].mxu0
    %v5006 = vadd.f32 %v4741, %v5005
    %v5007 = vpop.f32.mrb[0].mxu0
    %v5008 = vadd.f32 %v4745, %v5007
    %v5009 = vpop.f32.mrb[0].mxu0
    %v5010 = vpop.f32.mrb[0].mxu0
    %5011 = vdwg.mxu0
    %v5012 = vmul.f32 %v4945, %v4945
    %v5013 = vmul.f32 %v4947, %v4947
    %v5014 = vmul.f32 %v4996, %v4996
    %v5015 = vmul.f32 %v4998, %v4998
    %v5016 = vmul.f32 %v4949, %v4949
    %v5017 = vmul.f32 %v4951, %v4951
    %v5018 = vmul.f32 %v5000, %v5000
    %v5019 = vmul.f32 %v5002, %v5002
    %v5020 = vmul.f32 %v4955, %v4955
    %v5021 = vmul.f32 %v4957, %v4957
    %v5022 = vmul.f32 %v5006, %v5006
    %v5023 = vmul.f32 %v5008, %v5008
    %v5024 = vmul.f32 %v4945, %v5012
    %v5025 = vmul.f32 %v4947, %v5013
    %v5026 = vmul.f32 %v4996, %v5014
    %v5027 = vmul.f32 %v4998, %v5015
    %v5028 = vmul.f32 %v4949, %v5016
    %v5029 = vmul.f32 %v4951, %v5017
    %v5030 = vmul.f32 %v5000, %v5018
    %v5031 = vmul.f32 %v5002, %v5019
    %v5032 = vmul.f32 %v4955, %v5020
    %v5033 = vmul.f32 %v4957, %v5021
    %v5034 = vmul.f32 %v5006, %v5022
    %v5035 = vmul.f32 %v5008, %v5023
    %v5036 = vmul.f32 %v5024, 0.044715
    %v5037 = vmul.f32 %v5025, 0.044715
    %v5038 = vmul.f32 %v5026, 0.044715
    %v5039 = vmul.f32 %v5027, 0.044715
    %v5040 = vmul.f32 %v5028, 0.044715
    %v5041 = vmul.f32 %v5029, 0.044715
    %v5042 = vmul.f32 %v5030, 0.044715
    %v5043 = vmul.f32 %v5031, 0.044715
    %v5044 = vmul.f32 %v5032, 0.044715
    %v5045 = vmul.f32 %v5033, 0.044715
    %v5046 = vmul.f32 %v5034, 0.044715
    %v5047 = vmul.f32 %v5035, 0.044715
    %v5048 = vadd.f32 %v4945, %v5036
    %v5049 = vadd.f32 %v4947, %v5037
    %v5050 = vadd.f32 %v4996, %v5038
    %v5051 = vadd.f32 %v4998, %v5039
    %v5052 = vadd.f32 %v4949, %v5040
    %v5053 = vadd.f32 %v4951, %v5041
    %v5054 = vadd.f32 %v5000, %v5042
    %v5055 = vadd.f32 %v5002, %v5043
    %v5056 = vadd.f32 %v4955, %v5044
    %v5057 = vadd.f32 %v4957, %v5045
    %v5058 = vadd.f32 %v5006, %v5046
    %v5059 = vadd.f32 %v5008, %v5047
    %v5060 = vmul.f32 %v5048, 0.7978846
    %v5061 = vmul.f32 %v5049, 0.7978846
    %v5062 = vmul.f32 %v5050, 0.7978846
    %v5063 = vmul.f32 %v5051, 0.7978846
    %v5064 = vmul.f32 %v5052, 0.7978846
    %v5065 = vmul.f32 %v5053, 0.7978846
    %v5066 = vmul.f32 %v5054, 0.7978846
    %v5067 = vmul.f32 %v5055, 0.7978846
    %v5068 = vmul.f32 %v5056, 0.7978846
    %v5069 = vmul.f32 %v5057, 0.7978846
    %v5070 = vmul.f32 %v5058, 0.7978846
    %v5071 = vmul.f32 %v5059, 0.7978846
    %v5072 = vtanh.pop %v5060
    %v5073 = vtanh.pop %v5061
    %v5074 = vtanh.pop %v5062
    %v5075 = vtanh.pop %v5063
    %v5076 = vtanh.pop %v5064
    %v5077 = vtanh.pop %v5065
    %v5078 = vtanh.pop %v5066
    %v5079 = vtanh.pop %v5067
    %v5080 = vtanh.pop %v5068
    %v5081 = vtanh.pop %v5069
    %v5082 = vtanh.pop %v5070
    %v5083 = vtanh.pop %v5071
    %v5084 = vadd.f32 %v5072, 1.0
    %v5085 = vadd.f32 %v5073, 1.0
    %v5086 = vadd.f32 %v5074, 1.0
    %v5087 = vadd.f32 %v5075, 1.0
    %v5088 = vadd.f32 %v5076, 1.0
    %v5089 = vadd.f32 %v5077, 1.0
    %v5090 = vadd.f32 %v5078, 1.0
    %v5091 = vadd.f32 %v5079, 1.0
    %v5092 = vadd.f32 %v5080, 1.0
    %v5093 = vadd.f32 %v5081, 1.0
    %v5094 = vadd.f32 %v5082, 1.0
    %v5095 = vadd.f32 %v5083, 1.0
    %v5096 = vmul.f32 %v5084, 0.5
    %v5097 = vmul.f32 %v5085, 0.5
    %v5098 = vmul.f32 %v5086, 0.5
    %v5099 = vmul.f32 %v5087, 0.5
    %v5100 = vmul.f32 %v5088, 0.5
    %v5101 = vmul.f32 %v5089, 0.5
    %v5102 = vmul.f32 %v5090, 0.5
    %v5103 = vmul.f32 %v5091, 0.5
    %v5104 = vmul.f32 %v5092, 0.5
    %v5105 = vmul.f32 %v5093, 0.5
    %v5106 = vmul.f32 %v5094, 0.5
    %v5107 = vmul.f32 %v5095, 0.5
    %v5108 = vmul.f32 %v4945, %v5096
    %v5109 = vmul.f32 %v4947, %v5097
    %v5110 = vmul.f32 %v4996, %v5098
    %v5111 = vmul.f32 %v4998, %v5099
    %v5112 = vmul.f32 %v4949, %v5100
    %v5113 = vmul.f32 %v4951, %v5101
    %v5114 = vmul.f32 %v5000, %v5102
    %v5115 = vmul.f32 %v5002, %v5103
    %v5116 = vmul.f32 %v4955, %v5104
    %v5117 = vmul.f32 %v4957, %v5105
    %v5118 = vmul.f32 %v5006, %v5106
    %v5119 = vmul.f32 %v5008, %v5107
    %v5120 = vpack.c.bf16 %v5112, %v5108
    %v5121 = vpack.c.bf16 %v5113, %v5109
    %v5122 = vpack.c.bf16 %v5114, %v5110
    %v5123 = vpack.c.bf16 %v5115, %v5111
    %v5124 = vpack.c.bf16 %v5116, %v5116
    %v5125 = vpack.c.bf16 %v5117, %v5117
    %v5126 = vpack.c.bf16 %v5118, %v5118
    %v5127 = vpack.c.bf16 %v5119, %v5119
    %v5129 = vlaneseq
    %v5130 = vshrl.u32 %v5129, 7
    %v5131 = vsub.s32 0, %v5130
    %v5132 = vrot.slane %v2974, %v5131
    %v5198 = vunpack.c.l.b16 %v2909
    %v5199 = vunpack.c.l.b16 %v2910
    %v5200 = vunpack.c.l.b16 %v2911
    %v5201 = vunpack.c.l.b16 %v2912
    %v5202 = vunpack.c.l.b16 %v2913
    %v5203 = vunpack.c.l.b16 %v2914
    %v5204 = vunpack.c.l.b16 %v2915
    %v5205 = vunpack.c.l.b16 %v2916
    %v5206 = vunpack.c.l.b16 %v2917
    %v5207 = vunpack.c.l.b16 %v2918
    %v5208 = vunpack.c.l.b16 %v2919
    %v5209 = vunpack.c.l.b16 %v2920
    %v5210 = vunpack.c.l.b16 %v2921
    %v5211 = vunpack.c.l.b16 %v2922
    %v5212 = vunpack.c.l.b16 %v2923
    %v5213 = vunpack.c.l.b16 %v2924
    %v5214 = vunpack.c.l.b16 %v2925
    %v5215 = vunpack.c.l.b16 %v2926
    %v5216 = vunpack.c.l.b16 %v2927
    %v5217 = vunpack.c.l.b16 %v2928
    %v5218 = vunpack.c.l.b16 %v2929
    %v5219 = vunpack.c.l.b16 %v2930
    %v5220 = vunpack.c.l.b16 %v2931
    %v5221 = vunpack.c.l.b16 %v2932
    %v5222 = vunpack.c.l.b16 %v2933
    %v5223 = vunpack.c.l.b16 %v2934
    %v5224 = vunpack.c.l.b16 %v2935
    %v5225 = vunpack.c.l.b16 %v2936
    %v5226 = vunpack.c.l.b16 %v2937
    %v5227 = vunpack.c.l.b16 %v2938
    %v5228 = vunpack.c.l.b16 %v2939
    %v5229 = vunpack.c.l.b16 %v2940
    %v5230 = vunpack.c.l.b16 %v2941
    %v5231 = vunpack.c.l.b16 %v2942
    %v5232 = vunpack.c.l.b16 %v2943
    %v5233 = vunpack.c.l.b16 %v2944
    %v5234 = vunpack.c.l.b16 %v2945
    %v5235 = vunpack.c.l.b16 %v2946
    %v5236 = vunpack.c.l.b16 %v2947
    %v5237 = vunpack.c.l.b16 %v2948
    %v5238 = vunpack.c.l.b16 %v2949
    %v5239 = vunpack.c.l.b16 %v2950
    %v5240 = vunpack.c.l.b16 %v2951
    %v5241 = vunpack.c.l.b16 %v2952
    %v5242 = vunpack.c.l.b16 %v2953
    %v5243 = vunpack.c.l.b16 %v2954
    %v5244 = vunpack.c.l.b16 %v2955
    %v5245 = vunpack.c.l.b16 %v2956
    %v5246 = vunpack.c.l.b16 %v2957
    %v5247 = vunpack.c.l.b16 %v2958
    %v5248 = vunpack.c.l.b16 %v2959
    %v5249 = vunpack.c.l.b16 %v2960
    %v5250 = vunpack.c.l.b16 %v2961
    %v5251 = vunpack.c.l.b16 %v2962
    %v5252 = vunpack.c.l.b16 %v2963
    %v5253 = vunpack.c.l.b16 %v2964
    %v5254 = vunpack.c.l.b16 %v2965
    %v5255 = vunpack.c.l.b16 %v2966
    %v5256 = vunpack.c.l.b16 %v2967
    %v5257 = vunpack.c.l.b16 %v2968
    %v5258 = vunpack.c.l.b16 %v2969
    %v5259 = vunpack.c.l.b16 %v2970
    %v5260 = vunpack.c.l.b16 %v2971
    %v5261 = vunpack.c.l.b16 %v2972
    %v5262 = vpack.c.b16 %v5199, %v5198
    %v5263 = vpack.c.b16 %v5201, %v5200
    %v5264 = vpack.c.b16 %v5203, %v5202
    %v5265 = vpack.c.b16 %v5205, %v5204
    %v5266 = vpack.c.b16 %v5207, %v5206
    %v5267 = vpack.c.b16 %v5209, %v5208
    %v5268 = vpack.c.b16 %v5211, %v5210
    %v5269 = vpack.c.b16 %v5213, %v5212
    %v5270 = vpack.c.b16 %v5215, %v5214
    %v5271 = vpack.c.b16 %v5217, %v5216
    %v5272 = vpack.c.b16 %v5219, %v5218
    %v5273 = vpack.c.b16 %v5221, %v5220
    %v5274 = vpack.c.b16 %v5223, %v5222
    %v5275 = vpack.c.b16 %v5225, %v5224
    %v5276 = vpack.c.b16 %v5227, %v5226
    %v5277 = vpack.c.b16 %v5229, %v5228
    %v5278 = vpack.c.b16 %v5231, %v5230
    %v5279 = vpack.c.b16 %v5233, %v5232
    %v5280 = vpack.c.b16 %v5235, %v5234
    %v5281 = vpack.c.b16 %v5237, %v5236
    %v5282 = vpack.c.b16 %v5239, %v5238
    %v5283 = vpack.c.b16 %v5241, %v5240
    %v5284 = vpack.c.b16 %v5243, %v5242
    %v5285 = vpack.c.b16 %v5245, %v5244
    %v5286 = vpack.c.b16 %v5247, %v5246
    %v5287 = vpack.c.b16 %v5249, %v5248
    %v5288 = vpack.c.b16 %v5251, %v5250
    %v5289 = vpack.c.b16 %v5253, %v5252
    %v5290 = vpack.c.b16 %v5255, %v5254
    %v5291 = vpack.c.b16 %v5257, %v5256
    %v5292 = vpack.c.b16 %v5259, %v5258
    %v5293 = vpack.c.b16 %v5261, %v5260
    %5326 = vmatprep.subr.bf16.mxu0 0
    %5327 = vmatpush1.bf16.msra.mxu0 %v5262
    %5328 = vmatprep.subr.bf16.mxu0 0
    %5329 = vmatpush1.bf16.msra.mxu0 %v5263
    %5330 = vmatprep.subr.bf16.mxu0 0
    %5331 = vmatpush1.bf16.msra.mxu0 %v5264
    %5332 = vmatprep.subr.bf16.mxu0 0
    %5333 = vmatpush1.bf16.msra.mxu0 %v5265
    %5334 = vmatprep.subr.bf16.mxu0 0
    %5335 = vmatpush1.bf16.msra.mxu0 %v5266
    %5336 = vmatprep.subr.bf16.mxu0 0
    %5337 = vmatpush1.bf16.msra.mxu0 %v5267
    %5338 = vmatprep.subr.bf16.mxu0 0
    %5339 = vmatpush1.bf16.msra.mxu0 %v5268
    %5340 = vmatprep.subr.bf16.mxu0 0
    %5341 = vmatpush1.bf16.msra.mxu0 %v5269
    %5342 = vmatprep.subr.bf16.mxu0 0
    %5343 = vmatpush1.bf16.msra.mxu0 %v5270
    %5344 = vmatprep.subr.bf16.mxu0 0
    %5345 = vmatpush1.bf16.msra.mxu0 %v5271
    %5346 = vmatprep.subr.bf16.mxu0 0
    %5347 = vmatpush1.bf16.msra.mxu0 %v5272
    %5348 = vmatprep.subr.bf16.mxu0 0
    %5349 = vmatpush1.bf16.msra.mxu0 %v5273
    %5350 = vmatprep.subr.bf16.mxu0 0
    %5351 = vmatpush1.bf16.msra.mxu0 %v5274
    %5352 = vmatprep.subr.bf16.mxu0 0
    %5353 = vmatpush1.bf16.msra.mxu0 %v5275
    %5354 = vmatprep.subr.bf16.mxu0 0
    %5355 = vmatpush1.bf16.msra.mxu0 %v5276
    %5356 = vmatprep.subr.bf16.mxu0 0
    %5357 = vmatpush1.bf16.msra.mxu0 %v5277
    %5358 = vmatprep.mubr.bf16.mxu0 %v5121
    %5359 = vmatmul.mubr.bf16.gmra.mrb[0].mxu0 %v5120
    %v5360 = vpop.f32.mrb[0].mxu0
    %v5361 = vadd.f32 %v5132, %v5360
    %v5362 = vpop.f32.mrb[0].mxu0
    %v5363 = vpop.f32.mrb[0].mxu0
    %v5364 = vadd.f32 %v5132, %v5363
    %v5365 = vpop.f32.mrb[0].mxu0
    %5366 = vmatprep.mubr.bf16.mxu0 %v5125
    %5367 = vmatmul.mubr.bf16.gmra.mrb[0].mxu0 %v5124
    %v5368 = vpop.f32.mrb[0].mxu0
    %v5369 = vadd.f32 %v5132, %v5368
    %v5370 = vpop.f32.mrb[0].mxu0
    %v5371 = vpop.f32.mrb[0].mxu0
    %v5372 = vpop.f32.mrb[0].mxu0
    %5373 = vdwg.mxu0
    %5374 = vmatprep.subr.bf16.mxu0 0
    %5375 = vmatpush1.bf16.msra.mxu0 %v5278
    %5376 = vmatprep.subr.bf16.mxu0 0
    %5377 = vmatpush1.bf16.msra.mxu0 %v5279
    %5378 = vmatprep.subr.bf16.mxu0 0
    %5379 = vmatpush1.bf16.msra.mxu0 %v5280
    %5380 = vmatprep.subr.bf16.mxu0 0
    %5381 = vmatpush1.bf16.msra.mxu0 %v5281
    %5382 = vmatprep.subr.bf16.mxu0 0
    %5383 = vmatpush1.bf16.msra.mxu0 %v5282
    %5384 = vmatprep.subr.bf16.mxu0 0
    %5385 = vmatpush1.bf16.msra.mxu0 %v5283
    %5386 = vmatprep.subr.bf16.mxu0 0
    %5387 = vmatpush1.bf16.msra.mxu0 %v5284
    %5388 = vmatprep.subr.bf16.mxu0 0
    %5389 = vmatpush1.bf16.msra.mxu0 %v5285
    %5390 = vmatprep.subr.bf16.mxu0 0
    %5391 = vmatpush1.bf16.msra.mxu0 %v5286
    %5392 = vmatprep.subr.bf16.mxu0 0
    %5393 = vmatpush1.bf16.msra.mxu0 %v5287
    %5394 = vmatprep.subr.bf16.mxu0 0
    %5395 = vmatpush1.bf16.msra.mxu0 %v5288
    %5396 = vmatprep.subr.bf16.mxu0 0
    %5397 = vmatpush1.bf16.msra.mxu0 %v5289
    %5398 = vmatprep.subr.bf16.mxu0 0
    %5399 = vmatpush1.bf16.msra.mxu0 %v5290
    %5400 = vmatprep.subr.bf16.mxu0 0
    %5401 = vmatpush1.bf16.msra.mxu0 %v5291
    %5402 = vmatprep.subr.bf16.mxu0 0
    %5403 = vmatpush1.bf16.msra.mxu0 %v5292
    %5404 = vmatprep.subr.bf16.mxu0 0
    %5405 = vmatpush1.bf16.msra.mxu0 %v5293
    %5406 = vmatprep.mubr.bf16.mxu0 %v5123
    %5407 = vmatmul.mubr.bf16.gmra.mrb[0].mxu0 %v5122
    %v5408 = vpop.f32.mrb[0].mxu0
    %v5409 = vadd.f32 %v5361, %v5408
    %v5410 = vpop.f32.mrb[0].mxu0
    %v5411 = vpop.f32.mrb[0].mxu0
    %v5412 = vadd.f32 %v5364, %v5411
    %v5413 = vpop.f32.mrb[0].mxu0
    %5414 = vmatprep.mubr.bf16.mxu0 %v5127
    %5415 = vmatmul.mubr.bf16.gmra.mrb[0].mxu0 %v5126
    %v5416 = vpop.f32.mrb[0].mxu0
    %v5417 = vadd.f32 %v5369, %v5416
    %v5418 = vpop.f32.mrb[0].mxu0
    %v5419 = vpop.f32.mrb[0].mxu0
    %v5420 = vpop.f32.mrb[0].mxu0
    %5421 = vdwg.mxu0
    %v5422 = vadd.f32 %v4674, %v5409
    %v5423 = vadd.f32 %v4677, %v5412
    %v5424 = vadd.f32 %v4682, %v5417
    %v5428 = vcombine.high %v5422, %v5422
    %v5429 = vcombine.high %v5423, %v5423
    %v5430 = vcombine.high %v5424, %v5424
    %v5432 = vcombine.low %v5422, %v5428
    %v5433 = vcombine.low %v5429, %v5424
    %v5436 = vadd.f32 %v2807, %v5432
    %v5437 = vadd.f32 %v2808, %v5423
    %v5438 = vadd.f32 %v2809, %v5433
    %v5439 = vadd.f32 %v2810, %v5430
    %5440 = vst [vmem:[%s15] sm:$0xff] %v5436
    %5441 = vst [vmem:[%s15 + $0x8] sm:$0xf] %v5437
    %5442 = vst [vmem:[%s15 + $0x10] sm:$0xff] %v5438
    %5443 = vst [vmem:[%s15 + $0x18] sm:$0xf] %v5439
    // Predicated region
    $region98: #{unified_tinyvla_forward.4} parent=1 // pred_check
      _
    $region99: #{unified_tinyvla_forward.4} parent=1 // pred_check_branch
      %5445 = sbr.rel (0) target = $region101
    $region100: #{unified_tinyvla_forward.4} parent=1 // pred_region
      _
    $region101: #{unified_tinyvla_forward.4} parent=1 // pred_fallthru
      _
    // Predicated region
    $region102: #{unified_tinyvla_forward.4} parent=1 // pred_check
      _
    $region103: #{unified_tinyvla_forward.4} parent=1 // pred_check_branch
      %5447 = sbr.rel (0) target = $region105
    $region104: #{unified_tinyvla_forward.4} parent=1 // pred_region
      _
    $region105: #{unified_tinyvla_forward.4} parent=1 // pred_fallthru
      _
    %5448 = vsyncpa [#allocation3], 1
    %5449 = vsyncpa [#allocation5], 1
    %5450 = vsyncpa [#allocation8], 1
    %5451 = vsyncpa [#allocation11], 1
    %5452 = vsyncpa [#allocation14], 1

</llo_original>
